<compile_context>
chip_gen: v5e
topology: v5e:2x2
jax: 0.10.0
libtpu: 0.0.40
codegen_flags: <defaults>
</compile_context>

<pallas_src>
import functools
import math

import jax
import jax.numpy as jnp
from jax.experimental import pallas as pl
from jax.experimental.pallas import tpu as pltpu

EPS = 1e-5


# --------------------------- per-generation plan -----------------------------

@functools.lru_cache(maxsize=None)
def _chip_plan():
    """VMEM budget + tile targets derived from the actual chip.

    v5e/v6e have 128 MiB VMEM -> big tiles and a ~112 MiB scoped cap;
    v7x has 64 MiB per TensorCore -> conservative tiles, ~0.7x capacity cap.
    """
    vmem_cap = 64 * 1024 * 1024                    # conservative fallback (v7x)
    try:
        info = pltpu.get_tpu_info()
        cap = getattr(info, "vmem_capacity_bytes", None)
        if cap:
            vmem_cap = int(cap)
    except Exception:
        pass
    if vmem_cap >= 100 * 1024 * 1024:              # v5e / v6e (128 MiB VMEM)
        return {"vmem_limit": min(int(vmem_cap * 0.75), 112 * 1024 * 1024),
                "tm": 1024, "tn": 1024, "tk": 1024}
    return {"vmem_limit": int(vmem_cap * 0.70),    # v7x (64 MiB / TensorCore)
            "tm": 512, "tn": 512, "tk": 512}


def _tile_sub(dim, target):
    """Tile for a second-minor (sublane) dim: multiple of 8 dividing dim, else full."""
    if dim % 8 != 0:
        return dim
    t = (min(dim, target) // 8) * 8
    while t >= 8:
        if dim % t == 0:
            return t
        t -= 8
    return dim


def _tile_last(dim, target):
    """Tile for a minor (lane) dim: divisor of dim, preferring 256-aligned
    (v6e/v7x MXU is 256-wide), falling back to 128-aligned, else the full dim."""
    if dim % 128 != 0:
        return dim
    target = max(target, 128)
    for step in (256, 128):
        t = (min(dim, target) // step) * step
        while t >= step:
            if dim % t == 0:
                return t
            t -= step
    return dim


def _check_fits(name, est_bytes, budget):
    if est_bytes > budget:
        raise ValueError(
            f"{name}: estimated VMEM {est_bytes / 2**20:.1f} MiB exceeds the "
            f"{budget / 2**20:.1f} MiB budget even at the smallest legal tiling; "
            "pad the row dim to a multiple of 8 or lower the tile targets.")


# ------------------------------ Pallas kernels -------------------------------

def _ln_linear_kernel(x_ref, g_ref, bln_ref, w_ref, b_ref, o_ref, xn_ref, *,
                      quickgelu):
    """Fused LayerNorm(x) @ W + b (+ optional QuickGELU).

    LayerNorm (fp32, fp16-safe) is computed ONCE per row tile at j == 0 and
    cached in a bf16 VMEM scratch, then reused for every N tile (grid axis j is
    'arbitrary' so the cache is never split across cores).
    """
    @pl.when(pl.program_id(1) == 0)
    def _():
        x = x_ref[...].astype(jnp.float32)
        mean = jnp.mean(x, axis=-1, keepdims=True)
        xc = x - mean
        var = jnp.mean(xc * xc, axis=-1, keepdims=True)
        xn = xc * jax.lax.rsqrt(var + EPS)
        xn = xn * g_ref[...].astype(jnp.float32) + bln_ref[...].astype(jnp.float32)
        xn_ref[...] = xn.astype(jnp.bfloat16)

    y = jnp.dot(xn_ref[...], w_ref[...], preferred_element_type=jnp.float32)
    y = y + b_ref[...].astype(jnp.float32)
    if quickgelu:
        # QuickGELU: x * sigmoid(1.702 x) == x * 0.5 * (1 + tanh(0.851 x))
        # -> a single EUP transcendental instead of exp + reciprocal.
        y = y * (0.5 * (jnp.tanh(0.851 * y) + 1.0))
    o_ref[...] = y.astype(o_ref.dtype)


def _linear_residual_kernel(x_ref, w_ref, b_ref, r_ref, o_ref, acc_ref):
    """Tiled x @ W with K-reduction accumulator; bias + residual fused into the
    epilogue of the last K step."""
    @pl.when(pl.program_id(2) == 0)
    def _():
        acc_ref[...] = jnp.zeros_like(acc_ref)

    acc_ref[...] += jnp.dot(x_ref[...].astype(jnp.bfloat16), w_ref[...],
                            preferred_element_type=jnp.float32)

    @pl.when(pl.program_id(2) == pl.num_programs(2) - 1)
    def _():
        y = acc_ref[...] + b_ref[...].astype(jnp.float32) \
            + r_ref[...].astype(jnp.float32)
        o_ref[...] = y.astype(o_ref.dtype)


def _sdpa_kernel(qkv_ref, o_ref, *, n_head, seq_major):
    """Multi-head self-attention on one block of bb batch elements.

      batch-major: qkv block (bb, L, 3D) -> o block (bb, L, D)
      seq-major:   qkv block (L, bb, 3D) -> o block (L, bb, D)

    The 1/sqrt(dh) scale is pre-folded into the q slice of W_in/b_in.  Scores
    and softmax stay fp32; probabilities are cast to bf16 only for the PV dot;
    the output store is lane-dense (last dim = D).
    """
    qkv = qkv_ref[...]
    if seq_major:
        qkv = jnp.transpose(qkv, (1, 0, 2))            # on-chip relayout only
    bb, L, three_d = qkv.shape
    d_model = three_d // 3
    dh = d_model // n_head
    outs = []
    for h in range(n_head):                            # static unroll over heads
        q = qkv[:, :, h * dh:(h + 1) * dh]
        k = qkv[:, :, d_model + h * dh:d_model + (h + 1) * dh]
        v = qkv[:, :, 2 * d_model + h * dh:2 * d_model + (h + 1) * dh]
        s = jnp.einsum('bqd,bkd->bqk', q, k, preferred_element_type=jnp.float32)
        m = jnp.max(s, axis=-1, keepdims=True)
        p = jnp.exp(s - m)
        l = jnp.sum(p, axis=-1, keepdims=True)
        o = jnp.einsum('bqk,bkd->bqd', p.astype(qkv.dtype), v,
                       preferred_element_type=jnp.float32)
        outs.append(o * pl.reciprocal(l, approx=True))
    o = jnp.concatenate(outs, axis=-1)                 # (bb, L, D) lane-dense
    if seq_major:
        o = jnp.transpose(o, (1, 0, 2))                # -> (L, bb, D)
    o_ref[...] = o.astype(o_ref.dtype)
    # TODO(synk): switch to an online-softmax (flash) K/V-tiled loop before
    # scaling sequence length: the (bb, L, L) fp32 scores grow quadratically.


# ------------------------------ Pallas wrappers ------------------------------

def _ln_linear_bytes(tm, k, tn, out_bytes):
    return (2 * tm * k * 4          # x fp32, double-buffered
            + tm * k * 2            # normalized-x scratch (bf16)
            + 2 * k * tn * 2        # W bf16, double-buffered
            + 4 * k * 4 + 4 * tn * 4
            + 2 * tm * tn * out_bytes)


def ln_linear(x2d, gamma, beta, w_t, b, *, quickgelu=False, out_dtype=None):
    """Fused LayerNorm + Linear. x2d:(M,K) f32, w_t:(K,N) bf16, b:(1,N) f32."""
    M, K = x2d.shape
    N = w_t.shape[1]
    out_dtype = out_dtype or x2d.dtype
    plan = _chip_plan()
    budget = plan["vmem_limit"]
    tm = _tile_sub(M, plan["tm"])
    tn = _tile_last(N, plan["tn"])
    out_b = jnp.dtype(out_dtype).itemsize
    while _ln_linear_bytes(tm, K, tn, out_b) > budget:
        new_tm = _tile_sub(M, tm // 2) if tm // 2 >= 8 else tm
        if new_tm < tm:
            tm = new_tm
            continue
        new_tn = _tile_last(N, tn // 2) if tn // 2 >= 128 else tn
        if new_tn < tn:
            tn = new_tn
            continue
        break
    _check_fits("ln_linear", _ln_linear_bytes(tm, K, tn, out_b), budget)

    kern = functools.partial(_ln_linear_kernel, quickgelu=quickgelu)
    return pl.pallas_call(
        kern,
        out_shape=jax.ShapeDtypeStruct((M, N), out_dtype),
        grid=(M // tm, N // tn),
        in_specs=[
            pl.BlockSpec((tm, K), lambda i, j: (i, 0)),
            pl.BlockSpec((1, K), lambda i, j: (0, 0)),
            pl.BlockSpec((1, K), lambda i, j: (0, 0)),
            pl.BlockSpec((K, tn), lambda i, j: (0, j)),
            pl.BlockSpec((1, tn), lambda i, j: (0, j)),
        ],
        out_specs=pl.BlockSpec((tm, tn), lambda i, j: (i, j)),
        scratch_shapes=[pltpu.VMEM((tm, K), jnp.bfloat16)],
        compiler_params=pltpu.CompilerParams(
            # j must stay sequential (LN cache); i is megacore-shardable.
            dimension_semantics=("parallel", "arbitrary"),
            vmem_limit_bytes=budget),
    )(x2d, gamma, beta, w_t, b)


def _lin_res_bytes(tm, tk, tn):
    return (2 * tm * tk * 2 + 2 * tk * tn * 2 + 4 * tn * 4
            + 2 * tm * tn * 4       # residual fp32, double-buffered
            + 2 * tm * tn * 4       # out fp32, double-buffered
            + tm * tn * 4)          # accumulator scratch


def linear_residual(x2d, w_t, b, res2d):
    """y = x2d @ w_t + b + res2d. x2d:(M,K) bf16, w_t:(K,N) bf16, res2d:(M,N) f32."""
    M, K = x2d.shape
    N = w_t.shape[1]
    plan = _chip_plan()
    budget = plan["vmem_limit"]
    tm = _tile_sub(M, plan["tm"])
    tn = _tile_last(N, plan["tn"])
    tk = _tile_last(K, plan["tk"])
    while _lin_res_bytes(tm, tk, tn) > budget:
        new_tm = _tile_sub(M, tm // 2) if tm // 2 >= 8 else tm
        if new_tm < tm:
            tm = new_tm
            continue
        new_tk = _tile_last(K, tk // 2) if tk // 2 >= 128 else tk
        if new_tk < tk:
            tk = new_tk
            continue
        new_tn = _tile_last(N, tn // 2) if tn // 2 >= 128 else tn
        if new_tn < tn:
            tn = new_tn
            continue
        break
    _check_fits("linear_residual", _lin_res_bytes(tm, tk, tn), budget)

    return pl.pallas_call(
        _linear_residual_kernel,
        out_shape=jax.ShapeDtypeStruct((M, N), res2d.dtype),
        grid=(M // tm, N // tn, K // tk),
        in_specs=[
            pl.BlockSpec((tm, tk), lambda i, j, k: (i, k)),
            pl.BlockSpec((tk, tn), lambda i, j, k: (k, j)),
            pl.BlockSpec((1, tn), lambda i, j, k: (0, j)),
            pl.BlockSpec((tm, tn), lambda i, j, k: (i, j)),
        ],
        out_specs=pl.BlockSpec((tm, tn), lambda i, j, k: (i, j)),
        scratch_shapes=[pltpu.VMEM((tm, tn), jnp.float32)],
        compiler_params=pltpu.CompilerParams(
            dimension_semantics=("parallel", "parallel", "arbitrary"),
            vmem_limit_bytes=budget),
    )(x2d, w_t, b, res2d)


def _sdpa_per_elem_bytes(L, d_model, n_head):
    # double-buffered qkv-in + out tiles plus in-flight fp32 score/prob/output
    # temporaries per batch element (loose upper bound).
    del n_head
    return (2 * L * 3 * d_model * 2 + 2 * L * d_model * 2
            + 8 * L * L * 4 + 4 * L * d_model * 4)


def _pick_bb(B, per_elem_bytes, budget, align):
    """Largest batch-block dividing B that respects sublane alignment and the
    per-step VMEM budget; prefers >=2 grid steps (megacore on v7x)."""
    valid = [bb for bb in range(1, B + 1)
             if B % bb == 0 and (bb % align == 0 or bb == B)]
    cap = min(1024, max(1, budget // max(per_elem_bytes, 1)))
    fitting = [bb for bb in valid if bb <= cap]
    if not fitting:
        return valid[0]                    # smallest legal block (flash TODO)
    bb = max(fitting)
    if bb == B and len(fitting) > 1:       # prefer at least two grid steps
        bb = sorted(fitting)[-2]
    return bb


def _sdpa(qkv3, n_head, *, seq_major):
    """Batched multi-head attention.

    seq_major=False: qkv3 (B, L, 3D) -> (B, L, D)   (temporal layout)
    seq_major=True : qkv3 (L, B, 3D) -> (L, B, D)   (spatial layout)
    """
    if seq_major:
        L, B, three_d = qkv3.shape
        align = 8                          # bb sits on the sublane dim of block
    else:
        B, L, three_d = qkv3.shape
        align = 1                          # bb is a leading (untiled) dim
    d_model = three_d // 3
    plan = _chip_plan()
    bb = _pick_bb(B, _sdpa_per_elem_bytes(L, d_model, n_head),
                  plan["vmem_limit"] // 3, align)

    kern = functools.partial(_sdpa_kernel, n_head=n_head, seq_major=seq_major)
    if seq_major:
        blk_in, blk_out = (L, bb, three_d), (L, bb, d_model)
        out_shape = (L, B, d_model)
        idx = lambda i: (0, i, 0)
    else:
        blk_in, blk_out = (bb, L, three_d), (bb, L, d_model)
        out_shape = (B, L, d_model)
        idx = lambda i: (i, 0, 0)
    return pl.pallas_call(
        kern,
        out_shape=jax.ShapeDtypeStruct(out_shape, jnp.bfloat16),
        grid=(B // bb,),
        in_specs=[pl.BlockSpec(blk_in, idx)],
        out_specs=pl.BlockSpec(blk_out, idx),
        compiler_params=pltpu.CompilerParams(
            dimension_semantics=("parallel",),
            vmem_limit_bytes=plan["vmem_limit"]),
    )(qkv3)


# ------------------------------- Model pieces --------------------------------

def _attention_block(x2, ln_p, attn_p, n_head, view, seq_major):
    """x + out_proj(MHA(LN(x))): LN fused into the QKV matmul, residual fused
    into the output projection, and the SDPA consumes / produces the rows in
    their existing order (zero HBM transposes)."""
    M, D = x2.shape
    qkv = ln_linear(x2, ln_p["g"], ln_p["b"], attn_p["w_in"], attn_p["b_in"],
                    out_dtype=jnp.bfloat16)              # (M, 3D)
    qkv = qkv.reshape(view[0], view[1], 3 * D)           # free reshape
    o = _sdpa(qkv, n_head, seq_major=seq_major)          # same row order as x2
    o = o.reshape(M, D)
    return linear_residual(o, attn_p["w_out"], attn_p["b_out"], x2)


def _mlp_block(x2, ln_p, mlp_p):
    """x + c_proj(QuickGELU(c_fc(LayerNorm(x)))), fused into two matmuls."""
    h = ln_linear(x2, ln_p["g"], ln_p["b"], mlp_p["w_fc"], mlp_p["b_fc"],
                  quickgelu=True, out_dtype=jnp.bfloat16)  # (M, 4D)
    return linear_residual(h, mlp_p["w_proj"], mlp_p["b_proj"], x2)


def residual_attention_block(x, p, n_head, num_frames):
    # x: (n, b*t, d) with the b*t axis ordered (b outer, t inner).
    n, bt, d = x.shape
    t = num_frames
    b = bt // t
    x2 = x.reshape(n * bt, d)                # rows ordered (n, b, t)

    # TODO(synk): DropPath is a stochastic training-only op; identity at inference.
    # Temporal attention ('n (b t) d -> t (b n) d' in the reference) == attention
    # over the t axis per (n, b) pair; done directly on the contiguous
    # (n*b, t, .) view, so the two HBM rearranges vanish (pure index plumbing).
    x2 = _attention_block(x2, p["t_norm"], p["t_attn"], n_head,
                          view=(n * b, t), seq_major=False)
    # Spatial attention: sequence = n tokens per (b, t) column -> seq-major view.
    x2 = _attention_block(x2, p["ln_1"], p["attn"], n_head,
                          view=(n, bt), seq_major=True)
    x2 = _mlp_block(x2, p["ln_2"], p["mlp"])
    return x2.reshape(n, bt, d)


def transformer_forward(x, params, n_head, num_frames):
    for p in params:
        x = residual_attention_block(x, p, n_head, num_frames)
    return x


# ------------------------------ Parameter init -------------------------------

def init_params(key, width, layers):
    """torch-layout parameters: Linear weights are (out_features, in_features)."""
    d = width
    params = []
    for _ in range(layers):
        keys = jax.random.split(key, 7)
        key = keys[-1]

        def w(k, shape):
            return (0.02 * jax.random.normal(k, shape)).astype(jnp.float32)

        def attn_params(k1, k2):
            return {"in_proj_w": w(k1, (3 * d, d)),
                    "in_proj_b": jnp.zeros((3 * d,), jnp.float32),
                    "out_w": w(k2, (d, d)),
                    "out_b": jnp.zeros((d,), jnp.float32)}

        def ln_params():
            return {"g": jnp.ones((d,), jnp.float32),
                    "b": jnp.zeros((d,), jnp.float32)}

        params.append({
            "t_norm": ln_params(), "t_attn": attn_params(keys[0], keys[1]),
            "ln_1": ln_params(), "attn": attn_params(keys[2], keys[3]),
            "ln_2": ln_params(),
            "mlp": {"c_fc_w": w(keys[4], (4 * d, d)),
                    "c_fc_b": jnp.zeros((4 * d,), jnp.float32),
                    "c_proj_w": w(keys[5], (d, 4 * d)),
                    "c_proj_b": jnp.zeros((d,), jnp.float32)},
        })
    return params


def prepare_params(torch_params, n_head):
    """One-time prep: transpose torch (out,in) weights to (in,out), fold the
    1/sqrt(dh) attention scale into the q slice of the QKV projection, pre-cast
    matmul weights to bf16 (MXU) and store vectors as (1, N) fp32 rows."""
    def prep_attn(p):
        d = p["out_w"].shape[0]
        scale = 1.0 / math.sqrt(d // n_head)
        w_in = jnp.asarray(p["in_proj_w"], jnp.float32).T          # (D, 3D)
        b_in = jnp.asarray(p["in_proj_b"], jnp.float32)
        w_in = w_in.at[:, :d].multiply(scale)                      # scale q only
        b_in = b_in.at[:d].multiply(scale)
        return {"w_in": w_in.astype(jnp.bfloat16),
                "b_in": b_in.reshape(1, -1),
                "w_out": jnp.asarray(p["out_w"], jnp.float32).T.astype(jnp.bfloat16),
                "b_out": jnp.asarray(p["out_b"], jnp.float32).reshape(1, -1)}

    def prep_ln(p):
        return {"g": p["g"].reshape(1, -1), "b": p["b"].reshape(1, -1)}

    prepped = []
    for p in torch_params:
        prepped.append({
            "t_norm": prep_ln(p["t_norm"]), "t_attn": prep_attn(p["t_attn"]),
            "ln_1": prep_ln(p["ln_1"]), "attn": prep_attn(p["attn"]),
            "ln_2": prep_ln(p["ln_2"]),
            "mlp": {"w_fc": jnp.asarray(p["mlp"]["c_fc_w"], jnp.float32).T.astype(jnp.bfloat16),
                    "b_fc": p["mlp"]["c_fc_b"].reshape(1, -1),
                    "w_proj": jnp.asarray(p["mlp"]["c_proj_w"], jnp.float32).T.astype(jnp.bfloat16),
                    "b_proj": p["mlp"]["c_proj_b"].reshape(1, -1)},
        })
    return prepped


# ----------------------------------- Main -------------------------------------

if __name__ == "__main__":
    num_frames = 4     # t
    width = 32         # d
    layers = 2
    heads = 4
    n_tokens = 8       # spatial tokens (n)
    batch = 2          # b  ->  bt = b * t = 8

    key = jax.random.PRNGKey(0)
    k_x, k_p = jax.random.split(key)
    x = jax.random.normal(k_x, (n_tokens, batch * num_frames, width), jnp.float32)
    params = prepare_params(init_params(k_p, width, layers), heads)

    fwd = jax.jit(functools.partial(transformer_forward,
                                    n_head=heads, num_frames=num_frames))
    out = fwd(x, params)
    jax.block_until_ready(out)
    assert out.shape == x.shape and out.dtype == x.dtype
    assert bool(jnp.isfinite(out).all())
    print("KERNEL_OK")
</pallas_src>

<mosaic_0001>
module attributes {stable_mosaic.version = 11 : i64} {
  func.func @_ln_linear_kernel(%arg0: i32, %arg1: i32, %arg2: memref<64x32xf32, #tpu.memory_space<vmem>>, %arg3: memref<1x32xf32, #tpu.memory_space<vmem>>, %arg4: memref<1x32xf32, #tpu.memory_space<vmem>>, %arg5: memref<32x96xbf16, #tpu.memory_space<vmem>>, %arg6: memref<1x96xf32, #tpu.memory_space<vmem>>, %arg7: memref<64x96xbf16, #tpu.memory_space<vmem>>, %arg8: memref<64x32xbf16, #tpu.memory_space<vmem>>) attributes {dimension_semantics = [#tpu.dimension_semantics<parallel>, #tpu.dimension_semantics<arbitrary>], iteration_bounds = array<i64: 1, 1>, scalar_prefetch = 0 : i64, scratch_operands = 1 : i64, tpu.core_type = #tpu.core_type<tc>, window_params = [{transform_indices = @transform_0, window_bounds = array<i64: 64, 32>}, {pipeline_mode = #tpu.pipeline_mode<synchronous>, transform_indices = @transform_1, window_bounds = array<i64: 1, 32>}, {pipeline_mode = #tpu.pipeline_mode<synchronous>, transform_indices = @transform_2, window_bounds = array<i64: 1, 32>}, {transform_indices = @transform_3, window_bounds = array<i64: 32, 96>}, {transform_indices = @transform_4, window_bounds = array<i64: 1, 96>}, {transform_indices = @transform_5, window_bounds = array<i64: 64, 96>}]} {
    %c0_i32 = arith.constant 0 : i32
    %0 = arith.cmpi eq, %arg1, %c0_i32 : i32
    %1 = arith.extui %0 : i1 to i32
    %c0_i32_0 = arith.constant 0 : i32
    %2 = arith.cmpi ne, %1, %c0_i32_0 : i32
    scf.if %2 {
      %c0_8 = arith.constant 0 : index
      %c0_9 = arith.constant 0 : index
      %11 = vector.load %arg2[%c0_8, %c0_9] : memref<64x32xf32, #tpu.memory_space<vmem>>, vector<64x32xf32>
      %cst_10 = arith.constant dense<0.000000e+00> : vector<64xf32>
      %12 = vector.multi_reduction <add>, %11, %cst_10 [1] : vector<64x32xf32> to vector<64xf32>
      %13 = vector.shape_cast %12 : vector<64xf32> to vector<64x1xf32>
      %cst_11 = arith.constant 3.200000e+01 : f32
      %14 = vector.broadcast %cst_11 : f32 to vector<64x1xf32>
      %15 = arith.divf %13, %14 : vector<64x1xf32>
      %16 = vector.broadcast %15 : vector<64x1xf32> to vector<64x32xf32>
      %17 = arith.subf %11, %16 : vector<64x32xf32>
      %18 = arith.mulf %17, %17 : vector<64x32xf32>
      %cst_12 = arith.constant dense<0.000000e+00> : vector<64xf32>
      %19 = vector.multi_reduction <add>, %18, %cst_12 [1] : vector<64x32xf32> to vector<64xf32>
      %20 = vector.shape_cast %19 : vector<64xf32> to vector<64x1xf32>
      %cst_13 = arith.constant 3.200000e+01 : f32
      %21 = vector.broadcast %cst_13 : f32 to vector<64x1xf32>
      %22 = arith.divf %20, %21 : vector<64x1xf32>
      %cst_14 = arith.constant 9.99999974E-6 : f32
      %23 = vector.broadcast %cst_14 : f32 to vector<64x1xf32>
      %24 = arith.addf %22, %23 : vector<64x1xf32>
      %25 = math.rsqrt %24 : vector<64x1xf32>
      %26 = vector.broadcast %25 : vector<64x1xf32> to vector<64x32xf32>
      %27 = arith.mulf %17, %26 : vector<64x32xf32>
      %c0_15 = arith.constant 0 : index
      %c0_16 = arith.constant 0 : index
      %28 = vector.load %arg3[%c0_15, %c0_16] : memref<1x32xf32, #tpu.memory_space<vmem>>, vector<1x32xf32>
      %29 = vector.broadcast %28 : vector<1x32xf32> to vector<64x32xf32>
      %30 = arith.mulf %27, %29 : vector<64x32xf32>
      %c0_17 = arith.constant 0 : index
      %c0_18 = arith.constant 0 : index
      %31 = vector.load %arg4[%c0_17, %c0_18] : memref<1x32xf32, #tpu.memory_space<vmem>>, vector<1x32xf32>
      %32 = vector.broadcast %31 : vector<1x32xf32> to vector<64x32xf32>
      %33 = arith.addf %30, %32 : vector<64x32xf32>
      %34 = arith.truncf %33 : vector<64x32xf32> to vector<64x32xbf16>
      %c0_19 = arith.constant 0 : index
      %c0_20 = arith.constant 0 : index
      %35 = vector.load %arg8[%c0_19, %c0_20] : memref<64x32xbf16, #tpu.memory_space<vmem>>, vector<64x32xbf16>
      tpu.vector_store %arg8[%c0_19, %c0_20], %34 {strides = array<i32>} : memref<64x32xbf16, #tpu.memory_space<vmem>>, vector<64x32xbf16>,
    } else {
    }
    %c0 = arith.constant 0 : index
    %c0_1 = arith.constant 0 : index
    %3 = vector.load %arg8[%c0, %c0_1] : memref<64x32xbf16, #tpu.memory_space<vmem>>, vector<64x32xbf16>
    %c0_2 = arith.constant 0 : index
    %c0_3 = arith.constant 0 : index
    %4 = vector.load %arg5[%c0_2, %c0_3] : memref<32x96xbf16, #tpu.memory_space<vmem>>, vector<32x96xbf16>
    %cst = arith.constant dense<0.000000e+00> : vector<64x96xf32>
    %5 = tpu.matmul %3, %4, %cst {dimension_numbers = #tpu.dot_dimension_numbers<[1], [0], [0], [1], [0, 0, 1, 1], [], []>} : vector<64x32xbf16>, vector<32x96xbf16>, vector<64x96xf32> -> vector<64x96xf32>
    %c0_4 = arith.constant 0 : index
    %c0_5 = arith.constant 0 : index
    %6 = vector.load %arg6[%c0_4, %c0_5] : memref<1x96xf32, #tpu.memory_space<vmem>>, vector<1x96xf32>
    %7 = vector.broadcast %6 : vector<1x96xf32> to vector<64x96xf32>
    %8 = arith.addf %5, %7 : vector<64x96xf32>
    %9 = arith.truncf %8 : vector<64x96xf32> to vector<64x96xbf16>
    %c0_6 = arith.constant 0 : index
    %c0_7 = arith.constant 0 : index
    %10 = vector.load %arg7[%c0_6, %c0_7] : memref<64x96xbf16, #tpu.memory_space<vmem>>, vector<64x96xbf16>
    tpu.vector_store %arg7[%c0_6, %c0_7], %9 {strides = array<i32>} : memref<64x96xbf16, #tpu.memory_space<vmem>>, vector<64x96xbf16>,
    return
  }
  func.func @transform_0(%arg0: i32, %arg1: i32) -> (i32, i32) {
    %c0_i32 = arith.constant 0 : i32
    %c0_i32_0 = arith.constant 0 : i32
    return %arg0, %c0_i32 : i32, i32
  }
  func.func @transform_1(%arg0: i32, %arg1: i32) -> (i32, i32) {
    %c0_i32 = arith.constant 0 : i32
    %c0_i32_0 = arith.constant 0 : i32
    %c0_i32_1 = arith.constant 0 : i32
    return %c0_i32, %c0_i32_0 : i32, i32
  }
  func.func @transform_2(%arg0: i32, %arg1: i32) -> (i32, i32) {
    %c0_i32 = arith.constant 0 : i32
    %c0_i32_0 = arith.constant 0 : i32
    %c0_i32_1 = arith.constant 0 : i32
    return %c0_i32, %c0_i32_0 : i32, i32
  }
  func.func @transform_3(%arg0: i32, %arg1: i32) -> (i32, i32) {
    %c0_i32 = arith.constant 0 : i32
    %c0_i32_0 = arith.constant 0 : i32
    return %c0_i32, %arg1 : i32, i32
  }
  func.func @transform_4(%arg0: i32, %arg1: i32) -> (i32, i32) {
    %c0_i32 = arith.constant 0 : i32
    %c0_i32_0 = arith.constant 0 : i32
    return %c0_i32, %arg1 : i32, i32
  }
  func.func @transform_5(%arg0: i32, %arg1: i32) -> (i32, i32) {
    %c0_i32 = arith.constant 0 : i32
    return %arg0, %arg1 : i32, i32
  }
}

module attributes {stable_mosaic.version = 11 : i64} {
  func.func @_linear_residual_kernel(%arg0: i32, %arg1: i32, %arg2: i32, %arg3: memref<64x32xbf16, #tpu.memory_space<vmem>>, %arg4: memref<32x32xbf16, #tpu.memory_space<vmem>>, %arg5: memref<1x32xf32, #tpu.memory_space<vmem>>, %arg6: memref<64x32xf32, #tpu.memory_space<vmem>>, %arg7: memref<64x32xf32, #tpu.memory_space<vmem>>, %arg8: memref<64x32xf32, #tpu.memory_space<vmem>>) attributes {dimension_semantics = [#tpu.dimension_semantics<parallel>, #tpu.dimension_semantics<parallel>, #tpu.dimension_semantics<arbitrary>], iteration_bounds = array<i64: 1, 1, 1>, scalar_prefetch = 0 : i64, scratch_operands = 1 : i64, tpu.core_type = #tpu.core_type<tc>, window_params = [{transform_indices = @transform_0, window_bounds = array<i64: 64, 32>}, {transform_indices = @transform_1, window_bounds = array<i64: 32, 32>}, {transform_indices = @transform_2, window_bounds = array<i64: 1, 32>}, {transform_indices = @transform_3, window_bounds = array<i64: 64, 32>}, {transform_indices = @transform_4, window_bounds = array<i64: 64, 32>}]} {
    %c0_i32 = arith.constant 0 : i32
    %0 = arith.cmpi eq, %arg2, %c0_i32 : i32
    %1 = arith.extui %0 : i1 to i32
    %c0_i32_0 = arith.constant 0 : i32
    %2 = arith.cmpi ne, %1, %c0_i32_0 : i32
    scf.if %2 {
      %cst_10 = arith.constant 0.000000e+00 : f32
      %12 = vector.broadcast %cst_10 : f32 to vector<64x32xf32>
      %c0_11 = arith.constant 0 : index
      %c0_12 = arith.constant 0 : index
      %13 = vector.load %arg8[%c0_11, %c0_12] : memref<64x32xf32, #tpu.memory_space<vmem>>, vector<64x32xf32>
      tpu.vector_store %arg8[%c0_11, %c0_12], %12 {strides = array<i32>} : memref<64x32xf32, #tpu.memory_space<vmem>>, vector<64x32xf32>,
    } else {
    }
    %c0 = arith.constant 0 : index
    %c0_1 = arith.constant 0 : index
    %3 = vector.load %arg8[%c0, %c0_1] : memref<64x32xf32, #tpu.memory_space<vmem>>, vector<64x32xf32>
    %c0_2 = arith.constant 0 : index
    %c0_3 = arith.constant 0 : index
    %4 = vector.load %arg3[%c0_2, %c0_3] : memref<64x32xbf16, #tpu.memory_space<vmem>>, vector<64x32xbf16>
    %c0_4 = arith.constant 0 : index
    %c0_5 = arith.constant 0 : index
    %5 = vector.load %arg4[%c0_4, %c0_5] : memref<32x32xbf16, #tpu.memory_space<vmem>>, vector<32x32xbf16>
    %cst = arith.constant dense<0.000000e+00> : vector<64x32xf32>
    %6 = tpu.matmul %4, %5, %cst {dimension_numbers = #tpu.dot_dimension_numbers<[1], [0], [0], [1], [0, 0, 1, 1], [], []>} : vector<64x32xbf16>, vector<32x32xbf16>, vector<64x32xf32> -> vector<64x32xf32>
    %7 = arith.addf %3, %6 : vector<64x32xf32>
    %c0_6 = arith.constant 0 : index
    %c0_7 = arith.constant 0 : index
    %8 = vector.load %arg8[%c0_6, %c0_7] : memref<64x32xf32, #tpu.memory_space<vmem>>, vector<64x32xf32>
    tpu.vector_store %arg8[%c0_6, %c0_7], %7 {strides = array<i32>} : memref<64x32xf32, #tpu.memory_space<vmem>>, vector<64x32xf32>,
    %c0_i32_8 = arith.constant 0 : i32
    %9 = arith.cmpi eq, %arg2, %c0_i32_8 : i32
    %10 = arith.extui %9 : i1 to i32
    %c0_i32_9 = arith.constant 0 : i32
    %11 = arith.cmpi ne, %10, %c0_i32_9 : i32
    scf.if %11 {
      %c0_10 = arith.constant 0 : index
      %c0_11 = arith.constant 0 : index
      %12 = vector.load %arg8[%c0_10, %c0_11] : memref<64x32xf32, #tpu.memory_space<vmem>>, vector<64x32xf32>
      %c0_12 = arith.constant 0 : index
      %c0_13 = arith.constant 0 : index
      %13 = vector.load %arg5[%c0_12, %c0_13] : memref<1x32xf32, #tpu.memory_space<vmem>>, vector<1x32xf32>
      %14 = vector.broadcast %13 : vector<1x32xf32> to vector<64x32xf32>
      %15 = arith.addf %12, %14 : vector<64x32xf32>
      %c0_14 = arith.constant 0 : index
      %c0_15 = arith.constant 0 : index
      %16 = vector.load %arg6[%c0_14, %c0_15] : memref<64x32xf32, #tpu.memory_space<vmem>>, vector<64x32xf32>
      %17 = arith.addf %15, %16 : vector<64x32xf32>
      %c0_16 = arith.constant 0 : index
      %c0_17 = arith.constant 0 : index
      %18 = vector.load %arg7[%c0_16, %c0_17] : memref<64x32xf32, #tpu.memory_space<vmem>>, vector<64x32xf32>
      tpu.vector_store %arg7[%c0_16, %c0_17], %17 {strides = array<i32>} : memref<64x32xf32, #tpu.memory_space<vmem>>, vector<64x32xf32>,
    } else {
    }
    return
  }
  func.func @transform_0(%arg0: i32, %arg1: i32, %arg2: i32) -> (i32, i32) {
    %c0_i32 = arith.constant 0 : i32
    return %arg0, %arg2 : i32, i32
  }
  func.func @transform_1(%arg0: i32, %arg1: i32, %arg2: i32) -> (i32, i32) {
    %c0_i32 = arith.constant 0 : i32
    return %arg2, %arg1 : i32, i32
  }
  func.func @transform_2(%arg0: i32, %arg1: i32, %arg2: i32) -> (i32, i32) {
    %c0_i32 = arith.constant 0 : i32
    %c0_i32_0 = arith.constant 0 : i32
    return %c0_i32, %arg1 : i32, i32
  }
  func.func @transform_3(%arg0: i32, %arg1: i32, %arg2: i32) -> (i32, i32) {
    %c0_i32 = arith.constant 0 : i32
    return %arg0, %arg1 : i32, i32
  }
  func.func @transform_4(%arg0: i32, %arg1: i32, %arg2: i32) -> (i32, i32) {
    %c0_i32 = arith.constant 0 : i32
    return %arg0, %arg1 : i32, i32
  }
}

module attributes {stable_mosaic.version = 11 : i64} {
  func.func @_ln_linear_kernel(%arg0: i32, %arg1: i32, %arg2: memref<64x32xf32, #tpu.memory_space<vmem>>, %arg3: memref<1x32xf32, #tpu.memory_space<vmem>>, %arg4: memref<1x32xf32, #tpu.memory_space<vmem>>, %arg5: memref<32x96xbf16, #tpu.memory_space<vmem>>, %arg6: memref<1x96xf32, #tpu.memory_space<vmem>>, %arg7: memref<64x96xbf16, #tpu.memory_space<vmem>>, %arg8: memref<64x32xbf16, #tpu.memory_space<vmem>>) attributes {dimension_semantics = [#tpu.dimension_semantics<parallel>, #tpu.dimension_semantics<arbitrary>], iteration_bounds = array<i64: 1, 1>, scalar_prefetch = 0 : i64, scratch_operands = 1 : i64, tpu.core_type = #tpu.core_type<tc>, window_params = [{transform_indices = @transform_0, window_bounds = array<i64: 64, 32>}, {pipeline_mode = #tpu.pipeline_mode<synchronous>, transform_indices = @transform_1, window_bounds = array<i64: 1, 32>}, {pipeline_mode = #tpu.pipeline_mode<synchronous>, transform_indices = @transform_2, window_bounds = array<i64: 1, 32>}, {transform_indices = @transform_3, window_bounds = array<i64: 32, 96>}, {transform_indices = @transform_4, window_bounds = array<i64: 1, 96>}, {transform_indices = @transform_5, window_bounds = array<i64: 64, 96>}]} {
    %c0_i32 = arith.constant 0 : i32
    %0 = arith.cmpi eq, %arg1, %c0_i32 : i32
    %1 = arith.extui %0 : i1 to i32
    %c0_i32_0 = arith.constant 0 : i32
    %2 = arith.cmpi ne, %1, %c0_i32_0 : i32
    scf.if %2 {
      %c0_8 = arith.constant 0 : index
      %c0_9 = arith.constant 0 : index
      %11 = vector.load %arg2[%c0_8, %c0_9] : memref<64x32xf32, #tpu.memory_space<vmem>>, vector<64x32xf32>
      %cst_10 = arith.constant dense<0.000000e+00> : vector<64xf32>
      %12 = vector.multi_reduction <add>, %11, %cst_10 [1] : vector<64x32xf32> to vector<64xf32>
      %13 = vector.shape_cast %12 : vector<64xf32> to vector<64x1xf32>
      %cst_11 = arith.constant 3.200000e+01 : f32
      %14 = vector.broadcast %cst_11 : f32 to vector<64x1xf32>
      %15 = arith.divf %13, %14 : vector<64x1xf32>
      %16 = vector.broadcast %15 : vector<64x1xf32> to vector<64x32xf32>
      %17 = arith.subf %11, %16 : vector<64x32xf32>
      %18 = arith.mulf %17, %17 : vector<64x32xf32>
      %cst_12 = arith.constant dense<0.000000e+00> : vector<64xf32>
      %19 = vector.multi_reduction <add>, %18, %cst_12 [1] : vector<64x32xf32> to vector<64xf32>
      %20 = vector.shape_cast %19 : vector<64xf32> to vector<64x1xf32>
      %cst_13 = arith.constant 3.200000e+01 : f32
      %21 = vector.broadcast %cst_13 : f32 to vector<64x1xf32>
      %22 = arith.divf %20, %21 : vector<64x1xf32>
      %cst_14 = arith.constant 9.99999974E-6 : f32
      %23 = vector.broadcast %cst_14 : f32 to vector<64x1xf32>
      %24 = arith.addf %22, %23 : vector<64x1xf32>
      %25 = math.rsqrt %24 : vector<64x1xf32>
      %26 = vector.broadcast %25 : vector<64x1xf32> to vector<64x32xf32>
      %27 = arith.mulf %17, %26 : vector<64x32xf32>
      %c0_15 = arith.constant 0 : index
      %c0_16 = arith.constant 0 : index
      %28 = vector.load %arg3[%c0_15, %c0_16] : memref<1x32xf32, #tpu.memory_space<vmem>>, vector<1x32xf32>
      %29 = vector.broadcast %28 : vector<1x32xf32> to vector<64x32xf32>
      %30 = arith.mulf %27, %29 : vector<64x32xf32>
      %c0_17 = arith.constant 0 : index
      %c0_18 = arith.constant 0 : index
      %31 = vector.load %arg4[%c0_17, %c0_18] : memref<1x32xf32, #tpu.memory_space<vmem>>, vector<1x32xf32>
      %32 = vector.broadcast %31 : vector<1x32xf32> to vector<64x32xf32>
      %33 = arith.addf %30, %32 : vector<64x32xf32>
      %34 = arith.truncf %33 : vector<64x32xf32> to vector<64x32xbf16>
      %c0_19 = arith.constant 0 : index
      %c0_20 = arith.constant 0 : index
      %35 = vector.load %arg8[%c0_19, %c0_20] : memref<64x32xbf16, #tpu.memory_space<vmem>>, vector<64x32xbf16>
      tpu.vector_store %arg8[%c0_19, %c0_20], %34 {strides = array<i32>} : memref<64x32xbf16, #tpu.memory_space<vmem>>, vector<64x32xbf16>,
    } else {
    }
    %c0 = arith.constant 0 : index
    %c0_1 = arith.constant 0 : index
    %3 = vector.load %arg8[%c0, %c0_1] : memref<64x32xbf16, #tpu.memory_space<vmem>>, vector<64x32xbf16>
    %c0_2 = arith.constant 0 : index
    %c0_3 = arith.constant 0 : index
    %4 = vector.load %arg5[%c0_2, %c0_3] : memref<32x96xbf16, #tpu.memory_space<vmem>>, vector<32x96xbf16>
    %cst = arith.constant dense<0.000000e+00> : vector<64x96xf32>
    %5 = tpu.matmul %3, %4, %cst {dimension_numbers = #tpu.dot_dimension_numbers<[1], [0], [0], [1], [0, 0, 1, 1], [], []>} : vector<64x32xbf16>, vector<32x96xbf16>, vector<64x96xf32> -> vector<64x96xf32>
    %c0_4 = arith.constant 0 : index
    %c0_5 = arith.constant 0 : index
    %6 = vector.load %arg6[%c0_4, %c0_5] : memref<1x96xf32, #tpu.memory_space<vmem>>, vector<1x96xf32>
    %7 = vector.broadcast %6 : vector<1x96xf32> to vector<64x96xf32>
    %8 = arith.addf %5, %7 : vector<64x96xf32>
    %9 = arith.truncf %8 : vector<64x96xf32> to vector<64x96xbf16>
    %c0_6 = arith.constant 0 : index
    %c0_7 = arith.constant 0 : index
    %10 = vector.load %arg7[%c0_6, %c0_7] : memref<64x96xbf16, #tpu.memory_space<vmem>>, vector<64x96xbf16>
    tpu.vector_store %arg7[%c0_6, %c0_7], %9 {strides = array<i32>} : memref<64x96xbf16, #tpu.memory_space<vmem>>, vector<64x96xbf16>,
    return
  }
  func.func @transform_0(%arg0: i32, %arg1: i32) -> (i32, i32) {
    %c0_i32 = arith.constant 0 : i32
    %c0_i32_0 = arith.constant 0 : i32
    return %arg0, %c0_i32 : i32, i32
  }
  func.func @transform_1(%arg0: i32, %arg1: i32) -> (i32, i32) {
    %c0_i32 = arith.constant 0 : i32
    %c0_i32_0 = arith.constant 0 : i32
    %c0_i32_1 = arith.constant 0 : i32
    return %c0_i32, %c0_i32_0 : i32, i32
  }
  func.func @transform_2(%arg0: i32, %arg1: i32) -> (i32, i32) {
    %c0_i32 = arith.constant 0 : i32
    %c0_i32_0 = arith.constant 0 : i32
    %c0_i32_1 = arith.constant 0 : i32
    return %c0_i32, %c0_i32_0 : i32, i32
  }
  func.func @transform_3(%arg0: i32, %arg1: i32) -> (i32, i32) {
    %c0_i32 = arith.constant 0 : i32
    %c0_i32_0 = arith.constant 0 : i32
    return %c0_i32, %arg1 : i32, i32
  }
  func.func @transform_4(%arg0: i32, %arg1: i32) -> (i32, i32) {
    %c0_i32 = arith.constant 0 : i32
    %c0_i32_0 = arith.constant 0 : i32
    return %c0_i32, %arg1 : i32, i32
  }
  func.func @transform_5(%arg0: i32, %arg1: i32) -> (i32, i32) {
    %c0_i32 = arith.constant 0 : i32
    return %arg0, %arg1 : i32, i32
  }
}

module attributes {stable_mosaic.version = 11 : i64} {
  func.func @_sdpa_kernel(%arg0: i32, %arg1: memref<8x4x96xbf16, #tpu.memory_space<vmem>>, %arg2: memref<8x4x32xbf16, #tpu.memory_space<vmem>>) attributes {dimension_semantics = [#tpu.dimension_semantics<parallel>], iteration_bounds = array<i64: 2>, scalar_prefetch = 0 : i64, scratch_operands = 0 : i64, tpu.core_type = #tpu.core_type<tc>, window_params = [{transform_indices = @transform_0, window_bounds = array<i64: 8, 4, 96>}, {transform_indices = @transform_1, window_bounds = array<i64: 8, 4, 32>}]} {
    %c0 = arith.constant 0 : index
    %c0_0 = arith.constant 0 : index
    %c0_1 = arith.constant 0 : index
    %0 = vector.load %arg1[%c0, %c0_0, %c0_1] : memref<8x4x96xbf16, #tpu.memory_space<vmem>>, vector<8x4x96xbf16>
    %1 = vector.extract_strided_slice %0 {offsets = [0, 0, 0], sizes = [8, 4, 8], strides = [1, 1, 1]} : vector<8x4x96xbf16> to vector<8x4x8xbf16>
    %2 = vector.extract_strided_slice %0 {offsets = [0, 0, 32], sizes = [8, 4, 8], strides = [1, 1, 1]} : vector<8x4x96xbf16> to vector<8x4x8xbf16>
    %3 = vector.extract_strided_slice %0 {offsets = [0, 0, 64], sizes = [8, 4, 8], strides = [1, 1, 1]} : vector<8x4x96xbf16> to vector<8x4x8xbf16>
    "tpu.trace_start"() <{level = 10 : i32, message = "bqd,bkd->bqk"}> : () -> ()
    %cst = arith.constant dense<0.000000e+00> : vector<8x4x4xf32>
    %4 = tpu.matmul %1, %2, %cst {dimension_numbers = #tpu.dot_dimension_numbers<[2], [2], [1], [1], [0, 0, 0, 1, 1, 1], [0], [0]>} : vector<8x4x8xbf16>, vector<8x4x8xbf16>, vector<8x4x4xf32> -> vector<8x4x4xf32>
    "tpu.trace_stop"() : () -> ()
    %cst_2 = arith.constant dense<0xFF800000> : vector<8x4xf32>
    %5 = vector.multi_reduction <maximumf>, %4, %cst_2 [2] : vector<8x4x4xf32> to vector<8x4xf32>
    %6 = vector.shape_cast %5 : vector<8x4xf32> to vector<8x4x1xf32>
    %7 = vector.broadcast %6 : vector<8x4x1xf32> to vector<8x4x4xf32>
    %8 = arith.subf %4, %7 : vector<8x4x4xf32>
    %9 = math.exp %8 : vector<8x4x4xf32>
    %cst_3 = arith.constant dense<0.000000e+00> : vector<8x4xf32>
    %10 = vector.multi_reduction <add>, %9, %cst_3 [2] : vector<8x4x4xf32> to vector<8x4xf32>
    %11 = vector.shape_cast %10 : vector<8x4xf32> to vector<8x4x1xf32>
    %12 = arith.truncf %9 : vector<8x4x4xf32> to vector<8x4x4xbf16>
    "tpu.trace_start"() <{level = 10 : i32, message = "bqk,bkd->bqd"}> : () -> ()
    %cst_4 = arith.constant dense<0.000000e+00> : vector<8x4x8xf32>
    %13 = tpu.matmul %12, %3, %cst_4 {dimension_numbers = #tpu.dot_dimension_numbers<[2], [1], [1], [2], [0, 0, 0, 1, 1, 2], [0], [0]>} : vector<8x4x4xbf16>, vector<8x4x8xbf16>, vector<8x4x8xf32> -> vector<8x4x8xf32>
    "tpu.trace_stop"() : () -> ()
    %14 = tpu.reciprocal %11 {approx = true} : vector<8x4x1xf32> -> vector<8x4x1xf32>
    %15 = vector.broadcast %14 : vector<8x4x1xf32> to vector<8x4x8xf32>
    %16 = arith.mulf %13, %15 : vector<8x4x8xf32>
    %17 = vector.extract_strided_slice %0 {offsets = [0, 0, 8], sizes = [8, 4, 8], strides = [1, 1, 1]} : vector<8x4x96xbf16> to vector<8x4x8xbf16>
    %18 = vector.extract_strided_slice %0 {offsets = [0, 0, 40], sizes = [8, 4, 8], strides = [1, 1, 1]} : vector<8x4x96xbf16> to vector<8x4x8xbf16>
    %19 = vector.extract_strided_slice %0 {offsets = [0, 0, 72], sizes = [8, 4, 8], strides = [1, 1, 1]} : vector<8x4x96xbf16> to vector<8x4x8xbf16>
    "tpu.trace_start"() <{level = 10 : i32, message = "bqd,bkd->bqk"}> : () -> ()
    %cst_5 = arith.constant dense<0.000000e+00> : vector<8x4x4xf32>
    %20 = tpu.matmul %17, %18, %cst_5 {dimension_numbers = #tpu.dot_dimension_numbers<[2], [2], [1], [1], [0, 0, 0, 1, 1, 1], [0], [0]>} : vector<8x4x8xbf16>, vector<8x4x8xbf16>, vector<8x4x4xf32> -> vector<8x4x4xf32>
    "tpu.trace_stop"() : () -> ()
    %cst_6 = arith.constant dense<0xFF800000> : vector<8x4xf32>
    %21 = vector.multi_reduction <maximumf>, %20, %cst_6 [2] : vector<8x4x4xf32> to vector<8x4xf32>
    %22 = vector.shape_cast %21 : vector<8x4xf32> to vector<8x4x1xf32>
    %23 = vector.broadcast %22 : vector<8x4x1xf32> to vector<8x4x4xf32>
    %24 = arith.subf %20, %23 : vector<8x4x4xf32>
    %25 = math.exp %24 : vector<8x4x4xf32>
    %cst_7 = arith.constant dense<0.000000e+00> : vector<8x4xf32>
    %26 = vector.multi_reduction <add>, %25, %cst_7 [2] : vector<8x4x4xf32> to vector<8x4xf32>
    %27 = vector.shape_cast %26 : vector<8x4xf32> to vector<8x4x1xf32>
    %28 = arith.truncf %25 : vector<8x4x4xf32> to vector<8x4x4xbf16>
    "tpu.trace_start"() <{level = 10 : i32, message = "bqk,bkd->bqd"}> : () -> ()
    %cst_8 = arith.constant dense<0.000000e+00> : vector<8x4x8xf32>
    %29 = tpu.matmul %28, %19, %cst_8 {dimension_numbers = #tpu.dot_dimension_numbers<[2], [1], [1], [2], [0, 0, 0, 1, 1, 2], [0], [0]>} : vector<8x4x4xbf16>, vector<8x4x8xbf16>, vector<8x4x8xf32> -> vector<8x4x8xf32>
    "tpu.trace_stop"() : () -> ()
    %30 = tpu.reciprocal %27 {approx = true} : vector<8x4x1xf32> -> vector<8x4x1xf32>
    %31 = vector.broadcast %30 : vector<8x4x1xf32> to vector<8x4x8xf32>
    %32 = arith.mulf %29, %31 : vector<8x4x8xf32>
    %33 = vector.extract_strided_slice %0 {offsets = [0, 0, 16], sizes = [8, 4, 8], strides = [1, 1, 1]} : vector<8x4x96xbf16> to vector<8x4x8xbf16>
    %34 = vector.extract_strided_slice %0 {offsets = [0, 0, 48], sizes = [8, 4, 8], strides = [1, 1, 1]} : vector<8x4x96xbf16> to vector<8x4x8xbf16>
    %35 = vector.extract_strided_slice %0 {offsets = [0, 0, 80], sizes = [8, 4, 8], strides = [1, 1, 1]} : vector<8x4x96xbf16> to vector<8x4x8xbf16>
    "tpu.trace_start"() <{level = 10 : i32, message = "bqd,bkd->bqk"}> : () -> ()
    %cst_9 = arith.constant dense<0.000000e+00> : vector<8x4x4xf32>
    %36 = tpu.matmul %33, %34, %cst_9 {dimension_numbers = #tpu.dot_dimension_numbers<[2], [2], [1], [1], [0, 0, 0, 1, 1, 1], [0], [0]>} : vector<8x4x8xbf16>, vector<8x4x8xbf16>, vector<8x4x4xf32> -> vector<8x4x4xf32>
    "tpu.trace_stop"() : () -> ()
    %cst_10 = arith.constant dense<0xFF800000> : vector<8x4xf32>
    %37 = vector.multi_reduction <maximumf>, %36, %cst_10 [2] : vector<8x4x4xf32> to vector<8x4xf32>
    %38 = vector.shape_cast %37 : vector<8x4xf32> to vector<8x4x1xf32>
    %39 = vector.broadcast %38 : vector<8x4x1xf32> to vector<8x4x4xf32>
    %40 = arith.subf %36, %39 : vector<8x4x4xf32>
    %41 = math.exp %40 : vector<8x4x4xf32>
    %cst_11 = arith.constant dense<0.000000e+00> : vector<8x4xf32>
    %42 = vector.multi_reduction <add>, %41, %cst_11 [2] : vector<8x4x4xf32> to vector<8x4xf32>
    %43 = vector.shape_cast %42 : vector<8x4xf32> to vector<8x4x1xf32>
    %44 = arith.truncf %41 : vector<8x4x4xf32> to vector<8x4x4xbf16>
    "tpu.trace_start"() <{level = 10 : i32, message = "bqk,bkd->bqd"}> : () -> ()
    %cst_12 = arith.constant dense<0.000000e+00> : vector<8x4x8xf32>
    %45 = tpu.matmul %44, %35, %cst_12 {dimension_numbers = #tpu.dot_dimension_numbers<[2], [1], [1], [2], [0, 0, 0, 1, 1, 2], [0], [0]>} : vector<8x4x4xbf16>, vector<8x4x8xbf16>, vector<8x4x8xf32> -> vector<8x4x8xf32>
    "tpu.trace_stop"() : () -> ()
    %46 = tpu.reciprocal %43 {approx = true} : vector<8x4x1xf32> -> vector<8x4x1xf32>
    %47 = vector.broadcast %46 : vector<8x4x1xf32> to vector<8x4x8xf32>
    %48 = arith.mulf %45, %47 : vector<8x4x8xf32>
    %49 = vector.extract_strided_slice %0 {offsets = [0, 0, 24], sizes = [8, 4, 8], strides = [1, 1, 1]} : vector<8x4x96xbf16> to vector<8x4x8xbf16>
    %50 = vector.extract_strided_slice %0 {offsets = [0, 0, 56], sizes = [8, 4, 8], strides = [1, 1, 1]} : vector<8x4x96xbf16> to vector<8x4x8xbf16>
    %51 = vector.extract_strided_slice %0 {offsets = [0, 0, 88], sizes = [8, 4, 8], strides = [1, 1, 1]} : vector<8x4x96xbf16> to vector<8x4x8xbf16>
    "tpu.trace_start"() <{level = 10 : i32, message = "bqd,bkd->bqk"}> : () -> ()
    %cst_13 = arith.constant dense<0.000000e+00> : vector<8x4x4xf32>
    %52 = tpu.matmul %49, %50, %cst_13 {dimension_numbers = #tpu.dot_dimension_numbers<[2], [2], [1], [1], [0, 0, 0, 1, 1, 1], [0], [0]>} : vector<8x4x8xbf16>, vector<8x4x8xbf16>, vector<8x4x4xf32> -> vector<8x4x4xf32>
    "tpu.trace_stop"() : () -> ()
    %cst_14 = arith.constant dense<0xFF800000> : vector<8x4xf32>
    %53 = vector.multi_reduction <maximumf>, %52, %cst_14 [2] : vector<8x4x4xf32> to vector<8x4xf32>
    %54 = vector.shape_cast %53 : vector<8x4xf32> to vector<8x4x1xf32>
    %55 = vector.broadcast %54 : vector<8x4x1xf32> to vector<8x4x4xf32>
    %56 = arith.subf %52, %55 : vector<8x4x4xf32>
    %57 = math.exp %56 : vector<8x4x4xf32>
    %cst_15 = arith.constant dense<0.000000e+00> : vector<8x4xf32>
    %58 = vector.multi_reduction <add>, %57, %cst_15 [2] : vector<8x4x4xf32> to vector<8x4xf32>
    %59 = vector.shape_cast %58 : vector<8x4xf32> to vector<8x4x1xf32>
    %60 = arith.truncf %57 : vector<8x4x4xf32> to vector<8x4x4xbf16>
    "tpu.trace_start"() <{level = 10 : i32, message = "bqk,bkd->bqd"}> : () -> ()
    %cst_16 = arith.constant dense<0.000000e+00> : vector<8x4x8xf32>
    %61 = tpu.matmul %60, %51, %cst_16 {dimension_numbers = #tpu.dot_dimension_numbers<[2], [1], [1], [2], [0, 0, 0, 1, 1, 2], [0], [0]>} : vector<8x4x4xbf16>, vector<8x4x8xbf16>, vector<8x4x8xf32> -> vector<8x4x8xf32>
    "tpu.trace_stop"() : () -> ()
    %62 = tpu.reciprocal %59 {approx = true} : vector<8x4x1xf32> -> vector<8x4x1xf32>
    %63 = vector.broadcast %62 : vector<8x4x1xf32> to vector<8x4x8xf32>
    %64 = arith.mulf %61, %63 : vector<8x4x8xf32>
    %65 = tpu.concatenate %16, %32, %48, %64 in 2 : vector<8x4x8xf32>, vector<8x4x8xf32>, vector<8x4x8xf32>, vector<8x4x8xf32> -> vector<8x4x32xf32>
    %66 = arith.truncf %65 : vector<8x4x32xf32> to vector<8x4x32xbf16>
    %c0_17 = arith.constant 0 : index
    %c0_18 = arith.constant 0 : index
    %c0_19 = arith.constant 0 : index
    %67 = vector.load %arg2[%c0_17, %c0_18, %c0_19] : memref<8x4x32xbf16, #tpu.memory_space<vmem>>, vector<8x4x32xbf16>
    tpu.vector_store %arg2[%c0_17, %c0_18, %c0_19], %66 {strides = array<i32>} : memref<8x4x32xbf16, #tpu.memory_space<vmem>>, vector<8x4x32xbf16>,
    return
  }
  func.func @transform_0(%arg0: i32) -> (i32, i32, i32) {
    %c0_i32 = arith.constant 0 : i32
    %c0_i32_0 = arith.constant 0 : i32
    %c0_i32_1 = arith.constant 0 : i32
    return %arg0, %c0_i32, %c0_i32_0 : i32, i32, i32
  }
  func.func @transform_1(%arg0: i32) -> (i32, i32, i32) {
    %c0_i32 = arith.constant 0 : i32
    %c0_i32_0 = arith.constant 0 : i32
    %c0_i32_1 = arith.constant 0 : i32
    return %arg0, %c0_i32, %c0_i32_0 : i32, i32, i32
  }
}

module attributes {stable_mosaic.version = 11 : i64} {
  func.func @_sdpa_kernel(%arg0: i32, %arg1: memref<8x8x96xbf16, #tpu.memory_space<vmem>>, %arg2: memref<8x8x32xbf16, #tpu.memory_space<vmem>>) attributes {dimension_semantics = [#tpu.dimension_semantics<parallel>], iteration_bounds = array<i64: 1>, scalar_prefetch = 0 : i64, scratch_operands = 0 : i64, tpu.core_type = #tpu.core_type<tc>, window_params = [{transform_indices = @transform_0, window_bounds = array<i64: 8, 8, 96>}, {transform_indices = @transform_1, window_bounds = array<i64: 8, 8, 32>}]} {
    %c0 = arith.constant 0 : index
    %c0_0 = arith.constant 0 : index
    %c0_1 = arith.constant 0 : index
    %0 = vector.load %arg1[%c0, %c0_0, %c0_1] : memref<8x8x96xbf16, #tpu.memory_space<vmem>>, vector<8x8x96xbf16>
    %1 = tpu.transpose %0, [1, 0, 2] : vector<8x8x96xbf16> -> vector<8x8x96xbf16>
    %2 = vector.extract_strided_slice %1 {offsets = [0, 0, 0], sizes = [8, 8, 8], strides = [1, 1, 1]} : vector<8x8x96xbf16> to vector<8x8x8xbf16>
    %3 = vector.extract_strided_slice %1 {offsets = [0, 0, 32], sizes = [8, 8, 8], strides = [1, 1, 1]} : vector<8x8x96xbf16> to vector<8x8x8xbf16>
    %4 = vector.extract_strided_slice %1 {offsets = [0, 0, 64], sizes = [8, 8, 8], strides = [1, 1, 1]} : vector<8x8x96xbf16> to vector<8x8x8xbf16>
    "tpu.trace_start"() <{level = 10 : i32, message = "bqd,bkd->bqk"}> : () -> ()
    %cst = arith.constant dense<0.000000e+00> : vector<8x8x8xf32>
    %5 = tpu.matmul %2, %3, %cst {dimension_numbers = #tpu.dot_dimension_numbers<[2], [2], [1], [1], [0, 0, 0, 1, 1, 1], [0], [0]>} : vector<8x8x8xbf16>, vector<8x8x8xbf16>, vector<8x8x8xf32> -> vector<8x8x8xf32>
    "tpu.trace_stop"() : () -> ()
    %cst_2 = arith.constant dense<0xFF800000> : vector<8x8xf32>
    %6 = vector.multi_reduction <maximumf>, %5, %cst_2 [2] : vector<8x8x8xf32> to vector<8x8xf32>
    %7 = vector.shape_cast %6 : vector<8x8xf32> to vector<8x8x1xf32>
    %8 = vector.broadcast %7 : vector<8x8x1xf32> to vector<8x8x8xf32>
    %9 = arith.subf %5, %8 : vector<8x8x8xf32>
    %10 = math.exp %9 : vector<8x8x8xf32>
    %cst_3 = arith.constant dense<0.000000e+00> : vector<8x8xf32>
    %11 = vector.multi_reduction <add>, %10, %cst_3 [2] : vector<8x8x8xf32> to vector<8x8xf32>
    %12 = vector.shape_cast %11 : vector<8x8xf32> to vector<8x8x1xf32>
    %13 = arith.truncf %10 : vector<8x8x8xf32> to vector<8x8x8xbf16>
    "tpu.trace_start"() <{level = 10 : i32, message = "bqk,bkd->bqd"}> : () -> ()
    %cst_4 = arith.constant dense<0.000000e+00> : vector<8x8x8xf32>
    %14 = tpu.matmul %13, %4, %cst_4 {dimension_numbers = #tpu.dot_dimension_numbers<[2], [1], [1], [2], [0, 0, 0, 1, 1, 2], [0], [0]>} : vector<8x8x8xbf16>, vector<8x8x8xbf16>, vector<8x8x8xf32> -> vector<8x8x8xf32>
    "tpu.trace_stop"() : () -> ()
    %15 = tpu.reciprocal %12 {approx = true} : vector<8x8x1xf32> -> vector<8x8x1xf32>
    %16 = vector.broadcast %15 : vector<8x8x1xf32> to vector<8x8x8xf32>
    %17 = arith.mulf %14, %16 : vector<8x8x8xf32>
    %18 = vector.extract_strided_slice %1 {offsets = [0, 0, 8], sizes = [8, 8, 8], strides = [1, 1, 1]} : vector<8x8x96xbf16> to vector<8x8x8xbf16>
    %19 = vector.extract_strided_slice %1 {offsets = [0, 0, 40], sizes = [8, 8, 8], strides = [1, 1, 1]} : vector<8x8x96xbf16> to vector<8x8x8xbf16>
    %20 = vector.extract_strided_slice %1 {offsets = [0, 0, 72], sizes = [8, 8, 8], strides = [1, 1, 1]} : vector<8x8x96xbf16> to vector<8x8x8xbf16>
    "tpu.trace_start"() <{level = 10 : i32, message = "bqd,bkd->bqk"}> : () -> ()
    %cst_5 = arith.constant dense<0.000000e+00> : vector<8x8x8xf32>
    %21 = tpu.matmul %18, %19, %cst_5 {dimension_numbers = #tpu.dot_dimension_numbers<[2], [2], [1], [1], [0, 0, 0, 1, 1, 1], [0], [0]>} : vector<8x8x8xbf16>, vector<8x8x8xbf16>, vector<8x8x8xf32> -> vector<8x8x8xf32>
    "tpu.trace_stop"() : () -> ()
    %cst_6 = arith.constant dense<0xFF800000> : vector<8x8xf32>
    %22 = vector.multi_reduction <maximumf>, %21, %cst_6 [2] : vector<8x8x8xf32> to vector<8x8xf32>
    %23 = vector.shape_cast %22 : vector<8x8xf32> to vector<8x8x1xf32>
    %24 = vector.broadcast %23 : vector<8x8x1xf32> to vector<8x8x8xf32>
    %25 = arith.subf %21, %24 : vector<8x8x8xf32>
    %26 = math.exp %25 : vector<8x8x8xf32>
    %cst_7 = arith.constant dense<0.000000e+00> : vector<8x8xf32>
    %27 = vector.multi_reduction <add>, %26, %cst_7 [2] : vector<8x8x8xf32> to vector<8x8xf32>
    %28 = vector.shape_cast %27 : vector<8x8xf32> to vector<8x8x1xf32>
    %29 = arith.truncf %26 : vector<8x8x8xf32> to vector<8x8x8xbf16>
    "tpu.trace_start"() <{level = 10 : i32, message = "bqk,bkd->bqd"}> : () -> ()
    %cst_8 = arith.constant dense<0.000000e+00> : vector<8x8x8xf32>
    %30 = tpu.matmul %29, %20, %cst_8 {dimension_numbers = #tpu.dot_dimension_numbers<[2], [1], [1], [2], [0, 0, 0, 1, 1, 2], [0], [0]>} : vector<8x8x8xbf16>, vector<8x8x8xbf16>, vector<8x8x8xf32> -> vector<8x8x8xf32>
    "tpu.trace_stop"() : () -> ()
    %31 = tpu.reciprocal %28 {approx = true} : vector<8x8x1xf32> -> vector<8x8x1xf32>
    %32 = vector.broadcast %31 : vector<8x8x1xf32> to vector<8x8x8xf32>
    %33 = arith.mulf %30, %32 : vector<8x8x8xf32>
    %34 = vector.extract_strided_slice %1 {offsets = [0, 0, 16], sizes = [8, 8, 8], strides = [1, 1, 1]} : vector<8x8x96xbf16> to vector<8x8x8xbf16>
    %35 = vector.extract_strided_slice %1 {offsets = [0, 0, 48], sizes = [8, 8, 8], strides = [1, 1, 1]} : vector<8x8x96xbf16> to vector<8x8x8xbf16>
    %36 = vector.extract_strided_slice %1 {offsets = [0, 0, 80], sizes = [8, 8, 8], strides = [1, 1, 1]} : vector<8x8x96xbf16> to vector<8x8x8xbf16>
    "tpu.trace_start"() <{level = 10 : i32, message = "bqd,bkd->bqk"}> : () -> ()
    %cst_9 = arith.constant dense<0.000000e+00> : vector<8x8x8xf32>
    %37 = tpu.matmul %34, %35, %cst_9 {dimension_numbers = #tpu.dot_dimension_numbers<[2], [2], [1], [1], [0, 0, 0, 1, 1, 1], [0], [0]>} : vector<8x8x8xbf16>, vector<8x8x8xbf16>, vector<8x8x8xf32> -> vector<8x8x8xf32>
    "tpu.trace_stop"() : () -> ()
    %cst_10 = arith.constant dense<0xFF800000> : vector<8x8xf32>
    %38 = vector.multi_reduction <maximumf>, %37, %cst_10 [2] : vector<8x8x8xf32> to vector<8x8xf32>
    %39 = vector.shape_cast %38 : vector<8x8xf32> to vector<8x8x1xf32>
    %40 = vector.broadcast %39 : vector<8x8x1xf32> to vector<8x8x8xf32>
    %41 = arith.subf %37, %40 : vector<8x8x8xf32>
    %42 = math.exp %41 : vector<8x8x8xf32>
    %cst_11 = arith.constant dense<0.000000e+00> : vector<8x8xf32>
    %43 = vector.multi_reduction <add>, %42, %cst_11 [2] : vector<8x8x8xf32> to vector<8x8xf32>
    %44 = vector.shape_cast %43 : vector<8x8xf32> to vector<8x8x1xf32>
    %45 = arith.truncf %42 : vector<8x8x8xf32> to vector<8x8x8xbf16>
    "tpu.trace_start"() <{level = 10 : i32, message = "bqk,bkd->bqd"}> : () -> ()
    %cst_12 = arith.constant dense<0.000000e+00> : vector<8x8x8xf32>
    %46 = tpu.matmul %45, %36, %cst_12 {dimension_numbers = #tpu.dot_dimension_numbers<[2], [1], [1], [2], [0, 0, 0, 1, 1, 2], [0], [0]>} : vector<8x8x8xbf16>, vector<8x8x8xbf16>, vector<8x8x8xf32> -> vector<8x8x8xf32>
    "tpu.trace_stop"() : () -> ()
    %47 = tpu.reciprocal %44 {approx = true} : vector<8x8x1xf32> -> vector<8x8x1xf32>
    %48 = vector.broadcast %47 : vector<8x8x1xf32> to vector<8x8x8xf32>
    %49 = arith.mulf %46, %48 : vector<8x8x8xf32>
    %50 = vector.extract_strided_slice %1 {offsets = [0, 0, 24], sizes = [8, 8, 8], strides = [1, 1, 1]} : vector<8x8x96xbf16> to vector<8x8x8xbf16>
    %51 = vector.extract_strided_slice %1 {offsets = [0, 0, 56], sizes = [8, 8, 8], strides = [1, 1, 1]} : vector<8x8x96xbf16> to vector<8x8x8xbf16>
    %52 = vector.extract_strided_slice %1 {offsets = [0, 0, 88], sizes = [8, 8, 8], strides = [1, 1, 1]} : vector<8x8x96xbf16> to vector<8x8x8xbf16>
    "tpu.trace_start"() <{level = 10 : i32, message = "bqd,bkd->bqk"}> : () -> ()
    %cst_13 = arith.constant dense<0.000000e+00> : vector<8x8x8xf32>
    %53 = tpu.matmul %50, %51, %cst_13 {dimension_numbers = #tpu.dot_dimension_numbers<[2], [2], [1], [1], [0, 0, 0, 1, 1, 1], [0], [0]>} : vector<8x8x8xbf16>, vector<8x8x8xbf16>, vector<8x8x8xf32> -> vector<8x8x8xf32>
    "tpu.trace_stop"() : () -> ()
    %cst_14 = arith.constant dense<0xFF800000> : vector<8x8xf32>
    %54 = vector.multi_reduction <maximumf>, %53, %cst_14 [2] : vector<8x8x8xf32> to vector<8x8xf32>
    %55 = vector.shape_cast %54 : vector<8x8xf32> to vector<8x8x1xf32>
    %56 = vector.broadcast %55 : vector<8x8x1xf32> to vector<8x8x8xf32>
    %57 = arith.subf %53, %56 : vector<8x8x8xf32>
    %58 = math.exp %57 : vector<8x8x8xf32>
    %cst_15 = arith.constant dense<0.000000e+00> : vector<8x8xf32>
    %59 = vector.multi_reduction <add>, %58, %cst_15 [2] : vector<8x8x8xf32> to vector<8x8xf32>
    %60 = vector.shape_cast %59 : vector<8x8xf32> to vector<8x8x1xf32>
    %61 = arith.truncf %58 : vector<8x8x8xf32> to vector<8x8x8xbf16>
    "tpu.trace_start"() <{level = 10 : i32, message = "bqk,bkd->bqd"}> : () -> ()
    %cst_16 = arith.constant dense<0.000000e+00> : vector<8x8x8xf32>
    %62 = tpu.matmul %61, %52, %cst_16 {dimension_numbers = #tpu.dot_dimension_numbers<[2], [1], [1], [2], [0, 0, 0, 1, 1, 2], [0], [0]>} : vector<8x8x8xbf16>, vector<8x8x8xbf16>, vector<8x8x8xf32> -> vector<8x8x8xf32>
    "tpu.trace_stop"() : () -> ()
    %63 = tpu.reciprocal %60 {approx = true} : vector<8x8x1xf32> -> vector<8x8x1xf32>
    %64 = vector.broadcast %63 : vector<8x8x1xf32> to vector<8x8x8xf32>
    %65 = arith.mulf %62, %64 : vector<8x8x8xf32>
    %66 = tpu.concatenate %17, %33, %49, %65 in 2 : vector<8x8x8xf32>, vector<8x8x8xf32>, vector<8x8x8xf32>, vector<8x8x8xf32> -> vector<8x8x32xf32>
    %67 = tpu.transpose %66, [1, 0, 2] : vector<8x8x32xf32> -> vector<8x8x32xf32>
    %68 = arith.truncf %67 : vector<8x8x32xf32> to vector<8x8x32xbf16>
    %c0_17 = arith.constant 0 : index
    %c0_18 = arith.constant 0 : index
    %c0_19 = arith.constant 0 : index
    %69 = vector.load %arg2[%c0_17, %c0_18, %c0_19] : memref<8x8x32xbf16, #tpu.memory_space<vmem>>, vector<8x8x32xbf16>
    tpu.vector_store %arg2[%c0_17, %c0_18, %c0_19], %68 {strides = array<i32>} : memref<8x8x32xbf16, #tpu.memory_space<vmem>>, vector<8x8x32xbf16>,
    return
  }
  func.func @transform_0(%arg0: i32) -> (i32, i32, i32) {
    %c0_i32 = arith.constant 0 : i32
    %c0_i32_0 = arith.constant 0 : i32
    %c0_i32_1 = arith.constant 0 : i32
    return %c0_i32, %arg0, %c0_i32_0 : i32, i32, i32
  }
  func.func @transform_1(%arg0: i32) -> (i32, i32, i32) {
    %c0_i32 = arith.constant 0 : i32
    %c0_i32_0 = arith.constant 0 : i32
    %c0_i32_1 = arith.constant 0 : i32
    return %c0_i32, %arg0, %c0_i32_0 : i32, i32, i32
  }
}

module attributes {stable_mosaic.version = 11 : i64} {
  func.func @_linear_residual_kernel(%arg0: i32, %arg1: i32, %arg2: i32, %arg3: memref<64x32xbf16, #tpu.memory_space<vmem>>, %arg4: memref<32x32xbf16, #tpu.memory_space<vmem>>, %arg5: memref<1x32xf32, #tpu.memory_space<vmem>>, %arg6: memref<64x32xf32, #tpu.memory_space<vmem>>, %arg7: memref<64x32xf32, #tpu.memory_space<vmem>>, %arg8: memref<64x32xf32, #tpu.memory_space<vmem>>) attributes {dimension_semantics = [#tpu.dimension_semantics<parallel>, #tpu.dimension_semantics<parallel>, #tpu.dimension_semantics<arbitrary>], iteration_bounds = array<i64: 1, 1, 1>, scalar_prefetch = 0 : i64, scratch_operands = 1 : i64, tpu.core_type = #tpu.core_type<tc>, window_params = [{transform_indices = @transform_0, window_bounds = array<i64: 64, 32>}, {transform_indices = @transform_1, window_bounds = array<i64: 32, 32>}, {transform_indices = @transform_2, window_bounds = array<i64: 1, 32>}, {transform_indices = @transform_3, window_bounds = array<i64: 64, 32>}, {transform_indices = @transform_4, window_bounds = array<i64: 64, 32>}]} {
    %c0_i32 = arith.constant 0 : i32
    %0 = arith.cmpi eq, %arg2, %c0_i32 : i32
    %1 = arith.extui %0 : i1 to i32
    %c0_i32_0 = arith.constant 0 : i32
    %2 = arith.cmpi ne, %1, %c0_i32_0 : i32
    scf.if %2 {
      %cst_10 = arith.constant 0.000000e+00 : f32
      %12 = vector.broadcast %cst_10 : f32 to vector<64x32xf32>
      %c0_11 = arith.constant 0 : index
      %c0_12 = arith.constant 0 : index
      %13 = vector.load %arg8[%c0_11, %c0_12] : memref<64x32xf32, #tpu.memory_space<vmem>>, vector<64x32xf32>
      tpu.vector_store %arg8[%c0_11, %c0_12], %12 {strides = array<i32>} : memref<64x32xf32, #tpu.memory_space<vmem>>, vector<64x32xf32>,
    } else {
    }
    %c0 = arith.constant 0 : index
    %c0_1 = arith.constant 0 : index
    %3 = vector.load %arg8[%c0, %c0_1] : memref<64x32xf32, #tpu.memory_space<vmem>>, vector<64x32xf32>
    %c0_2 = arith.constant 0 : index
    %c0_3 = arith.constant 0 : index
    %4 = vector.load %arg3[%c0_2, %c0_3] : memref<64x32xbf16, #tpu.memory_space<vmem>>, vector<64x32xbf16>
    %c0_4 = arith.constant 0 : index
    %c0_5 = arith.constant 0 : index
    %5 = vector.load %arg4[%c0_4, %c0_5] : memref<32x32xbf16, #tpu.memory_space<vmem>>, vector<32x32xbf16>
    %cst = arith.constant dense<0.000000e+00> : vector<64x32xf32>
    %6 = tpu.matmul %4, %5, %cst {dimension_numbers = #tpu.dot_dimension_numbers<[1], [0], [0], [1], [0, 0, 1, 1], [], []>} : vector<64x32xbf16>, vector<32x32xbf16>, vector<64x32xf32> -> vector<64x32xf32>
    %7 = arith.addf %3, %6 : vector<64x32xf32>
    %c0_6 = arith.constant 0 : index
    %c0_7 = arith.constant 0 : index
    %8 = vector.load %arg8[%c0_6, %c0_7] : memref<64x32xf32, #tpu.memory_space<vmem>>, vector<64x32xf32>
    tpu.vector_store %arg8[%c0_6, %c0_7], %7 {strides = array<i32>} : memref<64x32xf32, #tpu.memory_space<vmem>>, vector<64x32xf32>,
    %c0_i32_8 = arith.constant 0 : i32
    %9 = arith.cmpi eq, %arg2, %c0_i32_8 : i32
    %10 = arith.extui %9 : i1 to i32
    %c0_i32_9 = arith.constant 0 : i32
    %11 = arith.cmpi ne, %10, %c0_i32_9 : i32
    scf.if %11 {
      %c0_10 = arith.constant 0 : index
      %c0_11 = arith.constant 0 : index
      %12 = vector.load %arg8[%c0_10, %c0_11] : memref<64x32xf32, #tpu.memory_space<vmem>>, vector<64x32xf32>
      %c0_12 = arith.constant 0 : index
      %c0_13 = arith.constant 0 : index
      %13 = vector.load %arg5[%c0_12, %c0_13] : memref<1x32xf32, #tpu.memory_space<vmem>>, vector<1x32xf32>
      %14 = vector.broadcast %13 : vector<1x32xf32> to vector<64x32xf32>
      %15 = arith.addf %12, %14 : vector<64x32xf32>
      %c0_14 = arith.constant 0 : index
      %c0_15 = arith.constant 0 : index
      %16 = vector.load %arg6[%c0_14, %c0_15] : memref<64x32xf32, #tpu.memory_space<vmem>>, vector<64x32xf32>
      %17 = arith.addf %15, %16 : vector<64x32xf32>
      %c0_16 = arith.constant 0 : index
      %c0_17 = arith.constant 0 : index
      %18 = vector.load %arg7[%c0_16, %c0_17] : memref<64x32xf32, #tpu.memory_space<vmem>>, vector<64x32xf32>
      tpu.vector_store %arg7[%c0_16, %c0_17], %17 {strides = array<i32>} : memref<64x32xf32, #tpu.memory_space<vmem>>, vector<64x32xf32>,
    } else {
    }
    return
  }
  func.func @transform_0(%arg0: i32, %arg1: i32, %arg2: i32) -> (i32, i32) {
    %c0_i32 = arith.constant 0 : i32
    return %arg0, %arg2 : i32, i32
  }
  func.func @transform_1(%arg0: i32, %arg1: i32, %arg2: i32) -> (i32, i32) {
    %c0_i32 = arith.constant 0 : i32
    return %arg2, %arg1 : i32, i32
  }
  func.func @transform_2(%arg0: i32, %arg1: i32, %arg2: i32) -> (i32, i32) {
    %c0_i32 = arith.constant 0 : i32
    %c0_i32_0 = arith.constant 0 : i32
    return %c0_i32, %arg1 : i32, i32
  }
  func.func @transform_3(%arg0: i32, %arg1: i32, %arg2: i32) -> (i32, i32) {
    %c0_i32 = arith.constant 0 : i32
    return %arg0, %arg1 : i32, i32
  }
  func.func @transform_4(%arg0: i32, %arg1: i32, %arg2: i32) -> (i32, i32) {
    %c0_i32 = arith.constant 0 : i32
    return %arg0, %arg1 : i32, i32
  }
}

module attributes {stable_mosaic.version = 11 : i64} {
  func.func @_ln_linear_kernel(%arg0: i32, %arg1: i32, %arg2: memref<64x32xf32, #tpu.memory_space<vmem>>, %arg3: memref<1x32xf32, #tpu.memory_space<vmem>>, %arg4: memref<1x32xf32, #tpu.memory_space<vmem>>, %arg5: memref<32x128xbf16, #tpu.memory_space<vmem>>, %arg6: memref<1x128xf32, #tpu.memory_space<vmem>>, %arg7: memref<64x128xbf16, #tpu.memory_space<vmem>>, %arg8: memref<64x32xbf16, #tpu.memory_space<vmem>>) attributes {dimension_semantics = [#tpu.dimension_semantics<parallel>, #tpu.dimension_semantics<arbitrary>], iteration_bounds = array<i64: 1, 1>, scalar_prefetch = 0 : i64, scratch_operands = 1 : i64, tpu.core_type = #tpu.core_type<tc>, window_params = [{transform_indices = @transform_0, window_bounds = array<i64: 64, 32>}, {pipeline_mode = #tpu.pipeline_mode<synchronous>, transform_indices = @transform_1, window_bounds = array<i64: 1, 32>}, {pipeline_mode = #tpu.pipeline_mode<synchronous>, transform_indices = @transform_2, window_bounds = array<i64: 1, 32>}, {transform_indices = @transform_3, window_bounds = array<i64: 32, 128>}, {transform_indices = @transform_4, window_bounds = array<i64: 1, 128>}, {transform_indices = @transform_5, window_bounds = array<i64: 64, 128>}]} {
    %c0_i32 = arith.constant 0 : i32
    %0 = arith.cmpi eq, %arg1, %c0_i32 : i32
    %1 = arith.extui %0 : i1 to i32
    %c0_i32_0 = arith.constant 0 : i32
    %2 = arith.cmpi ne, %1, %c0_i32_0 : i32
    scf.if %2 {
      %c0_11 = arith.constant 0 : index
      %c0_12 = arith.constant 0 : index
      %19 = vector.load %arg2[%c0_11, %c0_12] : memref<64x32xf32, #tpu.memory_space<vmem>>, vector<64x32xf32>
      %cst_13 = arith.constant dense<0.000000e+00> : vector<64xf32>
      %20 = vector.multi_reduction <add>, %19, %cst_13 [1] : vector<64x32xf32> to vector<64xf32>
      %21 = vector.shape_cast %20 : vector<64xf32> to vector<64x1xf32>
      %cst_14 = arith.constant 3.200000e+01 : f32
      %22 = vector.broadcast %cst_14 : f32 to vector<64x1xf32>
      %23 = arith.divf %21, %22 : vector<64x1xf32>
      %24 = vector.broadcast %23 : vector<64x1xf32> to vector<64x32xf32>
      %25 = arith.subf %19, %24 : vector<64x32xf32>
      %26 = arith.mulf %25, %25 : vector<64x32xf32>
      %cst_15 = arith.constant dense<0.000000e+00> : vector<64xf32>
      %27 = vector.multi_reduction <add>, %26, %cst_15 [1] : vector<64x32xf32> to vector<64xf32>
      %28 = vector.shape_cast %27 : vector<64xf32> to vector<64x1xf32>
      %cst_16 = arith.constant 3.200000e+01 : f32
      %29 = vector.broadcast %cst_16 : f32 to vector<64x1xf32>
      %30 = arith.divf %28, %29 : vector<64x1xf32>
      %cst_17 = arith.constant 9.99999974E-6 : f32
      %31 = vector.broadcast %cst_17 : f32 to vector<64x1xf32>
      %32 = arith.addf %30, %31 : vector<64x1xf32>
      %33 = math.rsqrt %32 : vector<64x1xf32>
      %34 = vector.broadcast %33 : vector<64x1xf32> to vector<64x32xf32>
      %35 = arith.mulf %25, %34 : vector<64x32xf32>
      %c0_18 = arith.constant 0 : index
      %c0_19 = arith.constant 0 : index
      %36 = vector.load %arg3[%c0_18, %c0_19] : memref<1x32xf32, #tpu.memory_space<vmem>>, vector<1x32xf32>
      %37 = vector.broadcast %36 : vector<1x32xf32> to vector<64x32xf32>
      %38 = arith.mulf %35, %37 : vector<64x32xf32>
      %c0_20 = arith.constant 0 : index
      %c0_21 = arith.constant 0 : index
      %39 = vector.load %arg4[%c0_20, %c0_21] : memref<1x32xf32, #tpu.memory_space<vmem>>, vector<1x32xf32>
      %40 = vector.broadcast %39 : vector<1x32xf32> to vector<64x32xf32>
      %41 = arith.addf %38, %40 : vector<64x32xf32>
      %42 = arith.truncf %41 : vector<64x32xf32> to vector<64x32xbf16>
      %c0_22 = arith.constant 0 : index
      %c0_23 = arith.constant 0 : index
      %43 = vector.load %arg8[%c0_22, %c0_23] : memref<64x32xbf16, #tpu.memory_space<vmem>>, vector<64x32xbf16>
      tpu.vector_store %arg8[%c0_22, %c0_23], %42 {strides = array<i32>} : memref<64x32xbf16, #tpu.memory_space<vmem>>, vector<64x32xbf16>,
    } else {
    }
    %c0 = arith.constant 0 : index
    %c0_1 = arith.constant 0 : index
    %3 = vector.load %arg8[%c0, %c0_1] : memref<64x32xbf16, #tpu.memory_space<vmem>>, vector<64x32xbf16>
    %c0_2 = arith.constant 0 : index
    %c0_3 = arith.constant 0 : index
    %4 = vector.load %arg5[%c0_2, %c0_3] : memref<32x128xbf16, #tpu.memory_space<vmem>>, vector<32x128xbf16>
    %cst = arith.constant dense<0.000000e+00> : vector<64x128xf32>
    %5 = tpu.matmul %3, %4, %cst {dimension_numbers = #tpu.dot_dimension_numbers<[1], [0], [0], [1], [0, 0, 1, 1], [], []>} : vector<64x32xbf16>, vector<32x128xbf16>, vector<64x128xf32> -> vector<64x128xf32>
    %c0_4 = arith.constant 0 : index
    %c0_5 = arith.constant 0 : index
    %6 = vector.load %arg6[%c0_4, %c0_5] : memref<1x128xf32, #tpu.memory_space<vmem>>, vector<1x128xf32>
    %7 = vector.broadcast %6 : vector<1x128xf32> to vector<64x128xf32>
    %8 = arith.addf %5, %7 : vector<64x128xf32>
    %cst_6 = arith.constant 8.510000e-01 : f32
    %9 = vector.broadcast %cst_6 : f32 to vector<64x128xf32>
    %10 = arith.mulf %9, %8 : vector<64x128xf32>
    %11 = math.tanh %10 : vector<64x128xf32>
    %cst_7 = arith.constant 1.000000e+00 : f32
    %12 = vector.broadcast %cst_7 : f32 to vector<64x128xf32>
    %13 = arith.addf %11, %12 : vector<64x128xf32>
    %cst_8 = arith.constant 5.000000e-01 : f32
    %14 = vector.broadcast %cst_8 : f32 to vector<64x128xf32>
    %15 = arith.mulf %14, %13 : vector<64x128xf32>
    %16 = arith.mulf %8, %15 : vector<64x128xf32>
    %17 = arith.truncf %16 : vector<64x128xf32> to vector<64x128xbf16>
    %c0_9 = arith.constant 0 : index
    %c0_10 = arith.constant 0 : index
    %18 = vector.load %arg7[%c0_9, %c0_10] : memref<64x128xbf16, #tpu.memory_space<vmem>>, vector<64x128xbf16>
    tpu.vector_store %arg7[%c0_9, %c0_10], %17 {strides = array<i32>} : memref<64x128xbf16, #tpu.memory_space<vmem>>, vector<64x128xbf16>,
    return
  }
  func.func @transform_0(%arg0: i32, %arg1: i32) -> (i32, i32) {
    %c0_i32 = arith.constant 0 : i32
    %c0_i32_0 = arith.constant 0 : i32
    return %arg0, %c0_i32 : i32, i32
  }
  func.func @transform_1(%arg0: i32, %arg1: i32) -> (i32, i32) {
    %c0_i32 = arith.constant 0 : i32
    %c0_i32_0 = arith.constant 0 : i32
    %c0_i32_1 = arith.constant 0 : i32
    return %c0_i32, %c0_i32_0 : i32, i32
  }
  func.func @transform_2(%arg0: i32, %arg1: i32) -> (i32, i32) {
    %c0_i32 = arith.constant 0 : i32
    %c0_i32_0 = arith.constant 0 : i32
    %c0_i32_1 = arith.constant 0 : i32
    return %c0_i32, %c0_i32_0 : i32, i32
  }
  func.func @transform_3(%arg0: i32, %arg1: i32) -> (i32, i32) {
    %c0_i32 = arith.constant 0 : i32
    %c0_i32_0 = arith.constant 0 : i32
    return %c0_i32, %arg1 : i32, i32
  }
  func.func @transform_4(%arg0: i32, %arg1: i32) -> (i32, i32) {
    %c0_i32 = arith.constant 0 : i32
    %c0_i32_0 = arith.constant 0 : i32
    return %c0_i32, %arg1 : i32, i32
  }
  func.func @transform_5(%arg0: i32, %arg1: i32) -> (i32, i32) {
    %c0_i32 = arith.constant 0 : i32
    return %arg0, %arg1 : i32, i32
  }
}

module attributes {stable_mosaic.version = 11 : i64} {
  func.func @_linear_residual_kernel(%arg0: i32, %arg1: i32, %arg2: i32, %arg3: memref<64x32xbf16, #tpu.memory_space<vmem>>, %arg4: memref<32x32xbf16, #tpu.memory_space<vmem>>, %arg5: memref<1x32xf32, #tpu.memory_space<vmem>>, %arg6: memref<64x32xf32, #tpu.memory_space<vmem>>, %arg7: memref<64x32xf32, #tpu.memory_space<vmem>>, %arg8: memref<64x32xf32, #tpu.memory_space<vmem>>) attributes {dimension_semantics = [#tpu.dimension_semantics<parallel>, #tpu.dimension_semantics<parallel>, #tpu.dimension_semantics<arbitrary>], iteration_bounds = array<i64: 1, 1, 1>, scalar_prefetch = 0 : i64, scratch_operands = 1 : i64, tpu.core_type = #tpu.core_type<tc>, window_params = [{transform_indices = @transform_0, window_bounds = array<i64: 64, 32>}, {transform_indices = @transform_1, window_bounds = array<i64: 32, 32>}, {transform_indices = @transform_2, window_bounds = array<i64: 1, 32>}, {transform_indices = @transform_3, window_bounds = array<i64: 64, 32>}, {transform_indices = @transform_4, window_bounds = array<i64: 64, 32>}]} {
    %c0_i32 = arith.constant 0 : i32
    %0 = arith.cmpi eq, %arg2, %c0_i32 : i32
    %1 = arith.extui %0 : i1 to i32
    %c0_i32_0 = arith.constant 0 : i32
    %2 = arith.cmpi ne, %1, %c0_i32_0 : i32
    scf.if %2 {
      %cst_10 = arith.constant 0.000000e+00 : f32
      %12 = vector.broadcast %cst_10 : f32 to vector<64x32xf32>
      %c0_11 = arith.constant 0 : index
      %c0_12 = arith.constant 0 : index
      %13 = vector.load %arg8[%c0_11, %c0_12] : memref<64x32xf32, #tpu.memory_space<vmem>>, vector<64x32xf32>
      tpu.vector_store %arg8[%c0_11, %c0_12], %12 {strides = array<i32>} : memref<64x32xf32, #tpu.memory_space<vmem>>, vector<64x32xf32>,
    } else {
    }
    %c0 = arith.constant 0 : index
    %c0_1 = arith.constant 0 : index
    %3 = vector.load %arg8[%c0, %c0_1] : memref<64x32xf32, #tpu.memory_space<vmem>>, vector<64x32xf32>
    %c0_2 = arith.constant 0 : index
    %c0_3 = arith.constant 0 : index
    %4 = vector.load %arg3[%c0_2, %c0_3] : memref<64x32xbf16, #tpu.memory_space<vmem>>, vector<64x32xbf16>
    %c0_4 = arith.constant 0 : index
    %c0_5 = arith.constant 0 : index
    %5 = vector.load %arg4[%c0_4, %c0_5] : memref<32x32xbf16, #tpu.memory_space<vmem>>, vector<32x32xbf16>
    %cst = arith.constant dense<0.000000e+00> : vector<64x32xf32>
    %6 = tpu.matmul %4, %5, %cst {dimension_numbers = #tpu.dot_dimension_numbers<[1], [0], [0], [1], [0, 0, 1, 1], [], []>} : vector<64x32xbf16>, vector<32x32xbf16>, vector<64x32xf32> -> vector<64x32xf32>
    %7 = arith.addf %3, %6 : vector<64x32xf32>
    %c0_6 = arith.constant 0 : index
    %c0_7 = arith.constant 0 : index
    %8 = vector.load %arg8[%c0_6, %c0_7] : memref<64x32xf32, #tpu.memory_space<vmem>>, vector<64x32xf32>
    tpu.vector_store %arg8[%c0_6, %c0_7], %7 {strides = array<i32>} : memref<64x32xf32, #tpu.memory_space<vmem>>, vector<64x32xf32>,
    %c0_i32_8 = arith.constant 0 : i32
    %9 = arith.cmpi eq, %arg2, %c0_i32_8 : i32
    %10 = arith.extui %9 : i1 to i32
    %c0_i32_9 = arith.constant 0 : i32
    %11 = arith.cmpi ne, %10, %c0_i32_9 : i32
    scf.if %11 {
      %c0_10 = arith.constant 0 : index
      %c0_11 = arith.constant 0 : index
      %12 = vector.load %arg8[%c0_10, %c0_11] : memref<64x32xf32, #tpu.memory_space<vmem>>, vector<64x32xf32>
      %c0_12 = arith.constant 0 : index
      %c0_13 = arith.constant 0 : index
      %13 = vector.load %arg5[%c0_12, %c0_13] : memref<1x32xf32, #tpu.memory_space<vmem>>, vector<1x32xf32>
      %14 = vector.broadcast %13 : vector<1x32xf32> to vector<64x32xf32>
      %15 = arith.addf %12, %14 : vector<64x32xf32>
      %c0_14 = arith.constant 0 : index
      %c0_15 = arith.constant 0 : index
      %16 = vector.load %arg6[%c0_14, %c0_15] : memref<64x32xf32, #tpu.memory_space<vmem>>, vector<64x32xf32>
      %17 = arith.addf %15, %16 : vector<64x32xf32>
      %c0_16 = arith.constant 0 : index
      %c0_17 = arith.constant 0 : index
      %18 = vector.load %arg7[%c0_16, %c0_17] : memref<64x32xf32, #tpu.memory_space<vmem>>, vector<64x32xf32>
      tpu.vector_store %arg7[%c0_16, %c0_17], %17 {strides = array<i32>} : memref<64x32xf32, #tpu.memory_space<vmem>>, vector<64x32xf32>,
    } else {
    }
    return
  }
  func.func @transform_0(%arg0: i32, %arg1: i32, %arg2: i32) -> (i32, i32) {
    %c0_i32 = arith.constant 0 : i32
    return %arg0, %arg2 : i32, i32
  }
  func.func @transform_1(%arg0: i32, %arg1: i32, %arg2: i32) -> (i32, i32) {
    %c0_i32 = arith.constant 0 : i32
    return %arg2, %arg1 : i32, i32
  }
  func.func @transform_2(%arg0: i32, %arg1: i32, %arg2: i32) -> (i32, i32) {
    %c0_i32 = arith.constant 0 : i32
    %c0_i32_0 = arith.constant 0 : i32
    return %c0_i32, %arg1 : i32, i32
  }
  func.func @transform_3(%arg0: i32, %arg1: i32, %arg2: i32) -> (i32, i32) {
    %c0_i32 = arith.constant 0 : i32
    return %arg0, %arg1 : i32, i32
  }
  func.func @transform_4(%arg0: i32, %arg1: i32, %arg2: i32) -> (i32, i32) {
    %c0_i32 = arith.constant 0 : i32
    return %arg0, %arg1 : i32, i32
  }
}

module attributes {stable_mosaic.version = 11 : i64} {
  func.func @_ln_linear_kernel(%arg0: i32, %arg1: i32, %arg2: memref<64x32xf32, #tpu.memory_space<vmem>>, %arg3: memref<1x32xf32, #tpu.memory_space<vmem>>, %arg4: memref<1x32xf32, #tpu.memory_space<vmem>>, %arg5: memref<32x96xbf16, #tpu.memory_space<vmem>>, %arg6: memref<1x96xf32, #tpu.memory_space<vmem>>, %arg7: memref<64x96xbf16, #tpu.memory_space<vmem>>, %arg8: memref<64x32xbf16, #tpu.memory_space<vmem>>) attributes {dimension_semantics = [#tpu.dimension_semantics<parallel>, #tpu.dimension_semantics<arbitrary>], iteration_bounds = array<i64: 1, 1>, scalar_prefetch = 0 : i64, scratch_operands = 1 : i64, tpu.core_type = #tpu.core_type<tc>, window_params = [{transform_indices = @transform_0, window_bounds = array<i64: 64, 32>}, {pipeline_mode = #tpu.pipeline_mode<synchronous>, transform_indices = @transform_1, window_bounds = array<i64: 1, 32>}, {pipeline_mode = #tpu.pipeline_mode<synchronous>, transform_indices = @transform_2, window_bounds = array<i64: 1, 32>}, {transform_indices = @transform_3, window_bounds = array<i64: 32, 96>}, {transform_indices = @transform_4, window_bounds = array<i64: 1, 96>}, {transform_indices = @transform_5, window_bounds = array<i64: 64, 96>}]} {
    %c0_i32 = arith.constant 0 : i32
    %0 = arith.cmpi eq, %arg1, %c0_i32 : i32
    %1 = arith.extui %0 : i1 to i32
    %c0_i32_0 = arith.constant 0 : i32
    %2 = arith.cmpi ne, %1, %c0_i32_0 : i32
    scf.if %2 {
      %c0_8 = arith.constant 0 : index
      %c0_9 = arith.constant 0 : index
      %11 = vector.load %arg2[%c0_8, %c0_9] : memref<64x32xf32, #tpu.memory_space<vmem>>, vector<64x32xf32>
      %cst_10 = arith.constant dense<0.000000e+00> : vector<64xf32>
      %12 = vector.multi_reduction <add>, %11, %cst_10 [1] : vector<64x32xf32> to vector<64xf32>
      %13 = vector.shape_cast %12 : vector<64xf32> to vector<64x1xf32>
      %cst_11 = arith.constant 3.200000e+01 : f32
      %14 = vector.broadcast %cst_11 : f32 to vector<64x1xf32>
      %15 = arith.divf %13, %14 : vector<64x1xf32>
      %16 = vector.broadcast %15 : vector<64x1xf32> to vector<64x32xf32>
      %17 = arith.subf %11, %16 : vector<64x32xf32>
      %18 = arith.mulf %17, %17 : vector<64x32xf32>
      %cst_12 = arith.constant dense<0.000000e+00> : vector<64xf32>
      %19 = vector.multi_reduction <add>, %18, %cst_12 [1] : vector<64x32xf32> to vector<64xf32>
      %20 = vector.shape_cast %19 : vector<64xf32> to vector<64x1xf32>
      %cst_13 = arith.constant 3.200000e+01 : f32
      %21 = vector.broadcast %cst_13 : f32 to vector<64x1xf32>
      %22 = arith.divf %20, %21 : vector<64x1xf32>
      %cst_14 = arith.constant 9.99999974E-6 : f32
      %23 = vector.broadcast %cst_14 : f32 to vector<64x1xf32>
      %24 = arith.addf %22, %23 : vector<64x1xf32>
      %25 = math.rsqrt %24 : vector<64x1xf32>
      %26 = vector.broadcast %25 : vector<64x1xf32> to vector<64x32xf32>
      %27 = arith.mulf %17, %26 : vector<64x32xf32>
      %c0_15 = arith.constant 0 : index
      %c0_16 = arith.constant 0 : index
      %28 = vector.load %arg3[%c0_15, %c0_16] : memref<1x32xf32, #tpu.memory_space<vmem>>, vector<1x32xf32>
      %29 = vector.broadcast %28 : vector<1x32xf32> to vector<64x32xf32>
      %30 = arith.mulf %27, %29 : vector<64x32xf32>
      %c0_17 = arith.constant 0 : index
      %c0_18 = arith.constant 0 : index
      %31 = vector.load %arg4[%c0_17, %c0_18] : memref<1x32xf32, #tpu.memory_space<vmem>>, vector<1x32xf32>
      %32 = vector.broadcast %31 : vector<1x32xf32> to vector<64x32xf32>
      %33 = arith.addf %30, %32 : vector<64x32xf32>
      %34 = arith.truncf %33 : vector<64x32xf32> to vector<64x32xbf16>
      %c0_19 = arith.constant 0 : index
      %c0_20 = arith.constant 0 : index
      %35 = vector.load %arg8[%c0_19, %c0_20] : memref<64x32xbf16, #tpu.memory_space<vmem>>, vector<64x32xbf16>
      tpu.vector_store %arg8[%c0_19, %c0_20], %34 {strides = array<i32>} : memref<64x32xbf16, #tpu.memory_space<vmem>>, vector<64x32xbf16>,
    } else {
    }
    %c0 = arith.constant 0 : index
    %c0_1 = arith.constant 0 : index
    %3 = vector.load %arg8[%c0, %c0_1] : memref<64x32xbf16, #tpu.memory_space<vmem>>, vector<64x32xbf16>
    %c0_2 = arith.constant 0 : index
    %c0_3 = arith.constant 0 : index
    %4 = vector.load %arg5[%c0_2, %c0_3] : memref<32x96xbf16, #tpu.memory_space<vmem>>, vector<32x96xbf16>
    %cst = arith.constant dense<0.000000e+00> : vector<64x96xf32>
    %5 = tpu.matmul %3, %4, %cst {dimension_numbers = #tpu.dot_dimension_numbers<[1], [0], [0], [1], [0, 0, 1, 1], [], []>} : vector<64x32xbf16>, vector<32x96xbf16>, vector<64x96xf32> -> vector<64x96xf32>
    %c0_4 = arith.constant 0 : index
    %c0_5 = arith.constant 0 : index
    %6 = vector.load %arg6[%c0_4, %c0_5] : memref<1x96xf32, #tpu.memory_space<vmem>>, vector<1x96xf32>
    %7 = vector.broadcast %6 : vector<1x96xf32> to vector<64x96xf32>
    %8 = arith.addf %5, %7 : vector<64x96xf32>
    %9 = arith.truncf %8 : vector<64x96xf32> to vector<64x96xbf16>
    %c0_6 = arith.constant 0 : index
    %c0_7 = arith.constant 0 : index
    %10 = vector.load %arg7[%c0_6, %c0_7] : memref<64x96xbf16, #tpu.memory_space<vmem>>, vector<64x96xbf16>
    tpu.vector_store %arg7[%c0_6, %c0_7], %9 {strides = array<i32>} : memref<64x96xbf16, #tpu.memory_space<vmem>>, vector<64x96xbf16>,
    return
  }
  func.func @transform_0(%arg0: i32, %arg1: i32) -> (i32, i32) {
    %c0_i32 = arith.constant 0 : i32
    %c0_i32_0 = arith.constant 0 : i32
    return %arg0, %c0_i32 : i32, i32
  }
  func.func @transform_1(%arg0: i32, %arg1: i32) -> (i32, i32) {
    %c0_i32 = arith.constant 0 : i32
    %c0_i32_0 = arith.constant 0 : i32
    %c0_i32_1 = arith.constant 0 : i32
    return %c0_i32, %c0_i32_0 : i32, i32
  }
  func.func @transform_2(%arg0: i32, %arg1: i32) -> (i32, i32) {
    %c0_i32 = arith.constant 0 : i32
    %c0_i32_0 = arith.constant 0 : i32
    %c0_i32_1 = arith.constant 0 : i32
    return %c0_i32, %c0_i32_0 : i32, i32
  }
  func.func @transform_3(%arg0: i32, %arg1: i32) -> (i32, i32) {
    %c0_i32 = arith.constant 0 : i32
    %c0_i32_0 = arith.constant 0 : i32
    return %c0_i32, %arg1 : i32, i32
  }
  func.func @transform_4(%arg0: i32, %arg1: i32) -> (i32, i32) {
    %c0_i32 = arith.constant 0 : i32
    %c0_i32_0 = arith.constant 0 : i32
    return %c0_i32, %arg1 : i32, i32
  }
  func.func @transform_5(%arg0: i32, %arg1: i32) -> (i32, i32) {
    %c0_i32 = arith.constant 0 : i32
    return %arg0, %arg1 : i32, i32
  }
}

module attributes {stable_mosaic.version = 11 : i64} {
  func.func @_linear_residual_kernel(%arg0: i32, %arg1: i32, %arg2: i32, %arg3: memref<64x128xbf16, #tpu.memory_space<vmem>>, %arg4: memref<128x32xbf16, #tpu.memory_space<vmem>>, %arg5: memref<1x32xf32, #tpu.memory_space<vmem>>, %arg6: memref<64x32xf32, #tpu.memory_space<vmem>>, %arg7: memref<64x32xf32, #tpu.memory_space<vmem>>, %arg8: memref<64x32xf32, #tpu.memory_space<vmem>>) attributes {dimension_semantics = [#tpu.dimension_semantics<parallel>, #tpu.dimension_semantics<parallel>, #tpu.dimension_semantics<arbitrary>], iteration_bounds = array<i64: 1, 1, 1>, scalar_prefetch = 0 : i64, scratch_operands = 1 : i64, tpu.core_type = #tpu.core_type<tc>, window_params = [{transform_indices = @transform_0, window_bounds = array<i64: 64, 128>}, {transform_indices = @transform_1, window_bounds = array<i64: 128, 32>}, {transform_indices = @transform_2, window_bounds = array<i64: 1, 32>}, {transform_indices = @transform_3, window_bounds = array<i64: 64, 32>}, {transform_indices = @transform_4, window_bounds = array<i64: 64, 32>}]} {
    %c0_i32 = arith.constant 0 : i32
    %0 = arith.cmpi eq, %arg2, %c0_i32 : i32
    %1 = arith.extui %0 : i1 to i32
    %c0_i32_0 = arith.constant 0 : i32
    %2 = arith.cmpi ne, %1, %c0_i32_0 : i32
    scf.if %2 {
      %cst_10 = arith.constant 0.000000e+00 : f32
      %12 = vector.broadcast %cst_10 : f32 to vector<64x32xf32>
      %c0_11 = arith.constant 0 : index
      %c0_12 = arith.constant 0 : index
      %13 = vector.load %arg8[%c0_11, %c0_12] : memref<64x32xf32, #tpu.memory_space<vmem>>, vector<64x32xf32>
      tpu.vector_store %arg8[%c0_11, %c0_12], %12 {strides = array<i32>} : memref<64x32xf32, #tpu.memory_space<vmem>>, vector<64x32xf32>,
    } else {
    }
    %c0 = arith.constant 0 : index
    %c0_1 = arith.constant 0 : index
    %3 = vector.load %arg8[%c0, %c0_1] : memref<64x32xf32, #tpu.memory_space<vmem>>, vector<64x32xf32>
    %c0_2 = arith.constant 0 : index
    %c0_3 = arith.constant 0 : index
    %4 = vector.load %arg3[%c0_2, %c0_3] : memref<64x128xbf16, #tpu.memory_space<vmem>>, vector<64x128xbf16>
    %c0_4 = arith.constant 0 : index
    %c0_5 = arith.constant 0 : index
    %5 = vector.load %arg4[%c0_4, %c0_5] : memref<128x32xbf16, #tpu.memory_space<vmem>>, vector<128x32xbf16>
    %cst = arith.constant dense<0.000000e+00> : vector<64x32xf32>
    %6 = tpu.matmul %4, %5, %cst {dimension_numbers = #tpu.dot_dimension_numbers<[1], [0], [0], [1], [0, 0, 1, 1], [], []>} : vector<64x128xbf16>, vector<128x32xbf16>, vector<64x32xf32> -> vector<64x32xf32>
    %7 = arith.addf %3, %6 : vector<64x32xf32>
    %c0_6 = arith.constant 0 : index
    %c0_7 = arith.constant 0 : index
    %8 = vector.load %arg8[%c0_6, %c0_7] : memref<64x32xf32, #tpu.memory_space<vmem>>, vector<64x32xf32>
    tpu.vector_store %arg8[%c0_6, %c0_7], %7 {strides = array<i32>} : memref<64x32xf32, #tpu.memory_space<vmem>>, vector<64x32xf32>,
    %c0_i32_8 = arith.constant 0 : i32
    %9 = arith.cmpi eq, %arg2, %c0_i32_8 : i32
    %10 = arith.extui %9 : i1 to i32
    %c0_i32_9 = arith.constant 0 : i32
    %11 = arith.cmpi ne, %10, %c0_i32_9 : i32
    scf.if %11 {
      %c0_10 = arith.constant 0 : index
      %c0_11 = arith.constant 0 : index
      %12 = vector.load %arg8[%c0_10, %c0_11] : memref<64x32xf32, #tpu.memory_space<vmem>>, vector<64x32xf32>
      %c0_12 = arith.constant 0 : index
      %c0_13 = arith.constant 0 : index
      %13 = vector.load %arg5[%c0_12, %c0_13] : memref<1x32xf32, #tpu.memory_space<vmem>>, vector<1x32xf32>
      %14 = vector.broadcast %13 : vector<1x32xf32> to vector<64x32xf32>
      %15 = arith.addf %12, %14 : vector<64x32xf32>
      %c0_14 = arith.constant 0 : index
      %c0_15 = arith.constant 0 : index
      %16 = vector.load %arg6[%c0_14, %c0_15] : memref<64x32xf32, #tpu.memory_space<vmem>>, vector<64x32xf32>
      %17 = arith.addf %15, %16 : vector<64x32xf32>
      %c0_16 = arith.constant 0 : index
      %c0_17 = arith.constant 0 : index
      %18 = vector.load %arg7[%c0_16, %c0_17] : memref<64x32xf32, #tpu.memory_space<vmem>>, vector<64x32xf32>
      tpu.vector_store %arg7[%c0_16, %c0_17], %17 {strides = array<i32>} : memref<64x32xf32, #tpu.memory_space<vmem>>, vector<64x32xf32>,
    } else {
    }
    return
  }
  func.func @transform_0(%arg0: i32, %arg1: i32, %arg2: i32) -> (i32, i32) {
    %c0_i32 = arith.constant 0 : i32
    return %arg0, %arg2 : i32, i32
  }
  func.func @transform_1(%arg0: i32, %arg1: i32, %arg2: i32) -> (i32, i32) {
    %c0_i32 = arith.constant 0 : i32
    return %arg2, %arg1 : i32, i32
  }
  func.func @transform_2(%arg0: i32, %arg1: i32, %arg2: i32) -> (i32, i32) {
    %c0_i32 = arith.constant 0 : i32
    %c0_i32_0 = arith.constant 0 : i32
    return %c0_i32, %arg1 : i32, i32
  }
  func.func @transform_3(%arg0: i32, %arg1: i32, %arg2: i32) -> (i32, i32) {
    %c0_i32 = arith.constant 0 : i32
    return %arg0, %arg1 : i32, i32
  }
  func.func @transform_4(%arg0: i32, %arg1: i32, %arg2: i32) -> (i32, i32) {
    %c0_i32 = arith.constant 0 : i32
    return %arg0, %arg1 : i32, i32
  }
}

module attributes {stable_mosaic.version = 11 : i64} {
  func.func @_ln_linear_kernel(%arg0: i32, %arg1: i32, %arg2: memref<64x32xf32, #tpu.memory_space<vmem>>, %arg3: memref<1x32xf32, #tpu.memory_space<vmem>>, %arg4: memref<1x32xf32, #tpu.memory_space<vmem>>, %arg5: memref<32x96xbf16, #tpu.memory_space<vmem>>, %arg6: memref<1x96xf32, #tpu.memory_space<vmem>>, %arg7: memref<64x96xbf16, #tpu.memory_space<vmem>>, %arg8: memref<64x32xbf16, #tpu.memory_space<vmem>>) attributes {dimension_semantics = [#tpu.dimension_semantics<parallel>, #tpu.dimension_semantics<arbitrary>], iteration_bounds = array<i64: 1, 1>, scalar_prefetch = 0 : i64, scratch_operands = 1 : i64, tpu.core_type = #tpu.core_type<tc>, window_params = [{transform_indices = @transform_0, window_bounds = array<i64: 64, 32>}, {pipeline_mode = #tpu.pipeline_mode<synchronous>, transform_indices = @transform_1, window_bounds = array<i64: 1, 32>}, {pipeline_mode = #tpu.pipeline_mode<synchronous>, transform_indices = @transform_2, window_bounds = array<i64: 1, 32>}, {transform_indices = @transform_3, window_bounds = array<i64: 32, 96>}, {transform_indices = @transform_4, window_bounds = array<i64: 1, 96>}, {transform_indices = @transform_5, window_bounds = array<i64: 64, 96>}]} {
    %c0_i32 = arith.constant 0 : i32
    %0 = arith.cmpi eq, %arg1, %c0_i32 : i32
    %1 = arith.extui %0 : i1 to i32
    %c0_i32_0 = arith.constant 0 : i32
    %2 = arith.cmpi ne, %1, %c0_i32_0 : i32
    scf.if %2 {
      %c0_8 = arith.constant 0 : index
      %c0_9 = arith.constant 0 : index
      %11 = vector.load %arg2[%c0_8, %c0_9] : memref<64x32xf32, #tpu.memory_space<vmem>>, vector<64x32xf32>
      %cst_10 = arith.constant dense<0.000000e+00> : vector<64xf32>
      %12 = vector.multi_reduction <add>, %11, %cst_10 [1] : vector<64x32xf32> to vector<64xf32>
      %13 = vector.shape_cast %12 : vector<64xf32> to vector<64x1xf32>
      %cst_11 = arith.constant 3.200000e+01 : f32
      %14 = vector.broadcast %cst_11 : f32 to vector<64x1xf32>
      %15 = arith.divf %13, %14 : vector<64x1xf32>
      %16 = vector.broadcast %15 : vector<64x1xf32> to vector<64x32xf32>
      %17 = arith.subf %11, %16 : vector<64x32xf32>
      %18 = arith.mulf %17, %17 : vector<64x32xf32>
      %cst_12 = arith.constant dense<0.000000e+00> : vector<64xf32>
      %19 = vector.multi_reduction <add>, %18, %cst_12 [1] : vector<64x32xf32> to vector<64xf32>
      %20 = vector.shape_cast %19 : vector<64xf32> to vector<64x1xf32>
      %cst_13 = arith.constant 3.200000e+01 : f32
      %21 = vector.broadcast %cst_13 : f32 to vector<64x1xf32>
      %22 = arith.divf %20, %21 : vector<64x1xf32>
      %cst_14 = arith.constant 9.99999974E-6 : f32
      %23 = vector.broadcast %cst_14 : f32 to vector<64x1xf32>
      %24 = arith.addf %22, %23 : vector<64x1xf32>
      %25 = math.rsqrt %24 : vector<64x1xf32>
      %26 = vector.broadcast %25 : vector<64x1xf32> to vector<64x32xf32>
      %27 = arith.mulf %17, %26 : vector<64x32xf32>
      %c0_15 = arith.constant 0 : index
      %c0_16 = arith.constant 0 : index
      %28 = vector.load %arg3[%c0_15, %c0_16] : memref<1x32xf32, #tpu.memory_space<vmem>>, vector<1x32xf32>
      %29 = vector.broadcast %28 : vector<1x32xf32> to vector<64x32xf32>
      %30 = arith.mulf %27, %29 : vector<64x32xf32>
      %c0_17 = arith.constant 0 : index
      %c0_18 = arith.constant 0 : index
      %31 = vector.load %arg4[%c0_17, %c0_18] : memref<1x32xf32, #tpu.memory_space<vmem>>, vector<1x32xf32>
      %32 = vector.broadcast %31 : vector<1x32xf32> to vector<64x32xf32>
      %33 = arith.addf %30, %32 : vector<64x32xf32>
      %34 = arith.truncf %33 : vector<64x32xf32> to vector<64x32xbf16>
      %c0_19 = arith.constant 0 : index
      %c0_20 = arith.constant 0 : index
      %35 = vector.load %arg8[%c0_19, %c0_20] : memref<64x32xbf16, #tpu.memory_space<vmem>>, vector<64x32xbf16>
      tpu.vector_store %arg8[%c0_19, %c0_20], %34 {strides = array<i32>} : memref<64x32xbf16, #tpu.memory_space<vmem>>, vector<64x32xbf16>,
    } else {
    }
    %c0 = arith.constant 0 : index
    %c0_1 = arith.constant 0 : index
    %3 = vector.load %arg8[%c0, %c0_1] : memref<64x32xbf16, #tpu.memory_space<vmem>>, vector<64x32xbf16>
    %c0_2 = arith.constant 0 : index
    %c0_3 = arith.constant 0 : index
    %4 = vector.load %arg5[%c0_2, %c0_3] : memref<32x96xbf16, #tpu.memory_space<vmem>>, vector<32x96xbf16>
    %cst = arith.constant dense<0.000000e+00> : vector<64x96xf32>
    %5 = tpu.matmul %3, %4, %cst {dimension_numbers = #tpu.dot_dimension_numbers<[1], [0], [0], [1], [0, 0, 1, 1], [], []>} : vector<64x32xbf16>, vector<32x96xbf16>, vector<64x96xf32> -> vector<64x96xf32>
    %c0_4 = arith.constant 0 : index
    %c0_5 = arith.constant 0 : index
    %6 = vector.load %arg6[%c0_4, %c0_5] : memref<1x96xf32, #tpu.memory_space<vmem>>, vector<1x96xf32>
    %7 = vector.broadcast %6 : vector<1x96xf32> to vector<64x96xf32>
    %8 = arith.addf %5, %7 : vector<64x96xf32>
    %9 = arith.truncf %8 : vector<64x96xf32> to vector<64x96xbf16>
    %c0_6 = arith.constant 0 : index
    %c0_7 = arith.constant 0 : index
    %10 = vector.load %arg7[%c0_6, %c0_7] : memref<64x96xbf16, #tpu.memory_space<vmem>>, vector<64x96xbf16>
    tpu.vector_store %arg7[%c0_6, %c0_7], %9 {strides = array<i32>} : memref<64x96xbf16, #tpu.memory_space<vmem>>, vector<64x96xbf16>,
    return
  }
  func.func @transform_0(%arg0: i32, %arg1: i32) -> (i32, i32) {
    %c0_i32 = arith.constant 0 : i32
    %c0_i32_0 = arith.constant 0 : i32
    return %arg0, %c0_i32 : i32, i32
  }
  func.func @transform_1(%arg0: i32, %arg1: i32) -> (i32, i32) {
    %c0_i32 = arith.constant 0 : i32
    %c0_i32_0 = arith.constant 0 : i32
    %c0_i32_1 = arith.constant 0 : i32
    return %c0_i32, %c0_i32_0 : i32, i32
  }
  func.func @transform_2(%arg0: i32, %arg1: i32) -> (i32, i32) {
    %c0_i32 = arith.constant 0 : i32
    %c0_i32_0 = arith.constant 0 : i32
    %c0_i32_1 = arith.constant 0 : i32
    return %c0_i32, %c0_i32_0 : i32, i32
  }
  func.func @transform_3(%arg0: i32, %arg1: i32) -> (i32, i32) {
    %c0_i32 = arith.constant 0 : i32
    %c0_i32_0 = arith.constant 0 : i32
    return %c0_i32, %arg1 : i32, i32
  }
  func.func @transform_4(%arg0: i32, %arg1: i32) -> (i32, i32) {
    %c0_i32 = arith.constant 0 : i32
    %c0_i32_0 = arith.constant 0 : i32
    return %c0_i32, %arg1 : i32, i32
  }
  func.func @transform_5(%arg0: i32, %arg1: i32) -> (i32, i32) {
    %c0_i32 = arith.constant 0 : i32
    return %arg0, %arg1 : i32, i32
  }
}

module attributes {stable_mosaic.version = 11 : i64} {
  func.func @_linear_residual_kernel(%arg0: i32, %arg1: i32, %arg2: i32, %arg3: memref<64x128xbf16, #tpu.memory_space<vmem>>, %arg4: memref<128x32xbf16, #tpu.memory_space<vmem>>, %arg5: memref<1x32xf32, #tpu.memory_space<vmem>>, %arg6: memref<64x32xf32, #tpu.memory_space<vmem>>, %arg7: memref<64x32xf32, #tpu.memory_space<vmem>>, %arg8: memref<64x32xf32, #tpu.memory_space<vmem>>) attributes {dimension_semantics = [#tpu.dimension_semantics<parallel>, #tpu.dimension_semantics<parallel>, #tpu.dimension_semantics<arbitrary>], iteration_bounds = array<i64: 1, 1, 1>, scalar_prefetch = 0 : i64, scratch_operands = 1 : i64, tpu.core_type = #tpu.core_type<tc>, window_params = [{transform_indices = @transform_0, window_bounds = array<i64: 64, 128>}, {transform_indices = @transform_1, window_bounds = array<i64: 128, 32>}, {transform_indices = @transform_2, window_bounds = array<i64: 1, 32>}, {transform_indices = @transform_3, window_bounds = array<i64: 64, 32>}, {transform_indices = @transform_4, window_bounds = array<i64: 64, 32>}]} {
    %c0_i32 = arith.constant 0 : i32
    %0 = arith.cmpi eq, %arg2, %c0_i32 : i32
    %1 = arith.extui %0 : i1 to i32
    %c0_i32_0 = arith.constant 0 : i32
    %2 = arith.cmpi ne, %1, %c0_i32_0 : i32
    scf.if %2 {
      %cst_10 = arith.constant 0.000000e+00 : f32
      %12 = vector.broadcast %cst_10 : f32 to vector<64x32xf32>
      %c0_11 = arith.constant 0 : index
      %c0_12 = arith.constant 0 : index
      %13 = vector.load %arg8[%c0_11, %c0_12] : memref<64x32xf32, #tpu.memory_space<vmem>>, vector<64x32xf32>
      tpu.vector_store %arg8[%c0_11, %c0_12], %12 {strides = array<i32>} : memref<64x32xf32, #tpu.memory_space<vmem>>, vector<64x32xf32>,
    } else {
    }
    %c0 = arith.constant 0 : index
    %c0_1 = arith.constant 0 : index
    %3 = vector.load %arg8[%c0, %c0_1] : memref<64x32xf32, #tpu.memory_space<vmem>>, vector<64x32xf32>
    %c0_2 = arith.constant 0 : index
    %c0_3 = arith.constant 0 : index
    %4 = vector.load %arg3[%c0_2, %c0_3] : memref<64x128xbf16, #tpu.memory_space<vmem>>, vector<64x128xbf16>
    %c0_4 = arith.constant 0 : index
    %c0_5 = arith.constant 0 : index
    %5 = vector.load %arg4[%c0_4, %c0_5] : memref<128x32xbf16, #tpu.memory_space<vmem>>, vector<128x32xbf16>
    %cst = arith.constant dense<0.000000e+00> : vector<64x32xf32>
    %6 = tpu.matmul %4, %5, %cst {dimension_numbers = #tpu.dot_dimension_numbers<[1], [0], [0], [1], [0, 0, 1, 1], [], []>} : vector<64x128xbf16>, vector<128x32xbf16>, vector<64x32xf32> -> vector<64x32xf32>
    %7 = arith.addf %3, %6 : vector<64x32xf32>
    %c0_6 = arith.constant 0 : index
    %c0_7 = arith.constant 0 : index
    %8 = vector.load %arg8[%c0_6, %c0_7] : memref<64x32xf32, #tpu.memory_space<vmem>>, vector<64x32xf32>
    tpu.vector_store %arg8[%c0_6, %c0_7], %7 {strides = array<i32>} : memref<64x32xf32, #tpu.memory_space<vmem>>, vector<64x32xf32>,
    %c0_i32_8 = arith.constant 0 : i32
    %9 = arith.cmpi eq, %arg2, %c0_i32_8 : i32
    %10 = arith.extui %9 : i1 to i32
    %c0_i32_9 = arith.constant 0 : i32
    %11 = arith.cmpi ne, %10, %c0_i32_9 : i32
    scf.if %11 {
      %c0_10 = arith.constant 0 : index
      %c0_11 = arith.constant 0 : index
      %12 = vector.load %arg8[%c0_10, %c0_11] : memref<64x32xf32, #tpu.memory_space<vmem>>, vector<64x32xf32>
      %c0_12 = arith.constant 0 : index
      %c0_13 = arith.constant 0 : index
      %13 = vector.load %arg5[%c0_12, %c0_13] : memref<1x32xf32, #tpu.memory_space<vmem>>, vector<1x32xf32>
      %14 = vector.broadcast %13 : vector<1x32xf32> to vector<64x32xf32>
      %15 = arith.addf %12, %14 : vector<64x32xf32>
      %c0_14 = arith.constant 0 : index
      %c0_15 = arith.constant 0 : index
      %16 = vector.load %arg6[%c0_14, %c0_15] : memref<64x32xf32, #tpu.memory_space<vmem>>, vector<64x32xf32>
      %17 = arith.addf %15, %16 : vector<64x32xf32>
      %c0_16 = arith.constant 0 : index
      %c0_17 = arith.constant 0 : index
      %18 = vector.load %arg7[%c0_16, %c0_17] : memref<64x32xf32, #tpu.memory_space<vmem>>, vector<64x32xf32>
      tpu.vector_store %arg7[%c0_16, %c0_17], %17 {strides = array<i32>} : memref<64x32xf32, #tpu.memory_space<vmem>>, vector<64x32xf32>,
    } else {
    }
    return
  }
  func.func @transform_0(%arg0: i32, %arg1: i32, %arg2: i32) -> (i32, i32) {
    %c0_i32 = arith.constant 0 : i32
    return %arg0, %arg2 : i32, i32
  }
  func.func @transform_1(%arg0: i32, %arg1: i32, %arg2: i32) -> (i32, i32) {
    %c0_i32 = arith.constant 0 : i32
    return %arg2, %arg1 : i32, i32
  }
  func.func @transform_2(%arg0: i32, %arg1: i32, %arg2: i32) -> (i32, i32) {
    %c0_i32 = arith.constant 0 : i32
    %c0_i32_0 = arith.constant 0 : i32
    return %c0_i32, %arg1 : i32, i32
  }
  func.func @transform_3(%arg0: i32, %arg1: i32, %arg2: i32) -> (i32, i32) {
    %c0_i32 = arith.constant 0 : i32
    return %arg0, %arg1 : i32, i32
  }
  func.func @transform_4(%arg0: i32, %arg1: i32, %arg2: i32) -> (i32, i32) {
    %c0_i32 = arith.constant 0 : i32
    return %arg0, %arg1 : i32, i32
  }
}

module attributes {stable_mosaic.version = 11 : i64} {
  func.func @_linear_residual_kernel(%arg0: i32, %arg1: i32, %arg2: i32, %arg3: memref<64x32xbf16, #tpu.memory_space<vmem>>, %arg4: memref<32x32xbf16, #tpu.memory_space<vmem>>, %arg5: memref<1x32xf32, #tpu.memory_space<vmem>>, %arg6: memref<64x32xf32, #tpu.memory_space<vmem>>, %arg7: memref<64x32xf32, #tpu.memory_space<vmem>>, %arg8: memref<64x32xf32, #tpu.memory_space<vmem>>) attributes {dimension_semantics = [#tpu.dimension_semantics<parallel>, #tpu.dimension_semantics<parallel>, #tpu.dimension_semantics<arbitrary>], iteration_bounds = array<i64: 1, 1, 1>, scalar_prefetch = 0 : i64, scratch_operands = 1 : i64, tpu.core_type = #tpu.core_type<tc>, window_params = [{transform_indices = @transform_0, window_bounds = array<i64: 64, 32>}, {transform_indices = @transform_1, window_bounds = array<i64: 32, 32>}, {transform_indices = @transform_2, window_bounds = array<i64: 1, 32>}, {transform_indices = @transform_3, window_bounds = array<i64: 64, 32>}, {transform_indices = @transform_4, window_bounds = array<i64: 64, 32>}]} {
    %c0_i32 = arith.constant 0 : i32
    %0 = arith.cmpi eq, %arg2, %c0_i32 : i32
    %1 = arith.extui %0 : i1 to i32
    %c0_i32_0 = arith.constant 0 : i32
    %2 = arith.cmpi ne, %1, %c0_i32_0 : i32
    scf.if %2 {
      %cst_10 = arith.constant 0.000000e+00 : f32
      %12 = vector.broadcast %cst_10 : f32 to vector<64x32xf32>
      %c0_11 = arith.constant 0 : index
      %c0_12 = arith.constant 0 : index
      %13 = vector.load %arg8[%c0_11, %c0_12] : memref<64x32xf32, #tpu.memory_space<vmem>>, vector<64x32xf32>
      tpu.vector_store %arg8[%c0_11, %c0_12], %12 {strides = array<i32>} : memref<64x32xf32, #tpu.memory_space<vmem>>, vector<64x32xf32>,
    } else {
    }
    %c0 = arith.constant 0 : index
    %c0_1 = arith.constant 0 : index
    %3 = vector.load %arg8[%c0, %c0_1] : memref<64x32xf32, #tpu.memory_space<vmem>>, vector<64x32xf32>
    %c0_2 = arith.constant 0 : index
    %c0_3 = arith.constant 0 : index
    %4 = vector.load %arg3[%c0_2, %c0_3] : memref<64x32xbf16, #tpu.memory_space<vmem>>, vector<64x32xbf16>
    %c0_4 = arith.constant 0 : index
    %c0_5 = arith.constant 0 : index
    %5 = vector.load %arg4[%c0_4, %c0_5] : memref<32x32xbf16, #tpu.memory_space<vmem>>, vector<32x32xbf16>
    %cst = arith.constant dense<0.000000e+00> : vector<64x32xf32>
    %6 = tpu.matmul %4, %5, %cst {dimension_numbers = #tpu.dot_dimension_numbers<[1], [0], [0], [1], [0, 0, 1, 1], [], []>} : vector<64x32xbf16>, vector<32x32xbf16>, vector<64x32xf32> -> vector<64x32xf32>
    %7 = arith.addf %3, %6 : vector<64x32xf32>
    %c0_6 = arith.constant 0 : index
    %c0_7 = arith.constant 0 : index
    %8 = vector.load %arg8[%c0_6, %c0_7] : memref<64x32xf32, #tpu.memory_space<vmem>>, vector<64x32xf32>
    tpu.vector_store %arg8[%c0_6, %c0_7], %7 {strides = array<i32>} : memref<64x32xf32, #tpu.memory_space<vmem>>, vector<64x32xf32>,
    %c0_i32_8 = arith.constant 0 : i32
    %9 = arith.cmpi eq, %arg2, %c0_i32_8 : i32
    %10 = arith.extui %9 : i1 to i32
    %c0_i32_9 = arith.constant 0 : i32
    %11 = arith.cmpi ne, %10, %c0_i32_9 : i32
    scf.if %11 {
      %c0_10 = arith.constant 0 : index
      %c0_11 = arith.constant 0 : index
      %12 = vector.load %arg8[%c0_10, %c0_11] : memref<64x32xf32, #tpu.memory_space<vmem>>, vector<64x32xf32>
      %c0_12 = arith.constant 0 : index
      %c0_13 = arith.constant 0 : index
      %13 = vector.load %arg5[%c0_12, %c0_13] : memref<1x32xf32, #tpu.memory_space<vmem>>, vector<1x32xf32>
      %14 = vector.broadcast %13 : vector<1x32xf32> to vector<64x32xf32>
      %15 = arith.addf %12, %14 : vector<64x32xf32>
      %c0_14 = arith.constant 0 : index
      %c0_15 = arith.constant 0 : index
      %16 = vector.load %arg6[%c0_14, %c0_15] : memref<64x32xf32, #tpu.memory_space<vmem>>, vector<64x32xf32>
      %17 = arith.addf %15, %16 : vector<64x32xf32>
      %c0_16 = arith.constant 0 : index
      %c0_17 = arith.constant 0 : index
      %18 = vector.load %arg7[%c0_16, %c0_17] : memref<64x32xf32, #tpu.memory_space<vmem>>, vector<64x32xf32>
      tpu.vector_store %arg7[%c0_16, %c0_17], %17 {strides = array<i32>} : memref<64x32xf32, #tpu.memory_space<vmem>>, vector<64x32xf32>,
    } else {
    }
    return
  }
  func.func @transform_0(%arg0: i32, %arg1: i32, %arg2: i32) -> (i32, i32) {
    %c0_i32 = arith.constant 0 : i32
    return %arg0, %arg2 : i32, i32
  }
  func.func @transform_1(%arg0: i32, %arg1: i32, %arg2: i32) -> (i32, i32) {
    %c0_i32 = arith.constant 0 : i32
    return %arg2, %arg1 : i32, i32
  }
  func.func @transform_2(%arg0: i32, %arg1: i32, %arg2: i32) -> (i32, i32) {
    %c0_i32 = arith.constant 0 : i32
    %c0_i32_0 = arith.constant 0 : i32
    return %c0_i32, %arg1 : i32, i32
  }
  func.func @transform_3(%arg0: i32, %arg1: i32, %arg2: i32) -> (i32, i32) {
    %c0_i32 = arith.constant 0 : i32
    return %arg0, %arg1 : i32, i32
  }
  func.func @transform_4(%arg0: i32, %arg1: i32, %arg2: i32) -> (i32, i32) {
    %c0_i32 = arith.constant 0 : i32
    return %arg0, %arg1 : i32, i32
  }
}

module attributes {stable_mosaic.version = 11 : i64} {
  func.func @_ln_linear_kernel(%arg0: i32, %arg1: i32, %arg2: memref<64x32xf32, #tpu.memory_space<vmem>>, %arg3: memref<1x32xf32, #tpu.memory_space<vmem>>, %arg4: memref<1x32xf32, #tpu.memory_space<vmem>>, %arg5: memref<32x128xbf16, #tpu.memory_space<vmem>>, %arg6: memref<1x128xf32, #tpu.memory_space<vmem>>, %arg7: memref<64x128xbf16, #tpu.memory_space<vmem>>, %arg8: memref<64x32xbf16, #tpu.memory_space<vmem>>) attributes {dimension_semantics = [#tpu.dimension_semantics<parallel>, #tpu.dimension_semantics<arbitrary>], iteration_bounds = array<i64: 1, 1>, scalar_prefetch = 0 : i64, scratch_operands = 1 : i64, tpu.core_type = #tpu.core_type<tc>, window_params = [{transform_indices = @transform_0, window_bounds = array<i64: 64, 32>}, {pipeline_mode = #tpu.pipeline_mode<synchronous>, transform_indices = @transform_1, window_bounds = array<i64: 1, 32>}, {pipeline_mode = #tpu.pipeline_mode<synchronous>, transform_indices = @transform_2, window_bounds = array<i64: 1, 32>}, {transform_indices = @transform_3, window_bounds = array<i64: 32, 128>}, {transform_indices = @transform_4, window_bounds = array<i64: 1, 128>}, {transform_indices = @transform_5, window_bounds = array<i64: 64, 128>}]} {
    %c0_i32 = arith.constant 0 : i32
    %0 = arith.cmpi eq, %arg1, %c0_i32 : i32
    %1 = arith.extui %0 : i1 to i32
    %c0_i32_0 = arith.constant 0 : i32
    %2 = arith.cmpi ne, %1, %c0_i32_0 : i32
    scf.if %2 {
      %c0_11 = arith.constant 0 : index
      %c0_12 = arith.constant 0 : index
      %19 = vector.load %arg2[%c0_11, %c0_12] : memref<64x32xf32, #tpu.memory_space<vmem>>, vector<64x32xf32>
      %cst_13 = arith.constant dense<0.000000e+00> : vector<64xf32>
      %20 = vector.multi_reduction <add>, %19, %cst_13 [1] : vector<64x32xf32> to vector<64xf32>
      %21 = vector.shape_cast %20 : vector<64xf32> to vector<64x1xf32>
      %cst_14 = arith.constant 3.200000e+01 : f32
      %22 = vector.broadcast %cst_14 : f32 to vector<64x1xf32>
      %23 = arith.divf %21, %22 : vector<64x1xf32>
      %24 = vector.broadcast %23 : vector<64x1xf32> to vector<64x32xf32>
      %25 = arith.subf %19, %24 : vector<64x32xf32>
      %26 = arith.mulf %25, %25 : vector<64x32xf32>
      %cst_15 = arith.constant dense<0.000000e+00> : vector<64xf32>
      %27 = vector.multi_reduction <add>, %26, %cst_15 [1] : vector<64x32xf32> to vector<64xf32>
      %28 = vector.shape_cast %27 : vector<64xf32> to vector<64x1xf32>
      %cst_16 = arith.constant 3.200000e+01 : f32
      %29 = vector.broadcast %cst_16 : f32 to vector<64x1xf32>
      %30 = arith.divf %28, %29 : vector<64x1xf32>
      %cst_17 = arith.constant 9.99999974E-6 : f32
      %31 = vector.broadcast %cst_17 : f32 to vector<64x1xf32>
      %32 = arith.addf %30, %31 : vector<64x1xf32>
      %33 = math.rsqrt %32 : vector<64x1xf32>
      %34 = vector.broadcast %33 : vector<64x1xf32> to vector<64x32xf32>
      %35 = arith.mulf %25, %34 : vector<64x32xf32>
      %c0_18 = arith.constant 0 : index
      %c0_19 = arith.constant 0 : index
      %36 = vector.load %arg3[%c0_18, %c0_19] : memref<1x32xf32, #tpu.memory_space<vmem>>, vector<1x32xf32>
      %37 = vector.broadcast %36 : vector<1x32xf32> to vector<64x32xf32>
      %38 = arith.mulf %35, %37 : vector<64x32xf32>
      %c0_20 = arith.constant 0 : index
      %c0_21 = arith.constant 0 : index
      %39 = vector.load %arg4[%c0_20, %c0_21] : memref<1x32xf32, #tpu.memory_space<vmem>>, vector<1x32xf32>
      %40 = vector.broadcast %39 : vector<1x32xf32> to vector<64x32xf32>
      %41 = arith.addf %38, %40 : vector<64x32xf32>
      %42 = arith.truncf %41 : vector<64x32xf32> to vector<64x32xbf16>
      %c0_22 = arith.constant 0 : index
      %c0_23 = arith.constant 0 : index
      %43 = vector.load %arg8[%c0_22, %c0_23] : memref<64x32xbf16, #tpu.memory_space<vmem>>, vector<64x32xbf16>
      tpu.vector_store %arg8[%c0_22, %c0_23], %42 {strides = array<i32>} : memref<64x32xbf16, #tpu.memory_space<vmem>>, vector<64x32xbf16>,
    } else {
    }
    %c0 = arith.constant 0 : index
    %c0_1 = arith.constant 0 : index
    %3 = vector.load %arg8[%c0, %c0_1] : memref<64x32xbf16, #tpu.memory_space<vmem>>, vector<64x32xbf16>
    %c0_2 = arith.constant 0 : index
    %c0_3 = arith.constant 0 : index
    %4 = vector.load %arg5[%c0_2, %c0_3] : memref<32x128xbf16, #tpu.memory_space<vmem>>, vector<32x128xbf16>
    %cst = arith.constant dense<0.000000e+00> : vector<64x128xf32>
    %5 = tpu.matmul %3, %4, %cst {dimension_numbers = #tpu.dot_dimension_numbers<[1], [0], [0], [1], [0, 0, 1, 1], [], []>} : vector<64x32xbf16>, vector<32x128xbf16>, vector<64x128xf32> -> vector<64x128xf32>
    %c0_4 = arith.constant 0 : index
    %c0_5 = arith.constant 0 : index
    %6 = vector.load %arg6[%c0_4, %c0_5] : memref<1x128xf32, #tpu.memory_space<vmem>>, vector<1x128xf32>
    %7 = vector.broadcast %6 : vector<1x128xf32> to vector<64x128xf32>
    %8 = arith.addf %5, %7 : vector<64x128xf32>
    %cst_6 = arith.constant 8.510000e-01 : f32
    %9 = vector.broadcast %cst_6 : f32 to vector<64x128xf32>
    %10 = arith.mulf %9, %8 : vector<64x128xf32>
    %11 = math.tanh %10 : vector<64x128xf32>
    %cst_7 = arith.constant 1.000000e+00 : f32
    %12 = vector.broadcast %cst_7 : f32 to vector<64x128xf32>
    %13 = arith.addf %11, %12 : vector<64x128xf32>
    %cst_8 = arith.constant 5.000000e-01 : f32
    %14 = vector.broadcast %cst_8 : f32 to vector<64x128xf32>
    %15 = arith.mulf %14, %13 : vector<64x128xf32>
    %16 = arith.mulf %8, %15 : vector<64x128xf32>
    %17 = arith.truncf %16 : vector<64x128xf32> to vector<64x128xbf16>
    %c0_9 = arith.constant 0 : index
    %c0_10 = arith.constant 0 : index
    %18 = vector.load %arg7[%c0_9, %c0_10] : memref<64x128xbf16, #tpu.memory_space<vmem>>, vector<64x128xbf16>
    tpu.vector_store %arg7[%c0_9, %c0_10], %17 {strides = array<i32>} : memref<64x128xbf16, #tpu.memory_space<vmem>>, vector<64x128xbf16>,
    return
  }
  func.func @transform_0(%arg0: i32, %arg1: i32) -> (i32, i32) {
    %c0_i32 = arith.constant 0 : i32
    %c0_i32_0 = arith.constant 0 : i32
    return %arg0, %c0_i32 : i32, i32
  }
  func.func @transform_1(%arg0: i32, %arg1: i32) -> (i32, i32) {
    %c0_i32 = arith.constant 0 : i32
    %c0_i32_0 = arith.constant 0 : i32
    %c0_i32_1 = arith.constant 0 : i32
    return %c0_i32, %c0_i32_0 : i32, i32
  }
  func.func @transform_2(%arg0: i32, %arg1: i32) -> (i32, i32) {
    %c0_i32 = arith.constant 0 : i32
    %c0_i32_0 = arith.constant 0 : i32
    %c0_i32_1 = arith.constant 0 : i32
    return %c0_i32, %c0_i32_0 : i32, i32
  }
  func.func @transform_3(%arg0: i32, %arg1: i32) -> (i32, i32) {
    %c0_i32 = arith.constant 0 : i32
    %c0_i32_0 = arith.constant 0 : i32
    return %c0_i32, %arg1 : i32, i32
  }
  func.func @transform_4(%arg0: i32, %arg1: i32) -> (i32, i32) {
    %c0_i32 = arith.constant 0 : i32
    %c0_i32_0 = arith.constant 0 : i32
    return %c0_i32, %arg1 : i32, i32
  }
  func.func @transform_5(%arg0: i32, %arg1: i32) -> (i32, i32) {
    %c0_i32 = arith.constant 0 : i32
    return %arg0, %arg1 : i32, i32
  }
}

</mosaic_0001>

<llo_original>
// kernel: transformer_forward.19
$region0: #{transformer_forward.19}
  #allocation0 [shape = 'u32[]', space=smem, size = 0x4, offset = 0x4, fixed_abs, tag = 'smem constant byte address 0x4 - core index']
  #allocation1 [shape = 'u32[72,128]{1,0:T(1,128)}', space=vmem, size = 0x9000, scoped, tag = 'internal scratch']
  #allocation2 [shape = 'bf16[64,32]{1,0:T(8,128)(2,1)}', space=vmem, size = 0x4000, scoped, tag = 'scratch operand']
  %s0 = inlined_call_operand.vmem [shape: f32[64,32], index: 0, kind: input, shape index: {}]
  %s1 = inlined_call_operand.hbm [shape: f32[1,32], index: 1, kind: input, shape index: {}]
  %s2 = inlined_call_operand.hbm [shape: f32[1,32], index: 2, kind: input, shape index: {}]
  %s3 = inlined_call_operand.hbm [shape: bf16[32,96], index: 3, kind: input, shape index: {}]
  %s4 = inlined_call_operand.hbm [shape: f32[1,96], index: 4, kind: input, shape index: {}]
  %s5 = inlined_call_operand.vmem [shape: bf16[64,96], index: 5, kind: output, shape index: {}]
  %s6 = sld [smem:[#allocation0]]
  $region50: #{transformer_forward.19} parent=0
    _
  %s8 = ssub.s32 1, %s6
  %s9 = scalar_select 0, %s8, %s6
  $region1: #{transformer_forward.19} parent=0
    #allocation3 [shape = 'u8[512]{0}', space=vmem, size = 0x400, scoped, tag = 'input window, operand 1, single buffered']
    #allocation4 [shape = 's32[1]{0}', space=sflag, size = 0x4, scoped, tag = 'scoped memory for transformer_forward.19']
    #allocation5 [shape = 'u8[512]{0}', space=vmem, size = 0x400, scoped, tag = 'input window, operand 2, single buffered']
    #allocation6 [shape = 's32[1]{0}', space=sflag, size = 0x4, scoped, tag = 'scoped memory for transformer_forward.19']
    #allocation7 [shape = 'u8[8192]{0}', space=vmem, size = 0x2000, scoped, tag = 'input window, operand 3, single buffered']
    #allocation8 [shape = 'u8[512]{0}', space=vmem, size = 0x400, scoped, tag = 'input window, operand 4, single buffered']
    #allocation9 [shape = 's32[1]{0}', space=sflag, size = 0x4, scoped, tag = 'scoped memory for transformer_forward.19']
    %10 = vsyncpa [#allocation4], 0
    %11 = vsyncpa [#allocation6], 0
    %12 = vsyncpa [#allocation9], 0
    // Predicated region
    $region2: #{transformer_forward.19} parent=1 // pred_check
      _
    $region3: #{transformer_forward.19} parent=1 // pred_check_branch
      %14 = sbr.rel (0) target = $region5
    $region4: #{transformer_forward.19} parent=1 // pred_region
      _
    $region5: #{transformer_forward.19} parent=1 // pred_fallthru
      _
    // Predicated region
    $region6: #{transformer_forward.19} parent=1 // pred_check
      _
    $region7: #{transformer_forward.19} parent=1 // pred_check_branch
      %16 = sbr.rel (0) target = $region9
    $region8: #{transformer_forward.19} parent=1 // pred_region
      %18 = vsyncadd [#allocation4], 0
      %s20 = sshll.u32 %s1, 4
      %s21 = int_to_ptr.hbm [resolvable:$true] %s20
      %s22 = sshll.u32 [#allocation3], 4
      %s23 = int_to_ptr.vmem [resolvable:$true] %s22
      %25 = dma.hbm_to_vmem [thread:$0]  %s21, 16, %s23, [#allocation4]
    $region9: #{transformer_forward.19} parent=1 // pred_fallthru
      _
    // Predicated region
    $region10: #{transformer_forward.19} parent=1 // pred_check
      _
    $region11: #{transformer_forward.19} parent=1 // pred_check_branch
      %27 = sbr.rel (0) target = $region13
    $region12: #{transformer_forward.19} parent=1 // pred_region
      %29 = vsyncadd [#allocation6], 0
      %s31 = sshll.u32 %s2, 4
      %s32 = int_to_ptr.hbm [resolvable:$true] %s31
      %s33 = sshll.u32 [#allocation5], 4
      %s34 = int_to_ptr.vmem [resolvable:$true] %s33
      %36 = dma.hbm_to_vmem [thread:$0]  %s32, 16, %s34, [#allocation6]
    $region13: #{transformer_forward.19} parent=1 // pred_fallthru
      _
    // Predicated region
    $region14: #{transformer_forward.19} parent=1 // pred_check
      _
    $region15: #{transformer_forward.19} parent=1 // pred_check_branch
      %38 = sbr.rel (0) target = $region17
    $region16: #{transformer_forward.19} parent=1 // pred_region
      %40 = vsyncadd [#allocation6], 0
      %s41 = sshll.u32 %s3, 4
      %s42 = int_to_ptr.hbm [resolvable:$true] %s41
      %s43 = sshll.u32 [#allocation7], 4
      %s44 = int_to_ptr.vmem [resolvable:$true] %s43
      %49 = dma.hbm_to_vmem [thread:$0]  %s42, 256, %s44, [#allocation6], 64, 64, 4
    $region17: #{transformer_forward.19} parent=1 // pred_fallthru
      _
    // Predicated region
    $region18: #{transformer_forward.19} parent=1 // pred_check
      _
    $region19: #{transformer_forward.19} parent=1 // pred_check_branch
      %51 = sbr.rel (0) target = $region21
    $region20: #{transformer_forward.19} parent=1 // pred_region
      %53 = vsyncadd [#allocation9], 0
      %s55 = sshll.u32 %s4, 4
      %s56 = int_to_ptr.hbm [resolvable:$true] %s55
      %s57 = sshll.u32 [#allocation8], 4
      %s58 = int_to_ptr.vmem [resolvable:$true] %s57
      %60 = dma.hbm_to_vmem [thread:$0]  %s56, 16, %s58, [#allocation9]
    $region21: #{transformer_forward.19} parent=1 // pred_fallthru
      _
    // Predicated region
    $region22: #{transformer_forward.19} parent=1 // pred_check
      _
    $region23: #{transformer_forward.19} parent=1 // pred_check_branch
      %62 = sbr.rel (0) target = $region25
    $region24: #{transformer_forward.19} parent=1 // pred_region
      %64 = dma.done [#allocation4], 16
    $region25: #{transformer_forward.19} parent=1 // pred_fallthru
      _
    // Predicated region
    $region26: #{transformer_forward.19} parent=1 // pred_check
      _
    $region27: #{transformer_forward.19} parent=1 // pred_check_branch
      %66 = sbr.rel (0) target = $region29
    $region28: #{transformer_forward.19} parent=1 // pred_region
      %68 = dma.done [#allocation6], 16
    $region29: #{transformer_forward.19} parent=1 // pred_fallthru
      _
    // Predicated region
    $region30: #{transformer_forward.19} parent=1 // pred_check
      _
    $region31: #{transformer_forward.19} parent=1 // pred_check_branch
      %70 = sbr.rel (0) target = $region33
    $region32: #{transformer_forward.19} parent=1 // pred_region
      %72 = dma.done [#allocation6], 256
    $region33: #{transformer_forward.19} parent=1 // pred_fallthru
      _
    // Predicated region
    $region34: #{transformer_forward.19} parent=1 // pred_check
      _
    $region35: #{transformer_forward.19} parent=1 // pred_check_branch
      %74 = sbr.rel (0) target = $region37
    $region36: #{transformer_forward.19} parent=1 // pred_region
      %76 = dma.done [#allocation9], 16
    $region37: #{transformer_forward.19} parent=1 // pred_fallthru
      _
    %p78 = scmp.eq.s32.totalorder 0, 0
    // Predicated region
    $region38: #{transformer_forward.19} parent=1 // pred_check
      %p79 = pneg %p78
    $region39: #{transformer_forward.19} parent=1 // pred_check_branch
      %81 = sbr.rel (%p79) target = $region41
    $region40: #{transformer_forward.19} parent=1 // pred_region
      %v82 = vld [vmem:[%s0] sm:$0xff]
      %v83 = vld [vmem:[%s0 + $0x8] sm:$0xff]
      %v84 = vld [vmem:[%s0 + $0x10] sm:$0xff]
      %v85 = vld [vmem:[%s0 + $0x18] sm:$0xff]
      %v86 = vld [vmem:[%s0 + $0x20] sm:$0xff]
      %v87 = vld [vmem:[%s0 + $0x28] sm:$0xff]
      %v88 = vld [vmem:[%s0 + $0x30] sm:$0xff]
      %v89 = vld [vmem:[%s0 + $0x38] sm:$0xff]
      %vm90 = vcmask 261120
      %v91 = vsel %vm90, %v82, 0.0
      %92 = vadd.xlane.f32.xlu0 %v91
      %v93 = vpop.xlane.xlu0 %92
      %v94 = vsel %vm90, %v83, 0.0
      %95 = vadd.xlane.f32.xlu0 %v94
      %v96 = vpop.xlane.xlu0 %95
      %v97 = vsel %vm90, %v84, 0.0
      %98 = vadd.xlane.f32.xlu0 %v97
      %v99 = vpop.xlane.xlu0 %98
      %v100 = vsel %vm90, %v85, 0.0
      %101 = vadd.xlane.f32.xlu0 %v100
      %v102 = vpop.xlane.xlu0 %101
      %v103 = vsel %vm90, %v86, 0.0
      %104 = vadd.xlane.f32.xlu0 %v103
      %v105 = vpop.xlane.xlu0 %104
      %v106 = vsel %vm90, %v87, 0.0
      %107 = vadd.xlane.f32.xlu0 %v106
      %v108 = vpop.xlane.xlu0 %107
      %v109 = vsel %vm90, %v88, 0.0
      %110 = vadd.xlane.f32.xlu0 %v109
      %v111 = vpop.xlane.xlu0 %110
      %v112 = vsel %vm90, %v89, 0.0
      %113 = vadd.xlane.f32.xlu0 %v112
      %v114 = vpop.xlane.xlu0 %113
      %v115 = vrcp.pop 32.0
      %v116 = vmul.f32 32.0, %v115
      %v117 = vsub.f32 1.0, %v116
      %v118 = vmul.f32 %v115, %v117
      %v119 = vadd.f32 %v115, %v118
      %vm120 = vweird.f32 %v115
      %v121 = vsel %vm120, %v115, %v119
      %v122 = vmul.f32 %v93, %v121
      %v123 = vmul.f32 %v96, %v121
      %v124 = vmul.f32 %v99, %v121
      %v125 = vmul.f32 %v102, %v121
      %v126 = vmul.f32 %v105, %v121
      %v127 = vmul.f32 %v108, %v121
      %v128 = vmul.f32 %v111, %v121
      %v129 = vmul.f32 %v114, %v121
      %v130 = vsub.f32 %v82, %v122
      %v131 = vsub.f32 %v83, %v123
      %v132 = vsub.f32 %v84, %v124
      %v133 = vsub.f32 %v85, %v125
      %v134 = vsub.f32 %v86, %v126
      %v135 = vsub.f32 %v87, %v127
      %v136 = vsub.f32 %v88, %v128
      %v137 = vsub.f32 %v89, %v129
      %v138 = vmul.f32 %v130, %v130
      %v139 = vmul.f32 %v131, %v131
      %v140 = vmul.f32 %v132, %v132
      %v141 = vmul.f32 %v133, %v133
      %v142 = vmul.f32 %v134, %v134
      %v143 = vmul.f32 %v135, %v135
      %v144 = vmul.f32 %v136, %v136
      %v145 = vmul.f32 %v137, %v137
      %v146 = vsel %vm90, %v138, 0.0
      %147 = vadd.xlane.f32.xlu0 %v146
      %v148 = vpop.xlane.xlu0 %147
      %v149 = vsel %vm90, %v139, 0.0
      %150 = vadd.xlane.f32.xlu0 %v149
      %v151 = vpop.xlane.xlu0 %150
      %v152 = vsel %vm90, %v140, 0.0
      %153 = vadd.xlane.f32.xlu0 %v152
      %v154 = vpop.xlane.xlu0 %153
      %v155 = vsel %vm90, %v141, 0.0
      %156 = vadd.xlane.f32.xlu0 %v155
      %v157 = vpop.xlane.xlu0 %156
      %v158 = vsel %vm90, %v142, 0.0
      %159 = vadd.xlane.f32.xlu0 %v158
      %v160 = vpop.xlane.xlu0 %159
      %v161 = vsel %vm90, %v143, 0.0
      %162 = vadd.xlane.f32.xlu0 %v161
      %v163 = vpop.xlane.xlu0 %162
      %v164 = vsel %vm90, %v144, 0.0
      %165 = vadd.xlane.f32.xlu0 %v164
      %v166 = vpop.xlane.xlu0 %165
      %v167 = vsel %vm90, %v145, 0.0
      %168 = vadd.xlane.f32.xlu0 %v167
      %v169 = vpop.xlane.xlu0 %168
      %v170 = vmul.f32 %v148, %v121
      %v171 = vmul.f32 %v151, %v121
      %v172 = vmul.f32 %v154, %v121
      %v173 = vmul.f32 %v157, %v121
      %v174 = vmul.f32 %v160, %v121
      %v175 = vmul.f32 %v163, %v121
      %v176 = vmul.f32 %v166, %v121
      %v177 = vmul.f32 %v169, %v121
      %v178 = vadd.f32 %v170, 1e-05
      %v179 = vadd.f32 %v171, 1e-05
      %v180 = vadd.f32 %v172, 1e-05
      %v181 = vadd.f32 %v173, 1e-05
      %v182 = vadd.f32 %v174, 1e-05
      %v183 = vadd.f32 %v175, 1e-05
      %v184 = vadd.f32 %v176, 1e-05
      %v185 = vadd.f32 %v177, 1e-05
      %v186 = vrsqrt.pop %v178
      %v187 = vmul.f32 %v186, %v178
      %v188 = vmul.f32 %v187, %v186
      %v189 = vmul.f32 0.5, %v188
      %v190 = vsub.f32 1.5, %v189
      %v191 = vmul.f32 %v186, %v190
      %vm192 = vweird.f32 %v178
      %vm193 = vweird.f32 %v186
      %vm194 = vmor %vm192, %vm193
      %v195 = vsel %vm194, %v186, %v191
      %v196 = vrsqrt.pop %v179
      %v197 = vmul.f32 %v196, %v179
      %v198 = vmul.f32 %v197, %v196
      %v199 = vmul.f32 0.5, %v198
      %v200 = vsub.f32 1.5, %v199
      %v201 = vmul.f32 %v196, %v200
      %vm202 = vweird.f32 %v179
      %vm203 = vweird.f32 %v196
      %vm204 = vmor %vm202, %vm203
      %v205 = vsel %vm204, %v196, %v201
      %v206 = vrsqrt.pop %v180
      %v207 = vmul.f32 %v206, %v180
      %v208 = vmul.f32 %v207, %v206
      %v209 = vmul.f32 0.5, %v208
      %v210 = vsub.f32 1.5, %v209
      %v211 = vmul.f32 %v206, %v210
      %vm212 = vweird.f32 %v180
      %vm213 = vweird.f32 %v206
      %vm214 = vmor %vm212, %vm213
      %v215 = vsel %vm214, %v206, %v211
      %v216 = vrsqrt.pop %v181
      %v217 = vmul.f32 %v216, %v181
      %v218 = vmul.f32 %v217, %v216
      %v219 = vmul.f32 0.5, %v218
      %v220 = vsub.f32 1.5, %v219
      %v221 = vmul.f32 %v216, %v220
      %vm222 = vweird.f32 %v181
      %vm223 = vweird.f32 %v216
      %vm224 = vmor %vm222, %vm223
      %v225 = vsel %vm224, %v216, %v221
      %v226 = vrsqrt.pop %v182
      %v227 = vmul.f32 %v226, %v182
      %v228 = vmul.f32 %v227, %v226
      %v229 = vmul.f32 0.5, %v228
      %v230 = vsub.f32 1.5, %v229
      %v231 = vmul.f32 %v226, %v230
      %vm232 = vweird.f32 %v182
      %vm233 = vweird.f32 %v226
      %vm234 = vmor %vm232, %vm233
      %v235 = vsel %vm234, %v226, %v231
      %v236 = vrsqrt.pop %v183
      %v237 = vmul.f32 %v236, %v183
      %v238 = vmul.f32 %v237, %v236
      %v239 = vmul.f32 0.5, %v238
      %v240 = vsub.f32 1.5, %v239
      %v241 = vmul.f32 %v236, %v240
      %vm242 = vweird.f32 %v183
      %vm243 = vweird.f32 %v236
      %vm244 = vmor %vm242, %vm243
      %v245 = vsel %vm244, %v236, %v241
      %v246 = vrsqrt.pop %v184
      %v247 = vmul.f32 %v246, %v184
      %v248 = vmul.f32 %v247, %v246
      %v249 = vmul.f32 0.5, %v248
      %v250 = vsub.f32 1.5, %v249
      %v251 = vmul.f32 %v246, %v250
      %vm252 = vweird.f32 %v184
      %vm253 = vweird.f32 %v246
      %vm254 = vmor %vm252, %vm253
      %v255 = vsel %vm254, %v246, %v251
      %v256 = vrsqrt.pop %v185
      %v257 = vmul.f32 %v256, %v185
      %v258 = vmul.f32 %v257, %v256
      %v259 = vmul.f32 0.5, %v258
      %v260 = vsub.f32 1.5, %v259
      %v261 = vmul.f32 %v256, %v260
      %vm262 = vweird.f32 %v185
      %vm263 = vweird.f32 %v256
      %vm264 = vmor %vm262, %vm263
      %v265 = vsel %vm264, %v256, %v261
      %v266 = vmul.f32 %v130, %v195
      %v267 = vmul.f32 %v131, %v205
      %v268 = vmul.f32 %v132, %v215
      %v269 = vmul.f32 %v133, %v225
      %v270 = vmul.f32 %v134, %v235
      %v271 = vmul.f32 %v135, %v245
      %v272 = vmul.f32 %v136, %v255
      %v273 = vmul.f32 %v137, %v265
      %v274 = vld [vmem:[#allocation3] sm:$0x1]
      %v276 = vperm.slane %v274, 0
      %v278 = vmul.f32 %v266, %v276
      %v279 = vmul.f32 %v267, %v276
      %v280 = vmul.f32 %v268, %v276
      %v281 = vmul.f32 %v269, %v276
      %v282 = vmul.f32 %v270, %v276
      %v283 = vmul.f32 %v271, %v276
      %v284 = vmul.f32 %v272, %v276
      %v285 = vmul.f32 %v273, %v276
      %v286 = vld [vmem:[#allocation5] sm:$0x1]
      %v288 = vperm.slane %v286, 0
      %v290 = vadd.f32 %v278, %v288
      %v291 = vadd.f32 %v279, %v288
      %v292 = vadd.f32 %v280, %v288
      %v293 = vadd.f32 %v281, %v288
      %v294 = vadd.f32 %v282, %v288
      %v295 = vadd.f32 %v283, %v288
      %v296 = vadd.f32 %v284, %v288
      %v297 = vadd.f32 %v285, %v288
      %v298 = vpack.c.bf16 %v290, %v290
      %v299 = vpack.c.bf16 %v291, %v291
      %v300 = vpack.c.bf16 %v292, %v292
      %v301 = vpack.c.bf16 %v293, %v293
      %v302 = vpack.c.bf16 %v294, %v294
      %v303 = vpack.c.bf16 %v295, %v295
      %v304 = vpack.c.bf16 %v296, %v296
      %v305 = vpack.c.bf16 %v297, %v297
      %vm306 = vcmask 257024
      %307 = vst.msk [vmem:[#allocation2] sm:$0xf] %vm306, %v298
      %308 = vst.msk [vmem:[#allocation2 + $0x4] sm:$0xf] %vm306, %v299
      %309 = vst.msk [vmem:[#allocation2 + $0x8] sm:$0xf] %vm306, %v300
      %310 = vst.msk [vmem:[#allocation2 + $0xc] sm:$0xf] %vm306, %v301
      %311 = vst.msk [vmem:[#allocation2 + $0x10] sm:$0xf] %vm306, %v302
      %312 = vst.msk [vmem:[#allocation2 + $0x14] sm:$0xf] %vm306, %v303
      %313 = vst.msk [vmem:[#allocation2 + $0x18] sm:$0xf] %vm306, %v304
      %314 = vst.msk [vmem:[#allocation2 + $0x1c] sm:$0xf] %vm306, %v305
    $region41: #{transformer_forward.19} parent=1 // pred_fallthru
      _
    %v315 = vld [vmem:[#allocation2] sm:$0xf]
    %v316 = vld [vmem:[#allocation2 + $0x4] sm:$0xf]
    %v317 = vld [vmem:[#allocation2 + $0x8] sm:$0xf]
    %v318 = vld [vmem:[#allocation2 + $0xc] sm:$0xf]
    %v319 = vld [vmem:[#allocation2 + $0x10] sm:$0xf]
    %v320 = vld [vmem:[#allocation2 + $0x14] sm:$0xf]
    %v321 = vld [vmem:[#allocation2 + $0x18] sm:$0xf]
    %v322 = vld [vmem:[#allocation2 + $0x1c] sm:$0xf]
    %v323 = vld [vmem:[#allocation7] sm:$0xf]
    %v324 = vld [vmem:[#allocation7 + $0x4] sm:$0xf]
    %v325 = vld [vmem:[#allocation7 + $0x8] sm:$0xf]
    %v326 = vld [vmem:[#allocation7 + $0xc] sm:$0xf]
    %v327 = vld [vmem:[#allocation8] sm:$0x1]
    %v329 = vperm.slane %v327, 0
    %v339 = vunpack.c.l.b16 %v315
    %v340 = vunpack.c.l.b16 %v316
    %v341 = vunpack.c.l.b16 %v317
    %v342 = vunpack.c.l.b16 %v318
    %v343 = vunpack.c.l.b16 %v319
    %v344 = vunpack.c.l.b16 %v320
    %v345 = vunpack.c.l.b16 %v321
    %v346 = vunpack.c.l.b16 %v322
    %v347 = vpack.c.b16 %v340, %v339
    %v348 = vpack.c.b16 %v342, %v341
    %v349 = vpack.c.b16 %v344, %v343
    %v350 = vpack.c.b16 %v346, %v345
    %v355 = vunpack.c.l.b16 %v323
    %v356 = vunpack.c.l.b16 %v324
    %v357 = vunpack.c.l.b16 %v325
    %v358 = vunpack.c.l.b16 %v326
    %v359 = vpack.c.b16 %v356, %v355
    %v360 = vpack.c.b16 %v358, %v357
    %vm363 = vcmask 261120
    %v365 = vsel %vm363, %v347, 0
    %v368 = vsel %vm363, %v348, 0
    %v371 = vsel %vm363, %v349, 0
    %v374 = vsel %vm363, %v350, 0
    %376 = vmatpush.bf16.msra.mxu0 0
    %377 = vmatpush.bf16.msra.mxu0 0
    %378 = vmatpush.bf16.msra.mxu0 0
    %379 = vmatpush.bf16.msra.mxu0 0
    %380 = vmatpush.bf16.msra.mxu0 0
    %381 = vmatpush.bf16.msra.mxu0 0
    %382 = vmatpush.bf16.msra.mxu0 %v360
    %383 = vmatpush.bf16.msra.mxu0 %v359
    %384 = vmatmul.bf16.gmra.mxu0 %v365
    %v385 = vpop.f32.mrf.mxu0
    %v386 = vadd.f32 %v329, %v385
    %v387 = vpop.f32.mrf.mxu0
    %v388 = vadd.f32 %v329, %v387
    %389 = vmatmul.bf16.gmra.mxu0 %v368
    %v390 = vpop.f32.mrf.mxu0
    %v391 = vadd.f32 %v329, %v390
    %v392 = vpop.f32.mrf.mxu0
    %v393 = vadd.f32 %v329, %v392
    %394 = vmatmul.bf16.gmra.mxu0 %v371
    %v395 = vpop.f32.mrf.mxu0
    %v396 = vadd.f32 %v329, %v395
    %v397 = vpop.f32.mrf.mxu0
    %v398 = vadd.f32 %v329, %v397
    %399 = vmatmul.bf16.gmra.mxu0 %v374
    %v400 = vpop.f32.mrf.mxu0
    %v401 = vadd.f32 %v329, %v400
    %v402 = vpop.f32.mrf.mxu0
    %v403 = vadd.f32 %v329, %v402
    %404 = vdwg.mxu0
    %v405 = vpack.c.bf16 %v386, %v386
    %v406 = vpack.c.bf16 %v388, %v388
    %v407 = vpack.c.bf16 %v391, %v391
    %v408 = vpack.c.bf16 %v393, %v393
    %v409 = vpack.c.bf16 %v396, %v396
    %v410 = vpack.c.bf16 %v398, %v398
    %v411 = vpack.c.bf16 %v401, %v401
    %v412 = vpack.c.bf16 %v403, %v403
    %vm413 = vcmask 781312
    %414 = vst.msk [vmem:[%s5] sm:$0xf] %vm413, %v405
    %415 = vst.msk [vmem:[%s5 + $0x4] sm:$0xf] %vm413, %v406
    %416 = vst.msk [vmem:[%s5 + $0x8] sm:$0xf] %vm413, %v407
    %417 = vst.msk [vmem:[%s5 + $0xc] sm:$0xf] %vm413, %v408
    %418 = vst.msk [vmem:[%s5 + $0x10] sm:$0xf] %vm413, %v409
    %419 = vst.msk [vmem:[%s5 + $0x14] sm:$0xf] %vm413, %v410
    %420 = vst.msk [vmem:[%s5 + $0x18] sm:$0xf] %vm413, %v411
    %421 = vst.msk [vmem:[%s5 + $0x1c] sm:$0xf] %vm413, %v412
    // Predicated region
    $region42: #{transformer_forward.19} parent=1 // pred_check
      _
    $region43: #{transformer_forward.19} parent=1 // pred_check_branch
      %423 = sbr.rel (0) target = $region45
    $region44: #{transformer_forward.19} parent=1 // pred_region
      _
    $region45: #{transformer_forward.19} parent=1 // pred_fallthru
      _
    // Predicated region
    $region46: #{transformer_forward.19} parent=1 // pred_check
      _
    $region47: #{transformer_forward.19} parent=1 // pred_check_branch
      %425 = sbr.rel (0) target = $region49
    $region48: #{transformer_forward.19} parent=1 // pred_region
      _
    $region49: #{transformer_forward.19} parent=1 // pred_fallthru
      _
    %426 = vsyncpa [#allocation4], 1
    %427 = vsyncpa [#allocation6], 1
    %428 = vsyncpa [#allocation9], 1

// kernel: transformer_forward.18
$region0: #{transformer_forward.18}
  #allocation0 [shape = 'u32[]', space=smem, size = 0x4, offset = 0x4, fixed_abs, tag = 'smem constant byte address 0x4 - core index']
  #allocation1 [shape = 'u32[72,128]{1,0:T(1,128)}', space=vmem, size = 0x9000, scoped, tag = 'internal scratch']
  #allocation2 [shape = 'f32[64,32]{1,0:T(8,128)}', space=vmem, size = 0x8000, scoped, tag = 'scratch operand']
  %s0 = inlined_call_operand.vmem [shape: bf16[64,32], index: 0, kind: input, shape index: {}]
  %s1 = inlined_call_operand.hbm [shape: bf16[32,32], index: 1, kind: input, shape index: {}]
  %s2 = inlined_call_operand.hbm [shape: f32[1,32], index: 2, kind: input, shape index: {}]
  %s3 = inlined_call_operand.hbm [shape: f32[64,32], index: 3, kind: input, shape index: {}]
  %s4 = inlined_call_operand.vmem [shape: f32[64,32], index: 4, kind: output, shape index: {}]
  %s5 = sld [smem:[#allocation0]]
  $region46: #{transformer_forward.18} parent=0
    _
  %s7 = ssub.s32 1, %s5
  %s8 = scalar_select 0, %s7, %s5
  $region1: #{transformer_forward.18} parent=0
    #allocation3 [shape = 'u8[8192]{0}', space=vmem, size = 0x2000, scoped, tag = 'input window, operand 1, single buffered']
    #allocation4 [shape = 's32[1]{0}', space=sflag, size = 0x4, scoped, tag = 'scoped memory for transformer_forward.18']
    #allocation5 [shape = 'u8[512]{0}', space=vmem, size = 0x400, scoped, tag = 'input window, operand 2, single buffered']
    #allocation6 [shape = 's32[1]{0}', space=sflag, size = 0x4, scoped, tag = 'scoped memory for transformer_forward.18']
    #allocation7 [shape = 'u8[32768]{0}', space=vmem, size = 0x8000, scoped, tag = 'input window, operand 3, single buffered']
    %9 = vsyncpa [#allocation4], 0
    %10 = vsyncpa [#allocation6], 0
    // Predicated region
    $region2: #{transformer_forward.18} parent=1 // pred_check
      _
    $region3: #{transformer_forward.18} parent=1 // pred_check_branch
      %12 = sbr.rel (0) target = $region5
    $region4: #{transformer_forward.18} parent=1 // pred_region
      _
    $region5: #{transformer_forward.18} parent=1 // pred_fallthru
      _
    // Predicated region
    $region6: #{transformer_forward.18} parent=1 // pred_check
      _
    $region7: #{transformer_forward.18} parent=1 // pred_check_branch
      %14 = sbr.rel (0) target = $region9
    $region8: #{transformer_forward.18} parent=1 // pred_region
      %16 = vsyncadd [#allocation4], 0
      %s17 = sshll.u32 %s1, 4
      %s18 = int_to_ptr.hbm [resolvable:$true] %s17
      %s19 = sshll.u32 [#allocation3], 4
      %s20 = int_to_ptr.vmem [resolvable:$true] %s19
      %25 = dma.hbm_to_vmem [thread:$0]  %s18, 256, %s20, [#allocation4], 64, 64, 4
    $region9: #{transformer_forward.18} parent=1 // pred_fallthru
      _
    // Predicated region
    $region10: #{transformer_forward.18} parent=1 // pred_check
      _
    $region11: #{transformer_forward.18} parent=1 // pred_check_branch
      %27 = sbr.rel (0) target = $region13
    $region12: #{transformer_forward.18} parent=1 // pred_region
      %29 = vsyncadd [#allocation6], 0
      %s31 = sshll.u32 %s2, 4
      %s32 = int_to_ptr.hbm [resolvable:$true] %s31
      %s33 = sshll.u32 [#allocation5], 4
      %s34 = int_to_ptr.vmem [resolvable:$true] %s33
      %36 = dma.hbm_to_vmem [thread:$0]  %s32, 16, %s34, [#allocation6]
    $region13: #{transformer_forward.18} parent=1 // pred_fallthru
      _
    // Predicated region
    $region14: #{transformer_forward.18} parent=1 // pred_check
      _
    $region15: #{transformer_forward.18} parent=1 // pred_check_branch
      %38 = sbr.rel (0) target = $region17
    $region16: #{transformer_forward.18} parent=1 // pred_region
      %40 = vsyncadd [#allocation6], 0
      %s41 = sshll.u32 %s3, 4
      %s42 = int_to_ptr.hbm [resolvable:$true] %s41
      %s43 = sshll.u32 [#allocation7], 4
      %s44 = int_to_ptr.vmem [resolvable:$true] %s43
      %49 = dma.hbm_to_vmem [thread:$0]  %s42, 1024, %s44, [#allocation6], 128, 128, 8
    $region17: #{transformer_forward.18} parent=1 // pred_fallthru
      _
    // Predicated region
    $region18: #{transformer_forward.18} parent=1 // pred_check
      _
    $region19: #{transformer_forward.18} parent=1 // pred_check_branch
      %51 = sbr.rel (0) target = $region21
    $region20: #{transformer_forward.18} parent=1 // pred_region
      %53 = dma.done [#allocation4], 256
    $region21: #{transformer_forward.18} parent=1 // pred_fallthru
      _
    // Predicated region
    $region22: #{transformer_forward.18} parent=1 // pred_check
      _
    $region23: #{transformer_forward.18} parent=1 // pred_check_branch
      %55 = sbr.rel (0) target = $region25
    $region24: #{transformer_forward.18} parent=1 // pred_region
      %57 = dma.done [#allocation6], 16
    $region25: #{transformer_forward.18} parent=1 // pred_fallthru
      _
    // Predicated region
    $region26: #{transformer_forward.18} parent=1 // pred_check
      _
    $region27: #{transformer_forward.18} parent=1 // pred_check_branch
      %59 = sbr.rel (0) target = $region29
    $region28: #{transformer_forward.18} parent=1 // pred_region
      %61 = dma.done [#allocation6], 1024
    $region29: #{transformer_forward.18} parent=1 // pred_fallthru
      _
    %p63 = scmp.eq.s32.totalorder 0, 0
    // Predicated region
    $region30: #{transformer_forward.18} parent=1 // pred_check
      %p64 = pneg %p63
    $region31: #{transformer_forward.18} parent=1 // pred_check_branch
      %66 = sbr.rel (%p64) target = $region33
    $region32: #{transformer_forward.18} parent=1 // pred_region
      %vm67 = vcmask 261120
      %68 = vst.msk [vmem:[#allocation2] sm:$0xff] %vm67, 0.0
      %69 = vst.msk [vmem:[#allocation2 + $0x8] sm:$0xff] %vm67, 0.0
      %70 = vst.msk [vmem:[#allocation2 + $0x10] sm:$0xff] %vm67, 0.0
      %71 = vst.msk [vmem:[#allocation2 + $0x18] sm:$0xff] %vm67, 0.0
      %72 = vst.msk [vmem:[#allocation2 + $0x20] sm:$0xff] %vm67, 0.0
      %73 = vst.msk [vmem:[#allocation2 + $0x28] sm:$0xff] %vm67, 0.0
      %74 = vst.msk [vmem:[#allocation2 + $0x30] sm:$0xff] %vm67, 0.0
      %75 = vst.msk [vmem:[#allocation2 + $0x38] sm:$0xff] %vm67, 0.0
    $region33: #{transformer_forward.18} parent=1 // pred_fallthru
      _
    %v76 = vld [vmem:[#allocation2] sm:$0xff]
    %v77 = vld [vmem:[#allocation2 + $0x8] sm:$0xff]
    %v78 = vld [vmem:[#allocation2 + $0x10] sm:$0xff]
    %v79 = vld [vmem:[#allocation2 + $0x18] sm:$0xff]
    %v80 = vld [vmem:[#allocation2 + $0x20] sm:$0xff]
    %v81 = vld [vmem:[#allocation2 + $0x28] sm:$0xff]
    %v82 = vld [vmem:[#allocation2 + $0x30] sm:$0xff]
    %v83 = vld [vmem:[#allocation2 + $0x38] sm:$0xff]
    %v84 = vld [vmem:[%s0] sm:$0xf]
    %v85 = vld [vmem:[%s0 + $0x4] sm:$0xf]
    %v86 = vld [vmem:[%s0 + $0x8] sm:$0xf]
    %v87 = vld [vmem:[%s0 + $0xc] sm:$0xf]
    %v88 = vld [vmem:[%s0 + $0x10] sm:$0xf]
    %v89 = vld [vmem:[%s0 + $0x14] sm:$0xf]
    %v90 = vld [vmem:[%s0 + $0x18] sm:$0xf]
    %v91 = vld [vmem:[%s0 + $0x1c] sm:$0xf]
    %v92 = vld [vmem:[#allocation3] sm:$0xf]
    %v93 = vld [vmem:[#allocation3 + $0x4] sm:$0xf]
    %v94 = vld [vmem:[#allocation3 + $0x8] sm:$0xf]
    %v95 = vld [vmem:[#allocation3 + $0xc] sm:$0xf]
    %v104 = vunpack.c.l.b16 %v84
    %v105 = vunpack.c.l.b16 %v85
    %v106 = vunpack.c.l.b16 %v86
    %v107 = vunpack.c.l.b16 %v87
    %v108 = vunpack.c.l.b16 %v88
    %v109 = vunpack.c.l.b16 %v89
    %v110 = vunpack.c.l.b16 %v90
    %v111 = vunpack.c.l.b16 %v91
    %v112 = vpack.c.b16 %v105, %v104
    %v113 = vpack.c.b16 %v107, %v106
    %v114 = vpack.c.b16 %v109, %v108
    %v115 = vpack.c.b16 %v111, %v110
    %v120 = vunpack.c.l.b16 %v92
    %v121 = vunpack.c.l.b16 %v93
    %v122 = vunpack.c.l.b16 %v94
    %v123 = vunpack.c.l.b16 %v95
    %v124 = vpack.c.b16 %v121, %v120
    %v125 = vpack.c.b16 %v123, %v122
    %vm128 = vcmask 261120
    %v130 = vsel %vm128, %v112, 0
    %v133 = vsel %vm128, %v113, 0
    %v136 = vsel %vm128, %v114, 0
    %v139 = vsel %vm128, %v115, 0
    %141 = vmatpush.bf16.msra.mxu0 0
    %142 = vmatpush.bf16.msra.mxu0 0
    %143 = vmatpush.bf16.msra.mxu0 0
    %144 = vmatpush.bf16.msra.mxu0 0
    %145 = vmatpush.bf16.msra.mxu0 0
    %146 = vmatpush.bf16.msra.mxu0 0
    %147 = vmatpush.bf16.msra.mxu0 %v125
    %148 = vmatpush.bf16.msra.mxu0 %v124
    %149 = vmatmul.bf16.gmra.mxu0 %v130
    %v150 = vpop.f32.mrf.mxu0
    %v151 = vadd.f32 0.0, %v150
    %v152 = vpop.f32.mrf.mxu0
    %v153 = vadd.f32 0.0, %v152
    %154 = vmatmul.bf16.gmra.mxu0 %v133
    %v155 = vpop.f32.mrf.mxu0
    %v156 = vadd.f32 0.0, %v155
    %v157 = vpop.f32.mrf.mxu0
    %v158 = vadd.f32 0.0, %v157
    %159 = vmatmul.bf16.gmra.mxu0 %v136
    %v160 = vpop.f32.mrf.mxu0
    %v161 = vadd.f32 0.0, %v160
    %v162 = vpop.f32.mrf.mxu0
    %v163 = vadd.f32 0.0, %v162
    %164 = vmatmul.bf16.gmra.mxu0 %v139
    %v165 = vpop.f32.mrf.mxu0
    %v166 = vadd.f32 0.0, %v165
    %v167 = vpop.f32.mrf.mxu0
    %v168 = vadd.f32 0.0, %v167
    %169 = vdwg.mxu0
    %v170 = vadd.f32 %v76, %v151
    %v171 = vadd.f32 %v77, %v153
    %v172 = vadd.f32 %v78, %v156
    %v173 = vadd.f32 %v79, %v158
    %v174 = vadd.f32 %v80, %v161
    %v175 = vadd.f32 %v81, %v163
    %v176 = vadd.f32 %v82, %v166
    %v177 = vadd.f32 %v83, %v168
    %178 = vst.msk [vmem:[#allocation2] sm:$0xff] %vm128, %v170
    %179 = vst.msk [vmem:[#allocation2 + $0x8] sm:$0xff] %vm128, %v171
    %180 = vst.msk [vmem:[#allocation2 + $0x10] sm:$0xff] %vm128, %v172
    %181 = vst.msk [vmem:[#allocation2 + $0x18] sm:$0xff] %vm128, %v173
    %182 = vst.msk [vmem:[#allocation2 + $0x20] sm:$0xff] %vm128, %v174
    %183 = vst.msk [vmem:[#allocation2 + $0x28] sm:$0xff] %vm128, %v175
    %184 = vst.msk [vmem:[#allocation2 + $0x30] sm:$0xff] %vm128, %v176
    %185 = vst.msk [vmem:[#allocation2 + $0x38] sm:$0xff] %vm128, %v177
    // Predicated region
    $region34: #{transformer_forward.18} parent=1 // pred_check
      %p186 = pneg %p63
    $region35: #{transformer_forward.18} parent=1 // pred_check_branch
      %188 = sbr.rel (%p186) target = $region37
    $region36: #{transformer_forward.18} parent=1 // pred_region
      %v189 = vld [vmem:[#allocation2] sm:$0xff]
      %v190 = vld [vmem:[#allocation2 + $0x8] sm:$0xff]
      %v191 = vld [vmem:[#allocation2 + $0x10] sm:$0xff]
      %v192 = vld [vmem:[#allocation2 + $0x18] sm:$0xff]
      %v193 = vld [vmem:[#allocation2 + $0x20] sm:$0xff]
      %v194 = vld [vmem:[#allocation2 + $0x28] sm:$0xff]
      %v195 = vld [vmem:[#allocation2 + $0x30] sm:$0xff]
      %v196 = vld [vmem:[#allocation2 + $0x38] sm:$0xff]
      %v197 = vld [vmem:[#allocation5] sm:$0x1]
      %v199 = vperm.slane %v197, 0
      %v201 = vadd.f32 %v189, %v199
      %v202 = vadd.f32 %v190, %v199
      %v203 = vadd.f32 %v191, %v199
      %v204 = vadd.f32 %v192, %v199
      %v205 = vadd.f32 %v193, %v199
      %v206 = vadd.f32 %v194, %v199
      %v207 = vadd.f32 %v195, %v199
      %v208 = vadd.f32 %v196, %v199
      %v209 = vld [vmem:[#allocation7] sm:$0xff]
      %v210 = vld [vmem:[#allocation7 + $0x8] sm:$0xff]
      %v211 = vld [vmem:[#allocation7 + $0x10] sm:$0xff]
      %v212 = vld [vmem:[#allocation7 + $0x18] sm:$0xff]
      %v213 = vld [vmem:[#allocation7 + $0x20] sm:$0xff]
      %v214 = vld [vmem:[#allocation7 + $0x28] sm:$0xff]
      %v215 = vld [vmem:[#allocation7 + $0x30] sm:$0xff]
      %v216 = vld [vmem:[#allocation7 + $0x38] sm:$0xff]
      %v217 = vadd.f32 %v201, %v209
      %v218 = vadd.f32 %v202, %v210
      %v219 = vadd.f32 %v203, %v211
      %v220 = vadd.f32 %v204, %v212
      %v221 = vadd.f32 %v205, %v213
      %v222 = vadd.f32 %v206, %v214
      %v223 = vadd.f32 %v207, %v215
      %v224 = vadd.f32 %v208, %v216
      %225 = vst.msk [vmem:[%s4] sm:$0xff] %vm128, %v217
      %226 = vst.msk [vmem:[%s4 + $0x8] sm:$0xff] %vm128, %v218
      %227 = vst.msk [vmem:[%s4 + $0x10] sm:$0xff] %vm128, %v219
      %228 = vst.msk [vmem:[%s4 + $0x18] sm:$0xff] %vm128, %v220
      %229 = vst.msk [vmem:[%s4 + $0x20] sm:$0xff] %vm128, %v221
      %230 = vst.msk [vmem:[%s4 + $0x28] sm:$0xff] %vm128, %v222
      %231 = vst.msk [vmem:[%s4 + $0x30] sm:$0xff] %vm128, %v223
      %232 = vst.msk [vmem:[%s4 + $0x38] sm:$0xff] %vm128, %v224
    $region37: #{transformer_forward.18} parent=1 // pred_fallthru
      _
    // Predicated region
    $region38: #{transformer_forward.18} parent=1 // pred_check
      _
    $region39: #{transformer_forward.18} parent=1 // pred_check_branch
      %234 = sbr.rel (0) target = $region41
    $region40: #{transformer_forward.18} parent=1 // pred_region
      _
    $region41: #{transformer_forward.18} parent=1 // pred_fallthru
      _
    // Predicated region
    $region42: #{transformer_forward.18} parent=1 // pred_check
      _
    $region43: #{transformer_forward.18} parent=1 // pred_check_branch
      %236 = sbr.rel (0) target = $region45
    $region44: #{transformer_forward.18} parent=1 // pred_region
      _
    $region45: #{transformer_forward.18} parent=1 // pred_fallthru
      _
    %237 = vsyncpa [#allocation4], 1
    %238 = vsyncpa [#allocation6], 1

// kernel: transformer_forward.16
$region0: #{transformer_forward.16}
  #allocation0 [shape = 'u32[]', space=smem, size = 0x4, offset = 0x4, fixed_abs, tag = 'smem constant byte address 0x4 - core index']
  #allocation1 [shape = 'u32[72,128]{1,0:T(1,128)}', space=vmem, size = 0x9000, scoped, tag = 'internal scratch']
  #allocation2 [shape = 'bf16[64,32]{1,0:T(8,128)(2,1)}', space=vmem, size = 0x4000, scoped, tag = 'scratch operand']
  %s0 = inlined_call_operand.hbm [shape: f32[64,32], index: 0, kind: input, shape index: {}]
  %s1 = inlined_call_operand.vmem [shape: f32[1,32], index: 1, kind: input, shape index: {}]
  %s2 = inlined_call_operand.vmem [shape: f32[1,32], index: 2, kind: input, shape index: {}]
  %s3 = inlined_call_operand.hbm [shape: bf16[32,96], index: 3, kind: input, shape index: {}]
  %s4 = inlined_call_operand.hbm [shape: f32[1,96], index: 4, kind: input, shape index: {}]
  %s5 = inlined_call_operand.vmem [shape: bf16[64,96], index: 5, kind: output, shape index: {}]
  %s6 = sld [smem:[#allocation0]]
  $region46: #{transformer_forward.16} parent=0
    _
  %s8 = ssub.s32 1, %s6
  %s9 = scalar_select 0, %s8, %s6
  $region1: #{transformer_forward.16} parent=0
    #allocation3 [shape = 'u8[32768]{0}', space=vmem, size = 0x8000, scoped, tag = 'input window, operand 0, single buffered']
    #allocation4 [shape = 's32[1]{0}', space=sflag, size = 0x4, scoped, tag = 'scoped memory for transformer_forward.16']
    #allocation5 [shape = 'u8[8192]{0}', space=vmem, size = 0x2000, scoped, tag = 'input window, operand 3, single buffered']
    #allocation6 [shape = 's32[1]{0}', space=sflag, size = 0x4, scoped, tag = 'scoped memory for transformer_forward.16']
    #allocation7 [shape = 'u8[512]{0}', space=vmem, size = 0x400, scoped, tag = 'input window, operand 4, single buffered']
    %10 = vsyncpa [#allocation4], 0
    %11 = vsyncpa [#allocation6], 0
    // Predicated region
    $region2: #{transformer_forward.16} parent=1 // pred_check
      _
    $region3: #{transformer_forward.16} parent=1 // pred_check_branch
      %13 = sbr.rel (0) target = $region5
    $region4: #{transformer_forward.16} parent=1 // pred_region
      %15 = vsyncadd [#allocation4], 0
      %s16 = sshll.u32 %s0, 4
      %s17 = int_to_ptr.hbm [resolvable:$true] %s16
      %s18 = sshll.u32 [#allocation3], 4
      %s19 = int_to_ptr.vmem [resolvable:$true] %s18
      %24 = dma.hbm_to_vmem [thread:$0]  %s17, 1024, %s19, [#allocation4], 128, 128, 8
    $region5: #{transformer_forward.16} parent=1 // pred_fallthru
      _
    // Predicated region
    $region6: #{transformer_forward.16} parent=1 // pred_check
      _
    $region7: #{transformer_forward.16} parent=1 // pred_check_branch
      %26 = sbr.rel (0) target = $region9
    $region8: #{transformer_forward.16} parent=1 // pred_region
      _
    $region9: #{transformer_forward.16} parent=1 // pred_fallthru
      _
    // Predicated region
    $region10: #{transformer_forward.16} parent=1 // pred_check
      _
    $region11: #{transformer_forward.16} parent=1 // pred_check_branch
      %28 = sbr.rel (0) target = $region13
    $region12: #{transformer_forward.16} parent=1 // pred_region
      _
    $region13: #{transformer_forward.16} parent=1 // pred_fallthru
      _
    // Predicated region
    $region14: #{transformer_forward.16} parent=1 // pred_check
      _
    $region15: #{transformer_forward.16} parent=1 // pred_check_branch
      %30 = sbr.rel (0) target = $region17
    $region16: #{transformer_forward.16} parent=1 // pred_region
      %32 = vsyncadd [#allocation6], 0
      %s33 = sshll.u32 %s3, 4
      %s34 = int_to_ptr.hbm [resolvable:$true] %s33
      %s35 = sshll.u32 [#allocation5], 4
      %s36 = int_to_ptr.vmem [resolvable:$true] %s35
      %41 = dma.hbm_to_vmem [thread:$0]  %s34, 256, %s36, [#allocation6], 64, 64, 4
    $region17: #{transformer_forward.16} parent=1 // pred_fallthru
      _
    // Predicated region
    $region18: #{transformer_forward.16} parent=1 // pred_check
      _
    $region19: #{transformer_forward.16} parent=1 // pred_check_branch
      %43 = sbr.rel (0) target = $region21
    $region20: #{transformer_forward.16} parent=1 // pred_region
      %45 = vsyncadd [#allocation6], 0
      %s47 = sshll.u32 %s4, 4
      %s48 = int_to_ptr.hbm [resolvable:$true] %s47
      %s49 = sshll.u32 [#allocation7], 4
      %s50 = int_to_ptr.vmem [resolvable:$true] %s49
      %52 = dma.hbm_to_vmem [thread:$0]  %s48, 16, %s50, [#allocation6]
    $region21: #{transformer_forward.16} parent=1 // pred_fallthru
      _
    // Predicated region
    $region22: #{transformer_forward.16} parent=1 // pred_check
      _
    $region23: #{transformer_forward.16} parent=1 // pred_check_branch
      %54 = sbr.rel (0) target = $region25
    $region24: #{transformer_forward.16} parent=1 // pred_region
      %56 = dma.done [#allocation4], 1024
    $region25: #{transformer_forward.16} parent=1 // pred_fallthru
      _
    // Predicated region
    $region26: #{transformer_forward.16} parent=1 // pred_check
      _
    $region27: #{transformer_forward.16} parent=1 // pred_check_branch
      %58 = sbr.rel (0) target = $region29
    $region28: #{transformer_forward.16} parent=1 // pred_region
      %60 = dma.done [#allocation6], 256
    $region29: #{transformer_forward.16} parent=1 // pred_fallthru
      _
    // Predicated region
    $region30: #{transformer_forward.16} parent=1 // pred_check
      _
    $region31: #{transformer_forward.16} parent=1 // pred_check_branch
      %62 = sbr.rel (0) target = $region33
    $region32: #{transformer_forward.16} parent=1 // pred_region
      %64 = dma.done [#allocation6], 16
    $region33: #{transformer_forward.16} parent=1 // pred_fallthru
      _
    %p66 = scmp.eq.s32.totalorder 0, 0
    // Predicated region
    $region34: #{transformer_forward.16} parent=1 // pred_check
      %p67 = pneg %p66
    $region35: #{transformer_forward.16} parent=1 // pred_check_branch
      %69 = sbr.rel (%p67) target = $region37
    $region36: #{transformer_forward.16} parent=1 // pred_region
      %v70 = vld [vmem:[#allocation3] sm:$0xff]
      %v71 = vld [vmem:[#allocation3 + $0x8] sm:$0xff]
      %v72 = vld [vmem:[#allocation3 + $0x10] sm:$0xff]
      %v73 = vld [vmem:[#allocation3 + $0x18] sm:$0xff]
      %v74 = vld [vmem:[#allocation3 + $0x20] sm:$0xff]
      %v75 = vld [vmem:[#allocation3 + $0x28] sm:$0xff]
      %v76 = vld [vmem:[#allocation3 + $0x30] sm:$0xff]
      %v77 = vld [vmem:[#allocation3 + $0x38] sm:$0xff]
      %vm78 = vcmask 261120
      %v79 = vsel %vm78, %v70, 0.0
      %80 = vadd.xlane.f32.xlu0 %v79
      %v81 = vpop.xlane.xlu0 %80
      %v82 = vsel %vm78, %v71, 0.0
      %83 = vadd.xlane.f32.xlu0 %v82
      %v84 = vpop.xlane.xlu0 %83
      %v85 = vsel %vm78, %v72, 0.0
      %86 = vadd.xlane.f32.xlu0 %v85
      %v87 = vpop.xlane.xlu0 %86
      %v88 = vsel %vm78, %v73, 0.0
      %89 = vadd.xlane.f32.xlu0 %v88
      %v90 = vpop.xlane.xlu0 %89
      %v91 = vsel %vm78, %v74, 0.0
      %92 = vadd.xlane.f32.xlu0 %v91
      %v93 = vpop.xlane.xlu0 %92
      %v94 = vsel %vm78, %v75, 0.0
      %95 = vadd.xlane.f32.xlu0 %v94
      %v96 = vpop.xlane.xlu0 %95
      %v97 = vsel %vm78, %v76, 0.0
      %98 = vadd.xlane.f32.xlu0 %v97
      %v99 = vpop.xlane.xlu0 %98
      %v100 = vsel %vm78, %v77, 0.0
      %101 = vadd.xlane.f32.xlu0 %v100
      %v102 = vpop.xlane.xlu0 %101
      %v103 = vrcp.pop 32.0
      %v104 = vmul.f32 32.0, %v103
      %v105 = vsub.f32 1.0, %v104
      %v106 = vmul.f32 %v103, %v105
      %v107 = vadd.f32 %v103, %v106
      %vm108 = vweird.f32 %v103
      %v109 = vsel %vm108, %v103, %v107
      %v110 = vmul.f32 %v81, %v109
      %v111 = vmul.f32 %v84, %v109
      %v112 = vmul.f32 %v87, %v109
      %v113 = vmul.f32 %v90, %v109
      %v114 = vmul.f32 %v93, %v109
      %v115 = vmul.f32 %v96, %v109
      %v116 = vmul.f32 %v99, %v109
      %v117 = vmul.f32 %v102, %v109
      %v118 = vsub.f32 %v70, %v110
      %v119 = vsub.f32 %v71, %v111
      %v120 = vsub.f32 %v72, %v112
      %v121 = vsub.f32 %v73, %v113
      %v122 = vsub.f32 %v74, %v114
      %v123 = vsub.f32 %v75, %v115
      %v124 = vsub.f32 %v76, %v116
      %v125 = vsub.f32 %v77, %v117
      %v126 = vmul.f32 %v118, %v118
      %v127 = vmul.f32 %v119, %v119
      %v128 = vmul.f32 %v120, %v120
      %v129 = vmul.f32 %v121, %v121
      %v130 = vmul.f32 %v122, %v122
      %v131 = vmul.f32 %v123, %v123
      %v132 = vmul.f32 %v124, %v124
      %v133 = vmul.f32 %v125, %v125
      %v134 = vsel %vm78, %v126, 0.0
      %135 = vadd.xlane.f32.xlu0 %v134
      %v136 = vpop.xlane.xlu0 %135
      %v137 = vsel %vm78, %v127, 0.0
      %138 = vadd.xlane.f32.xlu0 %v137
      %v139 = vpop.xlane.xlu0 %138
      %v140 = vsel %vm78, %v128, 0.0
      %141 = vadd.xlane.f32.xlu0 %v140
      %v142 = vpop.xlane.xlu0 %141
      %v143 = vsel %vm78, %v129, 0.0
      %144 = vadd.xlane.f32.xlu0 %v143
      %v145 = vpop.xlane.xlu0 %144
      %v146 = vsel %vm78, %v130, 0.0
      %147 = vadd.xlane.f32.xlu0 %v146
      %v148 = vpop.xlane.xlu0 %147
      %v149 = vsel %vm78, %v131, 0.0
      %150 = vadd.xlane.f32.xlu0 %v149
      %v151 = vpop.xlane.xlu0 %150
      %v152 = vsel %vm78, %v132, 0.0
      %153 = vadd.xlane.f32.xlu0 %v152
      %v154 = vpop.xlane.xlu0 %153
      %v155 = vsel %vm78, %v133, 0.0
      %156 = vadd.xlane.f32.xlu0 %v155
      %v157 = vpop.xlane.xlu0 %156
      %v158 = vmul.f32 %v136, %v109
      %v159 = vmul.f32 %v139, %v109
      %v160 = vmul.f32 %v142, %v109
      %v161 = vmul.f32 %v145, %v109
      %v162 = vmul.f32 %v148, %v109
      %v163 = vmul.f32 %v151, %v109
      %v164 = vmul.f32 %v154, %v109
      %v165 = vmul.f32 %v157, %v109
      %v166 = vadd.f32 %v158, 1e-05
      %v167 = vadd.f32 %v159, 1e-05
      %v168 = vadd.f32 %v160, 1e-05
      %v169 = vadd.f32 %v161, 1e-05
      %v170 = vadd.f32 %v162, 1e-05
      %v171 = vadd.f32 %v163, 1e-05
      %v172 = vadd.f32 %v164, 1e-05
      %v173 = vadd.f32 %v165, 1e-05
      %v174 = vrsqrt.pop %v166
      %v175 = vmul.f32 %v174, %v166
      %v176 = vmul.f32 %v175, %v174
      %v177 = vmul.f32 0.5, %v176
      %v178 = vsub.f32 1.5, %v177
      %v179 = vmul.f32 %v174, %v178
      %vm180 = vweird.f32 %v166
      %vm181 = vweird.f32 %v174
      %vm182 = vmor %vm180, %vm181
      %v183 = vsel %vm182, %v174, %v179
      %v184 = vrsqrt.pop %v167
      %v185 = vmul.f32 %v184, %v167
      %v186 = vmul.f32 %v185, %v184
      %v187 = vmul.f32 0.5, %v186
      %v188 = vsub.f32 1.5, %v187
      %v189 = vmul.f32 %v184, %v188
      %vm190 = vweird.f32 %v167
      %vm191 = vweird.f32 %v184
      %vm192 = vmor %vm190, %vm191
      %v193 = vsel %vm192, %v184, %v189
      %v194 = vrsqrt.pop %v168
      %v195 = vmul.f32 %v194, %v168
      %v196 = vmul.f32 %v195, %v194
      %v197 = vmul.f32 0.5, %v196
      %v198 = vsub.f32 1.5, %v197
      %v199 = vmul.f32 %v194, %v198
      %vm200 = vweird.f32 %v168
      %vm201 = vweird.f32 %v194
      %vm202 = vmor %vm200, %vm201
      %v203 = vsel %vm202, %v194, %v199
      %v204 = vrsqrt.pop %v169
      %v205 = vmul.f32 %v204, %v169
      %v206 = vmul.f32 %v205, %v204
      %v207 = vmul.f32 0.5, %v206
      %v208 = vsub.f32 1.5, %v207
      %v209 = vmul.f32 %v204, %v208
      %vm210 = vweird.f32 %v169
      %vm211 = vweird.f32 %v204
      %vm212 = vmor %vm210, %vm211
      %v213 = vsel %vm212, %v204, %v209
      %v214 = vrsqrt.pop %v170
      %v215 = vmul.f32 %v214, %v170
      %v216 = vmul.f32 %v215, %v214
      %v217 = vmul.f32 0.5, %v216
      %v218 = vsub.f32 1.5, %v217
      %v219 = vmul.f32 %v214, %v218
      %vm220 = vweird.f32 %v170
      %vm221 = vweird.f32 %v214
      %vm222 = vmor %vm220, %vm221
      %v223 = vsel %vm222, %v214, %v219
      %v224 = vrsqrt.pop %v171
      %v225 = vmul.f32 %v224, %v171
      %v226 = vmul.f32 %v225, %v224
      %v227 = vmul.f32 0.5, %v226
      %v228 = vsub.f32 1.5, %v227
      %v229 = vmul.f32 %v224, %v228
      %vm230 = vweird.f32 %v171
      %vm231 = vweird.f32 %v224
      %vm232 = vmor %vm230, %vm231
      %v233 = vsel %vm232, %v224, %v229
      %v234 = vrsqrt.pop %v172
      %v235 = vmul.f32 %v234, %v172
      %v236 = vmul.f32 %v235, %v234
      %v237 = vmul.f32 0.5, %v236
      %v238 = vsub.f32 1.5, %v237
      %v239 = vmul.f32 %v234, %v238
      %vm240 = vweird.f32 %v172
      %vm241 = vweird.f32 %v234
      %vm242 = vmor %vm240, %vm241
      %v243 = vsel %vm242, %v234, %v239
      %v244 = vrsqrt.pop %v173
      %v245 = vmul.f32 %v244, %v173
      %v246 = vmul.f32 %v245, %v244
      %v247 = vmul.f32 0.5, %v246
      %v248 = vsub.f32 1.5, %v247
      %v249 = vmul.f32 %v244, %v248
      %vm250 = vweird.f32 %v173
      %vm251 = vweird.f32 %v244
      %vm252 = vmor %vm250, %vm251
      %v253 = vsel %vm252, %v244, %v249
      %v254 = vmul.f32 %v118, %v183
      %v255 = vmul.f32 %v119, %v193
      %v256 = vmul.f32 %v120, %v203
      %v257 = vmul.f32 %v121, %v213
      %v258 = vmul.f32 %v122, %v223
      %v259 = vmul.f32 %v123, %v233
      %v260 = vmul.f32 %v124, %v243
      %v261 = vmul.f32 %v125, %v253
      %v262 = vld [vmem:[%s1] sm:$0x1]
      %v264 = vperm.slane %v262, 0
      %v266 = vmul.f32 %v254, %v264
      %v267 = vmul.f32 %v255, %v264
      %v268 = vmul.f32 %v256, %v264
      %v269 = vmul.f32 %v257, %v264
      %v270 = vmul.f32 %v258, %v264
      %v271 = vmul.f32 %v259, %v264
      %v272 = vmul.f32 %v260, %v264
      %v273 = vmul.f32 %v261, %v264
      %v274 = vld [vmem:[%s2] sm:$0x1]
      %v276 = vperm.slane %v274, 0
      %v278 = vadd.f32 %v266, %v276
      %v279 = vadd.f32 %v267, %v276
      %v280 = vadd.f32 %v268, %v276
      %v281 = vadd.f32 %v269, %v276
      %v282 = vadd.f32 %v270, %v276
      %v283 = vadd.f32 %v271, %v276
      %v284 = vadd.f32 %v272, %v276
      %v285 = vadd.f32 %v273, %v276
      %v286 = vpack.c.bf16 %v278, %v278
      %v287 = vpack.c.bf16 %v279, %v279
      %v288 = vpack.c.bf16 %v280, %v280
      %v289 = vpack.c.bf16 %v281, %v281
      %v290 = vpack.c.bf16 %v282, %v282
      %v291 = vpack.c.bf16 %v283, %v283
      %v292 = vpack.c.bf16 %v284, %v284
      %v293 = vpack.c.bf16 %v285, %v285
      %vm294 = vcmask 257024
      %295 = vst.msk [vmem:[#allocation2] sm:$0xf] %vm294, %v286
      %296 = vst.msk [vmem:[#allocation2 + $0x4] sm:$0xf] %vm294, %v287
      %297 = vst.msk [vmem:[#allocation2 + $0x8] sm:$0xf] %vm294, %v288
      %298 = vst.msk [vmem:[#allocation2 + $0xc] sm:$0xf] %vm294, %v289
      %299 = vst.msk [vmem:[#allocation2 + $0x10] sm:$0xf] %vm294, %v290
      %300 = vst.msk [vmem:[#allocation2 + $0x14] sm:$0xf] %vm294, %v291
      %301 = vst.msk [vmem:[#allocation2 + $0x18] sm:$0xf] %vm294, %v292
      %302 = vst.msk [vmem:[#allocation2 + $0x1c] sm:$0xf] %vm294, %v293
    $region37: #{transformer_forward.16} parent=1 // pred_fallthru
      _
    %v303 = vld [vmem:[#allocation2] sm:$0xf]
    %v304 = vld [vmem:[#allocation2 + $0x4] sm:$0xf]
    %v305 = vld [vmem:[#allocation2 + $0x8] sm:$0xf]
    %v306 = vld [vmem:[#allocation2 + $0xc] sm:$0xf]
    %v307 = vld [vmem:[#allocation2 + $0x10] sm:$0xf]
    %v308 = vld [vmem:[#allocation2 + $0x14] sm:$0xf]
    %v309 = vld [vmem:[#allocation2 + $0x18] sm:$0xf]
    %v310 = vld [vmem:[#allocation2 + $0x1c] sm:$0xf]
    %v311 = vld [vmem:[#allocation5] sm:$0xf]
    %v312 = vld [vmem:[#allocation5 + $0x4] sm:$0xf]
    %v313 = vld [vmem:[#allocation5 + $0x8] sm:$0xf]
    %v314 = vld [vmem:[#allocation5 + $0xc] sm:$0xf]
    %v315 = vld [vmem:[#allocation7] sm:$0x1]
    %v317 = vperm.slane %v315, 0
    %v327 = vunpack.c.l.b16 %v303
    %v328 = vunpack.c.l.b16 %v304
    %v329 = vunpack.c.l.b16 %v305
    %v330 = vunpack.c.l.b16 %v306
    %v331 = vunpack.c.l.b16 %v307
    %v332 = vunpack.c.l.b16 %v308
    %v333 = vunpack.c.l.b16 %v309
    %v334 = vunpack.c.l.b16 %v310
    %v335 = vpack.c.b16 %v328, %v327
    %v336 = vpack.c.b16 %v330, %v329
    %v337 = vpack.c.b16 %v332, %v331
    %v338 = vpack.c.b16 %v334, %v333
    %v343 = vunpack.c.l.b16 %v311
    %v344 = vunpack.c.l.b16 %v312
    %v345 = vunpack.c.l.b16 %v313
    %v346 = vunpack.c.l.b16 %v314
    %v347 = vpack.c.b16 %v344, %v343
    %v348 = vpack.c.b16 %v346, %v345
    %vm351 = vcmask 261120
    %v353 = vsel %vm351, %v335, 0
    %v356 = vsel %vm351, %v336, 0
    %v359 = vsel %vm351, %v337, 0
    %v362 = vsel %vm351, %v338, 0
    %364 = vmatpush.bf16.msra.mxu0 0
    %365 = vmatpush.bf16.msra.mxu0 0
    %366 = vmatpush.bf16.msra.mxu0 0
    %367 = vmatpush.bf16.msra.mxu0 0
    %368 = vmatpush.bf16.msra.mxu0 0
    %369 = vmatpush.bf16.msra.mxu0 0
    %370 = vmatpush.bf16.msra.mxu0 %v348
    %371 = vmatpush.bf16.msra.mxu0 %v347
    %372 = vmatmul.bf16.gmra.mxu0 %v353
    %v373 = vpop.f32.mrf.mxu0
    %v374 = vadd.f32 %v317, %v373
    %v375 = vpop.f32.mrf.mxu0
    %v376 = vadd.f32 %v317, %v375
    %377 = vmatmul.bf16.gmra.mxu0 %v356
    %v378 = vpop.f32.mrf.mxu0
    %v379 = vadd.f32 %v317, %v378
    %v380 = vpop.f32.mrf.mxu0
    %v381 = vadd.f32 %v317, %v380
    %382 = vmatmul.bf16.gmra.mxu0 %v359
    %v383 = vpop.f32.mrf.mxu0
    %v384 = vadd.f32 %v317, %v383
    %v385 = vpop.f32.mrf.mxu0
    %v386 = vadd.f32 %v317, %v385
    %387 = vmatmul.bf16.gmra.mxu0 %v362
    %v388 = vpop.f32.mrf.mxu0
    %v389 = vadd.f32 %v317, %v388
    %v390 = vpop.f32.mrf.mxu0
    %v391 = vadd.f32 %v317, %v390
    %392 = vdwg.mxu0
    %v393 = vpack.c.bf16 %v374, %v374
    %v394 = vpack.c.bf16 %v376, %v376
    %v395 = vpack.c.bf16 %v379, %v379
    %v396 = vpack.c.bf16 %v381, %v381
    %v397 = vpack.c.bf16 %v384, %v384
    %v398 = vpack.c.bf16 %v386, %v386
    %v399 = vpack.c.bf16 %v389, %v389
    %v400 = vpack.c.bf16 %v391, %v391
    %vm401 = vcmask 781312
    %402 = vst.msk [vmem:[%s5] sm:$0xf] %vm401, %v393
    %403 = vst.msk [vmem:[%s5 + $0x4] sm:$0xf] %vm401, %v394
    %404 = vst.msk [vmem:[%s5 + $0x8] sm:$0xf] %vm401, %v395
    %405 = vst.msk [vmem:[%s5 + $0xc] sm:$0xf] %vm401, %v396
    %406 = vst.msk [vmem:[%s5 + $0x10] sm:$0xf] %vm401, %v397
    %407 = vst.msk [vmem:[%s5 + $0x14] sm:$0xf] %vm401, %v398
    %408 = vst.msk [vmem:[%s5 + $0x18] sm:$0xf] %vm401, %v399
    %409 = vst.msk [vmem:[%s5 + $0x1c] sm:$0xf] %vm401, %v400
    // Predicated region
    $region38: #{transformer_forward.16} parent=1 // pred_check
      _
    $region39: #{transformer_forward.16} parent=1 // pred_check_branch
      %411 = sbr.rel (0) target = $region41
    $region40: #{transformer_forward.16} parent=1 // pred_region
      _
    $region41: #{transformer_forward.16} parent=1 // pred_fallthru
      _
    // Predicated region
    $region42: #{transformer_forward.16} parent=1 // pred_check
      _
    $region43: #{transformer_forward.16} parent=1 // pred_check_branch
      %413 = sbr.rel (0) target = $region45
    $region44: #{transformer_forward.16} parent=1 // pred_region
      _
    $region45: #{transformer_forward.16} parent=1 // pred_fallthru
      _
    %414 = vsyncpa [#allocation4], 1
    %415 = vsyncpa [#allocation6], 1

// kernel: transformer_forward.17
$region0: #{transformer_forward.17}
  #allocation0 [shape = 'u32[]', space=smem, size = 0x4, offset = 0x4, fixed_abs, tag = 'smem constant byte address 0x4 - core index']
  #allocation1 [shape = 'u32[72,128]{1,0:T(1,128)}', space=vmem, size = 0x9000, scoped, tag = 'internal scratch']
  %s0 = inlined_call_operand.vmem [shape: bf16[16,4,96], index: 0, kind: input, shape index: {}]
  %s1 = inlined_call_operand.vmem [shape: bf16[16,4,32], index: 1, kind: output, shape index: {}]
  %s2 = sld [smem:[#allocation0]]
  $region37: #{transformer_forward.17} parent=0
    _
  %s4 = ssub.s32 1, %s2
  %s5 = scalar_select 0, %s4, %s2
  loop: start=0, step=1, limit=4
  $region2: #{transformer_forward.17} parent=0 // loop_pre_header
    _
  $region3: #{transformer_forward.17} parent=0 // loop_header
    %s7 = sphi 0, %s11
    %p8 = scmp.ge.s32.totalorder %s7, 4
    %s17 = sphi 0, %s19
    %s20 = sphi 0, %s17
    %s21 = sphi 0, %s20
    %s37 = sphi 0, %s21
    %s43 = sphi 0, %s45
    %s46 = sphi 0, %s43
    %s47 = sphi 0, %s46
    %s63 = sphi 0, %s47
  $region4: #{transformer_forward.17} parent=0 // loop_header_branch
    %10 = sbr.rel (%p8) target = $region8
  $region5: #{transformer_forward.17} parent=0 // loop_body
    %s12 = ssub.s32 %s7, 1
    %s13 = ssub.s32 %s7, 2
    %s14 = sadd.s32 %s7, 1
    %s15 = ssub.s32 %s7, %s14
    %p16 = scmp.eq.s32.totalorder %s15, 0
    %s18 = sadd.s32 %s17, 1
    %s19 = scalar_select %p16, %s17, %s18
    %p22 = pneg %p16
    %p23 = scmp.eq.s32.totalorder %s7, 1
    %p24 = por %p22, %p23
    %p25 = scmp.ne.s32.totalorder %s17, %s20
    %p26 = scmp.eq.s32.totalorder %s7, 0
    %p27 = por %p25, %p26
    %p28 = scmp.ne.s32.totalorder %s17, %s20
    %p29 = scmp.eq.s32.totalorder %s12, 1
    %p30 = por %p28, %p29
    %p31 = scmp.ne.s32.totalorder %s20, %s21
    %p32 = scmp.eq.s32.totalorder %s12, 0
    %p33 = por %p31, %p32
    %p34 = scmp.ne.s32.totalorder %s20, %s21
    %p35 = scmp.eq.s32.totalorder %s13, 1
    %p36 = por %p34, %p35
    %p38 = scmp.ne.s32.totalorder %s21, %s37
    %p39 = scmp.eq.s32.totalorder %s13, 0
    %p40 = por %p38, %p39
    %s41 = ssub.s32 %s7, %s14
    %p42 = scmp.eq.s32.totalorder %s41, 0
    %s44 = sadd.s32 %s43, 1
    %s45 = scalar_select %p42, %s43, %s44
    %p48 = pneg %p42
    %p49 = scmp.eq.s32.totalorder %s7, 1
    %p50 = por %p48, %p49
    %p51 = scmp.ne.s32.totalorder %s43, %s46
    %p52 = scmp.eq.s32.totalorder %s7, 0
    %p53 = por %p51, %p52
    %p54 = scmp.ne.s32.totalorder %s43, %s46
    %p55 = scmp.eq.s32.totalorder %s12, 1
    %p56 = por %p54, %p55
    %p57 = scmp.ne.s32.totalorder %s46, %s47
    %p58 = scmp.eq.s32.totalorder %s12, 0
    %p59 = por %p57, %p58
    %p60 = scmp.ne.s32.totalorder %s46, %s47
    %p61 = scmp.eq.s32.totalorder %s13, 1
    %p62 = por %p60, %p61
    %p64 = scmp.ne.s32.totalorder %s47, %s63
    %p65 = scmp.eq.s32.totalorder %s13, 0
    %p66 = por %p64, %p65
    %p67 = scmp.le.s32.totalorder 1, %s7
    %p68 = scmp.lt.s32.totalorder %s7, 3
    %p69 = pnand %p67, %p68
    %p70 = pneg %p69
    // Predicated region
    $region9: #{transformer_forward.17} parent=5 // pred_check
      _
    $region10: #{transformer_forward.17} parent=5 // pred_check_branch
      %72 = sbr.rel (%p69) target = $region12
    $region11: #{transformer_forward.17} parent=5 // pred_region
      %s73 = ssub.s32 %s7, 1
    $region12: #{transformer_forward.17} parent=5 // pred_fallthru
      _
    %p74 = scmp.lt.s32.totalorder %s7, 2
    // Predicated region
    $region13: #{transformer_forward.17} parent=5 // pred_check
      %p75 = pneg %p74
    $region14: #{transformer_forward.17} parent=5 // pred_check_branch
      %77 = sbr.rel (%p75) target = $region16
    $region15: #{transformer_forward.17} parent=5 // pred_region
      // Predicated region
      $region17: #{transformer_forward.17} parent=15 // pred_check
        %p78 = pneg %p27
      $region18: #{transformer_forward.17} parent=15 // pred_check_branch
        %80 = sbr.rel (%p78) target = $region20
      $region19: #{transformer_forward.17} parent=15 // pred_region
        %s81 = smul.u32 8, %s7
        %p82 = scmp.lt.s32.totalorder %s81, 15
        %s83 = scalar_select %p82, %s81, 15
        %s84 = smul.addr %s83, 2
        %s85 = scalar_lea.vmem %s0, %s84
        %s86 = smul.u32 8, %s7
      $region20: #{transformer_forward.17} parent=15 // pred_fallthru
        _
    $region16: #{transformer_forward.17} parent=5 // pred_fallthru
      _
    %p87 = scmp.le.s32.totalorder 1, %s7
    %p88 = scmp.lt.s32.totalorder %s7, 3
    %p89 = pnand %p87, %p88
    %p90 = pneg %p89
    // Predicated region
    $region21: #{transformer_forward.17} parent=5 // pred_check
      _
    $region22: #{transformer_forward.17} parent=5 // pred_check_branch
      %92 = sbr.rel (%p89) target = $region24
    $region23: #{transformer_forward.17} parent=5 // pred_region
      %s93 = ssub.s32 %s7, 1
      %s94 = smul.u32 8, %s12
      %p95 = scmp.lt.s32.totalorder %s94, 15
      %s96 = scalar_select %p95, %s94, 15
      %s97 = smul.addr %s96, 2
      %s98 = scalar_lea.vmem %s0, %s97
      %p99 = pneg %p33
      %p100 = pneg %p30
      %p101 = pneg %p59
      %p102 = pneg %p56
      %s103 = smul.u32 8, %s12
      %p104 = scmp.lt.s32.totalorder %s103, 15
      %s105 = scalar_select %p104, %s103, 15
      %s106 = smul.addr %s105, 2
      %s107 = scalar_lea.vmem %s1, %s106
      %s108 = smul.u32 8, %s12
      %p109 = scmp.lt.s32.totalorder %s108, 15
      %s110 = scalar_select %p109, %s108, 15
      %s111 = smul.addr %s110, 2
      %s112 = scalar_lea.vmem %s0, %s111
      %s113 = smul.u32 8, %s12
      %s114 = smul.u32 8, %s12
      %p115 = scmp.lt.s32.totalorder %s114, 15
      %s116 = scalar_select %p115, %s114, 15
      %s117 = smul.addr %s116, 2
      %s118 = scalar_lea.vmem %s1, %s117
      %s119 = smul.u32 8, %s12
      %v121 = vld [vmem:[%s112] sm:$0x3]
      %v122 = vld [vmem:[%s112 + $0x2] sm:$0x3]
      %v123 = vld [vmem:[%s112 + $0x4] sm:$0x3]
      %v124 = vld [vmem:[%s112 + $0x6] sm:$0x3]
      %v125 = vld [vmem:[%s112 + $0x8] sm:$0x3]
      %v126 = vld [vmem:[%s112 + $0xa] sm:$0x3]
      %v127 = vld [vmem:[%s112 + $0xc] sm:$0x3]
      %v128 = vld [vmem:[%s112 + $0xe] sm:$0x3]
      %130 = vst [vmem:[#allocation1] ss:$4 sm:$0xff] %v121
      %v131 = vld.sshfl [vmem:[#allocation1] sm:$0xff pattern:$0x73625140]
      %133 = vrot.lane.b32.xlu0 %v131, 96
      %v134 = vpop.permute.xlu0 %133
      %vm135 = vcmask 64512
      %v136 = vsel %vm135, %v121, 0
      %v139 = vsel %vm135, %v134, 0
      %141 = vmatpush.bf16.xpose.msra.mxu0 0
      %142 = vmatpush.bf16.xpose.msra.mxu0 0
      %143 = vmatpush.bf16.xpose.msra.mxu0 0
      %144 = vmatpush.bf16.xpose.msra.mxu0 0
      %145 = vmatpush.bf16.xpose.msra.mxu0 0
      %146 = vmatpush.bf16.xpose.msra.mxu0 0
      %147 = vmatpush.bf16.xpose.msra.mxu0 0
      %148 = vmatpush.bf16.xpose.msra.mxu0 %v139
      %149 = vmatmul.bf16.gmra.mxu0 %v136
      %v150 = vpop.f32.mrf.mxu0
      %v151 = vadd.f32 0.0, %v150
      %v152 = vpop.f32.mrf.mxu0
      %153 = vdwg.mxu0
      %155 = vst [vmem:[#allocation1] ss:$4 sm:$0xff] %v122
      %v156 = vld.sshfl [vmem:[#allocation1] sm:$0xff pattern:$0x73625140]
      %158 = vrot.lane.b32.xlu0 %v156, 96
      %v159 = vpop.permute.xlu0 %158
      %v160 = vsel %vm135, %v122, 0
      %v163 = vsel %vm135, %v159, 0
      %165 = vmatpush.bf16.xpose.msra.mxu0 0
      %166 = vmatpush.bf16.xpose.msra.mxu0 0
      %167 = vmatpush.bf16.xpose.msra.mxu0 0
      %168 = vmatpush.bf16.xpose.msra.mxu0 0
      %169 = vmatpush.bf16.xpose.msra.mxu0 0
      %170 = vmatpush.bf16.xpose.msra.mxu0 0
      %171 = vmatpush.bf16.xpose.msra.mxu0 0
      %172 = vmatpush.bf16.xpose.msra.mxu0 %v163
      %173 = vmatmul.bf16.gmra.mxu0 %v160
      %v174 = vpop.f32.mrf.mxu0
      %v175 = vadd.f32 0.0, %v174
      %v176 = vpop.f32.mrf.mxu0
      %177 = vdwg.mxu0
      %179 = vst [vmem:[#allocation1] ss:$4 sm:$0xff] %v123
      %v180 = vld.sshfl [vmem:[#allocation1] sm:$0xff pattern:$0x73625140]
      %182 = vrot.lane.b32.xlu0 %v180, 96
      %v183 = vpop.permute.xlu0 %182
      %v184 = vsel %vm135, %v123, 0
      %v187 = vsel %vm135, %v183, 0
      %189 = vmatpush.bf16.xpose.msra.mxu0 0
      %190 = vmatpush.bf16.xpose.msra.mxu0 0
      %191 = vmatpush.bf16.xpose.msra.mxu0 0
      %192 = vmatpush.bf16.xpose.msra.mxu0 0
      %193 = vmatpush.bf16.xpose.msra.mxu0 0
      %194 = vmatpush.bf16.xpose.msra.mxu0 0
      %195 = vmatpush.bf16.xpose.msra.mxu0 0
      %196 = vmatpush.bf16.xpose.msra.mxu0 %v187
      %197 = vmatmul.bf16.gmra.mxu0 %v184
      %v198 = vpop.f32.mrf.mxu0
      %v199 = vadd.f32 0.0, %v198
      %v200 = vpop.f32.mrf.mxu0
      %201 = vdwg.mxu0
      %203 = vst [vmem:[#allocation1] ss:$4 sm:$0xff] %v124
      %v204 = vld.sshfl [vmem:[#allocation1] sm:$0xff pattern:$0x73625140]
      %206 = vrot.lane.b32.xlu0 %v204, 96
      %v207 = vpop.permute.xlu0 %206
      %v208 = vsel %vm135, %v124, 0
      %v211 = vsel %vm135, %v207, 0
      %213 = vmatpush.bf16.xpose.msra.mxu0 0
      %214 = vmatpush.bf16.xpose.msra.mxu0 0
      %215 = vmatpush.bf16.xpose.msra.mxu0 0
      %216 = vmatpush.bf16.xpose.msra.mxu0 0
      %217 = vmatpush.bf16.xpose.msra.mxu0 0
      %218 = vmatpush.bf16.xpose.msra.mxu0 0
      %219 = vmatpush.bf16.xpose.msra.mxu0 0
      %220 = vmatpush.bf16.xpose.msra.mxu0 %v211
      %221 = vmatmul.bf16.gmra.mxu0 %v208
      %v222 = vpop.f32.mrf.mxu0
      %v223 = vadd.f32 0.0, %v222
      %v224 = vpop.f32.mrf.mxu0
      %225 = vdwg.mxu0
      %227 = vst [vmem:[#allocation1] ss:$4 sm:$0xff] %v125
      %v228 = vld.sshfl [vmem:[#allocation1] sm:$0xff pattern:$0x73625140]
      %230 = vrot.lane.b32.xlu0 %v228, 96
      %v231 = vpop.permute.xlu0 %230
      %v232 = vsel %vm135, %v125, 0
      %v235 = vsel %vm135, %v231, 0
      %237 = vmatpush.bf16.xpose.msra.mxu0 0
      %238 = vmatpush.bf16.xpose.msra.mxu0 0
      %239 = vmatpush.bf16.xpose.msra.mxu0 0
      %240 = vmatpush.bf16.xpose.msra.mxu0 0
      %241 = vmatpush.bf16.xpose.msra.mxu0 0
      %242 = vmatpush.bf16.xpose.msra.mxu0 0
      %243 = vmatpush.bf16.xpose.msra.mxu0 0
      %244 = vmatpush.bf16.xpose.msra.mxu0 %v235
      %245 = vmatmul.bf16.gmra.mxu0 %v232
      %v246 = vpop.f32.mrf.mxu0
      %v247 = vadd.f32 0.0, %v246
      %v248 = vpop.f32.mrf.mxu0
      %249 = vdwg.mxu0
      %251 = vst [vmem:[#allocation1] ss:$4 sm:$0xff] %v126
      %v252 = vld.sshfl [vmem:[#allocation1] sm:$0xff pattern:$0x73625140]
      %254 = vrot.lane.b32.xlu0 %v252, 96
      %v255 = vpop.permute.xlu0 %254
      %v256 = vsel %vm135, %v126, 0
      %v259 = vsel %vm135, %v255, 0
      %261 = vmatpush.bf16.xpose.msra.mxu0 0
      %262 = vmatpush.bf16.xpose.msra.mxu0 0
      %263 = vmatpush.bf16.xpose.msra.mxu0 0
      %264 = vmatpush.bf16.xpose.msra.mxu0 0
      %265 = vmatpush.bf16.xpose.msra.mxu0 0
      %266 = vmatpush.bf16.xpose.msra.mxu0 0
      %267 = vmatpush.bf16.xpose.msra.mxu0 0
      %268 = vmatpush.bf16.xpose.msra.mxu0 %v259
      %269 = vmatmul.bf16.gmra.mxu0 %v256
      %v270 = vpop.f32.mrf.mxu0
      %v271 = vadd.f32 0.0, %v270
      %v272 = vpop.f32.mrf.mxu0
      %273 = vdwg.mxu0
      %275 = vst [vmem:[#allocation1] ss:$4 sm:$0xff] %v127
      %v276 = vld.sshfl [vmem:[#allocation1] sm:$0xff pattern:$0x73625140]
      %278 = vrot.lane.b32.xlu0 %v276, 96
      %v279 = vpop.permute.xlu0 %278
      %v280 = vsel %vm135, %v127, 0
      %v283 = vsel %vm135, %v279, 0
      %285 = vmatpush.bf16.xpose.msra.mxu0 0
      %286 = vmatpush.bf16.xpose.msra.mxu0 0
      %287 = vmatpush.bf16.xpose.msra.mxu0 0
      %288 = vmatpush.bf16.xpose.msra.mxu0 0
      %289 = vmatpush.bf16.xpose.msra.mxu0 0
      %290 = vmatpush.bf16.xpose.msra.mxu0 0
      %291 = vmatpush.bf16.xpose.msra.mxu0 0
      %292 = vmatpush.bf16.xpose.msra.mxu0 %v283
      %293 = vmatmul.bf16.gmra.mxu0 %v280
      %v294 = vpop.f32.mrf.mxu0
      %v295 = vadd.f32 0.0, %v294
      %v296 = vpop.f32.mrf.mxu0
      %297 = vdwg.mxu0
      %299 = vst [vmem:[#allocation1] ss:$4 sm:$0xff] %v128
      %v300 = vld.sshfl [vmem:[#allocation1] sm:$0xff pattern:$0x73625140]
      %302 = vrot.lane.b32.xlu0 %v300, 96
      %v303 = vpop.permute.xlu0 %302
      %v304 = vsel %vm135, %v128, 0
      %v307 = vsel %vm135, %v303, 0
      %309 = vmatpush.bf16.xpose.msra.mxu0 0
      %310 = vmatpush.bf16.xpose.msra.mxu0 0
      %311 = vmatpush.bf16.xpose.msra.mxu0 0
      %312 = vmatpush.bf16.xpose.msra.mxu0 0
      %313 = vmatpush.bf16.xpose.msra.mxu0 0
      %314 = vmatpush.bf16.xpose.msra.mxu0 0
      %315 = vmatpush.bf16.xpose.msra.mxu0 0
      %316 = vmatpush.bf16.xpose.msra.mxu0 %v307
      %317 = vmatmul.bf16.gmra.mxu0 %v304
      %v318 = vpop.f32.mrf.mxu0
      %v319 = vadd.f32 0.0, %v318
      %v320 = vpop.f32.mrf.mxu0
      %321 = vdwg.mxu0
      %vm322 = vcmask 27648
      %v323 = vsel %vm322, %v151, -inf
      %324 = vmax.xlane.f32.xlu0 %v323
      %v325 = vpop.xlane.xlu0 %324
      %v326 = vsel %vm322, %v175, -inf
      %327 = vmax.xlane.f32.xlu0 %v326
      %v328 = vpop.xlane.xlu0 %327
      %v329 = vsel %vm322, %v199, -inf
      %330 = vmax.xlane.f32.xlu0 %v329
      %v331 = vpop.xlane.xlu0 %330
      %v332 = vsel %vm322, %v223, -inf
      %333 = vmax.xlane.f32.xlu0 %v332
      %v334 = vpop.xlane.xlu0 %333
      %v335 = vsel %vm322, %v247, -inf
      %336 = vmax.xlane.f32.xlu0 %v335
      %v337 = vpop.xlane.xlu0 %336
      %v338 = vsel %vm322, %v271, -inf
      %339 = vmax.xlane.f32.xlu0 %v338
      %v340 = vpop.xlane.xlu0 %339
      %v341 = vsel %vm322, %v295, -inf
      %342 = vmax.xlane.f32.xlu0 %v341
      %v343 = vpop.xlane.xlu0 %342
      %v344 = vsel %vm322, %v319, -inf
      %345 = vmax.xlane.f32.xlu0 %v344
      %v346 = vpop.xlane.xlu0 %345
      %v347 = vsub.f32 %v151, %v325
      %v348 = vsub.f32 %v175, %v328
      %v349 = vsub.f32 %v199, %v331
      %v350 = vsub.f32 %v223, %v334
      %v351 = vsub.f32 %v247, %v337
      %v352 = vsub.f32 %v271, %v340
      %v353 = vsub.f32 %v295, %v343
      %v354 = vsub.f32 %v319, %v346
      %v355 = vmul.f32 %v347, 1.442695
      %v356 = vpow.pop %v355
      %v357 = vmul.f32 %v348, 1.442695
      %v358 = vpow.pop %v357
      %v359 = vmul.f32 %v349, 1.442695
      %v360 = vpow.pop %v359
      %v361 = vmul.f32 %v350, 1.442695
      %v362 = vpow.pop %v361
      %v363 = vmul.f32 %v351, 1.442695
      %v364 = vpow.pop %v363
      %v365 = vmul.f32 %v352, 1.442695
      %v366 = vpow.pop %v365
      %v367 = vmul.f32 %v353, 1.442695
      %v368 = vpow.pop %v367
      %v369 = vmul.f32 %v354, 1.442695
      %v370 = vpow.pop %v369
      %v371 = vsel %vm322, %v356, 0.0
      %372 = vadd.xlane.f32.xlu0 %v371
      %v373 = vpop.xlane.xlu0 %372
      %v374 = vsel %vm322, %v358, 0.0
      %375 = vadd.xlane.f32.xlu0 %v374
      %v376 = vpop.xlane.xlu0 %375
      %v377 = vsel %vm322, %v360, 0.0
      %378 = vadd.xlane.f32.xlu0 %v377
      %v379 = vpop.xlane.xlu0 %378
      %v380 = vsel %vm322, %v362, 0.0
      %381 = vadd.xlane.f32.xlu0 %v380
      %v382 = vpop.xlane.xlu0 %381
      %v383 = vsel %vm322, %v364, 0.0
      %384 = vadd.xlane.f32.xlu0 %v383
      %v385 = vpop.xlane.xlu0 %384
      %v386 = vsel %vm322, %v366, 0.0
      %387 = vadd.xlane.f32.xlu0 %v386
      %v388 = vpop.xlane.xlu0 %387
      %v389 = vsel %vm322, %v368, 0.0
      %390 = vadd.xlane.f32.xlu0 %v389
      %v391 = vpop.xlane.xlu0 %390
      %v392 = vsel %vm322, %v370, 0.0
      %393 = vadd.xlane.f32.xlu0 %v392
      %v394 = vpop.xlane.xlu0 %393
      %v395 = vpack.c.bf16 %v356, %v356
      %v396 = vpack.c.bf16 %v358, %v358
      %v397 = vpack.c.bf16 %v360, %v360
      %v398 = vpack.c.bf16 %v362, %v362
      %v399 = vpack.c.bf16 %v364, %v364
      %v400 = vpack.c.bf16 %v366, %v366
      %v401 = vpack.c.bf16 %v368, %v368
      %v402 = vpack.c.bf16 %v370, %v370
      %403 = vst [vmem:[#allocation1] ss:$4 sm:$0xff] %v121
      %v404 = vld.sshfl [vmem:[#allocation1] sm:$0xff pattern:$0x73625140]
      %406 = vrot.lane.b32.xlu0 %v404, 64
      %v407 = vpop.permute.xlu0 %406
      %vm408 = vcmask 31744
      %v410 = vsel %vm408, %v395, 0
      %vm412 = vcmask 1041408
      %v414 = vsel %vm412, %v407, 0
      %416 = vmatpush.bf16.msra.mxu0 0
      %417 = vmatpush.bf16.msra.mxu0 0
      %418 = vmatpush.bf16.msra.mxu0 0
      %419 = vmatpush.bf16.msra.mxu0 0
      %420 = vmatpush.bf16.msra.mxu0 0
      %421 = vmatpush.bf16.msra.mxu0 0
      %422 = vmatpush.bf16.msra.mxu0 0
      %423 = vmatpush.bf16.msra.mxu0 %v414
      %424 = vmatmul.bf16.gmra.mxu0 %v410
      %v425 = vpop.f32.mrf.mxu0
      %v426 = vadd.f32 0.0, %v425
      %v427 = vpop.f32.mrf.mxu0
      %428 = vdwg.mxu0
      %429 = vst [vmem:[#allocation1] ss:$4 sm:$0xff] %v122
      %v430 = vld.sshfl [vmem:[#allocation1] sm:$0xff pattern:$0x73625140]
      %432 = vrot.lane.b32.xlu0 %v430, 64
      %v433 = vpop.permute.xlu0 %432
      %v435 = vsel %vm408, %v396, 0
      %v438 = vsel %vm412, %v433, 0
      %440 = vmatpush.bf16.msra.mxu0 0
      %441 = vmatpush.bf16.msra.mxu0 0
      %442 = vmatpush.bf16.msra.mxu0 0
      %443 = vmatpush.bf16.msra.mxu0 0
      %444 = vmatpush.bf16.msra.mxu0 0
      %445 = vmatpush.bf16.msra.mxu0 0
      %446 = vmatpush.bf16.msra.mxu0 0
      %447 = vmatpush.bf16.msra.mxu0 %v438
      %448 = vmatmul.bf16.gmra.mxu0 %v435
      %v449 = vpop.f32.mrf.mxu0
      %v450 = vadd.f32 0.0, %v449
      %v451 = vpop.f32.mrf.mxu0
      %452 = vdwg.mxu0
      %453 = vst [vmem:[#allocation1] ss:$4 sm:$0xff] %v123
      %v454 = vld.sshfl [vmem:[#allocation1] sm:$0xff pattern:$0x73625140]
      %456 = vrot.lane.b32.xlu0 %v454, 64
      %v457 = vpop.permute.xlu0 %456
      %v459 = vsel %vm408, %v397, 0
      %v462 = vsel %vm412, %v457, 0
      %464 = vmatpush.bf16.msra.mxu0 0
      %465 = vmatpush.bf16.msra.mxu0 0
      %466 = vmatpush.bf16.msra.mxu0 0
      %467 = vmatpush.bf16.msra.mxu0 0
      %468 = vmatpush.bf16.msra.mxu0 0
      %469 = vmatpush.bf16.msra.mxu0 0
      %470 = vmatpush.bf16.msra.mxu0 0
      %471 = vmatpush.bf16.msra.mxu0 %v462
      %472 = vmatmul.bf16.gmra.mxu0 %v459
      %v473 = vpop.f32.mrf.mxu0
      %v474 = vadd.f32 0.0, %v473
      %v475 = vpop.f32.mrf.mxu0
      %476 = vdwg.mxu0
      %477 = vst [vmem:[#allocation1] ss:$4 sm:$0xff] %v124
      %v478 = vld.sshfl [vmem:[#allocation1] sm:$0xff pattern:$0x73625140]
      %480 = vrot.lane.b32.xlu0 %v478, 64
      %v481 = vpop.permute.xlu0 %480
      %v483 = vsel %vm408, %v398, 0
      %v486 = vsel %vm412, %v481, 0
      %488 = vmatpush.bf16.msra.mxu0 0
      %489 = vmatpush.bf16.msra.mxu0 0
      %490 = vmatpush.bf16.msra.mxu0 0
      %491 = vmatpush.bf16.msra.mxu0 0
      %492 = vmatpush.bf16.msra.mxu0 0
      %493 = vmatpush.bf16.msra.mxu0 0
      %494 = vmatpush.bf16.msra.mxu0 0
      %495 = vmatpush.bf16.msra.mxu0 %v486
      %496 = vmatmul.bf16.gmra.mxu0 %v483
      %v497 = vpop.f32.mrf.mxu0
      %v498 = vadd.f32 0.0, %v497
      %v499 = vpop.f32.mrf.mxu0
      %500 = vdwg.mxu0
      %501 = vst [vmem:[#allocation1] ss:$4 sm:$0xff] %v125
      %v502 = vld.sshfl [vmem:[#allocation1] sm:$0xff pattern:$0x73625140]
      %504 = vrot.lane.b32.xlu0 %v502, 64
      %v505 = vpop.permute.xlu0 %504
      %v507 = vsel %vm408, %v399, 0
      %v510 = vsel %vm412, %v505, 0
      %512 = vmatpush.bf16.msra.mxu0 0
      %513 = vmatpush.bf16.msra.mxu0 0
      %514 = vmatpush.bf16.msra.mxu0 0
      %515 = vmatpush.bf16.msra.mxu0 0
      %516 = vmatpush.bf16.msra.mxu0 0
      %517 = vmatpush.bf16.msra.mxu0 0
      %518 = vmatpush.bf16.msra.mxu0 0
      %519 = vmatpush.bf16.msra.mxu0 %v510
      %520 = vmatmul.bf16.gmra.mxu0 %v507
      %v521 = vpop.f32.mrf.mxu0
      %v522 = vadd.f32 0.0, %v521
      %v523 = vpop.f32.mrf.mxu0
      %524 = vdwg.mxu0
      %525 = vst [vmem:[#allocation1] ss:$4 sm:$0xff] %v126
      %v526 = vld.sshfl [vmem:[#allocation1] sm:$0xff pattern:$0x73625140]
      %528 = vrot.lane.b32.xlu0 %v526, 64
      %v529 = vpop.permute.xlu0 %528
      %v531 = vsel %vm408, %v400, 0
      %v534 = vsel %vm412, %v529, 0
      %536 = vmatpush.bf16.msra.mxu0 0
      %537 = vmatpush.bf16.msra.mxu0 0
      %538 = vmatpush.bf16.msra.mxu0 0
      %539 = vmatpush.bf16.msra.mxu0 0
      %540 = vmatpush.bf16.msra.mxu0 0
      %541 = vmatpush.bf16.msra.mxu0 0
      %542 = vmatpush.bf16.msra.mxu0 0
      %543 = vmatpush.bf16.msra.mxu0 %v534
      %544 = vmatmul.bf16.gmra.mxu0 %v531
      %v545 = vpop.f32.mrf.mxu0
      %v546 = vadd.f32 0.0, %v545
      %v547 = vpop.f32.mrf.mxu0
      %548 = vdwg.mxu0
      %549 = vst [vmem:[#allocation1] ss:$4 sm:$0xff] %v127
      %v550 = vld.sshfl [vmem:[#allocation1] sm:$0xff pattern:$0x73625140]
      %552 = vrot.lane.b32.xlu0 %v550, 64
      %v553 = vpop.permute.xlu0 %552
      %v555 = vsel %vm408, %v401, 0
      %v558 = vsel %vm412, %v553, 0
      %560 = vmatpush.bf16.msra.mxu0 0
      %561 = vmatpush.bf16.msra.mxu0 0
      %562 = vmatpush.bf16.msra.mxu0 0
      %563 = vmatpush.bf16.msra.mxu0 0
      %564 = vmatpush.bf16.msra.mxu0 0
      %565 = vmatpush.bf16.msra.mxu0 0
      %566 = vmatpush.bf16.msra.mxu0 0
      %567 = vmatpush.bf16.msra.mxu0 %v558
      %568 = vmatmul.bf16.gmra.mxu0 %v555
      %v569 = vpop.f32.mrf.mxu0
      %v570 = vadd.f32 0.0, %v569
      %v571 = vpop.f32.mrf.mxu0
      %572 = vdwg.mxu0
      %573 = vst [vmem:[#allocation1] ss:$4 sm:$0xff] %v128
      %v574 = vld.sshfl [vmem:[#allocation1] sm:$0xff pattern:$0x73625140]
      %576 = vrot.lane.b32.xlu0 %v574, 64
      %v577 = vpop.permute.xlu0 %576
      %v579 = vsel %vm408, %v402, 0
      %v582 = vsel %vm412, %v577, 0
      %584 = vmatpush.bf16.msra.mxu0 0
      %585 = vmatpush.bf16.msra.mxu0 0
      %586 = vmatpush.bf16.msra.mxu0 0
      %587 = vmatpush.bf16.msra.mxu0 0
      %588 = vmatpush.bf16.msra.mxu0 0
      %589 = vmatpush.bf16.msra.mxu0 0
      %590 = vmatpush.bf16.msra.mxu0 0
      %591 = vmatpush.bf16.msra.mxu0 %v582
      %592 = vmatmul.bf16.gmra.mxu0 %v579
      %v593 = vpop.f32.mrf.mxu0
      %v594 = vadd.f32 0.0, %v593
      %v595 = vpop.f32.mrf.mxu0
      %596 = vdwg.mxu0
      %v597 = vrcp.pop %v373
      %v598 = vrcp.pop %v376
      %v599 = vrcp.pop %v379
      %v600 = vrcp.pop %v382
      %v601 = vrcp.pop %v385
      %v602 = vrcp.pop %v388
      %v603 = vrcp.pop %v391
      %v604 = vrcp.pop %v394
      %v605 = vmul.f32 %v426, %v597
      %v606 = vmul.f32 %v450, %v598
      %v607 = vmul.f32 %v474, %v599
      %v608 = vmul.f32 %v498, %v600
      %v609 = vmul.f32 %v522, %v601
      %v610 = vmul.f32 %v546, %v602
      %v611 = vmul.f32 %v570, %v603
      %v612 = vmul.f32 %v594, %v604
      %613 = vst [vmem:[#allocation1] ss:$4 sm:$0xff] %v121
      %v614 = vld.sshfl [vmem:[#allocation1] sm:$0xff pattern:$0x73625140]
      %616 = vrot.lane.b32.xlu0 %v614, 120
      %v617 = vpop.permute.xlu0 %616
      %618 = vst [vmem:[#allocation1] ss:$4 sm:$0xff] %v121
      %v619 = vld.sshfl [vmem:[#allocation1] sm:$0xff pattern:$0x73625140]
      %621 = vrot.lane.b32.xlu0 %v619, 88
      %v622 = vpop.permute.xlu0 %621
      %v624 = vsel %vm135, %v617, 0
      %v627 = vsel %vm135, %v622, 0
      %629 = vmatpush.bf16.xpose.msra.mxu0 0
      %630 = vmatpush.bf16.xpose.msra.mxu0 0
      %631 = vmatpush.bf16.xpose.msra.mxu0 0
      %632 = vmatpush.bf16.xpose.msra.mxu0 0
      %633 = vmatpush.bf16.xpose.msra.mxu0 0
      %634 = vmatpush.bf16.xpose.msra.mxu0 0
      %635 = vmatpush.bf16.xpose.msra.mxu0 0
      %636 = vmatpush.bf16.xpose.msra.mxu0 %v627
      %637 = vmatmul.bf16.gmra.mxu0 %v624
      %v638 = vpop.f32.mrf.mxu0
      %v639 = vadd.f32 0.0, %v638
      %v640 = vpop.f32.mrf.mxu0
      %641 = vdwg.mxu0
      %642 = vst [vmem:[#allocation1] ss:$4 sm:$0xff] %v122
      %v643 = vld.sshfl [vmem:[#allocation1] sm:$0xff pattern:$0x73625140]
      %645 = vrot.lane.b32.xlu0 %v643, 120
      %v646 = vpop.permute.xlu0 %645
      %647 = vst [vmem:[#allocation1] ss:$4 sm:$0xff] %v122
      %v648 = vld.sshfl [vmem:[#allocation1] sm:$0xff pattern:$0x73625140]
      %650 = vrot.lane.b32.xlu0 %v648, 88
      %v651 = vpop.permute.xlu0 %650
      %v653 = vsel %vm135, %v646, 0
      %v656 = vsel %vm135, %v651, 0
      %658 = vmatpush.bf16.xpose.msra.mxu0 0
      %659 = vmatpush.bf16.xpose.msra.mxu0 0
      %660 = vmatpush.bf16.xpose.msra.mxu0 0
      %661 = vmatpush.bf16.xpose.msra.mxu0 0
      %662 = vmatpush.bf16.xpose.msra.mxu0 0
      %663 = vmatpush.bf16.xpose.msra.mxu0 0
      %664 = vmatpush.bf16.xpose.msra.mxu0 0
      %665 = vmatpush.bf16.xpose.msra.mxu0 %v656
      %666 = vmatmul.bf16.gmra.mxu0 %v653
      %v667 = vpop.f32.mrf.mxu0
      %v668 = vadd.f32 0.0, %v667
      %v669 = vpop.f32.mrf.mxu0
      %670 = vdwg.mxu0
      %671 = vst [vmem:[#allocation1] ss:$4 sm:$0xff] %v123
      %v672 = vld.sshfl [vmem:[#allocation1] sm:$0xff pattern:$0x73625140]
      %674 = vrot.lane.b32.xlu0 %v672, 120
      %v675 = vpop.permute.xlu0 %674
      %676 = vst [vmem:[#allocation1] ss:$4 sm:$0xff] %v123
      %v677 = vld.sshfl [vmem:[#allocation1] sm:$0xff pattern:$0x73625140]
      %679 = vrot.lane.b32.xlu0 %v677, 88
      %v680 = vpop.permute.xlu0 %679
      %v682 = vsel %vm135, %v675, 0
      %v685 = vsel %vm135, %v680, 0
      %687 = vmatpush.bf16.xpose.msra.mxu0 0
      %688 = vmatpush.bf16.xpose.msra.mxu0 0
      %689 = vmatpush.bf16.xpose.msra.mxu0 0
      %690 = vmatpush.bf16.xpose.msra.mxu0 0
      %691 = vmatpush.bf16.xpose.msra.mxu0 0
      %692 = vmatpush.bf16.xpose.msra.mxu0 0
      %693 = vmatpush.bf16.xpose.msra.mxu0 0
      %694 = vmatpush.bf16.xpose.msra.mxu0 %v685
      %695 = vmatmul.bf16.gmra.mxu0 %v682
      %v696 = vpop.f32.mrf.mxu0
      %v697 = vadd.f32 0.0, %v696
      %v698 = vpop.f32.mrf.mxu0
      %699 = vdwg.mxu0
      %700 = vst [vmem:[#allocation1] ss:$4 sm:$0xff] %v124
      %v701 = vld.sshfl [vmem:[#allocation1] sm:$0xff pattern:$0x73625140]
      %703 = vrot.lane.b32.xlu0 %v701, 120
      %v704 = vpop.permute.xlu0 %703
      %705 = vst [vmem:[#allocation1] ss:$4 sm:$0xff] %v124
      %v706 = vld.sshfl [vmem:[#allocation1] sm:$0xff pattern:$0x73625140]
      %708 = vrot.lane.b32.xlu0 %v706, 88
      %v709 = vpop.permute.xlu0 %708
      %v711 = vsel %vm135, %v704, 0
      %v714 = vsel %vm135, %v709, 0
      %716 = vmatpush.bf16.xpose.msra.mxu0 0
      %717 = vmatpush.bf16.xpose.msra.mxu0 0
      %718 = vmatpush.bf16.xpose.msra.mxu0 0
      %719 = vmatpush.bf16.xpose.msra.mxu0 0
      %720 = vmatpush.bf16.xpose.msra.mxu0 0
      %721 = vmatpush.bf16.xpose.msra.mxu0 0
      %722 = vmatpush.bf16.xpose.msra.mxu0 0
      %723 = vmatpush.bf16.xpose.msra.mxu0 %v714
      %724 = vmatmul.bf16.gmra.mxu0 %v711
      %v725 = vpop.f32.mrf.mxu0
      %v726 = vadd.f32 0.0, %v725
      %v727 = vpop.f32.mrf.mxu0
      %728 = vdwg.mxu0
      %729 = vst [vmem:[#allocation1] ss:$4 sm:$0xff] %v125
      %v730 = vld.sshfl [vmem:[#allocation1] sm:$0xff pattern:$0x73625140]
      %732 = vrot.lane.b32.xlu0 %v730, 120
      %v733 = vpop.permute.xlu0 %732
      %734 = vst [vmem:[#allocation1] ss:$4 sm:$0xff] %v125
      %v735 = vld.sshfl [vmem:[#allocation1] sm:$0xff pattern:$0x73625140]
      %737 = vrot.lane.b32.xlu0 %v735, 88
      %v738 = vpop.permute.xlu0 %737
      %v740 = vsel %vm135, %v733, 0
      %v743 = vsel %vm135, %v738, 0
      %745 = vmatpush.bf16.xpose.msra.mxu0 0
      %746 = vmatpush.bf16.xpose.msra.mxu0 0
      %747 = vmatpush.bf16.xpose.msra.mxu0 0
      %748 = vmatpush.bf16.xpose.msra.mxu0 0
      %749 = vmatpush.bf16.xpose.msra.mxu0 0
      %750 = vmatpush.bf16.xpose.msra.mxu0 0
      %751 = vmatpush.bf16.xpose.msra.mxu0 0
      %752 = vmatpush.bf16.xpose.msra.mxu0 %v743
      %753 = vmatmul.bf16.gmra.mxu0 %v740
      %v754 = vpop.f32.mrf.mxu0
      %v755 = vadd.f32 0.0, %v754
      %v756 = vpop.f32.mrf.mxu0
      %757 = vdwg.mxu0
      %758 = vst [vmem:[#allocation1] ss:$4 sm:$0xff] %v126
      %v759 = vld.sshfl [vmem:[#allocation1] sm:$0xff pattern:$0x73625140]
      %761 = vrot.lane.b32.xlu0 %v759, 120
      %v762 = vpop.permute.xlu0 %761
      %763 = vst [vmem:[#allocation1] ss:$4 sm:$0xff] %v126
      %v764 = vld.sshfl [vmem:[#allocation1] sm:$0xff pattern:$0x73625140]
      %766 = vrot.lane.b32.xlu0 %v764, 88
      %v767 = vpop.permute.xlu0 %766
      %v769 = vsel %vm135, %v762, 0
      %v772 = vsel %vm135, %v767, 0
      %774 = vmatpush.bf16.xpose.msra.mxu0 0
      %775 = vmatpush.bf16.xpose.msra.mxu0 0
      %776 = vmatpush.bf16.xpose.msra.mxu0 0
      %777 = vmatpush.bf16.xpose.msra.mxu0 0
      %778 = vmatpush.bf16.xpose.msra.mxu0 0
      %779 = vmatpush.bf16.xpose.msra.mxu0 0
      %780 = vmatpush.bf16.xpose.msra.mxu0 0
      %781 = vmatpush.bf16.xpose.msra.mxu0 %v772
      %782 = vmatmul.bf16.gmra.mxu0 %v769
      %v783 = vpop.f32.mrf.mxu0
      %v784 = vadd.f32 0.0, %v783
      %v785 = vpop.f32.mrf.mxu0
      %786 = vdwg.mxu0
      %787 = vst [vmem:[#allocation1] ss:$4 sm:$0xff] %v127
      %v788 = vld.sshfl [vmem:[#allocation1] sm:$0xff pattern:$0x73625140]
      %790 = vrot.lane.b32.xlu0 %v788, 120
      %v791 = vpop.permute.xlu0 %790
      %792 = vst [vmem:[#allocation1] ss:$4 sm:$0xff] %v127
      %v793 = vld.sshfl [vmem:[#allocation1] sm:$0xff pattern:$0x73625140]
      %795 = vrot.lane.b32.xlu0 %v793, 88
      %v796 = vpop.permute.xlu0 %795
      %v798 = vsel %vm135, %v791, 0
      %v801 = vsel %vm135, %v796, 0
      %803 = vmatpush.bf16.xpose.msra.mxu0 0
      %804 = vmatpush.bf16.xpose.msra.mxu0 0
      %805 = vmatpush.bf16.xpose.msra.mxu0 0
      %806 = vmatpush.bf16.xpose.msra.mxu0 0
      %807 = vmatpush.bf16.xpose.msra.mxu0 0
      %808 = vmatpush.bf16.xpose.msra.mxu0 0
      %809 = vmatpush.bf16.xpose.msra.mxu0 0
      %810 = vmatpush.bf16.xpose.msra.mxu0 %v801
      %811 = vmatmul.bf16.gmra.mxu0 %v798
      %v812 = vpop.f32.mrf.mxu0
      %v813 = vadd.f32 0.0, %v812
      %v814 = vpop.f32.mrf.mxu0
      %815 = vdwg.mxu0
      %816 = vst [vmem:[#allocation1] ss:$4 sm:$0xff] %v128
      %v817 = vld.sshfl [vmem:[#allocation1] sm:$0xff pattern:$0x73625140]
      %819 = vrot.lane.b32.xlu0 %v817, 120
      %v820 = vpop.permute.xlu0 %819
      %821 = vst [vmem:[#allocation1] ss:$4 sm:$0xff] %v128
      %v822 = vld.sshfl [vmem:[#allocation1] sm:$0xff pattern:$0x73625140]
      %824 = vrot.lane.b32.xlu0 %v822, 88
      %v825 = vpop.permute.xlu0 %824
      %v827 = vsel %vm135, %v820, 0
      %v830 = vsel %vm135, %v825, 0
      %832 = vmatpush.bf16.xpose.msra.mxu0 0
      %833 = vmatpush.bf16.xpose.msra.mxu0 0
      %834 = vmatpush.bf16.xpose.msra.mxu0 0
      %835 = vmatpush.bf16.xpose.msra.mxu0 0
      %836 = vmatpush.bf16.xpose.msra.mxu0 0
      %837 = vmatpush.bf16.xpose.msra.mxu0 0
      %838 = vmatpush.bf16.xpose.msra.mxu0 0
      %839 = vmatpush.bf16.xpose.msra.mxu0 %v830
      %840 = vmatmul.bf16.gmra.mxu0 %v827
      %v841 = vpop.f32.mrf.mxu0
      %v842 = vadd.f32 0.0, %v841
      %v843 = vpop.f32.mrf.mxu0
      %844 = vdwg.mxu0
      %v845 = vsel %vm322, %v639, -inf
      %846 = vmax.xlane.f32.xlu0 %v845
      %v847 = vpop.xlane.xlu0 %846
      %v848 = vsel %vm322, %v668, -inf
      %849 = vmax.xlane.f32.xlu0 %v848
      %v850 = vpop.xlane.xlu0 %849
      %v851 = vsel %vm322, %v697, -inf
      %852 = vmax.xlane.f32.xlu0 %v851
      %v853 = vpop.xlane.xlu0 %852
      %v854 = vsel %vm322, %v726, -inf
      %855 = vmax.xlane.f32.xlu0 %v854
      %v856 = vpop.xlane.xlu0 %855
      %v857 = vsel %vm322, %v755, -inf
      %858 = vmax.xlane.f32.xlu0 %v857
      %v859 = vpop.xlane.xlu0 %858
      %v860 = vsel %vm322, %v784, -inf
      %861 = vmax.xlane.f32.xlu0 %v860
      %v862 = vpop.xlane.xlu0 %861
      %v863 = vsel %vm322, %v813, -inf
      %864 = vmax.xlane.f32.xlu0 %v863
      %v865 = vpop.xlane.xlu0 %864
      %v866 = vsel %vm322, %v842, -inf
      %867 = vmax.xlane.f32.xlu0 %v866
      %v868 = vpop.xlane.xlu0 %867
      %v869 = vsub.f32 %v639, %v847
      %v870 = vsub.f32 %v668, %v850
      %v871 = vsub.f32 %v697, %v853
      %v872 = vsub.f32 %v726, %v856
      %v873 = vsub.f32 %v755, %v859
      %v874 = vsub.f32 %v784, %v862
      %v875 = vsub.f32 %v813, %v865
      %v876 = vsub.f32 %v842, %v868
      %v877 = vmul.f32 %v869, 1.442695
      %v878 = vpow.pop %v877
      %v879 = vmul.f32 %v870, 1.442695
      %v880 = vpow.pop %v879
      %v881 = vmul.f32 %v871, 1.442695
      %v882 = vpow.pop %v881
      %v883 = vmul.f32 %v872, 1.442695
      %v884 = vpow.pop %v883
      %v885 = vmul.f32 %v873, 1.442695
      %v886 = vpow.pop %v885
      %v887 = vmul.f32 %v874, 1.442695
      %v888 = vpow.pop %v887
      %v889 = vmul.f32 %v875, 1.442695
      %v890 = vpow.pop %v889
      %v891 = vmul.f32 %v876, 1.442695
      %v892 = vpow.pop %v891
      %v893 = vsel %vm322, %v878, 0.0
      %894 = vadd.xlane.f32.xlu0 %v893
      %v895 = vpop.xlane.xlu0 %894
      %v896 = vsel %vm322, %v880, 0.0
      %897 = vadd.xlane.f32.xlu0 %v896
      %v898 = vpop.xlane.xlu0 %897
      %v899 = vsel %vm322, %v882, 0.0
      %900 = vadd.xlane.f32.xlu0 %v899
      %v901 = vpop.xlane.xlu0 %900
      %v902 = vsel %vm322, %v884, 0.0
      %903 = vadd.xlane.f32.xlu0 %v902
      %v904 = vpop.xlane.xlu0 %903
      %v905 = vsel %vm322, %v886, 0.0
      %906 = vadd.xlane.f32.xlu0 %v905
      %v907 = vpop.xlane.xlu0 %906
      %v908 = vsel %vm322, %v888, 0.0
      %909 = vadd.xlane.f32.xlu0 %v908
      %v910 = vpop.xlane.xlu0 %909
      %v911 = vsel %vm322, %v890, 0.0
      %912 = vadd.xlane.f32.xlu0 %v911
      %v913 = vpop.xlane.xlu0 %912
      %v914 = vsel %vm322, %v892, 0.0
      %915 = vadd.xlane.f32.xlu0 %v914
      %v916 = vpop.xlane.xlu0 %915
      %v917 = vpack.c.bf16 %v878, %v878
      %v918 = vpack.c.bf16 %v880, %v880
      %v919 = vpack.c.bf16 %v882, %v882
      %v920 = vpack.c.bf16 %v884, %v884
      %v921 = vpack.c.bf16 %v886, %v886
      %v922 = vpack.c.bf16 %v888, %v888
      %v923 = vpack.c.bf16 %v890, %v890
      %v924 = vpack.c.bf16 %v892, %v892
      %925 = vst [vmem:[#allocation1] ss:$4 sm:$0xff] %v121
      %v926 = vld.sshfl [vmem:[#allocation1] sm:$0xff pattern:$0x73625140]
      %928 = vrot.lane.b32.xlu0 %v926, 56
      %v929 = vpop.permute.xlu0 %928
      %v931 = vsel %vm408, %v917, 0
      %v934 = vsel %vm412, %v929, 0
      %936 = vmatpush.bf16.msra.mxu0 0
      %937 = vmatpush.bf16.msra.mxu0 0
      %938 = vmatpush.bf16.msra.mxu0 0
      %939 = vmatpush.bf16.msra.mxu0 0
      %940 = vmatpush.bf16.msra.mxu0 0
      %941 = vmatpush.bf16.msra.mxu0 0
      %942 = vmatpush.bf16.msra.mxu0 0
      %943 = vmatpush.bf16.msra.mxu0 %v934
      %944 = vmatmul.bf16.gmra.mxu0 %v931
      %v945 = vpop.f32.mrf.mxu0
      %v946 = vadd.f32 0.0, %v945
      %v947 = vpop.f32.mrf.mxu0
      %948 = vdwg.mxu0
      %949 = vst [vmem:[#allocation1] ss:$4 sm:$0xff] %v122
      %v950 = vld.sshfl [vmem:[#allocation1] sm:$0xff pattern:$0x73625140]
      %952 = vrot.lane.b32.xlu0 %v950, 56
      %v953 = vpop.permute.xlu0 %952
      %v955 = vsel %vm408, %v918, 0
      %v958 = vsel %vm412, %v953, 0
      %960 = vmatpush.bf16.msra.mxu0 0
      %961 = vmatpush.bf16.msra.mxu0 0
      %962 = vmatpush.bf16.msra.mxu0 0
      %963 = vmatpush.bf16.msra.mxu0 0
      %964 = vmatpush.bf16.msra.mxu0 0
      %965 = vmatpush.bf16.msra.mxu0 0
      %966 = vmatpush.bf16.msra.mxu0 0
      %967 = vmatpush.bf16.msra.mxu0 %v958
      %968 = vmatmul.bf16.gmra.mxu0 %v955
      %v969 = vpop.f32.mrf.mxu0
      %v970 = vadd.f32 0.0, %v969
      %v971 = vpop.f32.mrf.mxu0
      %972 = vdwg.mxu0
      %973 = vst [vmem:[#allocation1] ss:$4 sm:$0xff] %v123
      %v974 = vld.sshfl [vmem:[#allocation1] sm:$0xff pattern:$0x73625140]
      %976 = vrot.lane.b32.xlu0 %v974, 56
      %v977 = vpop.permute.xlu0 %976
      %v979 = vsel %vm408, %v919, 0
      %v982 = vsel %vm412, %v977, 0
      %984 = vmatpush.bf16.msra.mxu0 0
      %985 = vmatpush.bf16.msra.mxu0 0
      %986 = vmatpush.bf16.msra.mxu0 0
      %987 = vmatpush.bf16.msra.mxu0 0
      %988 = vmatpush.bf16.msra.mxu0 0
      %989 = vmatpush.bf16.msra.mxu0 0
      %990 = vmatpush.bf16.msra.mxu0 0
      %991 = vmatpush.bf16.msra.mxu0 %v982
      %992 = vmatmul.bf16.gmra.mxu0 %v979
      %v993 = vpop.f32.mrf.mxu0
      %v994 = vadd.f32 0.0, %v993
      %v995 = vpop.f32.mrf.mxu0
      %996 = vdwg.mxu0
      %997 = vst [vmem:[#allocation1] ss:$4 sm:$0xff] %v124
      %v998 = vld.sshfl [vmem:[#allocation1] sm:$0xff pattern:$0x73625140]
      %1000 = vrot.lane.b32.xlu0 %v998, 56
      %v1001 = vpop.permute.xlu0 %1000
      %v1003 = vsel %vm408, %v920, 0
      %v1006 = vsel %vm412, %v1001, 0
      %1008 = vmatpush.bf16.msra.mxu0 0
      %1009 = vmatpush.bf16.msra.mxu0 0
      %1010 = vmatpush.bf16.msra.mxu0 0
      %1011 = vmatpush.bf16.msra.mxu0 0
      %1012 = vmatpush.bf16.msra.mxu0 0
      %1013 = vmatpush.bf16.msra.mxu0 0
      %1014 = vmatpush.bf16.msra.mxu0 0
      %1015 = vmatpush.bf16.msra.mxu0 %v1006
      %1016 = vmatmul.bf16.gmra.mxu0 %v1003
      %v1017 = vpop.f32.mrf.mxu0
      %v1018 = vadd.f32 0.0, %v1017
      %v1019 = vpop.f32.mrf.mxu0
      %1020 = vdwg.mxu0
      %1021 = vst [vmem:[#allocation1] ss:$4 sm:$0xff] %v125
      %v1022 = vld.sshfl [vmem:[#allocation1] sm:$0xff pattern:$0x73625140]
      %1024 = vrot.lane.b32.xlu0 %v1022, 56
      %v1025 = vpop.permute.xlu0 %1024
      %v1027 = vsel %vm408, %v921, 0
      %v1030 = vsel %vm412, %v1025, 0
      %1032 = vmatpush.bf16.msra.mxu0 0
      %1033 = vmatpush.bf16.msra.mxu0 0
      %1034 = vmatpush.bf16.msra.mxu0 0
      %1035 = vmatpush.bf16.msra.mxu0 0
      %1036 = vmatpush.bf16.msra.mxu0 0
      %1037 = vmatpush.bf16.msra.mxu0 0
      %1038 = vmatpush.bf16.msra.mxu0 0
      %1039 = vmatpush.bf16.msra.mxu0 %v1030
      %1040 = vmatmul.bf16.gmra.mxu0 %v1027
      %v1041 = vpop.f32.mrf.mxu0
      %v1042 = vadd.f32 0.0, %v1041
      %v1043 = vpop.f32.mrf.mxu0
      %1044 = vdwg.mxu0
      %1045 = vst [vmem:[#allocation1] ss:$4 sm:$0xff] %v126
      %v1046 = vld.sshfl [vmem:[#allocation1] sm:$0xff pattern:$0x73625140]
      %1048 = vrot.lane.b32.xlu0 %v1046, 56
      %v1049 = vpop.permute.xlu0 %1048
      %v1051 = vsel %vm408, %v922, 0
      %v1054 = vsel %vm412, %v1049, 0
      %1056 = vmatpush.bf16.msra.mxu0 0
      %1057 = vmatpush.bf16.msra.mxu0 0
      %1058 = vmatpush.bf16.msra.mxu0 0
      %1059 = vmatpush.bf16.msra.mxu0 0
      %1060 = vmatpush.bf16.msra.mxu0 0
      %1061 = vmatpush.bf16.msra.mxu0 0
      %1062 = vmatpush.bf16.msra.mxu0 0
      %1063 = vmatpush.bf16.msra.mxu0 %v1054
      %1064 = vmatmul.bf16.gmra.mxu0 %v1051
      %v1065 = vpop.f32.mrf.mxu0
      %v1066 = vadd.f32 0.0, %v1065
      %v1067 = vpop.f32.mrf.mxu0
      %1068 = vdwg.mxu0
      %1069 = vst [vmem:[#allocation1] ss:$4 sm:$0xff] %v127
      %v1070 = vld.sshfl [vmem:[#allocation1] sm:$0xff pattern:$0x73625140]
      %1072 = vrot.lane.b32.xlu0 %v1070, 56
      %v1073 = vpop.permute.xlu0 %1072
      %v1075 = vsel %vm408, %v923, 0
      %v1078 = vsel %vm412, %v1073, 0
      %1080 = vmatpush.bf16.msra.mxu0 0
      %1081 = vmatpush.bf16.msra.mxu0 0
      %1082 = vmatpush.bf16.msra.mxu0 0
      %1083 = vmatpush.bf16.msra.mxu0 0
      %1084 = vmatpush.bf16.msra.mxu0 0
      %1085 = vmatpush.bf16.msra.mxu0 0
      %1086 = vmatpush.bf16.msra.mxu0 0
      %1087 = vmatpush.bf16.msra.mxu0 %v1078
      %1088 = vmatmul.bf16.gmra.mxu0 %v1075
      %v1089 = vpop.f32.mrf.mxu0
      %v1090 = vadd.f32 0.0, %v1089
      %v1091 = vpop.f32.mrf.mxu0
      %1092 = vdwg.mxu0
      %1093 = vst [vmem:[#allocation1] ss:$4 sm:$0xff] %v128
      %v1094 = vld.sshfl [vmem:[#allocation1] sm:$0xff pattern:$0x73625140]
      %1096 = vrot.lane.b32.xlu0 %v1094, 56
      %v1097 = vpop.permute.xlu0 %1096
      %v1099 = vsel %vm408, %v924, 0
      %v1102 = vsel %vm412, %v1097, 0
      %1104 = vmatpush.bf16.msra.mxu0 0
      %1105 = vmatpush.bf16.msra.mxu0 0
      %1106 = vmatpush.bf16.msra.mxu0 0
      %1107 = vmatpush.bf16.msra.mxu0 0
      %1108 = vmatpush.bf16.msra.mxu0 0
      %1109 = vmatpush.bf16.msra.mxu0 0
      %1110 = vmatpush.bf16.msra.mxu0 0
      %1111 = vmatpush.bf16.msra.mxu0 %v1102
      %1112 = vmatmul.bf16.gmra.mxu0 %v1099
      %v1113 = vpop.f32.mrf.mxu0
      %v1114 = vadd.f32 0.0, %v1113
      %v1115 = vpop.f32.mrf.mxu0
      %1116 = vdwg.mxu0
      %v1117 = vrcp.pop %v895
      %v1118 = vrcp.pop %v898
      %v1119 = vrcp.pop %v901
      %v1120 = vrcp.pop %v904
      %v1121 = vrcp.pop %v907
      %v1122 = vrcp.pop %v910
      %v1123 = vrcp.pop %v913
      %v1124 = vrcp.pop %v916
      %v1125 = vmul.f32 %v946, %v1117
      %v1126 = vmul.f32 %v970, %v1118
      %v1127 = vmul.f32 %v994, %v1119
      %v1128 = vmul.f32 %v1018, %v1120
      %v1129 = vmul.f32 %v1042, %v1121
      %v1130 = vmul.f32 %v1066, %v1122
      %v1131 = vmul.f32 %v1090, %v1123
      %v1132 = vmul.f32 %v1114, %v1124
      %1133 = vst [vmem:[#allocation1] ss:$4 sm:$0xff] %v121
      %v1134 = vld.sshfl [vmem:[#allocation1] sm:$0xff pattern:$0x73625140]
      %1136 = vrot.lane.b32.xlu0 %v1134, 112
      %v1137 = vpop.permute.xlu0 %1136
      %1138 = vst [vmem:[#allocation1] ss:$4 sm:$0xff] %v121
      %v1139 = vld.sshfl [vmem:[#allocation1] sm:$0xff pattern:$0x73625140]
      %1141 = vrot.lane.b32.xlu0 %v1139, 80
      %v1142 = vpop.permute.xlu0 %1141
      %v1144 = vsel %vm135, %v1137, 0
      %v1147 = vsel %vm135, %v1142, 0
      %1149 = vmatpush.bf16.xpose.msra.mxu0 0
      %1150 = vmatpush.bf16.xpose.msra.mxu0 0
      %1151 = vmatpush.bf16.xpose.msra.mxu0 0
      %1152 = vmatpush.bf16.xpose.msra.mxu0 0
      %1153 = vmatpush.bf16.xpose.msra.mxu0 0
      %1154 = vmatpush.bf16.xpose.msra.mxu0 0
      %1155 = vmatpush.bf16.xpose.msra.mxu0 0
      %1156 = vmatpush.bf16.xpose.msra.mxu0 %v1147
      %1157 = vmatmul.bf16.gmra.mxu0 %v1144
      %v1158 = vpop.f32.mrf.mxu0
      %v1159 = vadd.f32 0.0, %v1158
      %v1160 = vpop.f32.mrf.mxu0
      %1161 = vdwg.mxu0
      %1162 = vst [vmem:[#allocation1] ss:$4 sm:$0xff] %v122
      %v1163 = vld.sshfl [vmem:[#allocation1] sm:$0xff pattern:$0x73625140]
      %1165 = vrot.lane.b32.xlu0 %v1163, 112
      %v1166 = vpop.permute.xlu0 %1165
      %1167 = vst [vmem:[#allocation1] ss:$4 sm:$0xff] %v122
      %v1168 = vld.sshfl [vmem:[#allocation1] sm:$0xff pattern:$0x73625140]
      %1170 = vrot.lane.b32.xlu0 %v1168, 80
      %v1171 = vpop.permute.xlu0 %1170
      %v1173 = vsel %vm135, %v1166, 0
      %v1176 = vsel %vm135, %v1171, 0
      %1178 = vmatpush.bf16.xpose.msra.mxu0 0
      %1179 = vmatpush.bf16.xpose.msra.mxu0 0
      %1180 = vmatpush.bf16.xpose.msra.mxu0 0
      %1181 = vmatpush.bf16.xpose.msra.mxu0 0
      %1182 = vmatpush.bf16.xpose.msra.mxu0 0
      %1183 = vmatpush.bf16.xpose.msra.mxu0 0
      %1184 = vmatpush.bf16.xpose.msra.mxu0 0
      %1185 = vmatpush.bf16.xpose.msra.mxu0 %v1176
      %1186 = vmatmul.bf16.gmra.mxu0 %v1173
      %v1187 = vpop.f32.mrf.mxu0
      %v1188 = vadd.f32 0.0, %v1187
      %v1189 = vpop.f32.mrf.mxu0
      %1190 = vdwg.mxu0
      %1191 = vst [vmem:[#allocation1] ss:$4 sm:$0xff] %v123
      %v1192 = vld.sshfl [vmem:[#allocation1] sm:$0xff pattern:$0x73625140]
      %1194 = vrot.lane.b32.xlu0 %v1192, 112
      %v1195 = vpop.permute.xlu0 %1194
      %1196 = vst [vmem:[#allocation1] ss:$4 sm:$0xff] %v123
      %v1197 = vld.sshfl [vmem:[#allocation1] sm:$0xff pattern:$0x73625140]
      %1199 = vrot.lane.b32.xlu0 %v1197, 80
      %v1200 = vpop.permute.xlu0 %1199
      %v1202 = vsel %vm135, %v1195, 0
      %v1205 = vsel %vm135, %v1200, 0
      %1207 = vmatpush.bf16.xpose.msra.mxu0 0
      %1208 = vmatpush.bf16.xpose.msra.mxu0 0
      %1209 = vmatpush.bf16.xpose.msra.mxu0 0
      %1210 = vmatpush.bf16.xpose.msra.mxu0 0
      %1211 = vmatpush.bf16.xpose.msra.mxu0 0
      %1212 = vmatpush.bf16.xpose.msra.mxu0 0
      %1213 = vmatpush.bf16.xpose.msra.mxu0 0
      %1214 = vmatpush.bf16.xpose.msra.mxu0 %v1205
      %1215 = vmatmul.bf16.gmra.mxu0 %v1202
      %v1216 = vpop.f32.mrf.mxu0
      %v1217 = vadd.f32 0.0, %v1216
      %v1218 = vpop.f32.mrf.mxu0
      %1219 = vdwg.mxu0
      %1220 = vst [vmem:[#allocation1] ss:$4 sm:$0xff] %v124
      %v1221 = vld.sshfl [vmem:[#allocation1] sm:$0xff pattern:$0x73625140]
      %1223 = vrot.lane.b32.xlu0 %v1221, 112
      %v1224 = vpop.permute.xlu0 %1223
      %1225 = vst [vmem:[#allocation1] ss:$4 sm:$0xff] %v124
      %v1226 = vld.sshfl [vmem:[#allocation1] sm:$0xff pattern:$0x73625140]
      %1228 = vrot.lane.b32.xlu0 %v1226, 80
      %v1229 = vpop.permute.xlu0 %1228
      %v1231 = vsel %vm135, %v1224, 0
      %v1234 = vsel %vm135, %v1229, 0
      %1236 = vmatpush.bf16.xpose.msra.mxu0 0
      %1237 = vmatpush.bf16.xpose.msra.mxu0 0
      %1238 = vmatpush.bf16.xpose.msra.mxu0 0
      %1239 = vmatpush.bf16.xpose.msra.mxu0 0
      %1240 = vmatpush.bf16.xpose.msra.mxu0 0
      %1241 = vmatpush.bf16.xpose.msra.mxu0 0
      %1242 = vmatpush.bf16.xpose.msra.mxu0 0
      %1243 = vmatpush.bf16.xpose.msra.mxu0 %v1234
      %1244 = vmatmul.bf16.gmra.mxu0 %v1231
      %v1245 = vpop.f32.mrf.mxu0
      %v1246 = vadd.f32 0.0, %v1245
      %v1247 = vpop.f32.mrf.mxu0
      %1248 = vdwg.mxu0
      %1249 = vst [vmem:[#allocation1] ss:$4 sm:$0xff] %v125
      %v1250 = vld.sshfl [vmem:[#allocation1] sm:$0xff pattern:$0x73625140]
      %1252 = vrot.lane.b32.xlu0 %v1250, 112
      %v1253 = vpop.permute.xlu0 %1252
      %1254 = vst [vmem:[#allocation1] ss:$4 sm:$0xff] %v125
      %v1255 = vld.sshfl [vmem:[#allocation1] sm:$0xff pattern:$0x73625140]
      %1257 = vrot.lane.b32.xlu0 %v1255, 80
      %v1258 = vpop.permute.xlu0 %1257
      %v1260 = vsel %vm135, %v1253, 0
      %v1263 = vsel %vm135, %v1258, 0
      %1265 = vmatpush.bf16.xpose.msra.mxu0 0
      %1266 = vmatpush.bf16.xpose.msra.mxu0 0
      %1267 = vmatpush.bf16.xpose.msra.mxu0 0
      %1268 = vmatpush.bf16.xpose.msra.mxu0 0
      %1269 = vmatpush.bf16.xpose.msra.mxu0 0
      %1270 = vmatpush.bf16.xpose.msra.mxu0 0
      %1271 = vmatpush.bf16.xpose.msra.mxu0 0
      %1272 = vmatpush.bf16.xpose.msra.mxu0 %v1263
      %1273 = vmatmul.bf16.gmra.mxu0 %v1260
      %v1274 = vpop.f32.mrf.mxu0
      %v1275 = vadd.f32 0.0, %v1274
      %v1276 = vpop.f32.mrf.mxu0
      %1277 = vdwg.mxu0
      %1278 = vst [vmem:[#allocation1] ss:$4 sm:$0xff] %v126
      %v1279 = vld.sshfl [vmem:[#allocation1] sm:$0xff pattern:$0x73625140]
      %1281 = vrot.lane.b32.xlu0 %v1279, 112
      %v1282 = vpop.permute.xlu0 %1281
      %1283 = vst [vmem:[#allocation1] ss:$4 sm:$0xff] %v126
      %v1284 = vld.sshfl [vmem:[#allocation1] sm:$0xff pattern:$0x73625140]
      %1286 = vrot.lane.b32.xlu0 %v1284, 80
      %v1287 = vpop.permute.xlu0 %1286
      %v1289 = vsel %vm135, %v1282, 0
      %v1292 = vsel %vm135, %v1287, 0
      %1294 = vmatpush.bf16.xpose.msra.mxu0 0
      %1295 = vmatpush.bf16.xpose.msra.mxu0 0
      %1296 = vmatpush.bf16.xpose.msra.mxu0 0
      %1297 = vmatpush.bf16.xpose.msra.mxu0 0
      %1298 = vmatpush.bf16.xpose.msra.mxu0 0
      %1299 = vmatpush.bf16.xpose.msra.mxu0 0
      %1300 = vmatpush.bf16.xpose.msra.mxu0 0
      %1301 = vmatpush.bf16.xpose.msra.mxu0 %v1292
      %1302 = vmatmul.bf16.gmra.mxu0 %v1289
      %v1303 = vpop.f32.mrf.mxu0
      %v1304 = vadd.f32 0.0, %v1303
      %v1305 = vpop.f32.mrf.mxu0
      %1306 = vdwg.mxu0
      %1307 = vst [vmem:[#allocation1] ss:$4 sm:$0xff] %v127
      %v1308 = vld.sshfl [vmem:[#allocation1] sm:$0xff pattern:$0x73625140]
      %1310 = vrot.lane.b32.xlu0 %v1308, 112
      %v1311 = vpop.permute.xlu0 %1310
      %1312 = vst [vmem:[#allocation1] ss:$4 sm:$0xff] %v127
      %v1313 = vld.sshfl [vmem:[#allocation1] sm:$0xff pattern:$0x73625140]
      %1315 = vrot.lane.b32.xlu0 %v1313, 80
      %v1316 = vpop.permute.xlu0 %1315
      %v1318 = vsel %vm135, %v1311, 0
      %v1321 = vsel %vm135, %v1316, 0
      %1323 = vmatpush.bf16.xpose.msra.mxu0 0
      %1324 = vmatpush.bf16.xpose.msra.mxu0 0
      %1325 = vmatpush.bf16.xpose.msra.mxu0 0
      %1326 = vmatpush.bf16.xpose.msra.mxu0 0
      %1327 = vmatpush.bf16.xpose.msra.mxu0 0
      %1328 = vmatpush.bf16.xpose.msra.mxu0 0
      %1329 = vmatpush.bf16.xpose.msra.mxu0 0
      %1330 = vmatpush.bf16.xpose.msra.mxu0 %v1321
      %1331 = vmatmul.bf16.gmra.mxu0 %v1318
      %v1332 = vpop.f32.mrf.mxu0
      %v1333 = vadd.f32 0.0, %v1332
      %v1334 = vpop.f32.mrf.mxu0
      %1335 = vdwg.mxu0
      %1336 = vst [vmem:[#allocation1] ss:$4 sm:$0xff] %v128
      %v1337 = vld.sshfl [vmem:[#allocation1] sm:$0xff pattern:$0x73625140]
      %1339 = vrot.lane.b32.xlu0 %v1337, 112
      %v1340 = vpop.permute.xlu0 %1339
      %1341 = vst [vmem:[#allocation1] ss:$4 sm:$0xff] %v128
      %v1342 = vld.sshfl [vmem:[#allocation1] sm:$0xff pattern:$0x73625140]
      %1344 = vrot.lane.b32.xlu0 %v1342, 80
      %v1345 = vpop.permute.xlu0 %1344
      %v1347 = vsel %vm135, %v1340, 0
      %v1350 = vsel %vm135, %v1345, 0
      %1352 = vmatpush.bf16.xpose.msra.mxu0 0
      %1353 = vmatpush.bf16.xpose.msra.mxu0 0
      %1354 = vmatpush.bf16.xpose.msra.mxu0 0
      %1355 = vmatpush.bf16.xpose.msra.mxu0 0
      %1356 = vmatpush.bf16.xpose.msra.mxu0 0
      %1357 = vmatpush.bf16.xpose.msra.mxu0 0
      %1358 = vmatpush.bf16.xpose.msra.mxu0 0
      %1359 = vmatpush.bf16.xpose.msra.mxu0 %v1350
      %1360 = vmatmul.bf16.gmra.mxu0 %v1347
      %v1361 = vpop.f32.mrf.mxu0
      %v1362 = vadd.f32 0.0, %v1361
      %v1363 = vpop.f32.mrf.mxu0
      %1364 = vdwg.mxu0
      %v1365 = vsel %vm322, %v1159, -inf
      %1366 = vmax.xlane.f32.xlu0 %v1365
      %v1367 = vpop.xlane.xlu0 %1366
      %v1368 = vsel %vm322, %v1188, -inf
      %1369 = vmax.xlane.f32.xlu0 %v1368
      %v1370 = vpop.xlane.xlu0 %1369
      %v1371 = vsel %vm322, %v1217, -inf
      %1372 = vmax.xlane.f32.xlu0 %v1371
      %v1373 = vpop.xlane.xlu0 %1372
      %v1374 = vsel %vm322, %v1246, -inf
      %1375 = vmax.xlane.f32.xlu0 %v1374
      %v1376 = vpop.xlane.xlu0 %1375
      %v1377 = vsel %vm322, %v1275, -inf
      %1378 = vmax.xlane.f32.xlu0 %v1377
      %v1379 = vpop.xlane.xlu0 %1378
      %v1380 = vsel %vm322, %v1304, -inf
      %1381 = vmax.xlane.f32.xlu0 %v1380
      %v1382 = vpop.xlane.xlu0 %1381
      %v1383 = vsel %vm322, %v1333, -inf
      %1384 = vmax.xlane.f32.xlu0 %v1383
      %v1385 = vpop.xlane.xlu0 %1384
      %v1386 = vsel %vm322, %v1362, -inf
      %1387 = vmax.xlane.f32.xlu0 %v1386
      %v1388 = vpop.xlane.xlu0 %1387
      %v1389 = vsub.f32 %v1159, %v1367
      %v1390 = vsub.f32 %v1188, %v1370
      %v1391 = vsub.f32 %v1217, %v1373
      %v1392 = vsub.f32 %v1246, %v1376
      %v1393 = vsub.f32 %v1275, %v1379
      %v1394 = vsub.f32 %v1304, %v1382
      %v1395 = vsub.f32 %v1333, %v1385
      %v1396 = vsub.f32 %v1362, %v1388
      %v1397 = vmul.f32 %v1389, 1.442695
      %v1398 = vpow.pop %v1397
      %v1399 = vmul.f32 %v1390, 1.442695
      %v1400 = vpow.pop %v1399
      %v1401 = vmul.f32 %v1391, 1.442695
      %v1402 = vpow.pop %v1401
      %v1403 = vmul.f32 %v1392, 1.442695
      %v1404 = vpow.pop %v1403
      %v1405 = vmul.f32 %v1393, 1.442695
      %v1406 = vpow.pop %v1405
      %v1407 = vmul.f32 %v1394, 1.442695
      %v1408 = vpow.pop %v1407
      %v1409 = vmul.f32 %v1395, 1.442695
      %v1410 = vpow.pop %v1409
      %v1411 = vmul.f32 %v1396, 1.442695
      %v1412 = vpow.pop %v1411
      %v1413 = vsel %vm322, %v1398, 0.0
      %1414 = vadd.xlane.f32.xlu0 %v1413
      %v1415 = vpop.xlane.xlu0 %1414
      %v1416 = vsel %vm322, %v1400, 0.0
      %1417 = vadd.xlane.f32.xlu0 %v1416
      %v1418 = vpop.xlane.xlu0 %1417
      %v1419 = vsel %vm322, %v1402, 0.0
      %1420 = vadd.xlane.f32.xlu0 %v1419
      %v1421 = vpop.xlane.xlu0 %1420
      %v1422 = vsel %vm322, %v1404, 0.0
      %1423 = vadd.xlane.f32.xlu0 %v1422
      %v1424 = vpop.xlane.xlu0 %1423
      %v1425 = vsel %vm322, %v1406, 0.0
      %1426 = vadd.xlane.f32.xlu0 %v1425
      %v1427 = vpop.xlane.xlu0 %1426
      %v1428 = vsel %vm322, %v1408, 0.0
      %1429 = vadd.xlane.f32.xlu0 %v1428
      %v1430 = vpop.xlane.xlu0 %1429
      %v1431 = vsel %vm322, %v1410, 0.0
      %1432 = vadd.xlane.f32.xlu0 %v1431
      %v1433 = vpop.xlane.xlu0 %1432
      %v1434 = vsel %vm322, %v1412, 0.0
      %1435 = vadd.xlane.f32.xlu0 %v1434
      %v1436 = vpop.xlane.xlu0 %1435
      %v1437 = vpack.c.bf16 %v1398, %v1398
      %v1438 = vpack.c.bf16 %v1400, %v1400
      %v1439 = vpack.c.bf16 %v1402, %v1402
      %v1440 = vpack.c.bf16 %v1404, %v1404
      %v1441 = vpack.c.bf16 %v1406, %v1406
      %v1442 = vpack.c.bf16 %v1408, %v1408
      %v1443 = vpack.c.bf16 %v1410, %v1410
      %v1444 = vpack.c.bf16 %v1412, %v1412
      %1445 = vst [vmem:[#allocation1] ss:$4 sm:$0xff] %v121
      %v1446 = vld.sshfl [vmem:[#allocation1] sm:$0xff pattern:$0x73625140]
      %1448 = vrot.lane.b32.xlu0 %v1446, 48
      %v1449 = vpop.permute.xlu0 %1448
      %v1451 = vsel %vm408, %v1437, 0
      %v1454 = vsel %vm412, %v1449, 0
      %1456 = vmatpush.bf16.msra.mxu0 0
      %1457 = vmatpush.bf16.msra.mxu0 0
      %1458 = vmatpush.bf16.msra.mxu0 0
      %1459 = vmatpush.bf16.msra.mxu0 0
      %1460 = vmatpush.bf16.msra.mxu0 0
      %1461 = vmatpush.bf16.msra.mxu0 0
      %1462 = vmatpush.bf16.msra.mxu0 0
      %1463 = vmatpush.bf16.msra.mxu0 %v1454
      %1464 = vmatmul.bf16.gmra.mxu0 %v1451
      %v1465 = vpop.f32.mrf.mxu0
      %v1466 = vadd.f32 0.0, %v1465
      %v1467 = vpop.f32.mrf.mxu0
      %1468 = vdwg.mxu0
      %1469 = vst [vmem:[#allocation1] ss:$4 sm:$0xff] %v122
      %v1470 = vld.sshfl [vmem:[#allocation1] sm:$0xff pattern:$0x73625140]
      %1472 = vrot.lane.b32.xlu0 %v1470, 48
      %v1473 = vpop.permute.xlu0 %1472
      %v1475 = vsel %vm408, %v1438, 0
      %v1478 = vsel %vm412, %v1473, 0
      %1480 = vmatpush.bf16.msra.mxu0 0
      %1481 = vmatpush.bf16.msra.mxu0 0
      %1482 = vmatpush.bf16.msra.mxu0 0
      %1483 = vmatpush.bf16.msra.mxu0 0
      %1484 = vmatpush.bf16.msra.mxu0 0
      %1485 = vmatpush.bf16.msra.mxu0 0
      %1486 = vmatpush.bf16.msra.mxu0 0
      %1487 = vmatpush.bf16.msra.mxu0 %v1478
      %1488 = vmatmul.bf16.gmra.mxu0 %v1475
      %v1489 = vpop.f32.mrf.mxu0
      %v1490 = vadd.f32 0.0, %v1489
      %v1491 = vpop.f32.mrf.mxu0
      %1492 = vdwg.mxu0
      %1493 = vst [vmem:[#allocation1] ss:$4 sm:$0xff] %v123
      %v1494 = vld.sshfl [vmem:[#allocation1] sm:$0xff pattern:$0x73625140]
      %1496 = vrot.lane.b32.xlu0 %v1494, 48
      %v1497 = vpop.permute.xlu0 %1496
      %v1499 = vsel %vm408, %v1439, 0
      %v1502 = vsel %vm412, %v1497, 0
      %1504 = vmatpush.bf16.msra.mxu0 0
      %1505 = vmatpush.bf16.msra.mxu0 0
      %1506 = vmatpush.bf16.msra.mxu0 0
      %1507 = vmatpush.bf16.msra.mxu0 0
      %1508 = vmatpush.bf16.msra.mxu0 0
      %1509 = vmatpush.bf16.msra.mxu0 0
      %1510 = vmatpush.bf16.msra.mxu0 0
      %1511 = vmatpush.bf16.msra.mxu0 %v1502
      %1512 = vmatmul.bf16.gmra.mxu0 %v1499
      %v1513 = vpop.f32.mrf.mxu0
      %v1514 = vadd.f32 0.0, %v1513
      %v1515 = vpop.f32.mrf.mxu0
      %1516 = vdwg.mxu0
      %1517 = vst [vmem:[#allocation1] ss:$4 sm:$0xff] %v124
      %v1518 = vld.sshfl [vmem:[#allocation1] sm:$0xff pattern:$0x73625140]
      %1520 = vrot.lane.b32.xlu0 %v1518, 48
      %v1521 = vpop.permute.xlu0 %1520
      %v1523 = vsel %vm408, %v1440, 0
      %v1526 = vsel %vm412, %v1521, 0
      %1528 = vmatpush.bf16.msra.mxu0 0
      %1529 = vmatpush.bf16.msra.mxu0 0
      %1530 = vmatpush.bf16.msra.mxu0 0
      %1531 = vmatpush.bf16.msra.mxu0 0
      %1532 = vmatpush.bf16.msra.mxu0 0
      %1533 = vmatpush.bf16.msra.mxu0 0
      %1534 = vmatpush.bf16.msra.mxu0 0
      %1535 = vmatpush.bf16.msra.mxu0 %v1526
      %1536 = vmatmul.bf16.gmra.mxu0 %v1523
      %v1537 = vpop.f32.mrf.mxu0
      %v1538 = vadd.f32 0.0, %v1537
      %v1539 = vpop.f32.mrf.mxu0
      %1540 = vdwg.mxu0
      %1541 = vst [vmem:[#allocation1] ss:$4 sm:$0xff] %v125
      %v1542 = vld.sshfl [vmem:[#allocation1] sm:$0xff pattern:$0x73625140]
      %1544 = vrot.lane.b32.xlu0 %v1542, 48
      %v1545 = vpop.permute.xlu0 %1544
      %v1547 = vsel %vm408, %v1441, 0
      %v1550 = vsel %vm412, %v1545, 0
      %1552 = vmatpush.bf16.msra.mxu0 0
      %1553 = vmatpush.bf16.msra.mxu0 0
      %1554 = vmatpush.bf16.msra.mxu0 0
      %1555 = vmatpush.bf16.msra.mxu0 0
      %1556 = vmatpush.bf16.msra.mxu0 0
      %1557 = vmatpush.bf16.msra.mxu0 0
      %1558 = vmatpush.bf16.msra.mxu0 0
      %1559 = vmatpush.bf16.msra.mxu0 %v1550
      %1560 = vmatmul.bf16.gmra.mxu0 %v1547
      %v1561 = vpop.f32.mrf.mxu0
      %v1562 = vadd.f32 0.0, %v1561
      %v1563 = vpop.f32.mrf.mxu0
      %1564 = vdwg.mxu0
      %1565 = vst [vmem:[#allocation1] ss:$4 sm:$0xff] %v126
      %v1566 = vld.sshfl [vmem:[#allocation1] sm:$0xff pattern:$0x73625140]
      %1568 = vrot.lane.b32.xlu0 %v1566, 48
      %v1569 = vpop.permute.xlu0 %1568
      %v1571 = vsel %vm408, %v1442, 0
      %v1574 = vsel %vm412, %v1569, 0
      %1576 = vmatpush.bf16.msra.mxu0 0
      %1577 = vmatpush.bf16.msra.mxu0 0
      %1578 = vmatpush.bf16.msra.mxu0 0
      %1579 = vmatpush.bf16.msra.mxu0 0
      %1580 = vmatpush.bf16.msra.mxu0 0
      %1581 = vmatpush.bf16.msra.mxu0 0
      %1582 = vmatpush.bf16.msra.mxu0 0
      %1583 = vmatpush.bf16.msra.mxu0 %v1574
      %1584 = vmatmul.bf16.gmra.mxu0 %v1571
      %v1585 = vpop.f32.mrf.mxu0
      %v1586 = vadd.f32 0.0, %v1585
      %v1587 = vpop.f32.mrf.mxu0
      %1588 = vdwg.mxu0
      %1589 = vst [vmem:[#allocation1] ss:$4 sm:$0xff] %v127
      %v1590 = vld.sshfl [vmem:[#allocation1] sm:$0xff pattern:$0x73625140]
      %1592 = vrot.lane.b32.xlu0 %v1590, 48
      %v1593 = vpop.permute.xlu0 %1592
      %v1595 = vsel %vm408, %v1443, 0
      %v1598 = vsel %vm412, %v1593, 0
      %1600 = vmatpush.bf16.msra.mxu0 0
      %1601 = vmatpush.bf16.msra.mxu0 0
      %1602 = vmatpush.bf16.msra.mxu0 0
      %1603 = vmatpush.bf16.msra.mxu0 0
      %1604 = vmatpush.bf16.msra.mxu0 0
      %1605 = vmatpush.bf16.msra.mxu0 0
      %1606 = vmatpush.bf16.msra.mxu0 0
      %1607 = vmatpush.bf16.msra.mxu0 %v1598
      %1608 = vmatmul.bf16.gmra.mxu0 %v1595
      %v1609 = vpop.f32.mrf.mxu0
      %v1610 = vadd.f32 0.0, %v1609
      %v1611 = vpop.f32.mrf.mxu0
      %1612 = vdwg.mxu0
      %1613 = vst [vmem:[#allocation1] ss:$4 sm:$0xff] %v128
      %v1614 = vld.sshfl [vmem:[#allocation1] sm:$0xff pattern:$0x73625140]
      %1616 = vrot.lane.b32.xlu0 %v1614, 48
      %v1617 = vpop.permute.xlu0 %1616
      %v1619 = vsel %vm408, %v1444, 0
      %v1622 = vsel %vm412, %v1617, 0
      %1624 = vmatpush.bf16.msra.mxu0 0
      %1625 = vmatpush.bf16.msra.mxu0 0
      %1626 = vmatpush.bf16.msra.mxu0 0
      %1627 = vmatpush.bf16.msra.mxu0 0
      %1628 = vmatpush.bf16.msra.mxu0 0
      %1629 = vmatpush.bf16.msra.mxu0 0
      %1630 = vmatpush.bf16.msra.mxu0 0
      %1631 = vmatpush.bf16.msra.mxu0 %v1622
      %1632 = vmatmul.bf16.gmra.mxu0 %v1619
      %v1633 = vpop.f32.mrf.mxu0
      %v1634 = vadd.f32 0.0, %v1633
      %v1635 = vpop.f32.mrf.mxu0
      %1636 = vdwg.mxu0
      %v1637 = vrcp.pop %v1415
      %v1638 = vrcp.pop %v1418
      %v1639 = vrcp.pop %v1421
      %v1640 = vrcp.pop %v1424
      %v1641 = vrcp.pop %v1427
      %v1642 = vrcp.pop %v1430
      %v1643 = vrcp.pop %v1433
      %v1644 = vrcp.pop %v1436
      %v1645 = vmul.f32 %v1466, %v1637
      %v1646 = vmul.f32 %v1490, %v1638
      %v1647 = vmul.f32 %v1514, %v1639
      %v1648 = vmul.f32 %v1538, %v1640
      %v1649 = vmul.f32 %v1562, %v1641
      %v1650 = vmul.f32 %v1586, %v1642
      %v1651 = vmul.f32 %v1610, %v1643
      %v1652 = vmul.f32 %v1634, %v1644
      %1653 = vst [vmem:[#allocation1] ss:$4 sm:$0xff] %v121
      %v1654 = vld.sshfl [vmem:[#allocation1] sm:$0xff pattern:$0x73625140]
      %1656 = vrot.lane.b32.xlu0 %v1654, 104
      %v1657 = vpop.permute.xlu0 %1656
      %1658 = vst [vmem:[#allocation1] ss:$4 sm:$0xff] %v121
      %v1659 = vld.sshfl [vmem:[#allocation1] sm:$0xff pattern:$0x73625140]
      %1661 = vrot.lane.b32.xlu0 %v1659, 72
      %v1662 = vpop.permute.xlu0 %1661
      %v1664 = vsel %vm135, %v1657, 0
      %v1667 = vsel %vm135, %v1662, 0
      %1669 = vmatpush.bf16.xpose.msra.mxu0 0
      %1670 = vmatpush.bf16.xpose.msra.mxu0 0
      %1671 = vmatpush.bf16.xpose.msra.mxu0 0
      %1672 = vmatpush.bf16.xpose.msra.mxu0 0
      %1673 = vmatpush.bf16.xpose.msra.mxu0 0
      %1674 = vmatpush.bf16.xpose.msra.mxu0 0
      %1675 = vmatpush.bf16.xpose.msra.mxu0 0
      %1676 = vmatpush.bf16.xpose.msra.mxu0 %v1667
      %1677 = vmatmul.bf16.gmra.mxu0 %v1664
      %v1678 = vpop.f32.mrf.mxu0
      %v1679 = vadd.f32 0.0, %v1678
      %v1680 = vpop.f32.mrf.mxu0
      %1681 = vdwg.mxu0
      %1682 = vst [vmem:[#allocation1] ss:$4 sm:$0xff] %v122
      %v1683 = vld.sshfl [vmem:[#allocation1] sm:$0xff pattern:$0x73625140]
      %1685 = vrot.lane.b32.xlu0 %v1683, 104
      %v1686 = vpop.permute.xlu0 %1685
      %1687 = vst [vmem:[#allocation1] ss:$4 sm:$0xff] %v122
      %v1688 = vld.sshfl [vmem:[#allocation1] sm:$0xff pattern:$0x73625140]
      %1690 = vrot.lane.b32.xlu0 %v1688, 72
      %v1691 = vpop.permute.xlu0 %1690
      %v1693 = vsel %vm135, %v1686, 0
      %v1696 = vsel %vm135, %v1691, 0
      %1698 = vmatpush.bf16.xpose.msra.mxu0 0
      %1699 = vmatpush.bf16.xpose.msra.mxu0 0
      %1700 = vmatpush.bf16.xpose.msra.mxu0 0
      %1701 = vmatpush.bf16.xpose.msra.mxu0 0
      %1702 = vmatpush.bf16.xpose.msra.mxu0 0
      %1703 = vmatpush.bf16.xpose.msra.mxu0 0
      %1704 = vmatpush.bf16.xpose.msra.mxu0 0
      %1705 = vmatpush.bf16.xpose.msra.mxu0 %v1696
      %1706 = vmatmul.bf16.gmra.mxu0 %v1693
      %v1707 = vpop.f32.mrf.mxu0
      %v1708 = vadd.f32 0.0, %v1707
      %v1709 = vpop.f32.mrf.mxu0
      %1710 = vdwg.mxu0
      %1711 = vst [vmem:[#allocation1] ss:$4 sm:$0xff] %v123
      %v1712 = vld.sshfl [vmem:[#allocation1] sm:$0xff pattern:$0x73625140]
      %1714 = vrot.lane.b32.xlu0 %v1712, 104
      %v1715 = vpop.permute.xlu0 %1714
      %1716 = vst [vmem:[#allocation1] ss:$4 sm:$0xff] %v123
      %v1717 = vld.sshfl [vmem:[#allocation1] sm:$0xff pattern:$0x73625140]
      %1719 = vrot.lane.b32.xlu0 %v1717, 72
      %v1720 = vpop.permute.xlu0 %1719
      %v1722 = vsel %vm135, %v1715, 0
      %v1725 = vsel %vm135, %v1720, 0
      %1727 = vmatpush.bf16.xpose.msra.mxu0 0
      %1728 = vmatpush.bf16.xpose.msra.mxu0 0
      %1729 = vmatpush.bf16.xpose.msra.mxu0 0
      %1730 = vmatpush.bf16.xpose.msra.mxu0 0
      %1731 = vmatpush.bf16.xpose.msra.mxu0 0
      %1732 = vmatpush.bf16.xpose.msra.mxu0 0
      %1733 = vmatpush.bf16.xpose.msra.mxu0 0
      %1734 = vmatpush.bf16.xpose.msra.mxu0 %v1725
      %1735 = vmatmul.bf16.gmra.mxu0 %v1722
      %v1736 = vpop.f32.mrf.mxu0
      %v1737 = vadd.f32 0.0, %v1736
      %v1738 = vpop.f32.mrf.mxu0
      %1739 = vdwg.mxu0
      %1740 = vst [vmem:[#allocation1] ss:$4 sm:$0xff] %v124
      %v1741 = vld.sshfl [vmem:[#allocation1] sm:$0xff pattern:$0x73625140]
      %1743 = vrot.lane.b32.xlu0 %v1741, 104
      %v1744 = vpop.permute.xlu0 %1743
      %1745 = vst [vmem:[#allocation1] ss:$4 sm:$0xff] %v124
      %v1746 = vld.sshfl [vmem:[#allocation1] sm:$0xff pattern:$0x73625140]
      %1748 = vrot.lane.b32.xlu0 %v1746, 72
      %v1749 = vpop.permute.xlu0 %1748
      %v1751 = vsel %vm135, %v1744, 0
      %v1754 = vsel %vm135, %v1749, 0
      %1756 = vmatpush.bf16.xpose.msra.mxu0 0
      %1757 = vmatpush.bf16.xpose.msra.mxu0 0
      %1758 = vmatpush.bf16.xpose.msra.mxu0 0
      %1759 = vmatpush.bf16.xpose.msra.mxu0 0
      %1760 = vmatpush.bf16.xpose.msra.mxu0 0
      %1761 = vmatpush.bf16.xpose.msra.mxu0 0
      %1762 = vmatpush.bf16.xpose.msra.mxu0 0
      %1763 = vmatpush.bf16.xpose.msra.mxu0 %v1754
      %1764 = vmatmul.bf16.gmra.mxu0 %v1751
      %v1765 = vpop.f32.mrf.mxu0
      %v1766 = vadd.f32 0.0, %v1765
      %v1767 = vpop.f32.mrf.mxu0
      %1768 = vdwg.mxu0
      %1769 = vst [vmem:[#allocation1] ss:$4 sm:$0xff] %v125
      %v1770 = vld.sshfl [vmem:[#allocation1] sm:$0xff pattern:$0x73625140]
      %1772 = vrot.lane.b32.xlu0 %v1770, 104
      %v1773 = vpop.permute.xlu0 %1772
      %1774 = vst [vmem:[#allocation1] ss:$4 sm:$0xff] %v125
      %v1775 = vld.sshfl [vmem:[#allocation1] sm:$0xff pattern:$0x73625140]
      %1777 = vrot.lane.b32.xlu0 %v1775, 72
      %v1778 = vpop.permute.xlu0 %1777
      %v1780 = vsel %vm135, %v1773, 0
      %v1783 = vsel %vm135, %v1778, 0
      %1785 = vmatpush.bf16.xpose.msra.mxu0 0
      %1786 = vmatpush.bf16.xpose.msra.mxu0 0
      %1787 = vmatpush.bf16.xpose.msra.mxu0 0
      %1788 = vmatpush.bf16.xpose.msra.mxu0 0
      %1789 = vmatpush.bf16.xpose.msra.mxu0 0
      %1790 = vmatpush.bf16.xpose.msra.mxu0 0
      %1791 = vmatpush.bf16.xpose.msra.mxu0 0
      %1792 = vmatpush.bf16.xpose.msra.mxu0 %v1783
      %1793 = vmatmul.bf16.gmra.mxu0 %v1780
      %v1794 = vpop.f32.mrf.mxu0
      %v1795 = vadd.f32 0.0, %v1794
      %v1796 = vpop.f32.mrf.mxu0
      %1797 = vdwg.mxu0
      %1798 = vst [vmem:[#allocation1] ss:$4 sm:$0xff] %v126
      %v1799 = vld.sshfl [vmem:[#allocation1] sm:$0xff pattern:$0x73625140]
      %1801 = vrot.lane.b32.xlu0 %v1799, 104
      %v1802 = vpop.permute.xlu0 %1801
      %1803 = vst [vmem:[#allocation1] ss:$4 sm:$0xff] %v126
      %v1804 = vld.sshfl [vmem:[#allocation1] sm:$0xff pattern:$0x73625140]
      %1806 = vrot.lane.b32.xlu0 %v1804, 72
      %v1807 = vpop.permute.xlu0 %1806
      %v1809 = vsel %vm135, %v1802, 0
      %v1812 = vsel %vm135, %v1807, 0
      %1814 = vmatpush.bf16.xpose.msra.mxu0 0
      %1815 = vmatpush.bf16.xpose.msra.mxu0 0
      %1816 = vmatpush.bf16.xpose.msra.mxu0 0
      %1817 = vmatpush.bf16.xpose.msra.mxu0 0
      %1818 = vmatpush.bf16.xpose.msra.mxu0 0
      %1819 = vmatpush.bf16.xpose.msra.mxu0 0
      %1820 = vmatpush.bf16.xpose.msra.mxu0 0
      %1821 = vmatpush.bf16.xpose.msra.mxu0 %v1812
      %1822 = vmatmul.bf16.gmra.mxu0 %v1809
      %v1823 = vpop.f32.mrf.mxu0
      %v1824 = vadd.f32 0.0, %v1823
      %v1825 = vpop.f32.mrf.mxu0
      %1826 = vdwg.mxu0
      %1827 = vst [vmem:[#allocation1] ss:$4 sm:$0xff] %v127
      %v1828 = vld.sshfl [vmem:[#allocation1] sm:$0xff pattern:$0x73625140]
      %1830 = vrot.lane.b32.xlu0 %v1828, 104
      %v1831 = vpop.permute.xlu0 %1830
      %1832 = vst [vmem:[#allocation1] ss:$4 sm:$0xff] %v127
      %v1833 = vld.sshfl [vmem:[#allocation1] sm:$0xff pattern:$0x73625140]
      %1835 = vrot.lane.b32.xlu0 %v1833, 72
      %v1836 = vpop.permute.xlu0 %1835
      %v1838 = vsel %vm135, %v1831, 0
      %v1841 = vsel %vm135, %v1836, 0
      %1843 = vmatpush.bf16.xpose.msra.mxu0 0
      %1844 = vmatpush.bf16.xpose.msra.mxu0 0
      %1845 = vmatpush.bf16.xpose.msra.mxu0 0
      %1846 = vmatpush.bf16.xpose.msra.mxu0 0
      %1847 = vmatpush.bf16.xpose.msra.mxu0 0
      %1848 = vmatpush.bf16.xpose.msra.mxu0 0
      %1849 = vmatpush.bf16.xpose.msra.mxu0 0
      %1850 = vmatpush.bf16.xpose.msra.mxu0 %v1841
      %1851 = vmatmul.bf16.gmra.mxu0 %v1838
      %v1852 = vpop.f32.mrf.mxu0
      %v1853 = vadd.f32 0.0, %v1852
      %v1854 = vpop.f32.mrf.mxu0
      %1855 = vdwg.mxu0
      %1856 = vst [vmem:[#allocation1] ss:$4 sm:$0xff] %v128
      %v1857 = vld.sshfl [vmem:[#allocation1] sm:$0xff pattern:$0x73625140]
      %1859 = vrot.lane.b32.xlu0 %v1857, 104
      %v1860 = vpop.permute.xlu0 %1859
      %1861 = vst [vmem:[#allocation1] ss:$4 sm:$0xff] %v128
      %v1862 = vld.sshfl [vmem:[#allocation1] sm:$0xff pattern:$0x73625140]
      %1864 = vrot.lane.b32.xlu0 %v1862, 72
      %v1865 = vpop.permute.xlu0 %1864
      %v1867 = vsel %vm135, %v1860, 0
      %v1870 = vsel %vm135, %v1865, 0
      %1872 = vmatpush.bf16.xpose.msra.mxu0 0
      %1873 = vmatpush.bf16.xpose.msra.mxu0 0
      %1874 = vmatpush.bf16.xpose.msra.mxu0 0
      %1875 = vmatpush.bf16.xpose.msra.mxu0 0
      %1876 = vmatpush.bf16.xpose.msra.mxu0 0
      %1877 = vmatpush.bf16.xpose.msra.mxu0 0
      %1878 = vmatpush.bf16.xpose.msra.mxu0 0
      %1879 = vmatpush.bf16.xpose.msra.mxu0 %v1870
      %1880 = vmatmul.bf16.gmra.mxu0 %v1867
      %v1881 = vpop.f32.mrf.mxu0
      %v1882 = vadd.f32 0.0, %v1881
      %v1883 = vpop.f32.mrf.mxu0
      %1884 = vdwg.mxu0
      %v1885 = vsel %vm322, %v1679, -inf
      %1886 = vmax.xlane.f32.xlu0 %v1885
      %v1887 = vpop.xlane.xlu0 %1886
      %v1888 = vsel %vm322, %v1708, -inf
      %1889 = vmax.xlane.f32.xlu0 %v1888
      %v1890 = vpop.xlane.xlu0 %1889
      %v1891 = vsel %vm322, %v1737, -inf
      %1892 = vmax.xlane.f32.xlu0 %v1891
      %v1893 = vpop.xlane.xlu0 %1892
      %v1894 = vsel %vm322, %v1766, -inf
      %1895 = vmax.xlane.f32.xlu0 %v1894
      %v1896 = vpop.xlane.xlu0 %1895
      %v1897 = vsel %vm322, %v1795, -inf
      %1898 = vmax.xlane.f32.xlu0 %v1897
      %v1899 = vpop.xlane.xlu0 %1898
      %v1900 = vsel %vm322, %v1824, -inf
      %1901 = vmax.xlane.f32.xlu0 %v1900
      %v1902 = vpop.xlane.xlu0 %1901
      %v1903 = vsel %vm322, %v1853, -inf
      %1904 = vmax.xlane.f32.xlu0 %v1903
      %v1905 = vpop.xlane.xlu0 %1904
      %v1906 = vsel %vm322, %v1882, -inf
      %1907 = vmax.xlane.f32.xlu0 %v1906
      %v1908 = vpop.xlane.xlu0 %1907
      %v1909 = vsub.f32 %v1679, %v1887
      %v1910 = vsub.f32 %v1708, %v1890
      %v1911 = vsub.f32 %v1737, %v1893
      %v1912 = vsub.f32 %v1766, %v1896
      %v1913 = vsub.f32 %v1795, %v1899
      %v1914 = vsub.f32 %v1824, %v1902
      %v1915 = vsub.f32 %v1853, %v1905
      %v1916 = vsub.f32 %v1882, %v1908
      %v1917 = vmul.f32 %v1909, 1.442695
      %v1918 = vpow.pop %v1917
      %v1919 = vmul.f32 %v1910, 1.442695
      %v1920 = vpow.pop %v1919
      %v1921 = vmul.f32 %v1911, 1.442695
      %v1922 = vpow.pop %v1921
      %v1923 = vmul.f32 %v1912, 1.442695
      %v1924 = vpow.pop %v1923
      %v1925 = vmul.f32 %v1913, 1.442695
      %v1926 = vpow.pop %v1925
      %v1927 = vmul.f32 %v1914, 1.442695
      %v1928 = vpow.pop %v1927
      %v1929 = vmul.f32 %v1915, 1.442695
      %v1930 = vpow.pop %v1929
      %v1931 = vmul.f32 %v1916, 1.442695
      %v1932 = vpow.pop %v1931
      %v1933 = vsel %vm322, %v1918, 0.0
      %1934 = vadd.xlane.f32.xlu0 %v1933
      %v1935 = vpop.xlane.xlu0 %1934
      %v1936 = vsel %vm322, %v1920, 0.0
      %1937 = vadd.xlane.f32.xlu0 %v1936
      %v1938 = vpop.xlane.xlu0 %1937
      %v1939 = vsel %vm322, %v1922, 0.0
      %1940 = vadd.xlane.f32.xlu0 %v1939
      %v1941 = vpop.xlane.xlu0 %1940
      %v1942 = vsel %vm322, %v1924, 0.0
      %1943 = vadd.xlane.f32.xlu0 %v1942
      %v1944 = vpop.xlane.xlu0 %1943
      %v1945 = vsel %vm322, %v1926, 0.0
      %1946 = vadd.xlane.f32.xlu0 %v1945
      %v1947 = vpop.xlane.xlu0 %1946
      %v1948 = vsel %vm322, %v1928, 0.0
      %1949 = vadd.xlane.f32.xlu0 %v1948
      %v1950 = vpop.xlane.xlu0 %1949
      %v1951 = vsel %vm322, %v1930, 0.0
      %1952 = vadd.xlane.f32.xlu0 %v1951
      %v1953 = vpop.xlane.xlu0 %1952
      %v1954 = vsel %vm322, %v1932, 0.0
      %1955 = vadd.xlane.f32.xlu0 %v1954
      %v1956 = vpop.xlane.xlu0 %1955
      %v1957 = vpack.c.bf16 %v1918, %v1918
      %v1958 = vpack.c.bf16 %v1920, %v1920
      %v1959 = vpack.c.bf16 %v1922, %v1922
      %v1960 = vpack.c.bf16 %v1924, %v1924
      %v1961 = vpack.c.bf16 %v1926, %v1926
      %v1962 = vpack.c.bf16 %v1928, %v1928
      %v1963 = vpack.c.bf16 %v1930, %v1930
      %v1964 = vpack.c.bf16 %v1932, %v1932
      %1965 = vst [vmem:[#allocation1] ss:$4 sm:$0xff] %v121
      %v1966 = vld.sshfl [vmem:[#allocation1] sm:$0xff pattern:$0x73625140]
      %1968 = vrot.lane.b32.xlu0 %v1966, 40
      %v1969 = vpop.permute.xlu0 %1968
      %v1971 = vsel %vm408, %v1957, 0
      %v1974 = vsel %vm412, %v1969, 0
      %1976 = vmatpush.bf16.msra.mxu0 0
      %1977 = vmatpush.bf16.msra.mxu0 0
      %1978 = vmatpush.bf16.msra.mxu0 0
      %1979 = vmatpush.bf16.msra.mxu0 0
      %1980 = vmatpush.bf16.msra.mxu0 0
      %1981 = vmatpush.bf16.msra.mxu0 0
      %1982 = vmatpush.bf16.msra.mxu0 0
      %1983 = vmatpush.bf16.msra.mxu0 %v1974
      %1984 = vmatmul.bf16.gmra.mxu0 %v1971
      %v1985 = vpop.f32.mrf.mxu0
      %v1986 = vadd.f32 0.0, %v1985
      %v1987 = vpop.f32.mrf.mxu0
      %1988 = vdwg.mxu0
      %1989 = vst [vmem:[#allocation1] ss:$4 sm:$0xff] %v122
      %v1990 = vld.sshfl [vmem:[#allocation1] sm:$0xff pattern:$0x73625140]
      %1992 = vrot.lane.b32.xlu0 %v1990, 40
      %v1993 = vpop.permute.xlu0 %1992
      %v1995 = vsel %vm408, %v1958, 0
      %v1998 = vsel %vm412, %v1993, 0
      %2000 = vmatpush.bf16.msra.mxu0 0
      %2001 = vmatpush.bf16.msra.mxu0 0
      %2002 = vmatpush.bf16.msra.mxu0 0
      %2003 = vmatpush.bf16.msra.mxu0 0
      %2004 = vmatpush.bf16.msra.mxu0 0
      %2005 = vmatpush.bf16.msra.mxu0 0
      %2006 = vmatpush.bf16.msra.mxu0 0
      %2007 = vmatpush.bf16.msra.mxu0 %v1998
      %2008 = vmatmul.bf16.gmra.mxu0 %v1995
      %v2009 = vpop.f32.mrf.mxu0
      %v2010 = vadd.f32 0.0, %v2009
      %v2011 = vpop.f32.mrf.mxu0
      %2012 = vdwg.mxu0
      %2013 = vst [vmem:[#allocation1] ss:$4 sm:$0xff] %v123
      %v2014 = vld.sshfl [vmem:[#allocation1] sm:$0xff pattern:$0x73625140]
      %2016 = vrot.lane.b32.xlu0 %v2014, 40
      %v2017 = vpop.permute.xlu0 %2016
      %v2019 = vsel %vm408, %v1959, 0
      %v2022 = vsel %vm412, %v2017, 0
      %2024 = vmatpush.bf16.msra.mxu0 0
      %2025 = vmatpush.bf16.msra.mxu0 0
      %2026 = vmatpush.bf16.msra.mxu0 0
      %2027 = vmatpush.bf16.msra.mxu0 0
      %2028 = vmatpush.bf16.msra.mxu0 0
      %2029 = vmatpush.bf16.msra.mxu0 0
      %2030 = vmatpush.bf16.msra.mxu0 0
      %2031 = vmatpush.bf16.msra.mxu0 %v2022
      %2032 = vmatmul.bf16.gmra.mxu0 %v2019
      %v2033 = vpop.f32.mrf.mxu0
      %v2034 = vadd.f32 0.0, %v2033
      %v2035 = vpop.f32.mrf.mxu0
      %2036 = vdwg.mxu0
      %2037 = vst [vmem:[#allocation1] ss:$4 sm:$0xff] %v124
      %v2038 = vld.sshfl [vmem:[#allocation1] sm:$0xff pattern:$0x73625140]
      %2040 = vrot.lane.b32.xlu0 %v2038, 40
      %v2041 = vpop.permute.xlu0 %2040
      %v2043 = vsel %vm408, %v1960, 0
      %v2046 = vsel %vm412, %v2041, 0
      %2048 = vmatpush.bf16.msra.mxu0 0
      %2049 = vmatpush.bf16.msra.mxu0 0
      %2050 = vmatpush.bf16.msra.mxu0 0
      %2051 = vmatpush.bf16.msra.mxu0 0
      %2052 = vmatpush.bf16.msra.mxu0 0
      %2053 = vmatpush.bf16.msra.mxu0 0
      %2054 = vmatpush.bf16.msra.mxu0 0
      %2055 = vmatpush.bf16.msra.mxu0 %v2046
      %2056 = vmatmul.bf16.gmra.mxu0 %v2043
      %v2057 = vpop.f32.mrf.mxu0
      %v2058 = vadd.f32 0.0, %v2057
      %v2059 = vpop.f32.mrf.mxu0
      %2060 = vdwg.mxu0
      %2061 = vst [vmem:[#allocation1] ss:$4 sm:$0xff] %v125
      %v2062 = vld.sshfl [vmem:[#allocation1] sm:$0xff pattern:$0x73625140]
      %2064 = vrot.lane.b32.xlu0 %v2062, 40
      %v2065 = vpop.permute.xlu0 %2064
      %v2067 = vsel %vm408, %v1961, 0
      %v2070 = vsel %vm412, %v2065, 0
      %2072 = vmatpush.bf16.msra.mxu0 0
      %2073 = vmatpush.bf16.msra.mxu0 0
      %2074 = vmatpush.bf16.msra.mxu0 0
      %2075 = vmatpush.bf16.msra.mxu0 0
      %2076 = vmatpush.bf16.msra.mxu0 0
      %2077 = vmatpush.bf16.msra.mxu0 0
      %2078 = vmatpush.bf16.msra.mxu0 0
      %2079 = vmatpush.bf16.msra.mxu0 %v2070
      %2080 = vmatmul.bf16.gmra.mxu0 %v2067
      %v2081 = vpop.f32.mrf.mxu0
      %v2082 = vadd.f32 0.0, %v2081
      %v2083 = vpop.f32.mrf.mxu0
      %2084 = vdwg.mxu0
      %2085 = vst [vmem:[#allocation1] ss:$4 sm:$0xff] %v126
      %v2086 = vld.sshfl [vmem:[#allocation1] sm:$0xff pattern:$0x73625140]
      %2088 = vrot.lane.b32.xlu0 %v2086, 40
      %v2089 = vpop.permute.xlu0 %2088
      %v2091 = vsel %vm408, %v1962, 0
      %v2094 = vsel %vm412, %v2089, 0
      %2096 = vmatpush.bf16.msra.mxu0 0
      %2097 = vmatpush.bf16.msra.mxu0 0
      %2098 = vmatpush.bf16.msra.mxu0 0
      %2099 = vmatpush.bf16.msra.mxu0 0
      %2100 = vmatpush.bf16.msra.mxu0 0
      %2101 = vmatpush.bf16.msra.mxu0 0
      %2102 = vmatpush.bf16.msra.mxu0 0
      %2103 = vmatpush.bf16.msra.mxu0 %v2094
      %2104 = vmatmul.bf16.gmra.mxu0 %v2091
      %v2105 = vpop.f32.mrf.mxu0
      %v2106 = vadd.f32 0.0, %v2105
      %v2107 = vpop.f32.mrf.mxu0
      %2108 = vdwg.mxu0
      %2109 = vst [vmem:[#allocation1] ss:$4 sm:$0xff] %v127
      %v2110 = vld.sshfl [vmem:[#allocation1] sm:$0xff pattern:$0x73625140]
      %2112 = vrot.lane.b32.xlu0 %v2110, 40
      %v2113 = vpop.permute.xlu0 %2112
      %v2115 = vsel %vm408, %v1963, 0
      %v2118 = vsel %vm412, %v2113, 0
      %2120 = vmatpush.bf16.msra.mxu0 0
      %2121 = vmatpush.bf16.msra.mxu0 0
      %2122 = vmatpush.bf16.msra.mxu0 0
      %2123 = vmatpush.bf16.msra.mxu0 0
      %2124 = vmatpush.bf16.msra.mxu0 0
      %2125 = vmatpush.bf16.msra.mxu0 0
      %2126 = vmatpush.bf16.msra.mxu0 0
      %2127 = vmatpush.bf16.msra.mxu0 %v2118
      %2128 = vmatmul.bf16.gmra.mxu0 %v2115
      %v2129 = vpop.f32.mrf.mxu0
      %v2130 = vadd.f32 0.0, %v2129
      %v2131 = vpop.f32.mrf.mxu0
      %2132 = vdwg.mxu0
      %2133 = vst [vmem:[#allocation1] ss:$4 sm:$0xff] %v128
      %v2134 = vld.sshfl [vmem:[#allocation1] sm:$0xff pattern:$0x73625140]
      %2136 = vrot.lane.b32.xlu0 %v2134, 40
      %v2137 = vpop.permute.xlu0 %2136
      %v2139 = vsel %vm408, %v1964, 0
      %v2142 = vsel %vm412, %v2137, 0
      %2144 = vmatpush.bf16.msra.mxu0 0
      %2145 = vmatpush.bf16.msra.mxu0 0
      %2146 = vmatpush.bf16.msra.mxu0 0
      %2147 = vmatpush.bf16.msra.mxu0 0
      %2148 = vmatpush.bf16.msra.mxu0 0
      %2149 = vmatpush.bf16.msra.mxu0 0
      %2150 = vmatpush.bf16.msra.mxu0 0
      %2151 = vmatpush.bf16.msra.mxu0 %v2142
      %2152 = vmatmul.bf16.gmra.mxu0 %v2139
      %v2153 = vpop.f32.mrf.mxu0
      %v2154 = vadd.f32 0.0, %v2153
      %v2155 = vpop.f32.mrf.mxu0
      %2156 = vdwg.mxu0
      %v2157 = vrcp.pop %v1935
      %v2158 = vrcp.pop %v1938
      %v2159 = vrcp.pop %v1941
      %v2160 = vrcp.pop %v1944
      %v2161 = vrcp.pop %v1947
      %v2162 = vrcp.pop %v1950
      %v2163 = vrcp.pop %v1953
      %v2164 = vrcp.pop %v1956
      %v2165 = vmul.f32 %v1986, %v2157
      %v2166 = vmul.f32 %v2010, %v2158
      %v2167 = vmul.f32 %v2034, %v2159
      %v2168 = vmul.f32 %v2058, %v2160
      %v2169 = vmul.f32 %v2082, %v2161
      %v2170 = vmul.f32 %v2106, %v2162
      %v2171 = vmul.f32 %v2130, %v2163
      %v2172 = vmul.f32 %v2154, %v2164
      %2181 = vrot.lane.b32.xlu0 %v1125, 8
      %v2182 = vpop.permute.xlu0 %2181
      %2183 = vrot.lane.b32.xlu0 %v1126, 8
      %v2184 = vpop.permute.xlu0 %2183
      %2185 = vrot.lane.b32.xlu0 %v1127, 8
      %v2186 = vpop.permute.xlu0 %2185
      %2187 = vrot.lane.b32.xlu0 %v1128, 8
      %v2188 = vpop.permute.xlu0 %2187
      %2189 = vrot.lane.b32.xlu0 %v1129, 8
      %v2190 = vpop.permute.xlu0 %2189
      %2191 = vrot.lane.b32.xlu0 %v1130, 8
      %v2192 = vpop.permute.xlu0 %2191
      %2193 = vrot.lane.b32.xlu0 %v1131, 8
      %v2194 = vpop.permute.xlu0 %2193
      %2195 = vrot.lane.b32.xlu0 %v1132, 8
      %v2196 = vpop.permute.xlu0 %2195
      %2213 = vrot.lane.b32.xlu0 %v1645, 16
      %v2214 = vpop.permute.xlu0 %2213
      %2215 = vrot.lane.b32.xlu0 %v1646, 16
      %v2216 = vpop.permute.xlu0 %2215
      %2217 = vrot.lane.b32.xlu0 %v1647, 16
      %v2218 = vpop.permute.xlu0 %2217
      %2219 = vrot.lane.b32.xlu0 %v1648, 16
      %v2220 = vpop.permute.xlu0 %2219
      %2221 = vrot.lane.b32.xlu0 %v1649, 16
      %v2222 = vpop.permute.xlu0 %2221
      %2223 = vrot.lane.b32.xlu0 %v1650, 16
      %v2224 = vpop.permute.xlu0 %2223
      %2225 = vrot.lane.b32.xlu0 %v1651, 16
      %v2226 = vpop.permute.xlu0 %2225
      %2227 = vrot.lane.b32.xlu0 %v1652, 16
      %v2228 = vpop.permute.xlu0 %2227
      %2245 = vrot.lane.b32.xlu0 %v2165, 24
      %v2246 = vpop.permute.xlu0 %2245
      %2247 = vrot.lane.b32.xlu0 %v2166, 24
      %v2248 = vpop.permute.xlu0 %2247
      %2249 = vrot.lane.b32.xlu0 %v2167, 24
      %v2250 = vpop.permute.xlu0 %2249
      %2251 = vrot.lane.b32.xlu0 %v2168, 24
      %v2252 = vpop.permute.xlu0 %2251
      %2253 = vrot.lane.b32.xlu0 %v2169, 24
      %v2254 = vpop.permute.xlu0 %2253
      %2255 = vrot.lane.b32.xlu0 %v2170, 24
      %v2256 = vpop.permute.xlu0 %2255
      %2257 = vrot.lane.b32.xlu0 %v2171, 24
      %v2258 = vpop.permute.xlu0 %2257
      %2259 = vrot.lane.b32.xlu0 %v2172, 24
      %v2260 = vpop.permute.xlu0 %2259
      %v2269 = vsel %vm135, %v605, %v2182
      %v2270 = vsel %vm135, %v606, %v2184
      %v2271 = vsel %vm135, %v607, %v2186
      %v2272 = vsel %vm135, %v608, %v2188
      %v2273 = vsel %vm135, %v609, %v2190
      %v2274 = vsel %vm135, %v610, %v2192
      %v2275 = vsel %vm135, %v611, %v2194
      %v2276 = vsel %vm135, %v612, %v2196
      %vm2277 = vcmask 130048
      %v2278 = vsel %vm2277, %v2269, %v2214
      %v2279 = vsel %vm2277, %v2270, %v2216
      %v2280 = vsel %vm2277, %v2271, %v2218
      %v2281 = vsel %vm2277, %v2272, %v2220
      %v2282 = vsel %vm2277, %v2273, %v2222
      %v2283 = vsel %vm2277, %v2274, %v2224
      %v2284 = vsel %vm2277, %v2275, %v2226
      %v2285 = vsel %vm2277, %v2276, %v2228
      %vm2286 = vcmask 195584
      %v2287 = vsel %vm2286, %v2278, %v2246
      %v2288 = vsel %vm2286, %v2279, %v2248
      %v2289 = vsel %vm2286, %v2280, %v2250
      %v2290 = vsel %vm2286, %v2281, %v2252
      %v2291 = vsel %vm2286, %v2282, %v2254
      %v2292 = vsel %vm2286, %v2283, %v2256
      %v2293 = vsel %vm2286, %v2284, %v2258
      %v2294 = vsel %vm2286, %v2285, %v2260
      %v2295 = vpack.c.bf16 %v2287, %v2287
      %v2296 = vpack.c.bf16 %v2288, %v2288
      %v2297 = vpack.c.bf16 %v2289, %v2289
      %v2298 = vpack.c.bf16 %v2290, %v2290
      %v2299 = vpack.c.bf16 %v2291, %v2291
      %v2300 = vpack.c.bf16 %v2292, %v2292
      %v2301 = vpack.c.bf16 %v2293, %v2293
      %v2302 = vpack.c.bf16 %v2294, %v2294
      %vm2303 = vcmask 254976
      %2304 = vst.msk [vmem:[%s118] sm:$0x3] %vm2303, %v2295
      %2305 = vst.msk [vmem:[%s118 + $0x2] sm:$0x3] %vm2303, %v2296
      %2306 = vst.msk [vmem:[%s118 + $0x4] sm:$0x3] %vm2303, %v2297
      %2307 = vst.msk [vmem:[%s118 + $0x6] sm:$0x3] %vm2303, %v2298
      %2308 = vst.msk [vmem:[%s118 + $0x8] sm:$0x3] %vm2303, %v2299
      %2309 = vst.msk [vmem:[%s118 + $0xa] sm:$0x3] %vm2303, %v2300
      %2310 = vst.msk [vmem:[%s118 + $0xc] sm:$0x3] %vm2303, %v2301
      %2311 = vst.msk [vmem:[%s118 + $0xe] sm:$0x3] %vm2303, %v2302
      %s2312 = smul.u32 8, %s12
      %p2313 = scmp.lt.s32.totalorder %s2312, 15
      %s2314 = scalar_select %p2313, %s2312, 15
      %s2315 = smul.addr %s2314, 2
      %s2316 = scalar_lea.vmem %s1, %s2315
      // Predicated region
      $region25: #{transformer_forward.17} parent=23 // pred_check
        %p2317 = pneg %p56
      $region26: #{transformer_forward.17} parent=23 // pred_check_branch
        %2319 = sbr.rel (%p2317) target = $region28
      $region27: #{transformer_forward.17} parent=23 // pred_region
        %s2320 = smul.u32 8, %s12
      $region28: #{transformer_forward.17} parent=23 // pred_fallthru
        _
    $region24: #{transformer_forward.17} parent=5 // pred_fallthru
      _
    %p2321 = scmp.le.s32.totalorder 2, %s7
    // Predicated region
    $region29: #{transformer_forward.17} parent=5 // pred_check
      %p2322 = pneg %p2321
    $region30: #{transformer_forward.17} parent=5 // pred_check_branch
      %2324 = sbr.rel (%p2322) target = $region32
    $region31: #{transformer_forward.17} parent=5 // pred_region
      %s2325 = ssub.s32 %s7, 2
      // Predicated region
      $region33: #{transformer_forward.17} parent=31 // pred_check
        %p2326 = pneg %p62
      $region34: #{transformer_forward.17} parent=31 // pred_check_branch
        %2328 = sbr.rel (%p2326) target = $region36
      $region35: #{transformer_forward.17} parent=31 // pred_region
        %s2329 = smul.u32 8, %s13
        %p2330 = scmp.lt.s32.totalorder %s2329, 15
        %s2331 = scalar_select %p2330, %s2329, 15
        %s2332 = smul.addr %s2331, 2
        %s2333 = scalar_lea.vmem %s1, %s2332
      $region36: #{transformer_forward.17} parent=31 // pred_fallthru
        _
    $region32: #{transformer_forward.17} parent=5 // pred_fallthru
      _
  $region6: #{transformer_forward.17} parent=0 // loop_footer
    %s11 = sadd.s32 1, %s7
  $region7: #{transformer_forward.17} parent=0 // loop_footer_branch
    %6 = sbr.rel target = $region3
  $region8: #{transformer_forward.17} parent=0 // loop_exit
    _

// kernel: transformer_forward.21
$region0: #{transformer_forward.21}
  #allocation0 [shape = 'u32[]', space=smem, size = 0x4, offset = 0x4, fixed_abs, tag = 'smem constant byte address 0x4 - core index']
  #allocation1 [shape = 'u32[72,128]{1,0:T(1,128)}', space=vmem, size = 0x9000, scoped, tag = 'internal scratch']
  #allocation2 [shape = 'f32[64,32]{1,0:T(8,128)}', space=vmem, size = 0x8000, scoped, tag = 'scratch operand']
  %s0 = inlined_call_operand.vmem [shape: bf16[64,32], index: 0, kind: input, shape index: {}]
  %s1 = inlined_call_operand.hbm [shape: bf16[32,32], index: 1, kind: input, shape index: {}]
  %s2 = inlined_call_operand.hbm [shape: f32[1,32], index: 2, kind: input, shape index: {}]
  %s3 = inlined_call_operand.vmem [shape: f32[64,32], index: 3, kind: input, shape index: {}]
  %s4 = inlined_call_operand.vmem [shape: f32[64,32], index: 4, kind: output, shape index: {}]
  %s5 = sld [smem:[#allocation0]]
  $region42: #{transformer_forward.21} parent=0
    _
  %s7 = ssub.s32 1, %s5
  %s8 = scalar_select 0, %s7, %s5
  $region1: #{transformer_forward.21} parent=0
    #allocation3 [shape = 'u8[8192]{0}', space=vmem, size = 0x2000, scoped, tag = 'input window, operand 1, single buffered']
    #allocation4 [shape = 's32[1]{0}', space=sflag, size = 0x4, scoped, tag = 'scoped memory for transformer_forward.21']
    #allocation5 [shape = 'u8[512]{0}', space=vmem, size = 0x400, scoped, tag = 'input window, operand 2, single buffered']
    #allocation6 [shape = 's32[1]{0}', space=sflag, size = 0x4, scoped, tag = 'scoped memory for transformer_forward.21']
    %9 = vsyncpa [#allocation4], 0
    %10 = vsyncpa [#allocation6], 0
    // Predicated region
    $region2: #{transformer_forward.21} parent=1 // pred_check
      _
    $region3: #{transformer_forward.21} parent=1 // pred_check_branch
      %12 = sbr.rel (0) target = $region5
    $region4: #{transformer_forward.21} parent=1 // pred_region
      _
    $region5: #{transformer_forward.21} parent=1 // pred_fallthru
      _
    // Predicated region
    $region6: #{transformer_forward.21} parent=1 // pred_check
      _
    $region7: #{transformer_forward.21} parent=1 // pred_check_branch
      %14 = sbr.rel (0) target = $region9
    $region8: #{transformer_forward.21} parent=1 // pred_region
      %16 = vsyncadd [#allocation4], 0
      %s17 = sshll.u32 %s1, 4
      %s18 = int_to_ptr.hbm [resolvable:$true] %s17
      %s19 = sshll.u32 [#allocation3], 4
      %s20 = int_to_ptr.vmem [resolvable:$true] %s19
      %25 = dma.hbm_to_vmem [thread:$0]  %s18, 256, %s20, [#allocation4], 64, 64, 4
    $region9: #{transformer_forward.21} parent=1 // pred_fallthru
      _
    // Predicated region
    $region10: #{transformer_forward.21} parent=1 // pred_check
      _
    $region11: #{transformer_forward.21} parent=1 // pred_check_branch
      %27 = sbr.rel (0) target = $region13
    $region12: #{transformer_forward.21} parent=1 // pred_region
      %29 = vsyncadd [#allocation6], 0
      %s31 = sshll.u32 %s2, 4
      %s32 = int_to_ptr.hbm [resolvable:$true] %s31
      %s33 = sshll.u32 [#allocation5], 4
      %s34 = int_to_ptr.vmem [resolvable:$true] %s33
      %36 = dma.hbm_to_vmem [thread:$0]  %s32, 16, %s34, [#allocation6]
    $region13: #{transformer_forward.21} parent=1 // pred_fallthru
      _
    // Predicated region
    $region14: #{transformer_forward.21} parent=1 // pred_check
      _
    $region15: #{transformer_forward.21} parent=1 // pred_check_branch
      %38 = sbr.rel (0) target = $region17
    $region16: #{transformer_forward.21} parent=1 // pred_region
      _
    $region17: #{transformer_forward.21} parent=1 // pred_fallthru
      _
    // Predicated region
    $region18: #{transformer_forward.21} parent=1 // pred_check
      _
    $region19: #{transformer_forward.21} parent=1 // pred_check_branch
      %40 = sbr.rel (0) target = $region21
    $region20: #{transformer_forward.21} parent=1 // pred_region
      %42 = dma.done [#allocation4], 256
    $region21: #{transformer_forward.21} parent=1 // pred_fallthru
      _
    // Predicated region
    $region22: #{transformer_forward.21} parent=1 // pred_check
      _
    $region23: #{transformer_forward.21} parent=1 // pred_check_branch
      %44 = sbr.rel (0) target = $region25
    $region24: #{transformer_forward.21} parent=1 // pred_region
      %46 = dma.done [#allocation6], 16
    $region25: #{transformer_forward.21} parent=1 // pred_fallthru
      _
    %p48 = scmp.eq.s32.totalorder 0, 0
    // Predicated region
    $region26: #{transformer_forward.21} parent=1 // pred_check
      %p49 = pneg %p48
    $region27: #{transformer_forward.21} parent=1 // pred_check_branch
      %51 = sbr.rel (%p49) target = $region29
    $region28: #{transformer_forward.21} parent=1 // pred_region
      %vm52 = vcmask 261120
      %53 = vst.msk [vmem:[#allocation2] sm:$0xff] %vm52, 0.0
      %54 = vst.msk [vmem:[#allocation2 + $0x8] sm:$0xff] %vm52, 0.0
      %55 = vst.msk [vmem:[#allocation2 + $0x10] sm:$0xff] %vm52, 0.0
      %56 = vst.msk [vmem:[#allocation2 + $0x18] sm:$0xff] %vm52, 0.0
      %57 = vst.msk [vmem:[#allocation2 + $0x20] sm:$0xff] %vm52, 0.0
      %58 = vst.msk [vmem:[#allocation2 + $0x28] sm:$0xff] %vm52, 0.0
      %59 = vst.msk [vmem:[#allocation2 + $0x30] sm:$0xff] %vm52, 0.0
      %60 = vst.msk [vmem:[#allocation2 + $0x38] sm:$0xff] %vm52, 0.0
    $region29: #{transformer_forward.21} parent=1 // pred_fallthru
      _
    %v61 = vld [vmem:[#allocation2] sm:$0xff]
    %v62 = vld [vmem:[#allocation2 + $0x8] sm:$0xff]
    %v63 = vld [vmem:[#allocation2 + $0x10] sm:$0xff]
    %v64 = vld [vmem:[#allocation2 + $0x18] sm:$0xff]
    %v65 = vld [vmem:[#allocation2 + $0x20] sm:$0xff]
    %v66 = vld [vmem:[#allocation2 + $0x28] sm:$0xff]
    %v67 = vld [vmem:[#allocation2 + $0x30] sm:$0xff]
    %v68 = vld [vmem:[#allocation2 + $0x38] sm:$0xff]
    %v69 = vld [vmem:[%s0] sm:$0xf]
    %v70 = vld [vmem:[%s0 + $0x4] sm:$0xf]
    %v71 = vld [vmem:[%s0 + $0x8] sm:$0xf]
    %v72 = vld [vmem:[%s0 + $0xc] sm:$0xf]
    %v73 = vld [vmem:[%s0 + $0x10] sm:$0xf]
    %v74 = vld [vmem:[%s0 + $0x14] sm:$0xf]
    %v75 = vld [vmem:[%s0 + $0x18] sm:$0xf]
    %v76 = vld [vmem:[%s0 + $0x1c] sm:$0xf]
    %v77 = vld [vmem:[#allocation3] sm:$0xf]
    %v78 = vld [vmem:[#allocation3 + $0x4] sm:$0xf]
    %v79 = vld [vmem:[#allocation3 + $0x8] sm:$0xf]
    %v80 = vld [vmem:[#allocation3 + $0xc] sm:$0xf]
    %v89 = vunpack.c.l.b16 %v69
    %v90 = vunpack.c.l.b16 %v70
    %v91 = vunpack.c.l.b16 %v71
    %v92 = vunpack.c.l.b16 %v72
    %v93 = vunpack.c.l.b16 %v73
    %v94 = vunpack.c.l.b16 %v74
    %v95 = vunpack.c.l.b16 %v75
    %v96 = vunpack.c.l.b16 %v76
    %v97 = vpack.c.b16 %v90, %v89
    %v98 = vpack.c.b16 %v92, %v91
    %v99 = vpack.c.b16 %v94, %v93
    %v100 = vpack.c.b16 %v96, %v95
    %v105 = vunpack.c.l.b16 %v77
    %v106 = vunpack.c.l.b16 %v78
    %v107 = vunpack.c.l.b16 %v79
    %v108 = vunpack.c.l.b16 %v80
    %v109 = vpack.c.b16 %v106, %v105
    %v110 = vpack.c.b16 %v108, %v107
    %vm113 = vcmask 261120
    %v115 = vsel %vm113, %v97, 0
    %v118 = vsel %vm113, %v98, 0
    %v121 = vsel %vm113, %v99, 0
    %v124 = vsel %vm113, %v100, 0
    %126 = vmatpush.bf16.msra.mxu0 0
    %127 = vmatpush.bf16.msra.mxu0 0
    %128 = vmatpush.bf16.msra.mxu0 0
    %129 = vmatpush.bf16.msra.mxu0 0
    %130 = vmatpush.bf16.msra.mxu0 0
    %131 = vmatpush.bf16.msra.mxu0 0
    %132 = vmatpush.bf16.msra.mxu0 %v110
    %133 = vmatpush.bf16.msra.mxu0 %v109
    %134 = vmatmul.bf16.gmra.mxu0 %v115
    %v135 = vpop.f32.mrf.mxu0
    %v136 = vadd.f32 0.0, %v135
    %v137 = vpop.f32.mrf.mxu0
    %v138 = vadd.f32 0.0, %v137
    %139 = vmatmul.bf16.gmra.mxu0 %v118
    %v140 = vpop.f32.mrf.mxu0
    %v141 = vadd.f32 0.0, %v140
    %v142 = vpop.f32.mrf.mxu0
    %v143 = vadd.f32 0.0, %v142
    %144 = vmatmul.bf16.gmra.mxu0 %v121
    %v145 = vpop.f32.mrf.mxu0
    %v146 = vadd.f32 0.0, %v145
    %v147 = vpop.f32.mrf.mxu0
    %v148 = vadd.f32 0.0, %v147
    %149 = vmatmul.bf16.gmra.mxu0 %v124
    %v150 = vpop.f32.mrf.mxu0
    %v151 = vadd.f32 0.0, %v150
    %v152 = vpop.f32.mrf.mxu0
    %v153 = vadd.f32 0.0, %v152
    %154 = vdwg.mxu0
    %v155 = vadd.f32 %v61, %v136
    %v156 = vadd.f32 %v62, %v138
    %v157 = vadd.f32 %v63, %v141
    %v158 = vadd.f32 %v64, %v143
    %v159 = vadd.f32 %v65, %v146
    %v160 = vadd.f32 %v66, %v148
    %v161 = vadd.f32 %v67, %v151
    %v162 = vadd.f32 %v68, %v153
    %163 = vst.msk [vmem:[#allocation2] sm:$0xff] %vm113, %v155
    %164 = vst.msk [vmem:[#allocation2 + $0x8] sm:$0xff] %vm113, %v156
    %165 = vst.msk [vmem:[#allocation2 + $0x10] sm:$0xff] %vm113, %v157
    %166 = vst.msk [vmem:[#allocation2 + $0x18] sm:$0xff] %vm113, %v158
    %167 = vst.msk [vmem:[#allocation2 + $0x20] sm:$0xff] %vm113, %v159
    %168 = vst.msk [vmem:[#allocation2 + $0x28] sm:$0xff] %vm113, %v160
    %169 = vst.msk [vmem:[#allocation2 + $0x30] sm:$0xff] %vm113, %v161
    %170 = vst.msk [vmem:[#allocation2 + $0x38] sm:$0xff] %vm113, %v162
    // Predicated region
    $region30: #{transformer_forward.21} parent=1 // pred_check
      %p171 = pneg %p48
    $region31: #{transformer_forward.21} parent=1 // pred_check_branch
      %173 = sbr.rel (%p171) target = $region33
    $region32: #{transformer_forward.21} parent=1 // pred_region
      %v174 = vld [vmem:[#allocation2] sm:$0xff]
      %v175 = vld [vmem:[#allocation2 + $0x8] sm:$0xff]
      %v176 = vld [vmem:[#allocation2 + $0x10] sm:$0xff]
      %v177 = vld [vmem:[#allocation2 + $0x18] sm:$0xff]
      %v178 = vld [vmem:[#allocation2 + $0x20] sm:$0xff]
      %v179 = vld [vmem:[#allocation2 + $0x28] sm:$0xff]
      %v180 = vld [vmem:[#allocation2 + $0x30] sm:$0xff]
      %v181 = vld [vmem:[#allocation2 + $0x38] sm:$0xff]
      %v182 = vld [vmem:[#allocation5] sm:$0x1]
      %v184 = vperm.slane %v182, 0
      %v186 = vadd.f32 %v174, %v184
      %v187 = vadd.f32 %v175, %v184
      %v188 = vadd.f32 %v176, %v184
      %v189 = vadd.f32 %v177, %v184
      %v190 = vadd.f32 %v178, %v184
      %v191 = vadd.f32 %v179, %v184
      %v192 = vadd.f32 %v180, %v184
      %v193 = vadd.f32 %v181, %v184
      %v194 = vld [vmem:[%s3] sm:$0xff]
      %v195 = vld [vmem:[%s3 + $0x8] sm:$0xff]
      %v196 = vld [vmem:[%s3 + $0x10] sm:$0xff]
      %v197 = vld [vmem:[%s3 + $0x18] sm:$0xff]
      %v198 = vld [vmem:[%s3 + $0x20] sm:$0xff]
      %v199 = vld [vmem:[%s3 + $0x28] sm:$0xff]
      %v200 = vld [vmem:[%s3 + $0x30] sm:$0xff]
      %v201 = vld [vmem:[%s3 + $0x38] sm:$0xff]
      %v202 = vadd.f32 %v186, %v194
      %v203 = vadd.f32 %v187, %v195
      %v204 = vadd.f32 %v188, %v196
      %v205 = vadd.f32 %v189, %v197
      %v206 = vadd.f32 %v190, %v198
      %v207 = vadd.f32 %v191, %v199
      %v208 = vadd.f32 %v192, %v200
      %v209 = vadd.f32 %v193, %v201
      %210 = vst.msk [vmem:[%s4] sm:$0xff] %vm113, %v202
      %211 = vst.msk [vmem:[%s4 + $0x8] sm:$0xff] %vm113, %v203
      %212 = vst.msk [vmem:[%s4 + $0x10] sm:$0xff] %vm113, %v204
      %213 = vst.msk [vmem:[%s4 + $0x18] sm:$0xff] %vm113, %v205
      %214 = vst.msk [vmem:[%s4 + $0x20] sm:$0xff] %vm113, %v206
      %215 = vst.msk [vmem:[%s4 + $0x28] sm:$0xff] %vm113, %v207
      %216 = vst.msk [vmem:[%s4 + $0x30] sm:$0xff] %vm113, %v208
      %217 = vst.msk [vmem:[%s4 + $0x38] sm:$0xff] %vm113, %v209
    $region33: #{transformer_forward.21} parent=1 // pred_fallthru
      _
    // Predicated region
    $region34: #{transformer_forward.21} parent=1 // pred_check
      _
    $region35: #{transformer_forward.21} parent=1 // pred_check_branch
      %219 = sbr.rel (0) target = $region37
    $region36: #{transformer_forward.21} parent=1 // pred_region
      _
    $region37: #{transformer_forward.21} parent=1 // pred_fallthru
      _
    // Predicated region
    $region38: #{transformer_forward.21} parent=1 // pred_check
      _
    $region39: #{transformer_forward.21} parent=1 // pred_check_branch
      %221 = sbr.rel (0) target = $region41
    $region40: #{transformer_forward.21} parent=1 // pred_region
      _
    $region41: #{transformer_forward.21} parent=1 // pred_fallthru
      _
    %222 = vsyncpa [#allocation4], 1
    %223 = vsyncpa [#allocation6], 1

// kernel: transformer_forward.22
$region0: #{transformer_forward.22}
  #allocation0 [shape = 'u32[]', space=smem, size = 0x4, offset = 0x4, fixed_abs, tag = 'smem constant byte address 0x4 - core index']
  #allocation1 [shape = 'u32[72,128]{1,0:T(1,128)}', space=vmem, size = 0x9000, scoped, tag = 'internal scratch']
  #allocation2 [shape = 'bf16[64,32]{1,0:T(8,128)(2,1)}', space=vmem, size = 0x4000, scoped, tag = 'scratch operand']
  %s0 = inlined_call_operand.vmem [shape: f32[64,32], index: 0, kind: input, shape index: {}]
  %s1 = inlined_call_operand.hbm [shape: f32[1,32], index: 1, kind: input, shape index: {}]
  %s2 = inlined_call_operand.hbm [shape: f32[1,32], index: 2, kind: input, shape index: {}]
  %s3 = inlined_call_operand.hbm [shape: bf16[32,128], index: 3, kind: input, shape index: {}]
  %s4 = inlined_call_operand.hbm [shape: f32[1,128], index: 4, kind: input, shape index: {}]
  %s5 = inlined_call_operand.vmem [shape: bf16[64,128], index: 5, kind: output, shape index: {}]
  %s6 = sld [smem:[#allocation0]]
  $region50: #{transformer_forward.22} parent=0
    _
  %s8 = ssub.s32 1, %s6
  %s9 = scalar_select 0, %s8, %s6
  $region1: #{transformer_forward.22} parent=0
    #allocation3 [shape = 'u8[512]{0}', space=vmem, size = 0x400, scoped, tag = 'input window, operand 1, single buffered']
    #allocation4 [shape = 's32[1]{0}', space=sflag, size = 0x4, scoped, tag = 'scoped memory for transformer_forward.22']
    #allocation5 [shape = 'u8[512]{0}', space=vmem, size = 0x400, scoped, tag = 'input window, operand 2, single buffered']
    #allocation6 [shape = 's32[1]{0}', space=sflag, size = 0x4, scoped, tag = 'scoped memory for transformer_forward.22']
    #allocation7 [shape = 'u8[8192]{0}', space=vmem, size = 0x2000, scoped, tag = 'input window, operand 3, single buffered']
    #allocation8 [shape = 'u8[512]{0}', space=vmem, size = 0x400, scoped, tag = 'input window, operand 4, single buffered']
    #allocation9 [shape = 's32[1]{0}', space=sflag, size = 0x4, scoped, tag = 'scoped memory for transformer_forward.22']
    %10 = vsyncpa [#allocation4], 0
    %11 = vsyncpa [#allocation6], 0
    %12 = vsyncpa [#allocation9], 0
    // Predicated region
    $region2: #{transformer_forward.22} parent=1 // pred_check
      _
    $region3: #{transformer_forward.22} parent=1 // pred_check_branch
      %14 = sbr.rel (0) target = $region5
    $region4: #{transformer_forward.22} parent=1 // pred_region
      _
    $region5: #{transformer_forward.22} parent=1 // pred_fallthru
      _
    // Predicated region
    $region6: #{transformer_forward.22} parent=1 // pred_check
      _
    $region7: #{transformer_forward.22} parent=1 // pred_check_branch
      %16 = sbr.rel (0) target = $region9
    $region8: #{transformer_forward.22} parent=1 // pred_region
      %18 = vsyncadd [#allocation4], 0
      %s20 = sshll.u32 %s1, 4
      %s21 = int_to_ptr.hbm [resolvable:$true] %s20
      %s22 = sshll.u32 [#allocation3], 4
      %s23 = int_to_ptr.vmem [resolvable:$true] %s22
      %25 = dma.hbm_to_vmem [thread:$0]  %s21, 16, %s23, [#allocation4]
    $region9: #{transformer_forward.22} parent=1 // pred_fallthru
      _
    // Predicated region
    $region10: #{transformer_forward.22} parent=1 // pred_check
      _
    $region11: #{transformer_forward.22} parent=1 // pred_check_branch
      %27 = sbr.rel (0) target = $region13
    $region12: #{transformer_forward.22} parent=1 // pred_region
      %29 = vsyncadd [#allocation6], 0
      %s31 = sshll.u32 %s2, 4
      %s32 = int_to_ptr.hbm [resolvable:$true] %s31
      %s33 = sshll.u32 [#allocation5], 4
      %s34 = int_to_ptr.vmem [resolvable:$true] %s33
      %36 = dma.hbm_to_vmem [thread:$0]  %s32, 16, %s34, [#allocation6]
    $region13: #{transformer_forward.22} parent=1 // pred_fallthru
      _
    // Predicated region
    $region14: #{transformer_forward.22} parent=1 // pred_check
      _
    $region15: #{transformer_forward.22} parent=1 // pred_check_branch
      %38 = sbr.rel (0) target = $region17
    $region16: #{transformer_forward.22} parent=1 // pred_region
      %40 = vsyncadd [#allocation6], 0
      %s41 = sshll.u32 %s3, 4
      %s42 = int_to_ptr.hbm [resolvable:$true] %s41
      %s43 = sshll.u32 [#allocation7], 4
      %s44 = int_to_ptr.vmem [resolvable:$true] %s43
      %49 = dma.hbm_to_vmem [thread:$0]  %s42, 256, %s44, [#allocation6], 64, 64, 4
    $region17: #{transformer_forward.22} parent=1 // pred_fallthru
      _
    // Predicated region
    $region18: #{transformer_forward.22} parent=1 // pred_check
      _
    $region19: #{transformer_forward.22} parent=1 // pred_check_branch
      %51 = sbr.rel (0) target = $region21
    $region20: #{transformer_forward.22} parent=1 // pred_region
      %53 = vsyncadd [#allocation9], 0
      %s55 = sshll.u32 %s4, 4
      %s56 = int_to_ptr.hbm [resolvable:$true] %s55
      %s57 = sshll.u32 [#allocation8], 4
      %s58 = int_to_ptr.vmem [resolvable:$true] %s57
      %60 = dma.hbm_to_vmem [thread:$0]  %s56, 16, %s58, [#allocation9]
    $region21: #{transformer_forward.22} parent=1 // pred_fallthru
      _
    // Predicated region
    $region22: #{transformer_forward.22} parent=1 // pred_check
      _
    $region23: #{transformer_forward.22} parent=1 // pred_check_branch
      %62 = sbr.rel (0) target = $region25
    $region24: #{transformer_forward.22} parent=1 // pred_region
      %64 = dma.done [#allocation4], 16
    $region25: #{transformer_forward.22} parent=1 // pred_fallthru
      _
    // Predicated region
    $region26: #{transformer_forward.22} parent=1 // pred_check
      _
    $region27: #{transformer_forward.22} parent=1 // pred_check_branch
      %66 = sbr.rel (0) target = $region29
    $region28: #{transformer_forward.22} parent=1 // pred_region
      %68 = dma.done [#allocation6], 16
    $region29: #{transformer_forward.22} parent=1 // pred_fallthru
      _
    // Predicated region
    $region30: #{transformer_forward.22} parent=1 // pred_check
      _
    $region31: #{transformer_forward.22} parent=1 // pred_check_branch
      %70 = sbr.rel (0) target = $region33
    $region32: #{transformer_forward.22} parent=1 // pred_region
      %72 = dma.done [#allocation6], 256
    $region33: #{transformer_forward.22} parent=1 // pred_fallthru
      _
    // Predicated region
    $region34: #{transformer_forward.22} parent=1 // pred_check
      _
    $region35: #{transformer_forward.22} parent=1 // pred_check_branch
      %74 = sbr.rel (0) target = $region37
    $region36: #{transformer_forward.22} parent=1 // pred_region
      %76 = dma.done [#allocation9], 16
    $region37: #{transformer_forward.22} parent=1 // pred_fallthru
      _
    %p78 = scmp.eq.s32.totalorder 0, 0
    // Predicated region
    $region38: #{transformer_forward.22} parent=1 // pred_check
      %p79 = pneg %p78
    $region39: #{transformer_forward.22} parent=1 // pred_check_branch
      %81 = sbr.rel (%p79) target = $region41
    $region40: #{transformer_forward.22} parent=1 // pred_region
      %v82 = vld [vmem:[%s0] sm:$0xff]
      %v83 = vld [vmem:[%s0 + $0x8] sm:$0xff]
      %v84 = vld [vmem:[%s0 + $0x10] sm:$0xff]
      %v85 = vld [vmem:[%s0 + $0x18] sm:$0xff]
      %v86 = vld [vmem:[%s0 + $0x20] sm:$0xff]
      %v87 = vld [vmem:[%s0 + $0x28] sm:$0xff]
      %v88 = vld [vmem:[%s0 + $0x30] sm:$0xff]
      %v89 = vld [vmem:[%s0 + $0x38] sm:$0xff]
      %vm90 = vcmask 261120
      %v91 = vsel %vm90, %v82, 0.0
      %92 = vadd.xlane.f32.xlu0 %v91
      %v93 = vpop.xlane.xlu0 %92
      %v94 = vsel %vm90, %v83, 0.0
      %95 = vadd.xlane.f32.xlu0 %v94
      %v96 = vpop.xlane.xlu0 %95
      %v97 = vsel %vm90, %v84, 0.0
      %98 = vadd.xlane.f32.xlu0 %v97
      %v99 = vpop.xlane.xlu0 %98
      %v100 = vsel %vm90, %v85, 0.0
      %101 = vadd.xlane.f32.xlu0 %v100
      %v102 = vpop.xlane.xlu0 %101
      %v103 = vsel %vm90, %v86, 0.0
      %104 = vadd.xlane.f32.xlu0 %v103
      %v105 = vpop.xlane.xlu0 %104
      %v106 = vsel %vm90, %v87, 0.0
      %107 = vadd.xlane.f32.xlu0 %v106
      %v108 = vpop.xlane.xlu0 %107
      %v109 = vsel %vm90, %v88, 0.0
      %110 = vadd.xlane.f32.xlu0 %v109
      %v111 = vpop.xlane.xlu0 %110
      %v112 = vsel %vm90, %v89, 0.0
      %113 = vadd.xlane.f32.xlu0 %v112
      %v114 = vpop.xlane.xlu0 %113
      %v115 = vrcp.pop 32.0
      %v116 = vmul.f32 32.0, %v115
      %v117 = vsub.f32 1.0, %v116
      %v118 = vmul.f32 %v115, %v117
      %v119 = vadd.f32 %v115, %v118
      %vm120 = vweird.f32 %v115
      %v121 = vsel %vm120, %v115, %v119
      %v122 = vmul.f32 %v93, %v121
      %v123 = vmul.f32 %v96, %v121
      %v124 = vmul.f32 %v99, %v121
      %v125 = vmul.f32 %v102, %v121
      %v126 = vmul.f32 %v105, %v121
      %v127 = vmul.f32 %v108, %v121
      %v128 = vmul.f32 %v111, %v121
      %v129 = vmul.f32 %v114, %v121
      %v130 = vsub.f32 %v82, %v122
      %v131 = vsub.f32 %v83, %v123
      %v132 = vsub.f32 %v84, %v124
      %v133 = vsub.f32 %v85, %v125
      %v134 = vsub.f32 %v86, %v126
      %v135 = vsub.f32 %v87, %v127
      %v136 = vsub.f32 %v88, %v128
      %v137 = vsub.f32 %v89, %v129
      %v138 = vmul.f32 %v130, %v130
      %v139 = vmul.f32 %v131, %v131
      %v140 = vmul.f32 %v132, %v132
      %v141 = vmul.f32 %v133, %v133
      %v142 = vmul.f32 %v134, %v134
      %v143 = vmul.f32 %v135, %v135
      %v144 = vmul.f32 %v136, %v136
      %v145 = vmul.f32 %v137, %v137
      %v146 = vsel %vm90, %v138, 0.0
      %147 = vadd.xlane.f32.xlu0 %v146
      %v148 = vpop.xlane.xlu0 %147
      %v149 = vsel %vm90, %v139, 0.0
      %150 = vadd.xlane.f32.xlu0 %v149
      %v151 = vpop.xlane.xlu0 %150
      %v152 = vsel %vm90, %v140, 0.0
      %153 = vadd.xlane.f32.xlu0 %v152
      %v154 = vpop.xlane.xlu0 %153
      %v155 = vsel %vm90, %v141, 0.0
      %156 = vadd.xlane.f32.xlu0 %v155
      %v157 = vpop.xlane.xlu0 %156
      %v158 = vsel %vm90, %v142, 0.0
      %159 = vadd.xlane.f32.xlu0 %v158
      %v160 = vpop.xlane.xlu0 %159
      %v161 = vsel %vm90, %v143, 0.0
      %162 = vadd.xlane.f32.xlu0 %v161
      %v163 = vpop.xlane.xlu0 %162
      %v164 = vsel %vm90, %v144, 0.0
      %165 = vadd.xlane.f32.xlu0 %v164
      %v166 = vpop.xlane.xlu0 %165
      %v167 = vsel %vm90, %v145, 0.0
      %168 = vadd.xlane.f32.xlu0 %v167
      %v169 = vpop.xlane.xlu0 %168
      %v170 = vmul.f32 %v148, %v121
      %v171 = vmul.f32 %v151, %v121
      %v172 = vmul.f32 %v154, %v121
      %v173 = vmul.f32 %v157, %v121
      %v174 = vmul.f32 %v160, %v121
      %v175 = vmul.f32 %v163, %v121
      %v176 = vmul.f32 %v166, %v121
      %v177 = vmul.f32 %v169, %v121
      %v178 = vadd.f32 %v170, 1e-05
      %v179 = vadd.f32 %v171, 1e-05
      %v180 = vadd.f32 %v172, 1e-05
      %v181 = vadd.f32 %v173, 1e-05
      %v182 = vadd.f32 %v174, 1e-05
      %v183 = vadd.f32 %v175, 1e-05
      %v184 = vadd.f32 %v176, 1e-05
      %v185 = vadd.f32 %v177, 1e-05
      %v186 = vrsqrt.pop %v178
      %v187 = vmul.f32 %v186, %v178
      %v188 = vmul.f32 %v187, %v186
      %v189 = vmul.f32 0.5, %v188
      %v190 = vsub.f32 1.5, %v189
      %v191 = vmul.f32 %v186, %v190
      %vm192 = vweird.f32 %v178
      %vm193 = vweird.f32 %v186
      %vm194 = vmor %vm192, %vm193
      %v195 = vsel %vm194, %v186, %v191
      %v196 = vrsqrt.pop %v179
      %v197 = vmul.f32 %v196, %v179
      %v198 = vmul.f32 %v197, %v196
      %v199 = vmul.f32 0.5, %v198
      %v200 = vsub.f32 1.5, %v199
      %v201 = vmul.f32 %v196, %v200
      %vm202 = vweird.f32 %v179
      %vm203 = vweird.f32 %v196
      %vm204 = vmor %vm202, %vm203
      %v205 = vsel %vm204, %v196, %v201
      %v206 = vrsqrt.pop %v180
      %v207 = vmul.f32 %v206, %v180
      %v208 = vmul.f32 %v207, %v206
      %v209 = vmul.f32 0.5, %v208
      %v210 = vsub.f32 1.5, %v209
      %v211 = vmul.f32 %v206, %v210
      %vm212 = vweird.f32 %v180
      %vm213 = vweird.f32 %v206
      %vm214 = vmor %vm212, %vm213
      %v215 = vsel %vm214, %v206, %v211
      %v216 = vrsqrt.pop %v181
      %v217 = vmul.f32 %v216, %v181
      %v218 = vmul.f32 %v217, %v216
      %v219 = vmul.f32 0.5, %v218
      %v220 = vsub.f32 1.5, %v219
      %v221 = vmul.f32 %v216, %v220
      %vm222 = vweird.f32 %v181
      %vm223 = vweird.f32 %v216
      %vm224 = vmor %vm222, %vm223
      %v225 = vsel %vm224, %v216, %v221
      %v226 = vrsqrt.pop %v182
      %v227 = vmul.f32 %v226, %v182
      %v228 = vmul.f32 %v227, %v226
      %v229 = vmul.f32 0.5, %v228
      %v230 = vsub.f32 1.5, %v229
      %v231 = vmul.f32 %v226, %v230
      %vm232 = vweird.f32 %v182
      %vm233 = vweird.f32 %v226
      %vm234 = vmor %vm232, %vm233
      %v235 = vsel %vm234, %v226, %v231
      %v236 = vrsqrt.pop %v183
      %v237 = vmul.f32 %v236, %v183
      %v238 = vmul.f32 %v237, %v236
      %v239 = vmul.f32 0.5, %v238
      %v240 = vsub.f32 1.5, %v239
      %v241 = vmul.f32 %v236, %v240
      %vm242 = vweird.f32 %v183
      %vm243 = vweird.f32 %v236
      %vm244 = vmor %vm242, %vm243
      %v245 = vsel %vm244, %v236, %v241
      %v246 = vrsqrt.pop %v184
      %v247 = vmul.f32 %v246, %v184
      %v248 = vmul.f32 %v247, %v246
      %v249 = vmul.f32 0.5, %v248
      %v250 = vsub.f32 1.5, %v249
      %v251 = vmul.f32 %v246, %v250
      %vm252 = vweird.f32 %v184
      %vm253 = vweird.f32 %v246
      %vm254 = vmor %vm252, %vm253
      %v255 = vsel %vm254, %v246, %v251
      %v256 = vrsqrt.pop %v185
      %v257 = vmul.f32 %v256, %v185
      %v258 = vmul.f32 %v257, %v256
      %v259 = vmul.f32 0.5, %v258
      %v260 = vsub.f32 1.5, %v259
      %v261 = vmul.f32 %v256, %v260
      %vm262 = vweird.f32 %v185
      %vm263 = vweird.f32 %v256
      %vm264 = vmor %vm262, %vm263
      %v265 = vsel %vm264, %v256, %v261
      %v266 = vmul.f32 %v130, %v195
      %v267 = vmul.f32 %v131, %v205
      %v268 = vmul.f32 %v132, %v215
      %v269 = vmul.f32 %v133, %v225
      %v270 = vmul.f32 %v134, %v235
      %v271 = vmul.f32 %v135, %v245
      %v272 = vmul.f32 %v136, %v255
      %v273 = vmul.f32 %v137, %v265
      %v274 = vld [vmem:[#allocation3] sm:$0x1]
      %v276 = vperm.slane %v274, 0
      %v278 = vmul.f32 %v266, %v276
      %v279 = vmul.f32 %v267, %v276
      %v280 = vmul.f32 %v268, %v276
      %v281 = vmul.f32 %v269, %v276
      %v282 = vmul.f32 %v270, %v276
      %v283 = vmul.f32 %v271, %v276
      %v284 = vmul.f32 %v272, %v276
      %v285 = vmul.f32 %v273, %v276
      %v286 = vld [vmem:[#allocation5] sm:$0x1]
      %v288 = vperm.slane %v286, 0
      %v290 = vadd.f32 %v278, %v288
      %v291 = vadd.f32 %v279, %v288
      %v292 = vadd.f32 %v280, %v288
      %v293 = vadd.f32 %v281, %v288
      %v294 = vadd.f32 %v282, %v288
      %v295 = vadd.f32 %v283, %v288
      %v296 = vadd.f32 %v284, %v288
      %v297 = vadd.f32 %v285, %v288
      %v298 = vpack.c.bf16 %v290, %v290
      %v299 = vpack.c.bf16 %v291, %v291
      %v300 = vpack.c.bf16 %v292, %v292
      %v301 = vpack.c.bf16 %v293, %v293
      %v302 = vpack.c.bf16 %v294, %v294
      %v303 = vpack.c.bf16 %v295, %v295
      %v304 = vpack.c.bf16 %v296, %v296
      %v305 = vpack.c.bf16 %v297, %v297
      %vm306 = vcmask 257024
      %307 = vst.msk [vmem:[#allocation2] sm:$0xf] %vm306, %v298
      %308 = vst.msk [vmem:[#allocation2 + $0x4] sm:$0xf] %vm306, %v299
      %309 = vst.msk [vmem:[#allocation2 + $0x8] sm:$0xf] %vm306, %v300
      %310 = vst.msk [vmem:[#allocation2 + $0xc] sm:$0xf] %vm306, %v301
      %311 = vst.msk [vmem:[#allocation2 + $0x10] sm:$0xf] %vm306, %v302
      %312 = vst.msk [vmem:[#allocation2 + $0x14] sm:$0xf] %vm306, %v303
      %313 = vst.msk [vmem:[#allocation2 + $0x18] sm:$0xf] %vm306, %v304
      %314 = vst.msk [vmem:[#allocation2 + $0x1c] sm:$0xf] %vm306, %v305
    $region41: #{transformer_forward.22} parent=1 // pred_fallthru
      _
    %v315 = vld [vmem:[#allocation2] sm:$0xf]
    %v316 = vld [vmem:[#allocation2 + $0x4] sm:$0xf]
    %v317 = vld [vmem:[#allocation2 + $0x8] sm:$0xf]
    %v318 = vld [vmem:[#allocation2 + $0xc] sm:$0xf]
    %v319 = vld [vmem:[#allocation2 + $0x10] sm:$0xf]
    %v320 = vld [vmem:[#allocation2 + $0x14] sm:$0xf]
    %v321 = vld [vmem:[#allocation2 + $0x18] sm:$0xf]
    %v322 = vld [vmem:[#allocation2 + $0x1c] sm:$0xf]
    %v323 = vld [vmem:[#allocation7] sm:$0xf]
    %v324 = vld [vmem:[#allocation7 + $0x4] sm:$0xf]
    %v325 = vld [vmem:[#allocation7 + $0x8] sm:$0xf]
    %v326 = vld [vmem:[#allocation7 + $0xc] sm:$0xf]
    %v327 = vld [vmem:[#allocation8] sm:$0x1]
    %v329 = vperm.slane %v327, 0
    %v339 = vunpack.c.l.b16 %v315
    %v340 = vunpack.c.l.b16 %v316
    %v341 = vunpack.c.l.b16 %v317
    %v342 = vunpack.c.l.b16 %v318
    %v343 = vunpack.c.l.b16 %v319
    %v344 = vunpack.c.l.b16 %v320
    %v345 = vunpack.c.l.b16 %v321
    %v346 = vunpack.c.l.b16 %v322
    %v347 = vpack.c.b16 %v340, %v339
    %v348 = vpack.c.b16 %v342, %v341
    %v349 = vpack.c.b16 %v344, %v343
    %v350 = vpack.c.b16 %v346, %v345
    %v355 = vunpack.c.l.b16 %v323
    %v356 = vunpack.c.l.b16 %v324
    %v357 = vunpack.c.l.b16 %v325
    %v358 = vunpack.c.l.b16 %v326
    %v359 = vpack.c.b16 %v356, %v355
    %v360 = vpack.c.b16 %v358, %v357
    %vm363 = vcmask 261120
    %v365 = vsel %vm363, %v347, 0
    %v368 = vsel %vm363, %v348, 0
    %v371 = vsel %vm363, %v349, 0
    %v374 = vsel %vm363, %v350, 0
    %376 = vmatpush.bf16.msra.mxu0 0
    %377 = vmatpush.bf16.msra.mxu0 0
    %378 = vmatpush.bf16.msra.mxu0 0
    %379 = vmatpush.bf16.msra.mxu0 0
    %380 = vmatpush.bf16.msra.mxu0 0
    %381 = vmatpush.bf16.msra.mxu0 0
    %382 = vmatpush.bf16.msra.mxu0 %v360
    %383 = vmatpush.bf16.msra.mxu0 %v359
    %384 = vmatmul.bf16.gmra.mxu0 %v365
    %v385 = vpop.f32.mrf.mxu0
    %v386 = vadd.f32 %v329, %v385
    %v387 = vpop.f32.mrf.mxu0
    %v388 = vadd.f32 %v329, %v387
    %389 = vmatmul.bf16.gmra.mxu0 %v368
    %v390 = vpop.f32.mrf.mxu0
    %v391 = vadd.f32 %v329, %v390
    %v392 = vpop.f32.mrf.mxu0
    %v393 = vadd.f32 %v329, %v392
    %394 = vmatmul.bf16.gmra.mxu0 %v371
    %v395 = vpop.f32.mrf.mxu0
    %v396 = vadd.f32 %v329, %v395
    %v397 = vpop.f32.mrf.mxu0
    %v398 = vadd.f32 %v329, %v397
    %399 = vmatmul.bf16.gmra.mxu0 %v374
    %v400 = vpop.f32.mrf.mxu0
    %v401 = vadd.f32 %v329, %v400
    %v402 = vpop.f32.mrf.mxu0
    %v403 = vadd.f32 %v329, %v402
    %404 = vdwg.mxu0
    %v405 = vmul.f32 %v386, 0.851
    %v406 = vmul.f32 %v388, 0.851
    %v407 = vmul.f32 %v391, 0.851
    %v408 = vmul.f32 %v393, 0.851
    %v409 = vmul.f32 %v396, 0.851
    %v410 = vmul.f32 %v398, 0.851
    %v411 = vmul.f32 %v401, 0.851
    %v412 = vmul.f32 %v403, 0.851
    %v413 = vtanh.pop %v405
    %v414 = vtanh.pop %v406
    %v415 = vtanh.pop %v407
    %v416 = vtanh.pop %v408
    %v417 = vtanh.pop %v409
    %v418 = vtanh.pop %v410
    %v419 = vtanh.pop %v411
    %v420 = vtanh.pop %v412
    %v421 = vadd.f32 %v413, 1.0
    %v422 = vadd.f32 %v414, 1.0
    %v423 = vadd.f32 %v415, 1.0
    %v424 = vadd.f32 %v416, 1.0
    %v425 = vadd.f32 %v417, 1.0
    %v426 = vadd.f32 %v418, 1.0
    %v427 = vadd.f32 %v419, 1.0
    %v428 = vadd.f32 %v420, 1.0
    %v429 = vmul.f32 %v421, 0.5
    %v430 = vmul.f32 %v422, 0.5
    %v431 = vmul.f32 %v423, 0.5
    %v432 = vmul.f32 %v424, 0.5
    %v433 = vmul.f32 %v425, 0.5
    %v434 = vmul.f32 %v426, 0.5
    %v435 = vmul.f32 %v427, 0.5
    %v436 = vmul.f32 %v428, 0.5
    %v437 = vmul.f32 %v386, %v429
    %v438 = vmul.f32 %v388, %v430
    %v439 = vmul.f32 %v391, %v431
    %v440 = vmul.f32 %v393, %v432
    %v441 = vmul.f32 %v396, %v433
    %v442 = vmul.f32 %v398, %v434
    %v443 = vmul.f32 %v401, %v435
    %v444 = vmul.f32 %v403, %v436
    %v445 = vpack.c.bf16 %v437, %v437
    %v446 = vpack.c.bf16 %v438, %v438
    %v447 = vpack.c.bf16 %v439, %v439
    %v448 = vpack.c.bf16 %v440, %v440
    %v449 = vpack.c.bf16 %v441, %v441
    %v450 = vpack.c.bf16 %v442, %v442
    %v451 = vpack.c.bf16 %v443, %v443
    %v452 = vpack.c.bf16 %v444, %v444
    %453 = vst [vmem:[%s5] sm:$0xf] %v445
    %454 = vst [vmem:[%s5 + $0x4] sm:$0xf] %v446
    %455 = vst [vmem:[%s5 + $0x8] sm:$0xf] %v447
    %456 = vst [vmem:[%s5 + $0xc] sm:$0xf] %v448
    %457 = vst [vmem:[%s5 + $0x10] sm:$0xf] %v449
    %458 = vst [vmem:[%s5 + $0x14] sm:$0xf] %v450
    %459 = vst [vmem:[%s5 + $0x18] sm:$0xf] %v451
    %460 = vst [vmem:[%s5 + $0x1c] sm:$0xf] %v452
    // Predicated region
    $region42: #{transformer_forward.22} parent=1 // pred_check
      _
    $region43: #{transformer_forward.22} parent=1 // pred_check_branch
      %462 = sbr.rel (0) target = $region45
    $region44: #{transformer_forward.22} parent=1 // pred_region
      _
    $region45: #{transformer_forward.22} parent=1 // pred_fallthru
      _
    // Predicated region
    $region46: #{transformer_forward.22} parent=1 // pred_check
      _
    $region47: #{transformer_forward.22} parent=1 // pred_check_branch
      %464 = sbr.rel (0) target = $region49
    $region48: #{transformer_forward.22} parent=1 // pred_region
      _
    $region49: #{transformer_forward.22} parent=1 // pred_fallthru
      _
    %465 = vsyncpa [#allocation4], 1
    %466 = vsyncpa [#allocation6], 1
    %467 = vsyncpa [#allocation9], 1

// kernel: transformer_forward.20
$region0: #{transformer_forward.20}
  #allocation0 [shape = 'u32[]', space=smem, size = 0x4, offset = 0x4, fixed_abs, tag = 'smem constant byte address 0x4 - core index']
  #allocation1 [shape = 'u32[72,128]{1,0:T(1,128)}', space=vmem, size = 0x9000, scoped, tag = 'internal scratch']
  %s0 = inlined_call_operand.vmem [shape: bf16[8,8,96], index: 0, kind: input, shape index: {}]
  %s1 = inlined_call_operand.vmem [shape: bf16[8,8,32], index: 1, kind: output, shape index: {}]
  %s2 = sld [smem:[#allocation0]]
  $region14: #{transformer_forward.20} parent=0
    _
  %s4 = ssub.s32 1, %s2
  %s5 = scalar_select 0, %s4, %s2
  // Predicated region
  $region2: #{transformer_forward.20} parent=0 // pred_check
    _
  $region3: #{transformer_forward.20} parent=0 // pred_check_branch
    %7 = sbr.rel (0) target = $region5
  $region4: #{transformer_forward.20} parent=0 // pred_region
    _
  $region5: #{transformer_forward.20} parent=0 // pred_fallthru
    _
  %v9 = vld [vmem:[%s0] sm:$0xf]
  %v10 = vld [vmem:[%s0 + $0x4] sm:$0xf]
  %v11 = vld [vmem:[%s0 + $0x8] sm:$0xf]
  %v12 = vld [vmem:[%s0 + $0xc] sm:$0xf]
  %v13 = vld [vmem:[%s0 + $0x10] sm:$0xf]
  %v14 = vld [vmem:[%s0 + $0x14] sm:$0xf]
  %v15 = vld [vmem:[%s0 + $0x18] sm:$0xf]
  %v16 = vld [vmem:[%s0 + $0x1c] sm:$0xf]
  %v17 = vrot.slane %v13, 4
  %vm18 = vcmask 1047556
  %v19 = vsel %vm18, %v17, %v9
  %v21 = vunpack.c.l.s4 1983009808
  %v22 = vunpack.c.0.s8 %v21
  %v23 = vperm.slane %v19, %v22
  %v24 = vrot.slane %v15, 4
  %v25 = vsel %vm18, %v24, %v11
  %v27 = vunpack.c.l.s4 1983009808
  %v28 = vunpack.c.0.s8 %v27
  %v29 = vperm.slane %v25, %v28
  %v30 = vrot.slane %v29, 4
  %v31 = vsel %vm18, %v30, %v23
  %v32 = vrot.slane %v23, 4
  %v33 = vsel %vm18, %v29, %v32
  %v35 = vunpack.c.l.s4 1934713408
  %v36 = vunpack.c.0.s8 %v35
  %v37 = vperm.slane %v31, %v36
  %v39 = vunpack.c.l.s4 1934713408
  %v40 = vunpack.c.0.s8 %v39
  %v41 = vperm.slane %v33, %v40
  %v42 = vrot.slane %v37, 4
  %v43 = vsel %vm18, 0, %v42
  %v44 = vrot.slane %v41, 4
  %v45 = vsel %vm18, 0, %v44
  %v46 = vrot.slane %v14, 4
  %v47 = vsel %vm18, %v46, %v10
  %v49 = vunpack.c.l.s4 1983009808
  %v50 = vunpack.c.0.s8 %v49
  %v51 = vperm.slane %v47, %v50
  %v52 = vrot.slane %v16, 4
  %v53 = vsel %vm18, %v52, %v12
  %v55 = vunpack.c.l.s4 1983009808
  %v56 = vunpack.c.0.s8 %v55
  %v57 = vperm.slane %v53, %v56
  %v58 = vrot.slane %v57, 4
  %v59 = vsel %vm18, %v58, %v51
  %v60 = vrot.slane %v51, 4
  %v61 = vsel %vm18, %v57, %v60
  %v63 = vunpack.c.l.s4 1934713408
  %v64 = vunpack.c.0.s8 %v63
  %v65 = vperm.slane %v59, %v64
  %v67 = vunpack.c.l.s4 1934713408
  %v68 = vunpack.c.0.s8 %v67
  %v69 = vperm.slane %v61, %v68
  %v70 = vrot.slane %v65, 4
  %v71 = vsel %vm18, 0, %v70
  %v72 = vrot.slane %v69, 4
  %v73 = vsel %vm18, 0, %v72
  %v76 = vpack.i.b16 %v65, %v37
  %v77 = vshrl.u32 %v37, 16
  %v78 = vshrl.u32 %v65, 16
  %v79 = vpack.i.b16 %v78, %v77
  %v82 = vpack.i.b16 %v71, %v43
  %v83 = vshrl.u32 %v43, 16
  %v84 = vshrl.u32 %v71, 16
  %v85 = vpack.i.b16 %v84, %v83
  %v88 = vpack.i.b16 %v69, %v41
  %v89 = vshrl.u32 %v41, 16
  %v90 = vshrl.u32 %v69, 16
  %v91 = vpack.i.b16 %v90, %v89
  %v94 = vpack.i.b16 %v73, %v45
  %v95 = vshrl.u32 %v45, 16
  %v96 = vshrl.u32 %v73, 16
  %v97 = vpack.i.b16 %v96, %v95
  %v98 = vunpack.c.l.b16 %v76
  %v99 = vpack.c.b16 %v98, %v98
  %100 = vrot.lane.b32.xlu0 %v99, 96
  %v101 = vpop.permute.xlu0 %100
  %vm102 = vcmask 64512
  %v104 = vsel %vm102, %v76, 0
  %v107 = vsel %vm102, %v101, 0
  %109 = vmatpush.bf16.xpose.msra.mxu0 0
  %110 = vmatpush.bf16.xpose.msra.mxu0 0
  %111 = vmatpush.bf16.xpose.msra.mxu0 0
  %112 = vmatpush.bf16.xpose.msra.mxu0 0
  %113 = vmatpush.bf16.xpose.msra.mxu0 0
  %114 = vmatpush.bf16.xpose.msra.mxu0 0
  %115 = vmatpush.bf16.xpose.msra.mxu0 0
  %116 = vmatpush.bf16.xpose.msra.mxu0 %v107
  %117 = vmatmul.bf16.gmra.mxu0 %v104
  %v118 = vpop.f32.mrf.mxu0
  %v119 = vadd.f32 0.0, %v118
  %v120 = vpop.f32.mrf.mxu0
  %121 = vdwg.mxu0
  %v122 = vunpack.c.l.b16 %v79
  %v123 = vpack.c.b16 %v122, %v122
  %124 = vrot.lane.b32.xlu0 %v123, 96
  %v125 = vpop.permute.xlu0 %124
  %v127 = vsel %vm102, %v79, 0
  %v130 = vsel %vm102, %v125, 0
  %132 = vmatpush.bf16.xpose.msra.mxu0 0
  %133 = vmatpush.bf16.xpose.msra.mxu0 0
  %134 = vmatpush.bf16.xpose.msra.mxu0 0
  %135 = vmatpush.bf16.xpose.msra.mxu0 0
  %136 = vmatpush.bf16.xpose.msra.mxu0 0
  %137 = vmatpush.bf16.xpose.msra.mxu0 0
  %138 = vmatpush.bf16.xpose.msra.mxu0 0
  %139 = vmatpush.bf16.xpose.msra.mxu0 %v130
  %140 = vmatmul.bf16.gmra.mxu0 %v127
  %v141 = vpop.f32.mrf.mxu0
  %v142 = vadd.f32 0.0, %v141
  %v143 = vpop.f32.mrf.mxu0
  %144 = vdwg.mxu0
  %v145 = vunpack.c.l.b16 %v82
  %v146 = vpack.c.b16 %v145, %v145
  %147 = vrot.lane.b32.xlu0 %v146, 96
  %v148 = vpop.permute.xlu0 %147
  %v150 = vsel %vm102, %v82, 0
  %v153 = vsel %vm102, %v148, 0
  %155 = vmatpush.bf16.xpose.msra.mxu0 0
  %156 = vmatpush.bf16.xpose.msra.mxu0 0
  %157 = vmatpush.bf16.xpose.msra.mxu0 0
  %158 = vmatpush.bf16.xpose.msra.mxu0 0
  %159 = vmatpush.bf16.xpose.msra.mxu0 0
  %160 = vmatpush.bf16.xpose.msra.mxu0 0
  %161 = vmatpush.bf16.xpose.msra.mxu0 0
  %162 = vmatpush.bf16.xpose.msra.mxu0 %v153
  %163 = vmatmul.bf16.gmra.mxu0 %v150
  %v164 = vpop.f32.mrf.mxu0
  %v165 = vadd.f32 0.0, %v164
  %v166 = vpop.f32.mrf.mxu0
  %167 = vdwg.mxu0
  %v168 = vunpack.c.l.b16 %v85
  %v169 = vpack.c.b16 %v168, %v168
  %170 = vrot.lane.b32.xlu0 %v169, 96
  %v171 = vpop.permute.xlu0 %170
  %v173 = vsel %vm102, %v85, 0
  %v176 = vsel %vm102, %v171, 0
  %178 = vmatpush.bf16.xpose.msra.mxu0 0
  %179 = vmatpush.bf16.xpose.msra.mxu0 0
  %180 = vmatpush.bf16.xpose.msra.mxu0 0
  %181 = vmatpush.bf16.xpose.msra.mxu0 0
  %182 = vmatpush.bf16.xpose.msra.mxu0 0
  %183 = vmatpush.bf16.xpose.msra.mxu0 0
  %184 = vmatpush.bf16.xpose.msra.mxu0 0
  %185 = vmatpush.bf16.xpose.msra.mxu0 %v176
  %186 = vmatmul.bf16.gmra.mxu0 %v173
  %v187 = vpop.f32.mrf.mxu0
  %v188 = vadd.f32 0.0, %v187
  %v189 = vpop.f32.mrf.mxu0
  %190 = vdwg.mxu0
  %v191 = vunpack.c.l.b16 %v88
  %v192 = vpack.c.b16 %v191, %v191
  %193 = vrot.lane.b32.xlu0 %v192, 96
  %v194 = vpop.permute.xlu0 %193
  %v196 = vsel %vm102, %v88, 0
  %v199 = vsel %vm102, %v194, 0
  %201 = vmatpush.bf16.xpose.msra.mxu0 0
  %202 = vmatpush.bf16.xpose.msra.mxu0 0
  %203 = vmatpush.bf16.xpose.msra.mxu0 0
  %204 = vmatpush.bf16.xpose.msra.mxu0 0
  %205 = vmatpush.bf16.xpose.msra.mxu0 0
  %206 = vmatpush.bf16.xpose.msra.mxu0 0
  %207 = vmatpush.bf16.xpose.msra.mxu0 0
  %208 = vmatpush.bf16.xpose.msra.mxu0 %v199
  %209 = vmatmul.bf16.gmra.mxu0 %v196
  %v210 = vpop.f32.mrf.mxu0
  %v211 = vadd.f32 0.0, %v210
  %v212 = vpop.f32.mrf.mxu0
  %213 = vdwg.mxu0
  %v214 = vunpack.c.l.b16 %v91
  %v215 = vpack.c.b16 %v214, %v214
  %216 = vrot.lane.b32.xlu0 %v215, 96
  %v217 = vpop.permute.xlu0 %216
  %v219 = vsel %vm102, %v91, 0
  %v222 = vsel %vm102, %v217, 0
  %224 = vmatpush.bf16.xpose.msra.mxu0 0
  %225 = vmatpush.bf16.xpose.msra.mxu0 0
  %226 = vmatpush.bf16.xpose.msra.mxu0 0
  %227 = vmatpush.bf16.xpose.msra.mxu0 0
  %228 = vmatpush.bf16.xpose.msra.mxu0 0
  %229 = vmatpush.bf16.xpose.msra.mxu0 0
  %230 = vmatpush.bf16.xpose.msra.mxu0 0
  %231 = vmatpush.bf16.xpose.msra.mxu0 %v222
  %232 = vmatmul.bf16.gmra.mxu0 %v219
  %v233 = vpop.f32.mrf.mxu0
  %v234 = vadd.f32 0.0, %v233
  %v235 = vpop.f32.mrf.mxu0
  %236 = vdwg.mxu0
  %v237 = vunpack.c.l.b16 %v94
  %v238 = vpack.c.b16 %v237, %v237
  %239 = vrot.lane.b32.xlu0 %v238, 96
  %v240 = vpop.permute.xlu0 %239
  %v242 = vsel %vm102, %v94, 0
  %v245 = vsel %vm102, %v240, 0
  %247 = vmatpush.bf16.xpose.msra.mxu0 0
  %248 = vmatpush.bf16.xpose.msra.mxu0 0
  %249 = vmatpush.bf16.xpose.msra.mxu0 0
  %250 = vmatpush.bf16.xpose.msra.mxu0 0
  %251 = vmatpush.bf16.xpose.msra.mxu0 0
  %252 = vmatpush.bf16.xpose.msra.mxu0 0
  %253 = vmatpush.bf16.xpose.msra.mxu0 0
  %254 = vmatpush.bf16.xpose.msra.mxu0 %v245
  %255 = vmatmul.bf16.gmra.mxu0 %v242
  %v256 = vpop.f32.mrf.mxu0
  %v257 = vadd.f32 0.0, %v256
  %v258 = vpop.f32.mrf.mxu0
  %259 = vdwg.mxu0
  %v260 = vunpack.c.l.b16 %v97
  %v261 = vpack.c.b16 %v260, %v260
  %262 = vrot.lane.b32.xlu0 %v261, 96
  %v263 = vpop.permute.xlu0 %262
  %v265 = vsel %vm102, %v97, 0
  %v268 = vsel %vm102, %v263, 0
  %270 = vmatpush.bf16.xpose.msra.mxu0 0
  %271 = vmatpush.bf16.xpose.msra.mxu0 0
  %272 = vmatpush.bf16.xpose.msra.mxu0 0
  %273 = vmatpush.bf16.xpose.msra.mxu0 0
  %274 = vmatpush.bf16.xpose.msra.mxu0 0
  %275 = vmatpush.bf16.xpose.msra.mxu0 0
  %276 = vmatpush.bf16.xpose.msra.mxu0 0
  %277 = vmatpush.bf16.xpose.msra.mxu0 %v268
  %278 = vmatmul.bf16.gmra.mxu0 %v265
  %v279 = vpop.f32.mrf.mxu0
  %v280 = vadd.f32 0.0, %v279
  %v281 = vpop.f32.mrf.mxu0
  %282 = vdwg.mxu0
  %v283 = vsel %vm102, %v119, -inf
  %284 = vmax.xlane.f32.xlu0 %v283
  %v285 = vpop.xlane.xlu0 %284
  %v286 = vsel %vm102, %v142, -inf
  %287 = vmax.xlane.f32.xlu0 %v286
  %v288 = vpop.xlane.xlu0 %287
  %v289 = vsel %vm102, %v165, -inf
  %290 = vmax.xlane.f32.xlu0 %v289
  %v291 = vpop.xlane.xlu0 %290
  %v292 = vsel %vm102, %v188, -inf
  %293 = vmax.xlane.f32.xlu0 %v292
  %v294 = vpop.xlane.xlu0 %293
  %v295 = vsel %vm102, %v211, -inf
  %296 = vmax.xlane.f32.xlu0 %v295
  %v297 = vpop.xlane.xlu0 %296
  %v298 = vsel %vm102, %v234, -inf
  %299 = vmax.xlane.f32.xlu0 %v298
  %v300 = vpop.xlane.xlu0 %299
  %v301 = vsel %vm102, %v257, -inf
  %302 = vmax.xlane.f32.xlu0 %v301
  %v303 = vpop.xlane.xlu0 %302
  %v304 = vsel %vm102, %v280, -inf
  %305 = vmax.xlane.f32.xlu0 %v304
  %v306 = vpop.xlane.xlu0 %305
  %v307 = vsub.f32 %v119, %v285
  %v308 = vsub.f32 %v142, %v288
  %v309 = vsub.f32 %v165, %v291
  %v310 = vsub.f32 %v188, %v294
  %v311 = vsub.f32 %v211, %v297
  %v312 = vsub.f32 %v234, %v300
  %v313 = vsub.f32 %v257, %v303
  %v314 = vsub.f32 %v280, %v306
  %v315 = vmul.f32 %v307, 1.442695
  %v316 = vpow.pop %v315
  %v317 = vmul.f32 %v308, 1.442695
  %v318 = vpow.pop %v317
  %v319 = vmul.f32 %v309, 1.442695
  %v320 = vpow.pop %v319
  %v321 = vmul.f32 %v310, 1.442695
  %v322 = vpow.pop %v321
  %v323 = vmul.f32 %v311, 1.442695
  %v324 = vpow.pop %v323
  %v325 = vmul.f32 %v312, 1.442695
  %v326 = vpow.pop %v325
  %v327 = vmul.f32 %v313, 1.442695
  %v328 = vpow.pop %v327
  %v329 = vmul.f32 %v314, 1.442695
  %v330 = vpow.pop %v329
  %v331 = vsel %vm102, %v316, 0.0
  %332 = vadd.xlane.f32.xlu0 %v331
  %v333 = vpop.xlane.xlu0 %332
  %v334 = vsel %vm102, %v318, 0.0
  %335 = vadd.xlane.f32.xlu0 %v334
  %v336 = vpop.xlane.xlu0 %335
  %v337 = vsel %vm102, %v320, 0.0
  %338 = vadd.xlane.f32.xlu0 %v337
  %v339 = vpop.xlane.xlu0 %338
  %v340 = vsel %vm102, %v322, 0.0
  %341 = vadd.xlane.f32.xlu0 %v340
  %v342 = vpop.xlane.xlu0 %341
  %v343 = vsel %vm102, %v324, 0.0
  %344 = vadd.xlane.f32.xlu0 %v343
  %v345 = vpop.xlane.xlu0 %344
  %v346 = vsel %vm102, %v326, 0.0
  %347 = vadd.xlane.f32.xlu0 %v346
  %v348 = vpop.xlane.xlu0 %347
  %v349 = vsel %vm102, %v328, 0.0
  %350 = vadd.xlane.f32.xlu0 %v349
  %v351 = vpop.xlane.xlu0 %350
  %v352 = vsel %vm102, %v330, 0.0
  %353 = vadd.xlane.f32.xlu0 %v352
  %v354 = vpop.xlane.xlu0 %353
  %v355 = vpack.c.bf16 %v316, %v316
  %v356 = vpack.c.bf16 %v318, %v318
  %v357 = vpack.c.bf16 %v320, %v320
  %v358 = vpack.c.bf16 %v322, %v322
  %v359 = vpack.c.bf16 %v324, %v324
  %v360 = vpack.c.bf16 %v326, %v326
  %v361 = vpack.c.bf16 %v328, %v328
  %v362 = vpack.c.bf16 %v330, %v330
  %363 = vrot.lane.b32.xlu0 %v99, 64
  %v364 = vpop.permute.xlu0 %363
  %v366 = vsel %vm102, %v355, 0
  %vm368 = vcmask 1043456
  %v370 = vsel %vm368, %v364, 0
  %372 = vmatpush.bf16.msra.mxu0 0
  %373 = vmatpush.bf16.msra.mxu0 0
  %374 = vmatpush.bf16.msra.mxu0 0
  %375 = vmatpush.bf16.msra.mxu0 0
  %376 = vmatpush.bf16.msra.mxu0 0
  %377 = vmatpush.bf16.msra.mxu0 0
  %378 = vmatpush.bf16.msra.mxu0 0
  %379 = vmatpush.bf16.msra.mxu0 %v370
  %380 = vmatmul.bf16.gmra.mxu0 %v366
  %v381 = vpop.f32.mrf.mxu0
  %v382 = vadd.f32 0.0, %v381
  %v383 = vpop.f32.mrf.mxu0
  %384 = vdwg.mxu0
  %385 = vrot.lane.b32.xlu0 %v123, 64
  %v386 = vpop.permute.xlu0 %385
  %v388 = vsel %vm102, %v356, 0
  %v391 = vsel %vm368, %v386, 0
  %393 = vmatpush.bf16.msra.mxu0 0
  %394 = vmatpush.bf16.msra.mxu0 0
  %395 = vmatpush.bf16.msra.mxu0 0
  %396 = vmatpush.bf16.msra.mxu0 0
  %397 = vmatpush.bf16.msra.mxu0 0
  %398 = vmatpush.bf16.msra.mxu0 0
  %399 = vmatpush.bf16.msra.mxu0 0
  %400 = vmatpush.bf16.msra.mxu0 %v391
  %401 = vmatmul.bf16.gmra.mxu0 %v388
  %v402 = vpop.f32.mrf.mxu0
  %v403 = vadd.f32 0.0, %v402
  %v404 = vpop.f32.mrf.mxu0
  %405 = vdwg.mxu0
  %406 = vrot.lane.b32.xlu0 %v146, 64
  %v407 = vpop.permute.xlu0 %406
  %v409 = vsel %vm102, %v357, 0
  %v412 = vsel %vm368, %v407, 0
  %414 = vmatpush.bf16.msra.mxu0 0
  %415 = vmatpush.bf16.msra.mxu0 0
  %416 = vmatpush.bf16.msra.mxu0 0
  %417 = vmatpush.bf16.msra.mxu0 0
  %418 = vmatpush.bf16.msra.mxu0 0
  %419 = vmatpush.bf16.msra.mxu0 0
  %420 = vmatpush.bf16.msra.mxu0 0
  %421 = vmatpush.bf16.msra.mxu0 %v412
  %422 = vmatmul.bf16.gmra.mxu0 %v409
  %v423 = vpop.f32.mrf.mxu0
  %v424 = vadd.f32 0.0, %v423
  %v425 = vpop.f32.mrf.mxu0
  %426 = vdwg.mxu0
  %427 = vrot.lane.b32.xlu0 %v169, 64
  %v428 = vpop.permute.xlu0 %427
  %v430 = vsel %vm102, %v358, 0
  %v433 = vsel %vm368, %v428, 0
  %435 = vmatpush.bf16.msra.mxu0 0
  %436 = vmatpush.bf16.msra.mxu0 0
  %437 = vmatpush.bf16.msra.mxu0 0
  %438 = vmatpush.bf16.msra.mxu0 0
  %439 = vmatpush.bf16.msra.mxu0 0
  %440 = vmatpush.bf16.msra.mxu0 0
  %441 = vmatpush.bf16.msra.mxu0 0
  %442 = vmatpush.bf16.msra.mxu0 %v433
  %443 = vmatmul.bf16.gmra.mxu0 %v430
  %v444 = vpop.f32.mrf.mxu0
  %v445 = vadd.f32 0.0, %v444
  %v446 = vpop.f32.mrf.mxu0
  %447 = vdwg.mxu0
  %448 = vrot.lane.b32.xlu0 %v192, 64
  %v449 = vpop.permute.xlu0 %448
  %v451 = vsel %vm102, %v359, 0
  %v454 = vsel %vm368, %v449, 0
  %456 = vmatpush.bf16.msra.mxu0 0
  %457 = vmatpush.bf16.msra.mxu0 0
  %458 = vmatpush.bf16.msra.mxu0 0
  %459 = vmatpush.bf16.msra.mxu0 0
  %460 = vmatpush.bf16.msra.mxu0 0
  %461 = vmatpush.bf16.msra.mxu0 0
  %462 = vmatpush.bf16.msra.mxu0 0
  %463 = vmatpush.bf16.msra.mxu0 %v454
  %464 = vmatmul.bf16.gmra.mxu0 %v451
  %v465 = vpop.f32.mrf.mxu0
  %v466 = vadd.f32 0.0, %v465
  %v467 = vpop.f32.mrf.mxu0
  %468 = vdwg.mxu0
  %469 = vrot.lane.b32.xlu0 %v215, 64
  %v470 = vpop.permute.xlu0 %469
  %v472 = vsel %vm102, %v360, 0
  %v475 = vsel %vm368, %v470, 0
  %477 = vmatpush.bf16.msra.mxu0 0
  %478 = vmatpush.bf16.msra.mxu0 0
  %479 = vmatpush.bf16.msra.mxu0 0
  %480 = vmatpush.bf16.msra.mxu0 0
  %481 = vmatpush.bf16.msra.mxu0 0
  %482 = vmatpush.bf16.msra.mxu0 0
  %483 = vmatpush.bf16.msra.mxu0 0
  %484 = vmatpush.bf16.msra.mxu0 %v475
  %485 = vmatmul.bf16.gmra.mxu0 %v472
  %v486 = vpop.f32.mrf.mxu0
  %v487 = vadd.f32 0.0, %v486
  %v488 = vpop.f32.mrf.mxu0
  %489 = vdwg.mxu0
  %490 = vrot.lane.b32.xlu0 %v238, 64
  %v491 = vpop.permute.xlu0 %490
  %v493 = vsel %vm102, %v361, 0
  %v496 = vsel %vm368, %v491, 0
  %498 = vmatpush.bf16.msra.mxu0 0
  %499 = vmatpush.bf16.msra.mxu0 0
  %500 = vmatpush.bf16.msra.mxu0 0
  %501 = vmatpush.bf16.msra.mxu0 0
  %502 = vmatpush.bf16.msra.mxu0 0
  %503 = vmatpush.bf16.msra.mxu0 0
  %504 = vmatpush.bf16.msra.mxu0 0
  %505 = vmatpush.bf16.msra.mxu0 %v496
  %506 = vmatmul.bf16.gmra.mxu0 %v493
  %v507 = vpop.f32.mrf.mxu0
  %v508 = vadd.f32 0.0, %v507
  %v509 = vpop.f32.mrf.mxu0
  %510 = vdwg.mxu0
  %511 = vrot.lane.b32.xlu0 %v261, 64
  %v512 = vpop.permute.xlu0 %511
  %v514 = vsel %vm102, %v362, 0
  %v517 = vsel %vm368, %v512, 0
  %519 = vmatpush.bf16.msra.mxu0 0
  %520 = vmatpush.bf16.msra.mxu0 0
  %521 = vmatpush.bf16.msra.mxu0 0
  %522 = vmatpush.bf16.msra.mxu0 0
  %523 = vmatpush.bf16.msra.mxu0 0
  %524 = vmatpush.bf16.msra.mxu0 0
  %525 = vmatpush.bf16.msra.mxu0 0
  %526 = vmatpush.bf16.msra.mxu0 %v517
  %527 = vmatmul.bf16.gmra.mxu0 %v514
  %v528 = vpop.f32.mrf.mxu0
  %v529 = vadd.f32 0.0, %v528
  %v530 = vpop.f32.mrf.mxu0
  %531 = vdwg.mxu0
  %v532 = vrcp.pop %v333
  %v533 = vrcp.pop %v336
  %v534 = vrcp.pop %v339
  %v535 = vrcp.pop %v342
  %v536 = vrcp.pop %v345
  %v537 = vrcp.pop %v348
  %v538 = vrcp.pop %v351
  %v539 = vrcp.pop %v354
  %v540 = vmul.f32 %v382, %v532
  %v541 = vmul.f32 %v403, %v533
  %v542 = vmul.f32 %v424, %v534
  %v543 = vmul.f32 %v445, %v535
  %v544 = vmul.f32 %v466, %v536
  %v545 = vmul.f32 %v487, %v537
  %v546 = vmul.f32 %v508, %v538
  %v547 = vmul.f32 %v529, %v539
  %548 = vrot.lane.b32.xlu0 %v99, 120
  %v549 = vpop.permute.xlu0 %548
  %550 = vrot.lane.b32.xlu0 %v99, 88
  %v551 = vpop.permute.xlu0 %550
  %v553 = vsel %vm102, %v549, 0
  %v556 = vsel %vm102, %v551, 0
  %558 = vmatpush.bf16.xpose.msra.mxu0 0
  %559 = vmatpush.bf16.xpose.msra.mxu0 0
  %560 = vmatpush.bf16.xpose.msra.mxu0 0
  %561 = vmatpush.bf16.xpose.msra.mxu0 0
  %562 = vmatpush.bf16.xpose.msra.mxu0 0
  %563 = vmatpush.bf16.xpose.msra.mxu0 0
  %564 = vmatpush.bf16.xpose.msra.mxu0 0
  %565 = vmatpush.bf16.xpose.msra.mxu0 %v556
  %566 = vmatmul.bf16.gmra.mxu0 %v553
  %v567 = vpop.f32.mrf.mxu0
  %v568 = vadd.f32 0.0, %v567
  %v569 = vpop.f32.mrf.mxu0
  %570 = vdwg.mxu0
  %571 = vrot.lane.b32.xlu0 %v123, 120
  %v572 = vpop.permute.xlu0 %571
  %573 = vrot.lane.b32.xlu0 %v123, 88
  %v574 = vpop.permute.xlu0 %573
  %v576 = vsel %vm102, %v572, 0
  %v579 = vsel %vm102, %v574, 0
  %581 = vmatpush.bf16.xpose.msra.mxu0 0
  %582 = vmatpush.bf16.xpose.msra.mxu0 0
  %583 = vmatpush.bf16.xpose.msra.mxu0 0
  %584 = vmatpush.bf16.xpose.msra.mxu0 0
  %585 = vmatpush.bf16.xpose.msra.mxu0 0
  %586 = vmatpush.bf16.xpose.msra.mxu0 0
  %587 = vmatpush.bf16.xpose.msra.mxu0 0
  %588 = vmatpush.bf16.xpose.msra.mxu0 %v579
  %589 = vmatmul.bf16.gmra.mxu0 %v576
  %v590 = vpop.f32.mrf.mxu0
  %v591 = vadd.f32 0.0, %v590
  %v592 = vpop.f32.mrf.mxu0
  %593 = vdwg.mxu0
  %594 = vrot.lane.b32.xlu0 %v146, 120
  %v595 = vpop.permute.xlu0 %594
  %596 = vrot.lane.b32.xlu0 %v146, 88
  %v597 = vpop.permute.xlu0 %596
  %v599 = vsel %vm102, %v595, 0
  %v602 = vsel %vm102, %v597, 0
  %604 = vmatpush.bf16.xpose.msra.mxu0 0
  %605 = vmatpush.bf16.xpose.msra.mxu0 0
  %606 = vmatpush.bf16.xpose.msra.mxu0 0
  %607 = vmatpush.bf16.xpose.msra.mxu0 0
  %608 = vmatpush.bf16.xpose.msra.mxu0 0
  %609 = vmatpush.bf16.xpose.msra.mxu0 0
  %610 = vmatpush.bf16.xpose.msra.mxu0 0
  %611 = vmatpush.bf16.xpose.msra.mxu0 %v602
  %612 = vmatmul.bf16.gmra.mxu0 %v599
  %v613 = vpop.f32.mrf.mxu0
  %v614 = vadd.f32 0.0, %v613
  %v615 = vpop.f32.mrf.mxu0
  %616 = vdwg.mxu0
  %617 = vrot.lane.b32.xlu0 %v169, 120
  %v618 = vpop.permute.xlu0 %617
  %619 = vrot.lane.b32.xlu0 %v169, 88
  %v620 = vpop.permute.xlu0 %619
  %v622 = vsel %vm102, %v618, 0
  %v625 = vsel %vm102, %v620, 0
  %627 = vmatpush.bf16.xpose.msra.mxu0 0
  %628 = vmatpush.bf16.xpose.msra.mxu0 0
  %629 = vmatpush.bf16.xpose.msra.mxu0 0
  %630 = vmatpush.bf16.xpose.msra.mxu0 0
  %631 = vmatpush.bf16.xpose.msra.mxu0 0
  %632 = vmatpush.bf16.xpose.msra.mxu0 0
  %633 = vmatpush.bf16.xpose.msra.mxu0 0
  %634 = vmatpush.bf16.xpose.msra.mxu0 %v625
  %635 = vmatmul.bf16.gmra.mxu0 %v622
  %v636 = vpop.f32.mrf.mxu0
  %v637 = vadd.f32 0.0, %v636
  %v638 = vpop.f32.mrf.mxu0
  %639 = vdwg.mxu0
  %640 = vrot.lane.b32.xlu0 %v192, 120
  %v641 = vpop.permute.xlu0 %640
  %642 = vrot.lane.b32.xlu0 %v192, 88
  %v643 = vpop.permute.xlu0 %642
  %v645 = vsel %vm102, %v641, 0
  %v648 = vsel %vm102, %v643, 0
  %650 = vmatpush.bf16.xpose.msra.mxu0 0
  %651 = vmatpush.bf16.xpose.msra.mxu0 0
  %652 = vmatpush.bf16.xpose.msra.mxu0 0
  %653 = vmatpush.bf16.xpose.msra.mxu0 0
  %654 = vmatpush.bf16.xpose.msra.mxu0 0
  %655 = vmatpush.bf16.xpose.msra.mxu0 0
  %656 = vmatpush.bf16.xpose.msra.mxu0 0
  %657 = vmatpush.bf16.xpose.msra.mxu0 %v648
  %658 = vmatmul.bf16.gmra.mxu0 %v645
  %v659 = vpop.f32.mrf.mxu0
  %v660 = vadd.f32 0.0, %v659
  %v661 = vpop.f32.mrf.mxu0
  %662 = vdwg.mxu0
  %663 = vrot.lane.b32.xlu0 %v215, 120
  %v664 = vpop.permute.xlu0 %663
  %665 = vrot.lane.b32.xlu0 %v215, 88
  %v666 = vpop.permute.xlu0 %665
  %v668 = vsel %vm102, %v664, 0
  %v671 = vsel %vm102, %v666, 0
  %673 = vmatpush.bf16.xpose.msra.mxu0 0
  %674 = vmatpush.bf16.xpose.msra.mxu0 0
  %675 = vmatpush.bf16.xpose.msra.mxu0 0
  %676 = vmatpush.bf16.xpose.msra.mxu0 0
  %677 = vmatpush.bf16.xpose.msra.mxu0 0
  %678 = vmatpush.bf16.xpose.msra.mxu0 0
  %679 = vmatpush.bf16.xpose.msra.mxu0 0
  %680 = vmatpush.bf16.xpose.msra.mxu0 %v671
  %681 = vmatmul.bf16.gmra.mxu0 %v668
  %v682 = vpop.f32.mrf.mxu0
  %v683 = vadd.f32 0.0, %v682
  %v684 = vpop.f32.mrf.mxu0
  %685 = vdwg.mxu0
  %686 = vrot.lane.b32.xlu0 %v238, 120
  %v687 = vpop.permute.xlu0 %686
  %688 = vrot.lane.b32.xlu0 %v238, 88
  %v689 = vpop.permute.xlu0 %688
  %v691 = vsel %vm102, %v687, 0
  %v694 = vsel %vm102, %v689, 0
  %696 = vmatpush.bf16.xpose.msra.mxu0 0
  %697 = vmatpush.bf16.xpose.msra.mxu0 0
  %698 = vmatpush.bf16.xpose.msra.mxu0 0
  %699 = vmatpush.bf16.xpose.msra.mxu0 0
  %700 = vmatpush.bf16.xpose.msra.mxu0 0
  %701 = vmatpush.bf16.xpose.msra.mxu0 0
  %702 = vmatpush.bf16.xpose.msra.mxu0 0
  %703 = vmatpush.bf16.xpose.msra.mxu0 %v694
  %704 = vmatmul.bf16.gmra.mxu0 %v691
  %v705 = vpop.f32.mrf.mxu0
  %v706 = vadd.f32 0.0, %v705
  %v707 = vpop.f32.mrf.mxu0
  %708 = vdwg.mxu0
  %709 = vrot.lane.b32.xlu0 %v261, 120
  %v710 = vpop.permute.xlu0 %709
  %711 = vrot.lane.b32.xlu0 %v261, 88
  %v712 = vpop.permute.xlu0 %711
  %v714 = vsel %vm102, %v710, 0
  %v717 = vsel %vm102, %v712, 0
  %719 = vmatpush.bf16.xpose.msra.mxu0 0
  %720 = vmatpush.bf16.xpose.msra.mxu0 0
  %721 = vmatpush.bf16.xpose.msra.mxu0 0
  %722 = vmatpush.bf16.xpose.msra.mxu0 0
  %723 = vmatpush.bf16.xpose.msra.mxu0 0
  %724 = vmatpush.bf16.xpose.msra.mxu0 0
  %725 = vmatpush.bf16.xpose.msra.mxu0 0
  %726 = vmatpush.bf16.xpose.msra.mxu0 %v717
  %727 = vmatmul.bf16.gmra.mxu0 %v714
  %v728 = vpop.f32.mrf.mxu0
  %v729 = vadd.f32 0.0, %v728
  %v730 = vpop.f32.mrf.mxu0
  %731 = vdwg.mxu0
  %v732 = vsel %vm102, %v568, -inf
  %733 = vmax.xlane.f32.xlu0 %v732
  %v734 = vpop.xlane.xlu0 %733
  %v735 = vsel %vm102, %v591, -inf
  %736 = vmax.xlane.f32.xlu0 %v735
  %v737 = vpop.xlane.xlu0 %736
  %v738 = vsel %vm102, %v614, -inf
  %739 = vmax.xlane.f32.xlu0 %v738
  %v740 = vpop.xlane.xlu0 %739
  %v741 = vsel %vm102, %v637, -inf
  %742 = vmax.xlane.f32.xlu0 %v741
  %v743 = vpop.xlane.xlu0 %742
  %v744 = vsel %vm102, %v660, -inf
  %745 = vmax.xlane.f32.xlu0 %v744
  %v746 = vpop.xlane.xlu0 %745
  %v747 = vsel %vm102, %v683, -inf
  %748 = vmax.xlane.f32.xlu0 %v747
  %v749 = vpop.xlane.xlu0 %748
  %v750 = vsel %vm102, %v706, -inf
  %751 = vmax.xlane.f32.xlu0 %v750
  %v752 = vpop.xlane.xlu0 %751
  %v753 = vsel %vm102, %v729, -inf
  %754 = vmax.xlane.f32.xlu0 %v753
  %v755 = vpop.xlane.xlu0 %754
  %v756 = vsub.f32 %v568, %v734
  %v757 = vsub.f32 %v591, %v737
  %v758 = vsub.f32 %v614, %v740
  %v759 = vsub.f32 %v637, %v743
  %v760 = vsub.f32 %v660, %v746
  %v761 = vsub.f32 %v683, %v749
  %v762 = vsub.f32 %v706, %v752
  %v763 = vsub.f32 %v729, %v755
  %v764 = vmul.f32 %v756, 1.442695
  %v765 = vpow.pop %v764
  %v766 = vmul.f32 %v757, 1.442695
  %v767 = vpow.pop %v766
  %v768 = vmul.f32 %v758, 1.442695
  %v769 = vpow.pop %v768
  %v770 = vmul.f32 %v759, 1.442695
  %v771 = vpow.pop %v770
  %v772 = vmul.f32 %v760, 1.442695
  %v773 = vpow.pop %v772
  %v774 = vmul.f32 %v761, 1.442695
  %v775 = vpow.pop %v774
  %v776 = vmul.f32 %v762, 1.442695
  %v777 = vpow.pop %v776
  %v778 = vmul.f32 %v763, 1.442695
  %v779 = vpow.pop %v778
  %v780 = vsel %vm102, %v765, 0.0
  %781 = vadd.xlane.f32.xlu0 %v780
  %v782 = vpop.xlane.xlu0 %781
  %v783 = vsel %vm102, %v767, 0.0
  %784 = vadd.xlane.f32.xlu0 %v783
  %v785 = vpop.xlane.xlu0 %784
  %v786 = vsel %vm102, %v769, 0.0
  %787 = vadd.xlane.f32.xlu0 %v786
  %v788 = vpop.xlane.xlu0 %787
  %v789 = vsel %vm102, %v771, 0.0
  %790 = vadd.xlane.f32.xlu0 %v789
  %v791 = vpop.xlane.xlu0 %790
  %v792 = vsel %vm102, %v773, 0.0
  %793 = vadd.xlane.f32.xlu0 %v792
  %v794 = vpop.xlane.xlu0 %793
  %v795 = vsel %vm102, %v775, 0.0
  %796 = vadd.xlane.f32.xlu0 %v795
  %v797 = vpop.xlane.xlu0 %796
  %v798 = vsel %vm102, %v777, 0.0
  %799 = vadd.xlane.f32.xlu0 %v798
  %v800 = vpop.xlane.xlu0 %799
  %v801 = vsel %vm102, %v779, 0.0
  %802 = vadd.xlane.f32.xlu0 %v801
  %v803 = vpop.xlane.xlu0 %802
  %v804 = vpack.c.bf16 %v765, %v765
  %v805 = vpack.c.bf16 %v767, %v767
  %v806 = vpack.c.bf16 %v769, %v769
  %v807 = vpack.c.bf16 %v771, %v771
  %v808 = vpack.c.bf16 %v773, %v773
  %v809 = vpack.c.bf16 %v775, %v775
  %v810 = vpack.c.bf16 %v777, %v777
  %v811 = vpack.c.bf16 %v779, %v779
  %812 = vrot.lane.b32.xlu0 %v99, 56
  %v813 = vpop.permute.xlu0 %812
  %v815 = vsel %vm102, %v804, 0
  %v818 = vsel %vm368, %v813, 0
  %820 = vmatpush.bf16.msra.mxu0 0
  %821 = vmatpush.bf16.msra.mxu0 0
  %822 = vmatpush.bf16.msra.mxu0 0
  %823 = vmatpush.bf16.msra.mxu0 0
  %824 = vmatpush.bf16.msra.mxu0 0
  %825 = vmatpush.bf16.msra.mxu0 0
  %826 = vmatpush.bf16.msra.mxu0 0
  %827 = vmatpush.bf16.msra.mxu0 %v818
  %828 = vmatmul.bf16.gmra.mxu0 %v815
  %v829 = vpop.f32.mrf.mxu0
  %v830 = vadd.f32 0.0, %v829
  %v831 = vpop.f32.mrf.mxu0
  %832 = vdwg.mxu0
  %833 = vrot.lane.b32.xlu0 %v123, 56
  %v834 = vpop.permute.xlu0 %833
  %v836 = vsel %vm102, %v805, 0
  %v839 = vsel %vm368, %v834, 0
  %841 = vmatpush.bf16.msra.mxu0 0
  %842 = vmatpush.bf16.msra.mxu0 0
  %843 = vmatpush.bf16.msra.mxu0 0
  %844 = vmatpush.bf16.msra.mxu0 0
  %845 = vmatpush.bf16.msra.mxu0 0
  %846 = vmatpush.bf16.msra.mxu0 0
  %847 = vmatpush.bf16.msra.mxu0 0
  %848 = vmatpush.bf16.msra.mxu0 %v839
  %849 = vmatmul.bf16.gmra.mxu0 %v836
  %v850 = vpop.f32.mrf.mxu0
  %v851 = vadd.f32 0.0, %v850
  %v852 = vpop.f32.mrf.mxu0
  %853 = vdwg.mxu0
  %854 = vrot.lane.b32.xlu0 %v146, 56
  %v855 = vpop.permute.xlu0 %854
  %v857 = vsel %vm102, %v806, 0
  %v860 = vsel %vm368, %v855, 0
  %862 = vmatpush.bf16.msra.mxu0 0
  %863 = vmatpush.bf16.msra.mxu0 0
  %864 = vmatpush.bf16.msra.mxu0 0
  %865 = vmatpush.bf16.msra.mxu0 0
  %866 = vmatpush.bf16.msra.mxu0 0
  %867 = vmatpush.bf16.msra.mxu0 0
  %868 = vmatpush.bf16.msra.mxu0 0
  %869 = vmatpush.bf16.msra.mxu0 %v860
  %870 = vmatmul.bf16.gmra.mxu0 %v857
  %v871 = vpop.f32.mrf.mxu0
  %v872 = vadd.f32 0.0, %v871
  %v873 = vpop.f32.mrf.mxu0
  %874 = vdwg.mxu0
  %875 = vrot.lane.b32.xlu0 %v169, 56
  %v876 = vpop.permute.xlu0 %875
  %v878 = vsel %vm102, %v807, 0
  %v881 = vsel %vm368, %v876, 0
  %883 = vmatpush.bf16.msra.mxu0 0
  %884 = vmatpush.bf16.msra.mxu0 0
  %885 = vmatpush.bf16.msra.mxu0 0
  %886 = vmatpush.bf16.msra.mxu0 0
  %887 = vmatpush.bf16.msra.mxu0 0
  %888 = vmatpush.bf16.msra.mxu0 0
  %889 = vmatpush.bf16.msra.mxu0 0
  %890 = vmatpush.bf16.msra.mxu0 %v881
  %891 = vmatmul.bf16.gmra.mxu0 %v878
  %v892 = vpop.f32.mrf.mxu0
  %v893 = vadd.f32 0.0, %v892
  %v894 = vpop.f32.mrf.mxu0
  %895 = vdwg.mxu0
  %896 = vrot.lane.b32.xlu0 %v192, 56
  %v897 = vpop.permute.xlu0 %896
  %v899 = vsel %vm102, %v808, 0
  %v902 = vsel %vm368, %v897, 0
  %904 = vmatpush.bf16.msra.mxu0 0
  %905 = vmatpush.bf16.msra.mxu0 0
  %906 = vmatpush.bf16.msra.mxu0 0
  %907 = vmatpush.bf16.msra.mxu0 0
  %908 = vmatpush.bf16.msra.mxu0 0
  %909 = vmatpush.bf16.msra.mxu0 0
  %910 = vmatpush.bf16.msra.mxu0 0
  %911 = vmatpush.bf16.msra.mxu0 %v902
  %912 = vmatmul.bf16.gmra.mxu0 %v899
  %v913 = vpop.f32.mrf.mxu0
  %v914 = vadd.f32 0.0, %v913
  %v915 = vpop.f32.mrf.mxu0
  %916 = vdwg.mxu0
  %917 = vrot.lane.b32.xlu0 %v215, 56
  %v918 = vpop.permute.xlu0 %917
  %v920 = vsel %vm102, %v809, 0
  %v923 = vsel %vm368, %v918, 0
  %925 = vmatpush.bf16.msra.mxu0 0
  %926 = vmatpush.bf16.msra.mxu0 0
  %927 = vmatpush.bf16.msra.mxu0 0
  %928 = vmatpush.bf16.msra.mxu0 0
  %929 = vmatpush.bf16.msra.mxu0 0
  %930 = vmatpush.bf16.msra.mxu0 0
  %931 = vmatpush.bf16.msra.mxu0 0
  %932 = vmatpush.bf16.msra.mxu0 %v923
  %933 = vmatmul.bf16.gmra.mxu0 %v920
  %v934 = vpop.f32.mrf.mxu0
  %v935 = vadd.f32 0.0, %v934
  %v936 = vpop.f32.mrf.mxu0
  %937 = vdwg.mxu0
  %938 = vrot.lane.b32.xlu0 %v238, 56
  %v939 = vpop.permute.xlu0 %938
  %v941 = vsel %vm102, %v810, 0
  %v944 = vsel %vm368, %v939, 0
  %946 = vmatpush.bf16.msra.mxu0 0
  %947 = vmatpush.bf16.msra.mxu0 0
  %948 = vmatpush.bf16.msra.mxu0 0
  %949 = vmatpush.bf16.msra.mxu0 0
  %950 = vmatpush.bf16.msra.mxu0 0
  %951 = vmatpush.bf16.msra.mxu0 0
  %952 = vmatpush.bf16.msra.mxu0 0
  %953 = vmatpush.bf16.msra.mxu0 %v944
  %954 = vmatmul.bf16.gmra.mxu0 %v941
  %v955 = vpop.f32.mrf.mxu0
  %v956 = vadd.f32 0.0, %v955
  %v957 = vpop.f32.mrf.mxu0
  %958 = vdwg.mxu0
  %959 = vrot.lane.b32.xlu0 %v261, 56
  %v960 = vpop.permute.xlu0 %959
  %v962 = vsel %vm102, %v811, 0
  %v965 = vsel %vm368, %v960, 0
  %967 = vmatpush.bf16.msra.mxu0 0
  %968 = vmatpush.bf16.msra.mxu0 0
  %969 = vmatpush.bf16.msra.mxu0 0
  %970 = vmatpush.bf16.msra.mxu0 0
  %971 = vmatpush.bf16.msra.mxu0 0
  %972 = vmatpush.bf16.msra.mxu0 0
  %973 = vmatpush.bf16.msra.mxu0 0
  %974 = vmatpush.bf16.msra.mxu0 %v965
  %975 = vmatmul.bf16.gmra.mxu0 %v962
  %v976 = vpop.f32.mrf.mxu0
  %v977 = vadd.f32 0.0, %v976
  %v978 = vpop.f32.mrf.mxu0
  %979 = vdwg.mxu0
  %v980 = vrcp.pop %v782
  %v981 = vrcp.pop %v785
  %v982 = vrcp.pop %v788
  %v983 = vrcp.pop %v791
  %v984 = vrcp.pop %v794
  %v985 = vrcp.pop %v797
  %v986 = vrcp.pop %v800
  %v987 = vrcp.pop %v803
  %v988 = vmul.f32 %v830, %v980
  %v989 = vmul.f32 %v851, %v981
  %v990 = vmul.f32 %v872, %v982
  %v991 = vmul.f32 %v893, %v983
  %v992 = vmul.f32 %v914, %v984
  %v993 = vmul.f32 %v935, %v985
  %v994 = vmul.f32 %v956, %v986
  %v995 = vmul.f32 %v977, %v987
  %996 = vrot.lane.b32.xlu0 %v99, 112
  %v997 = vpop.permute.xlu0 %996
  %998 = vrot.lane.b32.xlu0 %v99, 80
  %v999 = vpop.permute.xlu0 %998
  %v1001 = vsel %vm102, %v997, 0
  %v1004 = vsel %vm102, %v999, 0
  %1006 = vmatpush.bf16.xpose.msra.mxu0 0
  %1007 = vmatpush.bf16.xpose.msra.mxu0 0
  %1008 = vmatpush.bf16.xpose.msra.mxu0 0
  %1009 = vmatpush.bf16.xpose.msra.mxu0 0
  %1010 = vmatpush.bf16.xpose.msra.mxu0 0
  %1011 = vmatpush.bf16.xpose.msra.mxu0 0
  %1012 = vmatpush.bf16.xpose.msra.mxu0 0
  %1013 = vmatpush.bf16.xpose.msra.mxu0 %v1004
  %1014 = vmatmul.bf16.gmra.mxu0 %v1001
  %v1015 = vpop.f32.mrf.mxu0
  %v1016 = vadd.f32 0.0, %v1015
  %v1017 = vpop.f32.mrf.mxu0
  %1018 = vdwg.mxu0
  %1019 = vrot.lane.b32.xlu0 %v123, 112
  %v1020 = vpop.permute.xlu0 %1019
  %1021 = vrot.lane.b32.xlu0 %v123, 80
  %v1022 = vpop.permute.xlu0 %1021
  %v1024 = vsel %vm102, %v1020, 0
  %v1027 = vsel %vm102, %v1022, 0
  %1029 = vmatpush.bf16.xpose.msra.mxu0 0
  %1030 = vmatpush.bf16.xpose.msra.mxu0 0
  %1031 = vmatpush.bf16.xpose.msra.mxu0 0
  %1032 = vmatpush.bf16.xpose.msra.mxu0 0
  %1033 = vmatpush.bf16.xpose.msra.mxu0 0
  %1034 = vmatpush.bf16.xpose.msra.mxu0 0
  %1035 = vmatpush.bf16.xpose.msra.mxu0 0
  %1036 = vmatpush.bf16.xpose.msra.mxu0 %v1027
  %1037 = vmatmul.bf16.gmra.mxu0 %v1024
  %v1038 = vpop.f32.mrf.mxu0
  %v1039 = vadd.f32 0.0, %v1038
  %v1040 = vpop.f32.mrf.mxu0
  %1041 = vdwg.mxu0
  %1042 = vrot.lane.b32.xlu0 %v146, 112
  %v1043 = vpop.permute.xlu0 %1042
  %1044 = vrot.lane.b32.xlu0 %v146, 80
  %v1045 = vpop.permute.xlu0 %1044
  %v1047 = vsel %vm102, %v1043, 0
  %v1050 = vsel %vm102, %v1045, 0
  %1052 = vmatpush.bf16.xpose.msra.mxu0 0
  %1053 = vmatpush.bf16.xpose.msra.mxu0 0
  %1054 = vmatpush.bf16.xpose.msra.mxu0 0
  %1055 = vmatpush.bf16.xpose.msra.mxu0 0
  %1056 = vmatpush.bf16.xpose.msra.mxu0 0
  %1057 = vmatpush.bf16.xpose.msra.mxu0 0
  %1058 = vmatpush.bf16.xpose.msra.mxu0 0
  %1059 = vmatpush.bf16.xpose.msra.mxu0 %v1050
  %1060 = vmatmul.bf16.gmra.mxu0 %v1047
  %v1061 = vpop.f32.mrf.mxu0
  %v1062 = vadd.f32 0.0, %v1061
  %v1063 = vpop.f32.mrf.mxu0
  %1064 = vdwg.mxu0
  %1065 = vrot.lane.b32.xlu0 %v169, 112
  %v1066 = vpop.permute.xlu0 %1065
  %1067 = vrot.lane.b32.xlu0 %v169, 80
  %v1068 = vpop.permute.xlu0 %1067
  %v1070 = vsel %vm102, %v1066, 0
  %v1073 = vsel %vm102, %v1068, 0
  %1075 = vmatpush.bf16.xpose.msra.mxu0 0
  %1076 = vmatpush.bf16.xpose.msra.mxu0 0
  %1077 = vmatpush.bf16.xpose.msra.mxu0 0
  %1078 = vmatpush.bf16.xpose.msra.mxu0 0
  %1079 = vmatpush.bf16.xpose.msra.mxu0 0
  %1080 = vmatpush.bf16.xpose.msra.mxu0 0
  %1081 = vmatpush.bf16.xpose.msra.mxu0 0
  %1082 = vmatpush.bf16.xpose.msra.mxu0 %v1073
  %1083 = vmatmul.bf16.gmra.mxu0 %v1070
  %v1084 = vpop.f32.mrf.mxu0
  %v1085 = vadd.f32 0.0, %v1084
  %v1086 = vpop.f32.mrf.mxu0
  %1087 = vdwg.mxu0
  %1088 = vrot.lane.b32.xlu0 %v192, 112
  %v1089 = vpop.permute.xlu0 %1088
  %1090 = vrot.lane.b32.xlu0 %v192, 80
  %v1091 = vpop.permute.xlu0 %1090
  %v1093 = vsel %vm102, %v1089, 0
  %v1096 = vsel %vm102, %v1091, 0
  %1098 = vmatpush.bf16.xpose.msra.mxu0 0
  %1099 = vmatpush.bf16.xpose.msra.mxu0 0
  %1100 = vmatpush.bf16.xpose.msra.mxu0 0
  %1101 = vmatpush.bf16.xpose.msra.mxu0 0
  %1102 = vmatpush.bf16.xpose.msra.mxu0 0
  %1103 = vmatpush.bf16.xpose.msra.mxu0 0
  %1104 = vmatpush.bf16.xpose.msra.mxu0 0
  %1105 = vmatpush.bf16.xpose.msra.mxu0 %v1096
  %1106 = vmatmul.bf16.gmra.mxu0 %v1093
  %v1107 = vpop.f32.mrf.mxu0
  %v1108 = vadd.f32 0.0, %v1107
  %v1109 = vpop.f32.mrf.mxu0
  %1110 = vdwg.mxu0
  %1111 = vrot.lane.b32.xlu0 %v215, 112
  %v1112 = vpop.permute.xlu0 %1111
  %1113 = vrot.lane.b32.xlu0 %v215, 80
  %v1114 = vpop.permute.xlu0 %1113
  %v1116 = vsel %vm102, %v1112, 0
  %v1119 = vsel %vm102, %v1114, 0
  %1121 = vmatpush.bf16.xpose.msra.mxu0 0
  %1122 = vmatpush.bf16.xpose.msra.mxu0 0
  %1123 = vmatpush.bf16.xpose.msra.mxu0 0
  %1124 = vmatpush.bf16.xpose.msra.mxu0 0
  %1125 = vmatpush.bf16.xpose.msra.mxu0 0
  %1126 = vmatpush.bf16.xpose.msra.mxu0 0
  %1127 = vmatpush.bf16.xpose.msra.mxu0 0
  %1128 = vmatpush.bf16.xpose.msra.mxu0 %v1119
  %1129 = vmatmul.bf16.gmra.mxu0 %v1116
  %v1130 = vpop.f32.mrf.mxu0
  %v1131 = vadd.f32 0.0, %v1130
  %v1132 = vpop.f32.mrf.mxu0
  %1133 = vdwg.mxu0
  %1134 = vrot.lane.b32.xlu0 %v238, 112
  %v1135 = vpop.permute.xlu0 %1134
  %1136 = vrot.lane.b32.xlu0 %v238, 80
  %v1137 = vpop.permute.xlu0 %1136
  %v1139 = vsel %vm102, %v1135, 0
  %v1142 = vsel %vm102, %v1137, 0
  %1144 = vmatpush.bf16.xpose.msra.mxu0 0
  %1145 = vmatpush.bf16.xpose.msra.mxu0 0
  %1146 = vmatpush.bf16.xpose.msra.mxu0 0
  %1147 = vmatpush.bf16.xpose.msra.mxu0 0
  %1148 = vmatpush.bf16.xpose.msra.mxu0 0
  %1149 = vmatpush.bf16.xpose.msra.mxu0 0
  %1150 = vmatpush.bf16.xpose.msra.mxu0 0
  %1151 = vmatpush.bf16.xpose.msra.mxu0 %v1142
  %1152 = vmatmul.bf16.gmra.mxu0 %v1139
  %v1153 = vpop.f32.mrf.mxu0
  %v1154 = vadd.f32 0.0, %v1153
  %v1155 = vpop.f32.mrf.mxu0
  %1156 = vdwg.mxu0
  %1157 = vrot.lane.b32.xlu0 %v261, 112
  %v1158 = vpop.permute.xlu0 %1157
  %1159 = vrot.lane.b32.xlu0 %v261, 80
  %v1160 = vpop.permute.xlu0 %1159
  %v1162 = vsel %vm102, %v1158, 0
  %v1165 = vsel %vm102, %v1160, 0
  %1167 = vmatpush.bf16.xpose.msra.mxu0 0
  %1168 = vmatpush.bf16.xpose.msra.mxu0 0
  %1169 = vmatpush.bf16.xpose.msra.mxu0 0
  %1170 = vmatpush.bf16.xpose.msra.mxu0 0
  %1171 = vmatpush.bf16.xpose.msra.mxu0 0
  %1172 = vmatpush.bf16.xpose.msra.mxu0 0
  %1173 = vmatpush.bf16.xpose.msra.mxu0 0
  %1174 = vmatpush.bf16.xpose.msra.mxu0 %v1165
  %1175 = vmatmul.bf16.gmra.mxu0 %v1162
  %v1176 = vpop.f32.mrf.mxu0
  %v1177 = vadd.f32 0.0, %v1176
  %v1178 = vpop.f32.mrf.mxu0
  %1179 = vdwg.mxu0
  %v1180 = vsel %vm102, %v1016, -inf
  %1181 = vmax.xlane.f32.xlu0 %v1180
  %v1182 = vpop.xlane.xlu0 %1181
  %v1183 = vsel %vm102, %v1039, -inf
  %1184 = vmax.xlane.f32.xlu0 %v1183
  %v1185 = vpop.xlane.xlu0 %1184
  %v1186 = vsel %vm102, %v1062, -inf
  %1187 = vmax.xlane.f32.xlu0 %v1186
  %v1188 = vpop.xlane.xlu0 %1187
  %v1189 = vsel %vm102, %v1085, -inf
  %1190 = vmax.xlane.f32.xlu0 %v1189
  %v1191 = vpop.xlane.xlu0 %1190
  %v1192 = vsel %vm102, %v1108, -inf
  %1193 = vmax.xlane.f32.xlu0 %v1192
  %v1194 = vpop.xlane.xlu0 %1193
  %v1195 = vsel %vm102, %v1131, -inf
  %1196 = vmax.xlane.f32.xlu0 %v1195
  %v1197 = vpop.xlane.xlu0 %1196
  %v1198 = vsel %vm102, %v1154, -inf
  %1199 = vmax.xlane.f32.xlu0 %v1198
  %v1200 = vpop.xlane.xlu0 %1199
  %v1201 = vsel %vm102, %v1177, -inf
  %1202 = vmax.xlane.f32.xlu0 %v1201
  %v1203 = vpop.xlane.xlu0 %1202
  %v1204 = vsub.f32 %v1016, %v1182
  %v1205 = vsub.f32 %v1039, %v1185
  %v1206 = vsub.f32 %v1062, %v1188
  %v1207 = vsub.f32 %v1085, %v1191
  %v1208 = vsub.f32 %v1108, %v1194
  %v1209 = vsub.f32 %v1131, %v1197
  %v1210 = vsub.f32 %v1154, %v1200
  %v1211 = vsub.f32 %v1177, %v1203
  %v1212 = vmul.f32 %v1204, 1.442695
  %v1213 = vpow.pop %v1212
  %v1214 = vmul.f32 %v1205, 1.442695
  %v1215 = vpow.pop %v1214
  %v1216 = vmul.f32 %v1206, 1.442695
  %v1217 = vpow.pop %v1216
  %v1218 = vmul.f32 %v1207, 1.442695
  %v1219 = vpow.pop %v1218
  %v1220 = vmul.f32 %v1208, 1.442695
  %v1221 = vpow.pop %v1220
  %v1222 = vmul.f32 %v1209, 1.442695
  %v1223 = vpow.pop %v1222
  %v1224 = vmul.f32 %v1210, 1.442695
  %v1225 = vpow.pop %v1224
  %v1226 = vmul.f32 %v1211, 1.442695
  %v1227 = vpow.pop %v1226
  %v1228 = vsel %vm102, %v1213, 0.0
  %1229 = vadd.xlane.f32.xlu0 %v1228
  %v1230 = vpop.xlane.xlu0 %1229
  %v1231 = vsel %vm102, %v1215, 0.0
  %1232 = vadd.xlane.f32.xlu0 %v1231
  %v1233 = vpop.xlane.xlu0 %1232
  %v1234 = vsel %vm102, %v1217, 0.0
  %1235 = vadd.xlane.f32.xlu0 %v1234
  %v1236 = vpop.xlane.xlu0 %1235
  %v1237 = vsel %vm102, %v1219, 0.0
  %1238 = vadd.xlane.f32.xlu0 %v1237
  %v1239 = vpop.xlane.xlu0 %1238
  %v1240 = vsel %vm102, %v1221, 0.0
  %1241 = vadd.xlane.f32.xlu0 %v1240
  %v1242 = vpop.xlane.xlu0 %1241
  %v1243 = vsel %vm102, %v1223, 0.0
  %1244 = vadd.xlane.f32.xlu0 %v1243
  %v1245 = vpop.xlane.xlu0 %1244
  %v1246 = vsel %vm102, %v1225, 0.0
  %1247 = vadd.xlane.f32.xlu0 %v1246
  %v1248 = vpop.xlane.xlu0 %1247
  %v1249 = vsel %vm102, %v1227, 0.0
  %1250 = vadd.xlane.f32.xlu0 %v1249
  %v1251 = vpop.xlane.xlu0 %1250
  %v1252 = vpack.c.bf16 %v1213, %v1213
  %v1253 = vpack.c.bf16 %v1215, %v1215
  %v1254 = vpack.c.bf16 %v1217, %v1217
  %v1255 = vpack.c.bf16 %v1219, %v1219
  %v1256 = vpack.c.bf16 %v1221, %v1221
  %v1257 = vpack.c.bf16 %v1223, %v1223
  %v1258 = vpack.c.bf16 %v1225, %v1225
  %v1259 = vpack.c.bf16 %v1227, %v1227
  %1260 = vrot.lane.b32.xlu0 %v99, 48
  %v1261 = vpop.permute.xlu0 %1260
  %v1263 = vsel %vm102, %v1252, 0
  %v1266 = vsel %vm368, %v1261, 0
  %1268 = vmatpush.bf16.msra.mxu0 0
  %1269 = vmatpush.bf16.msra.mxu0 0
  %1270 = vmatpush.bf16.msra.mxu0 0
  %1271 = vmatpush.bf16.msra.mxu0 0
  %1272 = vmatpush.bf16.msra.mxu0 0
  %1273 = vmatpush.bf16.msra.mxu0 0
  %1274 = vmatpush.bf16.msra.mxu0 0
  %1275 = vmatpush.bf16.msra.mxu0 %v1266
  %1276 = vmatmul.bf16.gmra.mxu0 %v1263
  %v1277 = vpop.f32.mrf.mxu0
  %v1278 = vadd.f32 0.0, %v1277
  %v1279 = vpop.f32.mrf.mxu0
  %1280 = vdwg.mxu0
  %1281 = vrot.lane.b32.xlu0 %v123, 48
  %v1282 = vpop.permute.xlu0 %1281
  %v1284 = vsel %vm102, %v1253, 0
  %v1287 = vsel %vm368, %v1282, 0
  %1289 = vmatpush.bf16.msra.mxu0 0
  %1290 = vmatpush.bf16.msra.mxu0 0
  %1291 = vmatpush.bf16.msra.mxu0 0
  %1292 = vmatpush.bf16.msra.mxu0 0
  %1293 = vmatpush.bf16.msra.mxu0 0
  %1294 = vmatpush.bf16.msra.mxu0 0
  %1295 = vmatpush.bf16.msra.mxu0 0
  %1296 = vmatpush.bf16.msra.mxu0 %v1287
  %1297 = vmatmul.bf16.gmra.mxu0 %v1284
  %v1298 = vpop.f32.mrf.mxu0
  %v1299 = vadd.f32 0.0, %v1298
  %v1300 = vpop.f32.mrf.mxu0
  %1301 = vdwg.mxu0
  %1302 = vrot.lane.b32.xlu0 %v146, 48
  %v1303 = vpop.permute.xlu0 %1302
  %v1305 = vsel %vm102, %v1254, 0
  %v1308 = vsel %vm368, %v1303, 0
  %1310 = vmatpush.bf16.msra.mxu0 0
  %1311 = vmatpush.bf16.msra.mxu0 0
  %1312 = vmatpush.bf16.msra.mxu0 0
  %1313 = vmatpush.bf16.msra.mxu0 0
  %1314 = vmatpush.bf16.msra.mxu0 0
  %1315 = vmatpush.bf16.msra.mxu0 0
  %1316 = vmatpush.bf16.msra.mxu0 0
  %1317 = vmatpush.bf16.msra.mxu0 %v1308
  %1318 = vmatmul.bf16.gmra.mxu0 %v1305
  %v1319 = vpop.f32.mrf.mxu0
  %v1320 = vadd.f32 0.0, %v1319
  %v1321 = vpop.f32.mrf.mxu0
  %1322 = vdwg.mxu0
  %1323 = vrot.lane.b32.xlu0 %v169, 48
  %v1324 = vpop.permute.xlu0 %1323
  %v1326 = vsel %vm102, %v1255, 0
  %v1329 = vsel %vm368, %v1324, 0
  %1331 = vmatpush.bf16.msra.mxu0 0
  %1332 = vmatpush.bf16.msra.mxu0 0
  %1333 = vmatpush.bf16.msra.mxu0 0
  %1334 = vmatpush.bf16.msra.mxu0 0
  %1335 = vmatpush.bf16.msra.mxu0 0
  %1336 = vmatpush.bf16.msra.mxu0 0
  %1337 = vmatpush.bf16.msra.mxu0 0
  %1338 = vmatpush.bf16.msra.mxu0 %v1329
  %1339 = vmatmul.bf16.gmra.mxu0 %v1326
  %v1340 = vpop.f32.mrf.mxu0
  %v1341 = vadd.f32 0.0, %v1340
  %v1342 = vpop.f32.mrf.mxu0
  %1343 = vdwg.mxu0
  %1344 = vrot.lane.b32.xlu0 %v192, 48
  %v1345 = vpop.permute.xlu0 %1344
  %v1347 = vsel %vm102, %v1256, 0
  %v1350 = vsel %vm368, %v1345, 0
  %1352 = vmatpush.bf16.msra.mxu0 0
  %1353 = vmatpush.bf16.msra.mxu0 0
  %1354 = vmatpush.bf16.msra.mxu0 0
  %1355 = vmatpush.bf16.msra.mxu0 0
  %1356 = vmatpush.bf16.msra.mxu0 0
  %1357 = vmatpush.bf16.msra.mxu0 0
  %1358 = vmatpush.bf16.msra.mxu0 0
  %1359 = vmatpush.bf16.msra.mxu0 %v1350
  %1360 = vmatmul.bf16.gmra.mxu0 %v1347
  %v1361 = vpop.f32.mrf.mxu0
  %v1362 = vadd.f32 0.0, %v1361
  %v1363 = vpop.f32.mrf.mxu0
  %1364 = vdwg.mxu0
  %1365 = vrot.lane.b32.xlu0 %v215, 48
  %v1366 = vpop.permute.xlu0 %1365
  %v1368 = vsel %vm102, %v1257, 0
  %v1371 = vsel %vm368, %v1366, 0
  %1373 = vmatpush.bf16.msra.mxu0 0
  %1374 = vmatpush.bf16.msra.mxu0 0
  %1375 = vmatpush.bf16.msra.mxu0 0
  %1376 = vmatpush.bf16.msra.mxu0 0
  %1377 = vmatpush.bf16.msra.mxu0 0
  %1378 = vmatpush.bf16.msra.mxu0 0
  %1379 = vmatpush.bf16.msra.mxu0 0
  %1380 = vmatpush.bf16.msra.mxu0 %v1371
  %1381 = vmatmul.bf16.gmra.mxu0 %v1368
  %v1382 = vpop.f32.mrf.mxu0
  %v1383 = vadd.f32 0.0, %v1382
  %v1384 = vpop.f32.mrf.mxu0
  %1385 = vdwg.mxu0
  %1386 = vrot.lane.b32.xlu0 %v238, 48
  %v1387 = vpop.permute.xlu0 %1386
  %v1389 = vsel %vm102, %v1258, 0
  %v1392 = vsel %vm368, %v1387, 0
  %1394 = vmatpush.bf16.msra.mxu0 0
  %1395 = vmatpush.bf16.msra.mxu0 0
  %1396 = vmatpush.bf16.msra.mxu0 0
  %1397 = vmatpush.bf16.msra.mxu0 0
  %1398 = vmatpush.bf16.msra.mxu0 0
  %1399 = vmatpush.bf16.msra.mxu0 0
  %1400 = vmatpush.bf16.msra.mxu0 0
  %1401 = vmatpush.bf16.msra.mxu0 %v1392
  %1402 = vmatmul.bf16.gmra.mxu0 %v1389
  %v1403 = vpop.f32.mrf.mxu0
  %v1404 = vadd.f32 0.0, %v1403
  %v1405 = vpop.f32.mrf.mxu0
  %1406 = vdwg.mxu0
  %1407 = vrot.lane.b32.xlu0 %v261, 48
  %v1408 = vpop.permute.xlu0 %1407
  %v1410 = vsel %vm102, %v1259, 0
  %v1413 = vsel %vm368, %v1408, 0
  %1415 = vmatpush.bf16.msra.mxu0 0
  %1416 = vmatpush.bf16.msra.mxu0 0
  %1417 = vmatpush.bf16.msra.mxu0 0
  %1418 = vmatpush.bf16.msra.mxu0 0
  %1419 = vmatpush.bf16.msra.mxu0 0
  %1420 = vmatpush.bf16.msra.mxu0 0
  %1421 = vmatpush.bf16.msra.mxu0 0
  %1422 = vmatpush.bf16.msra.mxu0 %v1413
  %1423 = vmatmul.bf16.gmra.mxu0 %v1410
  %v1424 = vpop.f32.mrf.mxu0
  %v1425 = vadd.f32 0.0, %v1424
  %v1426 = vpop.f32.mrf.mxu0
  %1427 = vdwg.mxu0
  %v1428 = vrcp.pop %v1230
  %v1429 = vrcp.pop %v1233
  %v1430 = vrcp.pop %v1236
  %v1431 = vrcp.pop %v1239
  %v1432 = vrcp.pop %v1242
  %v1433 = vrcp.pop %v1245
  %v1434 = vrcp.pop %v1248
  %v1435 = vrcp.pop %v1251
  %v1436 = vmul.f32 %v1278, %v1428
  %v1437 = vmul.f32 %v1299, %v1429
  %v1438 = vmul.f32 %v1320, %v1430
  %v1439 = vmul.f32 %v1341, %v1431
  %v1440 = vmul.f32 %v1362, %v1432
  %v1441 = vmul.f32 %v1383, %v1433
  %v1442 = vmul.f32 %v1404, %v1434
  %v1443 = vmul.f32 %v1425, %v1435
  %1444 = vrot.lane.b32.xlu0 %v99, 104
  %v1445 = vpop.permute.xlu0 %1444
  %1446 = vrot.lane.b32.xlu0 %v99, 72
  %v1447 = vpop.permute.xlu0 %1446
  %v1449 = vsel %vm102, %v1445, 0
  %v1452 = vsel %vm102, %v1447, 0
  %1454 = vmatpush.bf16.xpose.msra.mxu0 0
  %1455 = vmatpush.bf16.xpose.msra.mxu0 0
  %1456 = vmatpush.bf16.xpose.msra.mxu0 0
  %1457 = vmatpush.bf16.xpose.msra.mxu0 0
  %1458 = vmatpush.bf16.xpose.msra.mxu0 0
  %1459 = vmatpush.bf16.xpose.msra.mxu0 0
  %1460 = vmatpush.bf16.xpose.msra.mxu0 0
  %1461 = vmatpush.bf16.xpose.msra.mxu0 %v1452
  %1462 = vmatmul.bf16.gmra.mxu0 %v1449
  %v1463 = vpop.f32.mrf.mxu0
  %v1464 = vadd.f32 0.0, %v1463
  %v1465 = vpop.f32.mrf.mxu0
  %1466 = vdwg.mxu0
  %1467 = vrot.lane.b32.xlu0 %v123, 104
  %v1468 = vpop.permute.xlu0 %1467
  %1469 = vrot.lane.b32.xlu0 %v123, 72
  %v1470 = vpop.permute.xlu0 %1469
  %v1472 = vsel %vm102, %v1468, 0
  %v1475 = vsel %vm102, %v1470, 0
  %1477 = vmatpush.bf16.xpose.msra.mxu0 0
  %1478 = vmatpush.bf16.xpose.msra.mxu0 0
  %1479 = vmatpush.bf16.xpose.msra.mxu0 0
  %1480 = vmatpush.bf16.xpose.msra.mxu0 0
  %1481 = vmatpush.bf16.xpose.msra.mxu0 0
  %1482 = vmatpush.bf16.xpose.msra.mxu0 0
  %1483 = vmatpush.bf16.xpose.msra.mxu0 0
  %1484 = vmatpush.bf16.xpose.msra.mxu0 %v1475
  %1485 = vmatmul.bf16.gmra.mxu0 %v1472
  %v1486 = vpop.f32.mrf.mxu0
  %v1487 = vadd.f32 0.0, %v1486
  %v1488 = vpop.f32.mrf.mxu0
  %1489 = vdwg.mxu0
  %1490 = vrot.lane.b32.xlu0 %v146, 104
  %v1491 = vpop.permute.xlu0 %1490
  %1492 = vrot.lane.b32.xlu0 %v146, 72
  %v1493 = vpop.permute.xlu0 %1492
  %v1495 = vsel %vm102, %v1491, 0
  %v1498 = vsel %vm102, %v1493, 0
  %1500 = vmatpush.bf16.xpose.msra.mxu0 0
  %1501 = vmatpush.bf16.xpose.msra.mxu0 0
  %1502 = vmatpush.bf16.xpose.msra.mxu0 0
  %1503 = vmatpush.bf16.xpose.msra.mxu0 0
  %1504 = vmatpush.bf16.xpose.msra.mxu0 0
  %1505 = vmatpush.bf16.xpose.msra.mxu0 0
  %1506 = vmatpush.bf16.xpose.msra.mxu0 0
  %1507 = vmatpush.bf16.xpose.msra.mxu0 %v1498
  %1508 = vmatmul.bf16.gmra.mxu0 %v1495
  %v1509 = vpop.f32.mrf.mxu0
  %v1510 = vadd.f32 0.0, %v1509
  %v1511 = vpop.f32.mrf.mxu0
  %1512 = vdwg.mxu0
  %1513 = vrot.lane.b32.xlu0 %v169, 104
  %v1514 = vpop.permute.xlu0 %1513
  %1515 = vrot.lane.b32.xlu0 %v169, 72
  %v1516 = vpop.permute.xlu0 %1515
  %v1518 = vsel %vm102, %v1514, 0
  %v1521 = vsel %vm102, %v1516, 0
  %1523 = vmatpush.bf16.xpose.msra.mxu0 0
  %1524 = vmatpush.bf16.xpose.msra.mxu0 0
  %1525 = vmatpush.bf16.xpose.msra.mxu0 0
  %1526 = vmatpush.bf16.xpose.msra.mxu0 0
  %1527 = vmatpush.bf16.xpose.msra.mxu0 0
  %1528 = vmatpush.bf16.xpose.msra.mxu0 0
  %1529 = vmatpush.bf16.xpose.msra.mxu0 0
  %1530 = vmatpush.bf16.xpose.msra.mxu0 %v1521
  %1531 = vmatmul.bf16.gmra.mxu0 %v1518
  %v1532 = vpop.f32.mrf.mxu0
  %v1533 = vadd.f32 0.0, %v1532
  %v1534 = vpop.f32.mrf.mxu0
  %1535 = vdwg.mxu0
  %1536 = vrot.lane.b32.xlu0 %v192, 104
  %v1537 = vpop.permute.xlu0 %1536
  %1538 = vrot.lane.b32.xlu0 %v192, 72
  %v1539 = vpop.permute.xlu0 %1538
  %v1541 = vsel %vm102, %v1537, 0
  %v1544 = vsel %vm102, %v1539, 0
  %1546 = vmatpush.bf16.xpose.msra.mxu0 0
  %1547 = vmatpush.bf16.xpose.msra.mxu0 0
  %1548 = vmatpush.bf16.xpose.msra.mxu0 0
  %1549 = vmatpush.bf16.xpose.msra.mxu0 0
  %1550 = vmatpush.bf16.xpose.msra.mxu0 0
  %1551 = vmatpush.bf16.xpose.msra.mxu0 0
  %1552 = vmatpush.bf16.xpose.msra.mxu0 0
  %1553 = vmatpush.bf16.xpose.msra.mxu0 %v1544
  %1554 = vmatmul.bf16.gmra.mxu0 %v1541
  %v1555 = vpop.f32.mrf.mxu0
  %v1556 = vadd.f32 0.0, %v1555
  %v1557 = vpop.f32.mrf.mxu0
  %1558 = vdwg.mxu0
  %1559 = vrot.lane.b32.xlu0 %v215, 104
  %v1560 = vpop.permute.xlu0 %1559
  %1561 = vrot.lane.b32.xlu0 %v215, 72
  %v1562 = vpop.permute.xlu0 %1561
  %v1564 = vsel %vm102, %v1560, 0
  %v1567 = vsel %vm102, %v1562, 0
  %1569 = vmatpush.bf16.xpose.msra.mxu0 0
  %1570 = vmatpush.bf16.xpose.msra.mxu0 0
  %1571 = vmatpush.bf16.xpose.msra.mxu0 0
  %1572 = vmatpush.bf16.xpose.msra.mxu0 0
  %1573 = vmatpush.bf16.xpose.msra.mxu0 0
  %1574 = vmatpush.bf16.xpose.msra.mxu0 0
  %1575 = vmatpush.bf16.xpose.msra.mxu0 0
  %1576 = vmatpush.bf16.xpose.msra.mxu0 %v1567
  %1577 = vmatmul.bf16.gmra.mxu0 %v1564
  %v1578 = vpop.f32.mrf.mxu0
  %v1579 = vadd.f32 0.0, %v1578
  %v1580 = vpop.f32.mrf.mxu0
  %1581 = vdwg.mxu0
  %1582 = vrot.lane.b32.xlu0 %v238, 104
  %v1583 = vpop.permute.xlu0 %1582
  %1584 = vrot.lane.b32.xlu0 %v238, 72
  %v1585 = vpop.permute.xlu0 %1584
  %v1587 = vsel %vm102, %v1583, 0
  %v1590 = vsel %vm102, %v1585, 0
  %1592 = vmatpush.bf16.xpose.msra.mxu0 0
  %1593 = vmatpush.bf16.xpose.msra.mxu0 0
  %1594 = vmatpush.bf16.xpose.msra.mxu0 0
  %1595 = vmatpush.bf16.xpose.msra.mxu0 0
  %1596 = vmatpush.bf16.xpose.msra.mxu0 0
  %1597 = vmatpush.bf16.xpose.msra.mxu0 0
  %1598 = vmatpush.bf16.xpose.msra.mxu0 0
  %1599 = vmatpush.bf16.xpose.msra.mxu0 %v1590
  %1600 = vmatmul.bf16.gmra.mxu0 %v1587
  %v1601 = vpop.f32.mrf.mxu0
  %v1602 = vadd.f32 0.0, %v1601
  %v1603 = vpop.f32.mrf.mxu0
  %1604 = vdwg.mxu0
  %1605 = vrot.lane.b32.xlu0 %v261, 104
  %v1606 = vpop.permute.xlu0 %1605
  %1607 = vrot.lane.b32.xlu0 %v261, 72
  %v1608 = vpop.permute.xlu0 %1607
  %v1610 = vsel %vm102, %v1606, 0
  %v1613 = vsel %vm102, %v1608, 0
  %1615 = vmatpush.bf16.xpose.msra.mxu0 0
  %1616 = vmatpush.bf16.xpose.msra.mxu0 0
  %1617 = vmatpush.bf16.xpose.msra.mxu0 0
  %1618 = vmatpush.bf16.xpose.msra.mxu0 0
  %1619 = vmatpush.bf16.xpose.msra.mxu0 0
  %1620 = vmatpush.bf16.xpose.msra.mxu0 0
  %1621 = vmatpush.bf16.xpose.msra.mxu0 0
  %1622 = vmatpush.bf16.xpose.msra.mxu0 %v1613
  %1623 = vmatmul.bf16.gmra.mxu0 %v1610
  %v1624 = vpop.f32.mrf.mxu0
  %v1625 = vadd.f32 0.0, %v1624
  %v1626 = vpop.f32.mrf.mxu0
  %1627 = vdwg.mxu0
  %v1628 = vsel %vm102, %v1464, -inf
  %1629 = vmax.xlane.f32.xlu0 %v1628
  %v1630 = vpop.xlane.xlu0 %1629
  %v1631 = vsel %vm102, %v1487, -inf
  %1632 = vmax.xlane.f32.xlu0 %v1631
  %v1633 = vpop.xlane.xlu0 %1632
  %v1634 = vsel %vm102, %v1510, -inf
  %1635 = vmax.xlane.f32.xlu0 %v1634
  %v1636 = vpop.xlane.xlu0 %1635
  %v1637 = vsel %vm102, %v1533, -inf
  %1638 = vmax.xlane.f32.xlu0 %v1637
  %v1639 = vpop.xlane.xlu0 %1638
  %v1640 = vsel %vm102, %v1556, -inf
  %1641 = vmax.xlane.f32.xlu0 %v1640
  %v1642 = vpop.xlane.xlu0 %1641
  %v1643 = vsel %vm102, %v1579, -inf
  %1644 = vmax.xlane.f32.xlu0 %v1643
  %v1645 = vpop.xlane.xlu0 %1644
  %v1646 = vsel %vm102, %v1602, -inf
  %1647 = vmax.xlane.f32.xlu0 %v1646
  %v1648 = vpop.xlane.xlu0 %1647
  %v1649 = vsel %vm102, %v1625, -inf
  %1650 = vmax.xlane.f32.xlu0 %v1649
  %v1651 = vpop.xlane.xlu0 %1650
  %v1652 = vsub.f32 %v1464, %v1630
  %v1653 = vsub.f32 %v1487, %v1633
  %v1654 = vsub.f32 %v1510, %v1636
  %v1655 = vsub.f32 %v1533, %v1639
  %v1656 = vsub.f32 %v1556, %v1642
  %v1657 = vsub.f32 %v1579, %v1645
  %v1658 = vsub.f32 %v1602, %v1648
  %v1659 = vsub.f32 %v1625, %v1651
  %v1660 = vmul.f32 %v1652, 1.442695
  %v1661 = vpow.pop %v1660
  %v1662 = vmul.f32 %v1653, 1.442695
  %v1663 = vpow.pop %v1662
  %v1664 = vmul.f32 %v1654, 1.442695
  %v1665 = vpow.pop %v1664
  %v1666 = vmul.f32 %v1655, 1.442695
  %v1667 = vpow.pop %v1666
  %v1668 = vmul.f32 %v1656, 1.442695
  %v1669 = vpow.pop %v1668
  %v1670 = vmul.f32 %v1657, 1.442695
  %v1671 = vpow.pop %v1670
  %v1672 = vmul.f32 %v1658, 1.442695
  %v1673 = vpow.pop %v1672
  %v1674 = vmul.f32 %v1659, 1.442695
  %v1675 = vpow.pop %v1674
  %v1676 = vsel %vm102, %v1661, 0.0
  %1677 = vadd.xlane.f32.xlu0 %v1676
  %v1678 = vpop.xlane.xlu0 %1677
  %v1679 = vsel %vm102, %v1663, 0.0
  %1680 = vadd.xlane.f32.xlu0 %v1679
  %v1681 = vpop.xlane.xlu0 %1680
  %v1682 = vsel %vm102, %v1665, 0.0
  %1683 = vadd.xlane.f32.xlu0 %v1682
  %v1684 = vpop.xlane.xlu0 %1683
  %v1685 = vsel %vm102, %v1667, 0.0
  %1686 = vadd.xlane.f32.xlu0 %v1685
  %v1687 = vpop.xlane.xlu0 %1686
  %v1688 = vsel %vm102, %v1669, 0.0
  %1689 = vadd.xlane.f32.xlu0 %v1688
  %v1690 = vpop.xlane.xlu0 %1689
  %v1691 = vsel %vm102, %v1671, 0.0
  %1692 = vadd.xlane.f32.xlu0 %v1691
  %v1693 = vpop.xlane.xlu0 %1692
  %v1694 = vsel %vm102, %v1673, 0.0
  %1695 = vadd.xlane.f32.xlu0 %v1694
  %v1696 = vpop.xlane.xlu0 %1695
  %v1697 = vsel %vm102, %v1675, 0.0
  %1698 = vadd.xlane.f32.xlu0 %v1697
  %v1699 = vpop.xlane.xlu0 %1698
  %v1700 = vpack.c.bf16 %v1661, %v1661
  %v1701 = vpack.c.bf16 %v1663, %v1663
  %v1702 = vpack.c.bf16 %v1665, %v1665
  %v1703 = vpack.c.bf16 %v1667, %v1667
  %v1704 = vpack.c.bf16 %v1669, %v1669
  %v1705 = vpack.c.bf16 %v1671, %v1671
  %v1706 = vpack.c.bf16 %v1673, %v1673
  %v1707 = vpack.c.bf16 %v1675, %v1675
  %1708 = vrot.lane.b32.xlu0 %v99, 40
  %v1709 = vpop.permute.xlu0 %1708
  %v1711 = vsel %vm102, %v1700, 0
  %v1714 = vsel %vm368, %v1709, 0
  %1716 = vmatpush.bf16.msra.mxu0 0
  %1717 = vmatpush.bf16.msra.mxu0 0
  %1718 = vmatpush.bf16.msra.mxu0 0
  %1719 = vmatpush.bf16.msra.mxu0 0
  %1720 = vmatpush.bf16.msra.mxu0 0
  %1721 = vmatpush.bf16.msra.mxu0 0
  %1722 = vmatpush.bf16.msra.mxu0 0
  %1723 = vmatpush.bf16.msra.mxu0 %v1714
  %1724 = vmatmul.bf16.gmra.mxu0 %v1711
  %v1725 = vpop.f32.mrf.mxu0
  %v1726 = vadd.f32 0.0, %v1725
  %v1727 = vpop.f32.mrf.mxu0
  %1728 = vdwg.mxu0
  %1729 = vrot.lane.b32.xlu0 %v123, 40
  %v1730 = vpop.permute.xlu0 %1729
  %v1732 = vsel %vm102, %v1701, 0
  %v1735 = vsel %vm368, %v1730, 0
  %1737 = vmatpush.bf16.msra.mxu0 0
  %1738 = vmatpush.bf16.msra.mxu0 0
  %1739 = vmatpush.bf16.msra.mxu0 0
  %1740 = vmatpush.bf16.msra.mxu0 0
  %1741 = vmatpush.bf16.msra.mxu0 0
  %1742 = vmatpush.bf16.msra.mxu0 0
  %1743 = vmatpush.bf16.msra.mxu0 0
  %1744 = vmatpush.bf16.msra.mxu0 %v1735
  %1745 = vmatmul.bf16.gmra.mxu0 %v1732
  %v1746 = vpop.f32.mrf.mxu0
  %v1747 = vadd.f32 0.0, %v1746
  %v1748 = vpop.f32.mrf.mxu0
  %1749 = vdwg.mxu0
  %1750 = vrot.lane.b32.xlu0 %v146, 40
  %v1751 = vpop.permute.xlu0 %1750
  %v1753 = vsel %vm102, %v1702, 0
  %v1756 = vsel %vm368, %v1751, 0
  %1758 = vmatpush.bf16.msra.mxu0 0
  %1759 = vmatpush.bf16.msra.mxu0 0
  %1760 = vmatpush.bf16.msra.mxu0 0
  %1761 = vmatpush.bf16.msra.mxu0 0
  %1762 = vmatpush.bf16.msra.mxu0 0
  %1763 = vmatpush.bf16.msra.mxu0 0
  %1764 = vmatpush.bf16.msra.mxu0 0
  %1765 = vmatpush.bf16.msra.mxu0 %v1756
  %1766 = vmatmul.bf16.gmra.mxu0 %v1753
  %v1767 = vpop.f32.mrf.mxu0
  %v1768 = vadd.f32 0.0, %v1767
  %v1769 = vpop.f32.mrf.mxu0
  %1770 = vdwg.mxu0
  %1771 = vrot.lane.b32.xlu0 %v169, 40
  %v1772 = vpop.permute.xlu0 %1771
  %v1774 = vsel %vm102, %v1703, 0
  %v1777 = vsel %vm368, %v1772, 0
  %1779 = vmatpush.bf16.msra.mxu0 0
  %1780 = vmatpush.bf16.msra.mxu0 0
  %1781 = vmatpush.bf16.msra.mxu0 0
  %1782 = vmatpush.bf16.msra.mxu0 0
  %1783 = vmatpush.bf16.msra.mxu0 0
  %1784 = vmatpush.bf16.msra.mxu0 0
  %1785 = vmatpush.bf16.msra.mxu0 0
  %1786 = vmatpush.bf16.msra.mxu0 %v1777
  %1787 = vmatmul.bf16.gmra.mxu0 %v1774
  %v1788 = vpop.f32.mrf.mxu0
  %v1789 = vadd.f32 0.0, %v1788
  %v1790 = vpop.f32.mrf.mxu0
  %1791 = vdwg.mxu0
  %1792 = vrot.lane.b32.xlu0 %v192, 40
  %v1793 = vpop.permute.xlu0 %1792
  %v1795 = vsel %vm102, %v1704, 0
  %v1798 = vsel %vm368, %v1793, 0
  %1800 = vmatpush.bf16.msra.mxu0 0
  %1801 = vmatpush.bf16.msra.mxu0 0
  %1802 = vmatpush.bf16.msra.mxu0 0
  %1803 = vmatpush.bf16.msra.mxu0 0
  %1804 = vmatpush.bf16.msra.mxu0 0
  %1805 = vmatpush.bf16.msra.mxu0 0
  %1806 = vmatpush.bf16.msra.mxu0 0
  %1807 = vmatpush.bf16.msra.mxu0 %v1798
  %1808 = vmatmul.bf16.gmra.mxu0 %v1795
  %v1809 = vpop.f32.mrf.mxu0
  %v1810 = vadd.f32 0.0, %v1809
  %v1811 = vpop.f32.mrf.mxu0
  %1812 = vdwg.mxu0
  %1813 = vrot.lane.b32.xlu0 %v215, 40
  %v1814 = vpop.permute.xlu0 %1813
  %v1816 = vsel %vm102, %v1705, 0
  %v1819 = vsel %vm368, %v1814, 0
  %1821 = vmatpush.bf16.msra.mxu0 0
  %1822 = vmatpush.bf16.msra.mxu0 0
  %1823 = vmatpush.bf16.msra.mxu0 0
  %1824 = vmatpush.bf16.msra.mxu0 0
  %1825 = vmatpush.bf16.msra.mxu0 0
  %1826 = vmatpush.bf16.msra.mxu0 0
  %1827 = vmatpush.bf16.msra.mxu0 0
  %1828 = vmatpush.bf16.msra.mxu0 %v1819
  %1829 = vmatmul.bf16.gmra.mxu0 %v1816
  %v1830 = vpop.f32.mrf.mxu0
  %v1831 = vadd.f32 0.0, %v1830
  %v1832 = vpop.f32.mrf.mxu0
  %1833 = vdwg.mxu0
  %1834 = vrot.lane.b32.xlu0 %v238, 40
  %v1835 = vpop.permute.xlu0 %1834
  %v1837 = vsel %vm102, %v1706, 0
  %v1840 = vsel %vm368, %v1835, 0
  %1842 = vmatpush.bf16.msra.mxu0 0
  %1843 = vmatpush.bf16.msra.mxu0 0
  %1844 = vmatpush.bf16.msra.mxu0 0
  %1845 = vmatpush.bf16.msra.mxu0 0
  %1846 = vmatpush.bf16.msra.mxu0 0
  %1847 = vmatpush.bf16.msra.mxu0 0
  %1848 = vmatpush.bf16.msra.mxu0 0
  %1849 = vmatpush.bf16.msra.mxu0 %v1840
  %1850 = vmatmul.bf16.gmra.mxu0 %v1837
  %v1851 = vpop.f32.mrf.mxu0
  %v1852 = vadd.f32 0.0, %v1851
  %v1853 = vpop.f32.mrf.mxu0
  %1854 = vdwg.mxu0
  %1855 = vrot.lane.b32.xlu0 %v261, 40
  %v1856 = vpop.permute.xlu0 %1855
  %v1858 = vsel %vm102, %v1707, 0
  %v1861 = vsel %vm368, %v1856, 0
  %1863 = vmatpush.bf16.msra.mxu0 0
  %1864 = vmatpush.bf16.msra.mxu0 0
  %1865 = vmatpush.bf16.msra.mxu0 0
  %1866 = vmatpush.bf16.msra.mxu0 0
  %1867 = vmatpush.bf16.msra.mxu0 0
  %1868 = vmatpush.bf16.msra.mxu0 0
  %1869 = vmatpush.bf16.msra.mxu0 0
  %1870 = vmatpush.bf16.msra.mxu0 %v1861
  %1871 = vmatmul.bf16.gmra.mxu0 %v1858
  %v1872 = vpop.f32.mrf.mxu0
  %v1873 = vadd.f32 0.0, %v1872
  %v1874 = vpop.f32.mrf.mxu0
  %1875 = vdwg.mxu0
  %v1876 = vrcp.pop %v1678
  %v1877 = vrcp.pop %v1681
  %v1878 = vrcp.pop %v1684
  %v1879 = vrcp.pop %v1687
  %v1880 = vrcp.pop %v1690
  %v1881 = vrcp.pop %v1693
  %v1882 = vrcp.pop %v1696
  %v1883 = vrcp.pop %v1699
  %v1884 = vmul.f32 %v1726, %v1876
  %v1885 = vmul.f32 %v1747, %v1877
  %v1886 = vmul.f32 %v1768, %v1878
  %v1887 = vmul.f32 %v1789, %v1879
  %v1888 = vmul.f32 %v1810, %v1880
  %v1889 = vmul.f32 %v1831, %v1881
  %v1890 = vmul.f32 %v1852, %v1882
  %v1891 = vmul.f32 %v1873, %v1883
  %1900 = vrot.lane.b32.xlu0 %v988, 8
  %v1901 = vpop.permute.xlu0 %1900
  %1902 = vrot.lane.b32.xlu0 %v989, 8
  %v1903 = vpop.permute.xlu0 %1902
  %1904 = vrot.lane.b32.xlu0 %v990, 8
  %v1905 = vpop.permute.xlu0 %1904
  %1906 = vrot.lane.b32.xlu0 %v991, 8
  %v1907 = vpop.permute.xlu0 %1906
  %1908 = vrot.lane.b32.xlu0 %v992, 8
  %v1909 = vpop.permute.xlu0 %1908
  %1910 = vrot.lane.b32.xlu0 %v993, 8
  %v1911 = vpop.permute.xlu0 %1910
  %1912 = vrot.lane.b32.xlu0 %v994, 8
  %v1913 = vpop.permute.xlu0 %1912
  %1914 = vrot.lane.b32.xlu0 %v995, 8
  %v1915 = vpop.permute.xlu0 %1914
  %1932 = vrot.lane.b32.xlu0 %v1436, 16
  %v1933 = vpop.permute.xlu0 %1932
  %1934 = vrot.lane.b32.xlu0 %v1437, 16
  %v1935 = vpop.permute.xlu0 %1934
  %1936 = vrot.lane.b32.xlu0 %v1438, 16
  %v1937 = vpop.permute.xlu0 %1936
  %1938 = vrot.lane.b32.xlu0 %v1439, 16
  %v1939 = vpop.permute.xlu0 %1938
  %1940 = vrot.lane.b32.xlu0 %v1440, 16
  %v1941 = vpop.permute.xlu0 %1940
  %1942 = vrot.lane.b32.xlu0 %v1441, 16
  %v1943 = vpop.permute.xlu0 %1942
  %1944 = vrot.lane.b32.xlu0 %v1442, 16
  %v1945 = vpop.permute.xlu0 %1944
  %1946 = vrot.lane.b32.xlu0 %v1443, 16
  %v1947 = vpop.permute.xlu0 %1946
  %1964 = vrot.lane.b32.xlu0 %v1884, 24
  %v1965 = vpop.permute.xlu0 %1964
  %1966 = vrot.lane.b32.xlu0 %v1885, 24
  %v1967 = vpop.permute.xlu0 %1966
  %1968 = vrot.lane.b32.xlu0 %v1886, 24
  %v1969 = vpop.permute.xlu0 %1968
  %1970 = vrot.lane.b32.xlu0 %v1887, 24
  %v1971 = vpop.permute.xlu0 %1970
  %1972 = vrot.lane.b32.xlu0 %v1888, 24
  %v1973 = vpop.permute.xlu0 %1972
  %1974 = vrot.lane.b32.xlu0 %v1889, 24
  %v1975 = vpop.permute.xlu0 %1974
  %1976 = vrot.lane.b32.xlu0 %v1890, 24
  %v1977 = vpop.permute.xlu0 %1976
  %1978 = vrot.lane.b32.xlu0 %v1891, 24
  %v1979 = vpop.permute.xlu0 %1978
  %v1988 = vsel %vm102, %v540, %v1901
  %v1989 = vsel %vm102, %v541, %v1903
  %v1990 = vsel %vm102, %v542, %v1905
  %v1991 = vsel %vm102, %v543, %v1907
  %v1992 = vsel %vm102, %v544, %v1909
  %v1993 = vsel %vm102, %v545, %v1911
  %v1994 = vsel %vm102, %v546, %v1913
  %v1995 = vsel %vm102, %v547, %v1915
  %vm1996 = vcmask 130048
  %v1997 = vsel %vm1996, %v1988, %v1933
  %v1998 = vsel %vm1996, %v1989, %v1935
  %v1999 = vsel %vm1996, %v1990, %v1937
  %v2000 = vsel %vm1996, %v1991, %v1939
  %v2001 = vsel %vm1996, %v1992, %v1941
  %v2002 = vsel %vm1996, %v1993, %v1943
  %v2003 = vsel %vm1996, %v1994, %v1945
  %v2004 = vsel %vm1996, %v1995, %v1947
  %vm2005 = vcmask 195584
  %v2006 = vsel %vm2005, %v1997, %v1965
  %v2007 = vsel %vm2005, %v1998, %v1967
  %v2008 = vsel %vm2005, %v1999, %v1969
  %v2009 = vsel %vm2005, %v2000, %v1971
  %v2010 = vsel %vm2005, %v2001, %v1973
  %v2011 = vsel %vm2005, %v2002, %v1975
  %v2012 = vsel %vm2005, %v2003, %v1977
  %v2013 = vsel %vm2005, %v2004, %v1979
  %v2014 = vrot.slane %v2008, 4
  %vm2015 = vcmask 1047556
  %v2016 = vsel %vm2015, %v2014, %v2006
  %v2017 = vrot.slane %v2006, 4
  %v2018 = vsel %vm2015, %v2008, %v2017
  %v2020 = vunpack.c.l.s4 1983009808
  %v2021 = vunpack.c.0.s8 %v2020
  %v2022 = vperm.slane %v2016, %v2021
  %v2024 = vunpack.c.l.s4 1983009808
  %v2025 = vunpack.c.0.s8 %v2024
  %v2026 = vperm.slane %v2018, %v2025
  %v2027 = vrot.slane %v2009, 4
  %v2028 = vsel %vm2015, %v2027, %v2007
  %v2029 = vrot.slane %v2007, 4
  %v2030 = vsel %vm2015, %v2009, %v2029
  %v2032 = vunpack.c.l.s4 1983009808
  %v2033 = vunpack.c.0.s8 %v2032
  %v2034 = vperm.slane %v2028, %v2033
  %v2036 = vunpack.c.l.s4 1983009808
  %v2037 = vunpack.c.0.s8 %v2036
  %v2038 = vperm.slane %v2030, %v2037
  %v2039 = vrot.slane %v2012, 4
  %v2040 = vsel %vm2015, %v2039, %v2010
  %v2041 = vrot.slane %v2010, 4
  %v2042 = vsel %vm2015, %v2012, %v2041
  %v2044 = vunpack.c.l.s4 1983009808
  %v2045 = vunpack.c.0.s8 %v2044
  %v2046 = vperm.slane %v2040, %v2045
  %v2048 = vunpack.c.l.s4 1983009808
  %v2049 = vunpack.c.0.s8 %v2048
  %v2050 = vperm.slane %v2042, %v2049
  %v2051 = vrot.slane %v2013, 4
  %v2052 = vsel %vm2015, %v2051, %v2011
  %v2053 = vrot.slane %v2011, 4
  %v2054 = vsel %vm2015, %v2013, %v2053
  %v2056 = vunpack.c.l.s4 1983009808
  %v2057 = vunpack.c.0.s8 %v2056
  %v2058 = vperm.slane %v2052, %v2057
  %v2060 = vunpack.c.l.s4 1983009808
  %v2061 = vunpack.c.0.s8 %v2060
  %v2062 = vperm.slane %v2054, %v2061
  %v2063 = vrot.slane %v2034, 4
  %v2064 = vsel %vm2015, %v2063, %v2022
  %v2065 = vrot.slane %v2022, 4
  %v2066 = vsel %vm2015, %v2034, %v2065
  %v2068 = vunpack.c.l.s4 1934713408
  %v2069 = vunpack.c.0.s8 %v2068
  %v2070 = vperm.slane %v2064, %v2069
  %v2072 = vunpack.c.l.s4 1934713408
  %v2073 = vunpack.c.0.s8 %v2072
  %v2074 = vperm.slane %v2066, %v2073
  %v2075 = vrot.slane %v2038, 4
  %v2076 = vsel %vm2015, %v2075, %v2026
  %v2077 = vrot.slane %v2026, 4
  %v2078 = vsel %vm2015, %v2038, %v2077
  %v2080 = vunpack.c.l.s4 1934713408
  %v2081 = vunpack.c.0.s8 %v2080
  %v2082 = vperm.slane %v2076, %v2081
  %v2084 = vunpack.c.l.s4 1934713408
  %v2085 = vunpack.c.0.s8 %v2084
  %v2086 = vperm.slane %v2078, %v2085
  %v2087 = vrot.slane %v2058, 4
  %v2088 = vsel %vm2015, %v2087, %v2046
  %v2089 = vrot.slane %v2046, 4
  %v2090 = vsel %vm2015, %v2058, %v2089
  %v2092 = vunpack.c.l.s4 1934713408
  %v2093 = vunpack.c.0.s8 %v2092
  %v2094 = vperm.slane %v2088, %v2093
  %v2096 = vunpack.c.l.s4 1934713408
  %v2097 = vunpack.c.0.s8 %v2096
  %v2098 = vperm.slane %v2090, %v2097
  %v2099 = vrot.slane %v2062, 4
  %v2100 = vsel %vm2015, %v2099, %v2050
  %v2101 = vrot.slane %v2050, 4
  %v2102 = vsel %vm2015, %v2062, %v2101
  %v2104 = vunpack.c.l.s4 1934713408
  %v2105 = vunpack.c.0.s8 %v2104
  %v2106 = vperm.slane %v2100, %v2105
  %v2108 = vunpack.c.l.s4 1934713408
  %v2109 = vunpack.c.0.s8 %v2108
  %v2110 = vperm.slane %v2102, %v2109
  %v2111 = vrot.slane %v2094, 4
  %v2112 = vsel %vm2015, %v2111, %v2070
  %v2113 = vrot.slane %v2070, 4
  %v2114 = vsel %vm2015, %v2094, %v2113
  %v2115 = vrot.slane %v2098, 4
  %v2116 = vsel %vm2015, %v2115, %v2074
  %v2117 = vrot.slane %v2074, 4
  %v2118 = vsel %vm2015, %v2098, %v2117
  %v2119 = vrot.slane %v2106, 4
  %v2120 = vsel %vm2015, %v2119, %v2082
  %v2121 = vrot.slane %v2082, 4
  %v2122 = vsel %vm2015, %v2106, %v2121
  %v2123 = vrot.slane %v2110, 4
  %v2124 = vsel %vm2015, %v2123, %v2086
  %v2125 = vrot.slane %v2086, 4
  %v2126 = vsel %vm2015, %v2110, %v2125
  %v2127 = vpack.c.bf16 %v2112, %v2112
  %v2128 = vpack.c.bf16 %v2114, %v2114
  %v2129 = vpack.c.bf16 %v2116, %v2116
  %v2130 = vpack.c.bf16 %v2118, %v2118
  %v2131 = vpack.c.bf16 %v2120, %v2120
  %v2132 = vpack.c.bf16 %v2122, %v2122
  %v2133 = vpack.c.bf16 %v2124, %v2124
  %v2134 = vpack.c.bf16 %v2126, %v2126
  %vm2135 = vcmask 257024
  %2136 = vst.msk [vmem:[%s1] sm:$0xf] %vm2135, %v2127
  %2137 = vst.msk [vmem:[%s1 + $0x4] sm:$0xf] %vm2135, %v2128
  %2138 = vst.msk [vmem:[%s1 + $0x8] sm:$0xf] %vm2135, %v2129
  %2139 = vst.msk [vmem:[%s1 + $0xc] sm:$0xf] %vm2135, %v2130
  %2140 = vst.msk [vmem:[%s1 + $0x10] sm:$0xf] %vm2135, %v2131
  %2141 = vst.msk [vmem:[%s1 + $0x14] sm:$0xf] %vm2135, %v2132
  %2142 = vst.msk [vmem:[%s1 + $0x18] sm:$0xf] %vm2135, %v2133
  %2143 = vst.msk [vmem:[%s1 + $0x1c] sm:$0xf] %vm2135, %v2134
  // Predicated region
  $region6: #{transformer_forward.20} parent=0 // pred_check
    _
  $region7: #{transformer_forward.20} parent=0 // pred_check_branch
    %2145 = sbr.rel (0) target = $region9
  $region8: #{transformer_forward.20} parent=0 // pred_region
    _
  $region9: #{transformer_forward.20} parent=0 // pred_fallthru
    _
  // Predicated region
  $region10: #{transformer_forward.20} parent=0 // pred_check
    _
  $region11: #{transformer_forward.20} parent=0 // pred_check_branch
    %2147 = sbr.rel (0) target = $region13
  $region12: #{transformer_forward.20} parent=0 // pred_region
    _
  $region13: #{transformer_forward.20} parent=0 // pred_fallthru
    _

// kernel: transformer_forward.26
$region0: #{transformer_forward.26}
  #allocation0 [shape = 'u32[]', space=smem, size = 0x4, offset = 0x4, fixed_abs, tag = 'smem constant byte address 0x4 - core index']
  #allocation1 [shape = 'u32[72,128]{1,0:T(1,128)}', space=vmem, size = 0x9000, scoped, tag = 'internal scratch']
  #allocation2 [shape = 'f32[64,32]{1,0:T(8,128)}', space=vmem, size = 0x8000, scoped, tag = 'scratch operand']
  %s0 = inlined_call_operand.vmem [shape: bf16[64,32], index: 0, kind: input, shape index: {}]
  %s1 = inlined_call_operand.vmem [shape: bf16[32,32], index: 1, kind: input, shape index: {}]
  %s2 = inlined_call_operand.vmem [shape: f32[1,32], index: 2, kind: input, shape index: {}]
  %s3 = inlined_call_operand.vmem [shape: f32[64,32], index: 3, kind: input, shape index: {}]
  %s4 = inlined_call_operand.vmem [shape: f32[64,32], index: 4, kind: output, shape index: {}]
  %s5 = sld [smem:[#allocation0]]
  $region34: #{transformer_forward.26} parent=0
    _
  %s7 = ssub.s32 1, %s5
  %s8 = scalar_select 0, %s7, %s5
  // Predicated region
  $region2: #{transformer_forward.26} parent=0 // pred_check
    _
  $region3: #{transformer_forward.26} parent=0 // pred_check_branch
    %10 = sbr.rel (0) target = $region5
  $region4: #{transformer_forward.26} parent=0 // pred_region
    _
  $region5: #{transformer_forward.26} parent=0 // pred_fallthru
    _
  // Predicated region
  $region6: #{transformer_forward.26} parent=0 // pred_check
    _
  $region7: #{transformer_forward.26} parent=0 // pred_check_branch
    %12 = sbr.rel (0) target = $region9
  $region8: #{transformer_forward.26} parent=0 // pred_region
    _
  $region9: #{transformer_forward.26} parent=0 // pred_fallthru
    _
  // Predicated region
  $region10: #{transformer_forward.26} parent=0 // pred_check
    _
  $region11: #{transformer_forward.26} parent=0 // pred_check_branch
    %14 = sbr.rel (0) target = $region13
  $region12: #{transformer_forward.26} parent=0 // pred_region
    _
  $region13: #{transformer_forward.26} parent=0 // pred_fallthru
    _
  // Predicated region
  $region14: #{transformer_forward.26} parent=0 // pred_check
    _
  $region15: #{transformer_forward.26} parent=0 // pred_check_branch
    %16 = sbr.rel (0) target = $region17
  $region16: #{transformer_forward.26} parent=0 // pred_region
    _
  $region17: #{transformer_forward.26} parent=0 // pred_fallthru
    _
  %p18 = scmp.eq.s32.totalorder 0, 0
  // Predicated region
  $region18: #{transformer_forward.26} parent=0 // pred_check
    %p19 = pneg %p18
  $region19: #{transformer_forward.26} parent=0 // pred_check_branch
    %21 = sbr.rel (%p19) target = $region21
  $region20: #{transformer_forward.26} parent=0 // pred_region
    %vm22 = vcmask 261120
    %23 = vst.msk [vmem:[#allocation2] sm:$0xff] %vm22, 0.0
    %24 = vst.msk [vmem:[#allocation2 + $0x8] sm:$0xff] %vm22, 0.0
    %25 = vst.msk [vmem:[#allocation2 + $0x10] sm:$0xff] %vm22, 0.0
    %26 = vst.msk [vmem:[#allocation2 + $0x18] sm:$0xff] %vm22, 0.0
    %27 = vst.msk [vmem:[#allocation2 + $0x20] sm:$0xff] %vm22, 0.0
    %28 = vst.msk [vmem:[#allocation2 + $0x28] sm:$0xff] %vm22, 0.0
    %29 = vst.msk [vmem:[#allocation2 + $0x30] sm:$0xff] %vm22, 0.0
    %30 = vst.msk [vmem:[#allocation2 + $0x38] sm:$0xff] %vm22, 0.0
  $region21: #{transformer_forward.26} parent=0 // pred_fallthru
    _
  %v31 = vld [vmem:[#allocation2] sm:$0xff]
  %v32 = vld [vmem:[#allocation2 + $0x8] sm:$0xff]
  %v33 = vld [vmem:[#allocation2 + $0x10] sm:$0xff]
  %v34 = vld [vmem:[#allocation2 + $0x18] sm:$0xff]
  %v35 = vld [vmem:[#allocation2 + $0x20] sm:$0xff]
  %v36 = vld [vmem:[#allocation2 + $0x28] sm:$0xff]
  %v37 = vld [vmem:[#allocation2 + $0x30] sm:$0xff]
  %v38 = vld [vmem:[#allocation2 + $0x38] sm:$0xff]
  %v39 = vld [vmem:[%s0] sm:$0xf]
  %v40 = vld [vmem:[%s0 + $0x4] sm:$0xf]
  %v41 = vld [vmem:[%s0 + $0x8] sm:$0xf]
  %v42 = vld [vmem:[%s0 + $0xc] sm:$0xf]
  %v43 = vld [vmem:[%s0 + $0x10] sm:$0xf]
  %v44 = vld [vmem:[%s0 + $0x14] sm:$0xf]
  %v45 = vld [vmem:[%s0 + $0x18] sm:$0xf]
  %v46 = vld [vmem:[%s0 + $0x1c] sm:$0xf]
  %v47 = vld [vmem:[%s1] sm:$0xf]
  %v48 = vld [vmem:[%s1 + $0x4] sm:$0xf]
  %v49 = vld [vmem:[%s1 + $0x8] sm:$0xf]
  %v50 = vld [vmem:[%s1 + $0xc] sm:$0xf]
  %v59 = vunpack.c.l.b16 %v39
  %v60 = vunpack.c.l.b16 %v40
  %v61 = vunpack.c.l.b16 %v41
  %v62 = vunpack.c.l.b16 %v42
  %v63 = vunpack.c.l.b16 %v43
  %v64 = vunpack.c.l.b16 %v44
  %v65 = vunpack.c.l.b16 %v45
  %v66 = vunpack.c.l.b16 %v46
  %v67 = vpack.c.b16 %v60, %v59
  %v68 = vpack.c.b16 %v62, %v61
  %v69 = vpack.c.b16 %v64, %v63
  %v70 = vpack.c.b16 %v66, %v65
  %v75 = vunpack.c.l.b16 %v47
  %v76 = vunpack.c.l.b16 %v48
  %v77 = vunpack.c.l.b16 %v49
  %v78 = vunpack.c.l.b16 %v50
  %v79 = vpack.c.b16 %v76, %v75
  %v80 = vpack.c.b16 %v78, %v77
  %vm83 = vcmask 261120
  %v85 = vsel %vm83, %v67, 0
  %v88 = vsel %vm83, %v68, 0
  %v91 = vsel %vm83, %v69, 0
  %v94 = vsel %vm83, %v70, 0
  %96 = vmatpush.bf16.msra.mxu0 0
  %97 = vmatpush.bf16.msra.mxu0 0
  %98 = vmatpush.bf16.msra.mxu0 0
  %99 = vmatpush.bf16.msra.mxu0 0
  %100 = vmatpush.bf16.msra.mxu0 0
  %101 = vmatpush.bf16.msra.mxu0 0
  %102 = vmatpush.bf16.msra.mxu0 %v80
  %103 = vmatpush.bf16.msra.mxu0 %v79
  %104 = vmatmul.bf16.gmra.mxu0 %v85
  %v105 = vpop.f32.mrf.mxu0
  %v106 = vadd.f32 0.0, %v105
  %v107 = vpop.f32.mrf.mxu0
  %v108 = vadd.f32 0.0, %v107
  %109 = vmatmul.bf16.gmra.mxu0 %v88
  %v110 = vpop.f32.mrf.mxu0
  %v111 = vadd.f32 0.0, %v110
  %v112 = vpop.f32.mrf.mxu0
  %v113 = vadd.f32 0.0, %v112
  %114 = vmatmul.bf16.gmra.mxu0 %v91
  %v115 = vpop.f32.mrf.mxu0
  %v116 = vadd.f32 0.0, %v115
  %v117 = vpop.f32.mrf.mxu0
  %v118 = vadd.f32 0.0, %v117
  %119 = vmatmul.bf16.gmra.mxu0 %v94
  %v120 = vpop.f32.mrf.mxu0
  %v121 = vadd.f32 0.0, %v120
  %v122 = vpop.f32.mrf.mxu0
  %v123 = vadd.f32 0.0, %v122
  %124 = vdwg.mxu0
  %v125 = vadd.f32 %v31, %v106
  %v126 = vadd.f32 %v32, %v108
  %v127 = vadd.f32 %v33, %v111
  %v128 = vadd.f32 %v34, %v113
  %v129 = vadd.f32 %v35, %v116
  %v130 = vadd.f32 %v36, %v118
  %v131 = vadd.f32 %v37, %v121
  %v132 = vadd.f32 %v38, %v123
  %133 = vst.msk [vmem:[#allocation2] sm:$0xff] %vm83, %v125
  %134 = vst.msk [vmem:[#allocation2 + $0x8] sm:$0xff] %vm83, %v126
  %135 = vst.msk [vmem:[#allocation2 + $0x10] sm:$0xff] %vm83, %v127
  %136 = vst.msk [vmem:[#allocation2 + $0x18] sm:$0xff] %vm83, %v128
  %137 = vst.msk [vmem:[#allocation2 + $0x20] sm:$0xff] %vm83, %v129
  %138 = vst.msk [vmem:[#allocation2 + $0x28] sm:$0xff] %vm83, %v130
  %139 = vst.msk [vmem:[#allocation2 + $0x30] sm:$0xff] %vm83, %v131
  %140 = vst.msk [vmem:[#allocation2 + $0x38] sm:$0xff] %vm83, %v132
  // Predicated region
  $region22: #{transformer_forward.26} parent=0 // pred_check
    %p141 = pneg %p18
  $region23: #{transformer_forward.26} parent=0 // pred_check_branch
    %143 = sbr.rel (%p141) target = $region25
  $region24: #{transformer_forward.26} parent=0 // pred_region
    %v144 = vld [vmem:[#allocation2] sm:$0xff]
    %v145 = vld [vmem:[#allocation2 + $0x8] sm:$0xff]
    %v146 = vld [vmem:[#allocation2 + $0x10] sm:$0xff]
    %v147 = vld [vmem:[#allocation2 + $0x18] sm:$0xff]
    %v148 = vld [vmem:[#allocation2 + $0x20] sm:$0xff]
    %v149 = vld [vmem:[#allocation2 + $0x28] sm:$0xff]
    %v150 = vld [vmem:[#allocation2 + $0x30] sm:$0xff]
    %v151 = vld [vmem:[#allocation2 + $0x38] sm:$0xff]
    %v152 = vld [vmem:[%s2] sm:$0x1]
    %v154 = vperm.slane %v152, 0
    %v156 = vadd.f32 %v144, %v154
    %v157 = vadd.f32 %v145, %v154
    %v158 = vadd.f32 %v146, %v154
    %v159 = vadd.f32 %v147, %v154
    %v160 = vadd.f32 %v148, %v154
    %v161 = vadd.f32 %v149, %v154
    %v162 = vadd.f32 %v150, %v154
    %v163 = vadd.f32 %v151, %v154
    %v164 = vld [vmem:[%s3] sm:$0xff]
    %v165 = vld [vmem:[%s3 + $0x8] sm:$0xff]
    %v166 = vld [vmem:[%s3 + $0x10] sm:$0xff]
    %v167 = vld [vmem:[%s3 + $0x18] sm:$0xff]
    %v168 = vld [vmem:[%s3 + $0x20] sm:$0xff]
    %v169 = vld [vmem:[%s3 + $0x28] sm:$0xff]
    %v170 = vld [vmem:[%s3 + $0x30] sm:$0xff]
    %v171 = vld [vmem:[%s3 + $0x38] sm:$0xff]
    %v172 = vadd.f32 %v156, %v164
    %v173 = vadd.f32 %v157, %v165
    %v174 = vadd.f32 %v158, %v166
    %v175 = vadd.f32 %v159, %v167
    %v176 = vadd.f32 %v160, %v168
    %v177 = vadd.f32 %v161, %v169
    %v178 = vadd.f32 %v162, %v170
    %v179 = vadd.f32 %v163, %v171
    %180 = vst.msk [vmem:[%s4] sm:$0xff] %vm83, %v172
    %181 = vst.msk [vmem:[%s4 + $0x8] sm:$0xff] %vm83, %v173
    %182 = vst.msk [vmem:[%s4 + $0x10] sm:$0xff] %vm83, %v174
    %183 = vst.msk [vmem:[%s4 + $0x18] sm:$0xff] %vm83, %v175
    %184 = vst.msk [vmem:[%s4 + $0x20] sm:$0xff] %vm83, %v176
    %185 = vst.msk [vmem:[%s4 + $0x28] sm:$0xff] %vm83, %v177
    %186 = vst.msk [vmem:[%s4 + $0x30] sm:$0xff] %vm83, %v178
    %187 = vst.msk [vmem:[%s4 + $0x38] sm:$0xff] %vm83, %v179
  $region25: #{transformer_forward.26} parent=0 // pred_fallthru
    _
  // Predicated region
  $region26: #{transformer_forward.26} parent=0 // pred_check
    _
  $region27: #{transformer_forward.26} parent=0 // pred_check_branch
    %189 = sbr.rel (0) target = $region29
  $region28: #{transformer_forward.26} parent=0 // pred_region
    _
  $region29: #{transformer_forward.26} parent=0 // pred_fallthru
    _
  // Predicated region
  $region30: #{transformer_forward.26} parent=0 // pred_check
    _
  $region31: #{transformer_forward.26} parent=0 // pred_check_branch
    %191 = sbr.rel (0) target = $region33
  $region32: #{transformer_forward.26} parent=0 // pred_region
    _
  $region33: #{transformer_forward.26} parent=0 // pred_fallthru
    _

// kernel: transformer_forward.23
$region0: #{transformer_forward.23}
  #allocation0 [shape = 'u32[]', space=smem, size = 0x4, offset = 0x4, fixed_abs, tag = 'smem constant byte address 0x4 - core index']
  #allocation1 [shape = 'u32[72,128]{1,0:T(1,128)}', space=vmem, size = 0x9000, scoped, tag = 'internal scratch']
  #allocation2 [shape = 'f32[64,32]{1,0:T(8,128)}', space=vmem, size = 0x8000, scoped, tag = 'scratch operand']
  %s0 = inlined_call_operand.vmem [shape: bf16[64,128], index: 0, kind: input, shape index: {}]
  %s1 = inlined_call_operand.vmem [shape: bf16[128,32], index: 1, kind: input, shape index: {}]
  %s2 = inlined_call_operand.hbm [shape: f32[1,32], index: 2, kind: input, shape index: {}]
  %s3 = inlined_call_operand.vmem [shape: f32[64,32], index: 3, kind: input, shape index: {}]
  %s4 = inlined_call_operand.vmem [shape: f32[64,32], index: 4, kind: output, shape index: {}]
  %s5 = sld [smem:[#allocation0]]
  $region38: #{transformer_forward.23} parent=0
    _
  %s7 = ssub.s32 1, %s5
  %s8 = scalar_select 0, %s7, %s5
  $region1: #{transformer_forward.23} parent=0
    #allocation3 [shape = 'u8[512]{0}', space=vmem, size = 0x400, scoped, tag = 'input window, operand 2, single buffered']
    #allocation4 [shape = 's32[1]{0}', space=sflag, size = 0x4, scoped, tag = 'scoped memory for transformer_forward.23']
    %9 = vsyncpa [#allocation4], 0
    // Predicated region
    $region2: #{transformer_forward.23} parent=1 // pred_check
      _
    $region3: #{transformer_forward.23} parent=1 // pred_check_branch
      %11 = sbr.rel (0) target = $region5
    $region4: #{transformer_forward.23} parent=1 // pred_region
      _
    $region5: #{transformer_forward.23} parent=1 // pred_fallthru
      _
    // Predicated region
    $region6: #{transformer_forward.23} parent=1 // pred_check
      _
    $region7: #{transformer_forward.23} parent=1 // pred_check_branch
      %13 = sbr.rel (0) target = $region9
    $region8: #{transformer_forward.23} parent=1 // pred_region
      _
    $region9: #{transformer_forward.23} parent=1 // pred_fallthru
      _
    // Predicated region
    $region10: #{transformer_forward.23} parent=1 // pred_check
      _
    $region11: #{transformer_forward.23} parent=1 // pred_check_branch
      %15 = sbr.rel (0) target = $region13
    $region12: #{transformer_forward.23} parent=1 // pred_region
      %17 = vsyncadd [#allocation4], 0
      %s19 = sshll.u32 %s2, 4
      %s20 = int_to_ptr.hbm [resolvable:$true] %s19
      %s21 = sshll.u32 [#allocation3], 4
      %s22 = int_to_ptr.vmem [resolvable:$true] %s21
      %24 = dma.hbm_to_vmem [thread:$0]  %s20, 16, %s22, [#allocation4]
    $region13: #{transformer_forward.23} parent=1 // pred_fallthru
      _
    // Predicated region
    $region14: #{transformer_forward.23} parent=1 // pred_check
      _
    $region15: #{transformer_forward.23} parent=1 // pred_check_branch
      %26 = sbr.rel (0) target = $region17
    $region16: #{transformer_forward.23} parent=1 // pred_region
      _
    $region17: #{transformer_forward.23} parent=1 // pred_fallthru
      _
    // Predicated region
    $region18: #{transformer_forward.23} parent=1 // pred_check
      _
    $region19: #{transformer_forward.23} parent=1 // pred_check_branch
      %28 = sbr.rel (0) target = $region21
    $region20: #{transformer_forward.23} parent=1 // pred_region
      %30 = dma.done [#allocation4], 16
    $region21: #{transformer_forward.23} parent=1 // pred_fallthru
      _
    %p31 = scmp.eq.s32.totalorder 0, 0
    // Predicated region
    $region22: #{transformer_forward.23} parent=1 // pred_check
      %p32 = pneg %p31
    $region23: #{transformer_forward.23} parent=1 // pred_check_branch
      %34 = sbr.rel (%p32) target = $region25
    $region24: #{transformer_forward.23} parent=1 // pred_region
      %vm35 = vcmask 261120
      %36 = vst.msk [vmem:[#allocation2] sm:$0xff] %vm35, 0.0
      %37 = vst.msk [vmem:[#allocation2 + $0x8] sm:$0xff] %vm35, 0.0
      %38 = vst.msk [vmem:[#allocation2 + $0x10] sm:$0xff] %vm35, 0.0
      %39 = vst.msk [vmem:[#allocation2 + $0x18] sm:$0xff] %vm35, 0.0
      %40 = vst.msk [vmem:[#allocation2 + $0x20] sm:$0xff] %vm35, 0.0
      %41 = vst.msk [vmem:[#allocation2 + $0x28] sm:$0xff] %vm35, 0.0
      %42 = vst.msk [vmem:[#allocation2 + $0x30] sm:$0xff] %vm35, 0.0
      %43 = vst.msk [vmem:[#allocation2 + $0x38] sm:$0xff] %vm35, 0.0
    $region25: #{transformer_forward.23} parent=1 // pred_fallthru
      _
    %v44 = vld [vmem:[#allocation2] sm:$0xff]
    %v45 = vld [vmem:[#allocation2 + $0x8] sm:$0xff]
    %v46 = vld [vmem:[#allocation2 + $0x10] sm:$0xff]
    %v47 = vld [vmem:[#allocation2 + $0x18] sm:$0xff]
    %v48 = vld [vmem:[#allocation2 + $0x20] sm:$0xff]
    %v49 = vld [vmem:[#allocation2 + $0x28] sm:$0xff]
    %v50 = vld [vmem:[#allocation2 + $0x30] sm:$0xff]
    %v51 = vld [vmem:[#allocation2 + $0x38] sm:$0xff]
    %v52 = vld [vmem:[%s0] sm:$0xf]
    %v53 = vld [vmem:[%s0 + $0x4] sm:$0xf]
    %v54 = vld [vmem:[%s0 + $0x8] sm:$0xf]
    %v55 = vld [vmem:[%s0 + $0xc] sm:$0xf]
    %v56 = vld [vmem:[%s0 + $0x10] sm:$0xf]
    %v57 = vld [vmem:[%s0 + $0x14] sm:$0xf]
    %v58 = vld [vmem:[%s0 + $0x18] sm:$0xf]
    %v59 = vld [vmem:[%s0 + $0x1c] sm:$0xf]
    %v60 = vld [vmem:[%s1] sm:$0xf]
    %v61 = vld [vmem:[%s1 + $0x4] sm:$0xf]
    %v62 = vld [vmem:[%s1 + $0x8] sm:$0xf]
    %v63 = vld [vmem:[%s1 + $0xc] sm:$0xf]
    %v64 = vld [vmem:[%s1 + $0x10] sm:$0xf]
    %v65 = vld [vmem:[%s1 + $0x14] sm:$0xf]
    %v66 = vld [vmem:[%s1 + $0x18] sm:$0xf]
    %v67 = vld [vmem:[%s1 + $0x1c] sm:$0xf]
    %v68 = vld [vmem:[%s1 + $0x20] sm:$0xf]
    %v69 = vld [vmem:[%s1 + $0x24] sm:$0xf]
    %v70 = vld [vmem:[%s1 + $0x28] sm:$0xf]
    %v71 = vld [vmem:[%s1 + $0x2c] sm:$0xf]
    %v72 = vld [vmem:[%s1 + $0x30] sm:$0xf]
    %v73 = vld [vmem:[%s1 + $0x34] sm:$0xf]
    %v74 = vld [vmem:[%s1 + $0x38] sm:$0xf]
    %v75 = vld [vmem:[%s1 + $0x3c] sm:$0xf]
    %v84 = vunpack.c.l.b16 %v52
    %v85 = vunpack.c.l.b16 %v53
    %v86 = vunpack.c.l.b16 %v54
    %v87 = vunpack.c.l.b16 %v55
    %v88 = vunpack.c.l.b16 %v56
    %v89 = vunpack.c.l.b16 %v57
    %v90 = vunpack.c.l.b16 %v58
    %v91 = vunpack.c.l.b16 %v59
    %v92 = vpack.c.b16 %v85, %v84
    %v93 = vpack.c.b16 %v87, %v86
    %v94 = vpack.c.b16 %v89, %v88
    %v95 = vpack.c.b16 %v91, %v90
    %v116 = vunpack.c.l.b16 %v60
    %v117 = vunpack.c.l.b16 %v61
    %v118 = vunpack.c.l.b16 %v62
    %v119 = vunpack.c.l.b16 %v63
    %v120 = vunpack.c.l.b16 %v64
    %v121 = vunpack.c.l.b16 %v65
    %v122 = vunpack.c.l.b16 %v66
    %v123 = vunpack.c.l.b16 %v67
    %v124 = vunpack.c.l.b16 %v68
    %v125 = vunpack.c.l.b16 %v69
    %v126 = vunpack.c.l.b16 %v70
    %v127 = vunpack.c.l.b16 %v71
    %v128 = vunpack.c.l.b16 %v72
    %v129 = vunpack.c.l.b16 %v73
    %v130 = vunpack.c.l.b16 %v74
    %v131 = vunpack.c.l.b16 %v75
    %v132 = vpack.c.b16 %v117, %v116
    %v133 = vpack.c.b16 %v119, %v118
    %v134 = vpack.c.b16 %v121, %v120
    %v135 = vpack.c.b16 %v123, %v122
    %v136 = vpack.c.b16 %v125, %v124
    %v137 = vpack.c.b16 %v127, %v126
    %v138 = vpack.c.b16 %v129, %v128
    %v139 = vpack.c.b16 %v131, %v130
    %148 = vmatpush.bf16.msra.mxu0 %v139
    %149 = vmatpush.bf16.msra.mxu0 %v138
    %150 = vmatpush.bf16.msra.mxu0 %v137
    %151 = vmatpush.bf16.msra.mxu0 %v136
    %152 = vmatpush.bf16.msra.mxu0 %v135
    %153 = vmatpush.bf16.msra.mxu0 %v134
    %154 = vmatpush.bf16.msra.mxu0 %v133
    %155 = vmatpush.bf16.msra.mxu0 %v132
    %156 = vmatmul.bf16.gmra.mxu0 %v92
    %v157 = vpop.f32.mrf.mxu0
    %v158 = vadd.f32 0.0, %v157
    %v159 = vpop.f32.mrf.mxu0
    %v160 = vadd.f32 0.0, %v159
    %161 = vmatmul.bf16.gmra.mxu0 %v93
    %v162 = vpop.f32.mrf.mxu0
    %v163 = vadd.f32 0.0, %v162
    %v164 = vpop.f32.mrf.mxu0
    %v165 = vadd.f32 0.0, %v164
    %166 = vmatmul.bf16.gmra.mxu0 %v94
    %v167 = vpop.f32.mrf.mxu0
    %v168 = vadd.f32 0.0, %v167
    %v169 = vpop.f32.mrf.mxu0
    %v170 = vadd.f32 0.0, %v169
    %171 = vmatmul.bf16.gmra.mxu0 %v95
    %v172 = vpop.f32.mrf.mxu0
    %v173 = vadd.f32 0.0, %v172
    %v174 = vpop.f32.mrf.mxu0
    %v175 = vadd.f32 0.0, %v174
    %176 = vdwg.mxu0
    %v177 = vadd.f32 %v44, %v158
    %v178 = vadd.f32 %v45, %v160
    %v179 = vadd.f32 %v46, %v163
    %v180 = vadd.f32 %v47, %v165
    %v181 = vadd.f32 %v48, %v168
    %v182 = vadd.f32 %v49, %v170
    %v183 = vadd.f32 %v50, %v173
    %v184 = vadd.f32 %v51, %v175
    %vm185 = vcmask 261120
    %186 = vst.msk [vmem:[#allocation2] sm:$0xff] %vm185, %v177
    %187 = vst.msk [vmem:[#allocation2 + $0x8] sm:$0xff] %vm185, %v178
    %188 = vst.msk [vmem:[#allocation2 + $0x10] sm:$0xff] %vm185, %v179
    %189 = vst.msk [vmem:[#allocation2 + $0x18] sm:$0xff] %vm185, %v180
    %190 = vst.msk [vmem:[#allocation2 + $0x20] sm:$0xff] %vm185, %v181
    %191 = vst.msk [vmem:[#allocation2 + $0x28] sm:$0xff] %vm185, %v182
    %192 = vst.msk [vmem:[#allocation2 + $0x30] sm:$0xff] %vm185, %v183
    %193 = vst.msk [vmem:[#allocation2 + $0x38] sm:$0xff] %vm185, %v184
    // Predicated region
    $region26: #{transformer_forward.23} parent=1 // pred_check
      %p194 = pneg %p31
    $region27: #{transformer_forward.23} parent=1 // pred_check_branch
      %196 = sbr.rel (%p194) target = $region29
    $region28: #{transformer_forward.23} parent=1 // pred_region
      %v197 = vld [vmem:[#allocation2] sm:$0xff]
      %v198 = vld [vmem:[#allocation2 + $0x8] sm:$0xff]
      %v199 = vld [vmem:[#allocation2 + $0x10] sm:$0xff]
      %v200 = vld [vmem:[#allocation2 + $0x18] sm:$0xff]
      %v201 = vld [vmem:[#allocation2 + $0x20] sm:$0xff]
      %v202 = vld [vmem:[#allocation2 + $0x28] sm:$0xff]
      %v203 = vld [vmem:[#allocation2 + $0x30] sm:$0xff]
      %v204 = vld [vmem:[#allocation2 + $0x38] sm:$0xff]
      %v205 = vld [vmem:[#allocation3] sm:$0x1]
      %v207 = vperm.slane %v205, 0
      %v209 = vadd.f32 %v197, %v207
      %v210 = vadd.f32 %v198, %v207
      %v211 = vadd.f32 %v199, %v207
      %v212 = vadd.f32 %v200, %v207
      %v213 = vadd.f32 %v201, %v207
      %v214 = vadd.f32 %v202, %v207
      %v215 = vadd.f32 %v203, %v207
      %v216 = vadd.f32 %v204, %v207
      %v217 = vld [vmem:[%s3] sm:$0xff]
      %v218 = vld [vmem:[%s3 + $0x8] sm:$0xff]
      %v219 = vld [vmem:[%s3 + $0x10] sm:$0xff]
      %v220 = vld [vmem:[%s3 + $0x18] sm:$0xff]
      %v221 = vld [vmem:[%s3 + $0x20] sm:$0xff]
      %v222 = vld [vmem:[%s3 + $0x28] sm:$0xff]
      %v223 = vld [vmem:[%s3 + $0x30] sm:$0xff]
      %v224 = vld [vmem:[%s3 + $0x38] sm:$0xff]
      %v225 = vadd.f32 %v209, %v217
      %v226 = vadd.f32 %v210, %v218
      %v227 = vadd.f32 %v211, %v219
      %v228 = vadd.f32 %v212, %v220
      %v229 = vadd.f32 %v213, %v221
      %v230 = vadd.f32 %v214, %v222
      %v231 = vadd.f32 %v215, %v223
      %v232 = vadd.f32 %v216, %v224
      %233 = vst.msk [vmem:[%s4] sm:$0xff] %vm185, %v225
      %234 = vst.msk [vmem:[%s4 + $0x8] sm:$0xff] %vm185, %v226
      %235 = vst.msk [vmem:[%s4 + $0x10] sm:$0xff] %vm185, %v227
      %236 = vst.msk [vmem:[%s4 + $0x18] sm:$0xff] %vm185, %v228
      %237 = vst.msk [vmem:[%s4 + $0x20] sm:$0xff] %vm185, %v229
      %238 = vst.msk [vmem:[%s4 + $0x28] sm:$0xff] %vm185, %v230
      %239 = vst.msk [vmem:[%s4 + $0x30] sm:$0xff] %vm185, %v231
      %240 = vst.msk [vmem:[%s4 + $0x38] sm:$0xff] %vm185, %v232
    $region29: #{transformer_forward.23} parent=1 // pred_fallthru
      _
    // Predicated region
    $region30: #{transformer_forward.23} parent=1 // pred_check
      _
    $region31: #{transformer_forward.23} parent=1 // pred_check_branch
      %242 = sbr.rel (0) target = $region33
    $region32: #{transformer_forward.23} parent=1 // pred_region
      _
    $region33: #{transformer_forward.23} parent=1 // pred_fallthru
      _
    // Predicated region
    $region34: #{transformer_forward.23} parent=1 // pred_check
      _
    $region35: #{transformer_forward.23} parent=1 // pred_check_branch
      %244 = sbr.rel (0) target = $region37
    $region36: #{transformer_forward.23} parent=1 // pred_region
      _
    $region37: #{transformer_forward.23} parent=1 // pred_fallthru
      _
    %245 = vsyncpa [#allocation4], 1

// kernel: transformer_forward.24
$region0: #{transformer_forward.24}
  #allocation0 [shape = 'u32[]', space=smem, size = 0x4, offset = 0x4, fixed_abs, tag = 'smem constant byte address 0x4 - core index']
  #allocation1 [shape = 'u32[72,128]{1,0:T(1,128)}', space=vmem, size = 0x9000, scoped, tag = 'internal scratch']
  #allocation2 [shape = 'bf16[64,32]{1,0:T(8,128)(2,1)}', space=vmem, size = 0x4000, scoped, tag = 'scratch operand']
  %s0 = inlined_call_operand.vmem [shape: f32[64,32], index: 0, kind: input, shape index: {}]
  %s1 = inlined_call_operand.vmem [shape: f32[1,32], index: 1, kind: input, shape index: {}]
  %s2 = inlined_call_operand.vmem [shape: f32[1,32], index: 2, kind: input, shape index: {}]
  %s3 = inlined_call_operand.vmem [shape: bf16[32,96], index: 3, kind: input, shape index: {}]
  %s4 = inlined_call_operand.vmem [shape: f32[1,96], index: 4, kind: input, shape index: {}]
  %s5 = inlined_call_operand.vmem [shape: bf16[64,96], index: 5, kind: output, shape index: {}]
  %s6 = sld [smem:[#allocation0]]
  $region34: #{transformer_forward.24} parent=0
    _
  %s8 = ssub.s32 1, %s6
  %s9 = scalar_select 0, %s8, %s6
  // Predicated region
  $region2: #{transformer_forward.24} parent=0 // pred_check
    _
  $region3: #{transformer_forward.24} parent=0 // pred_check_branch
    %11 = sbr.rel (0) target = $region5
  $region4: #{transformer_forward.24} parent=0 // pred_region
    _
  $region5: #{transformer_forward.24} parent=0 // pred_fallthru
    _
  // Predicated region
  $region6: #{transformer_forward.24} parent=0 // pred_check
    _
  $region7: #{transformer_forward.24} parent=0 // pred_check_branch
    %13 = sbr.rel (0) target = $region9
  $region8: #{transformer_forward.24} parent=0 // pred_region
    _
  $region9: #{transformer_forward.24} parent=0 // pred_fallthru
    _
  // Predicated region
  $region10: #{transformer_forward.24} parent=0 // pred_check
    _
  $region11: #{transformer_forward.24} parent=0 // pred_check_branch
    %15 = sbr.rel (0) target = $region13
  $region12: #{transformer_forward.24} parent=0 // pred_region
    _
  $region13: #{transformer_forward.24} parent=0 // pred_fallthru
    _
  // Predicated region
  $region14: #{transformer_forward.24} parent=0 // pred_check
    _
  $region15: #{transformer_forward.24} parent=0 // pred_check_branch
    %17 = sbr.rel (0) target = $region17
  $region16: #{transformer_forward.24} parent=0 // pred_region
    _
  $region17: #{transformer_forward.24} parent=0 // pred_fallthru
    _
  // Predicated region
  $region18: #{transformer_forward.24} parent=0 // pred_check
    _
  $region19: #{transformer_forward.24} parent=0 // pred_check_branch
    %19 = sbr.rel (0) target = $region21
  $region20: #{transformer_forward.24} parent=0 // pred_region
    _
  $region21: #{transformer_forward.24} parent=0 // pred_fallthru
    _
  %p21 = scmp.eq.s32.totalorder 0, 0
  // Predicated region
  $region22: #{transformer_forward.24} parent=0 // pred_check
    %p22 = pneg %p21
  $region23: #{transformer_forward.24} parent=0 // pred_check_branch
    %24 = sbr.rel (%p22) target = $region25
  $region24: #{transformer_forward.24} parent=0 // pred_region
    %v25 = vld [vmem:[%s0] sm:$0xff]
    %v26 = vld [vmem:[%s0 + $0x8] sm:$0xff]
    %v27 = vld [vmem:[%s0 + $0x10] sm:$0xff]
    %v28 = vld [vmem:[%s0 + $0x18] sm:$0xff]
    %v29 = vld [vmem:[%s0 + $0x20] sm:$0xff]
    %v30 = vld [vmem:[%s0 + $0x28] sm:$0xff]
    %v31 = vld [vmem:[%s0 + $0x30] sm:$0xff]
    %v32 = vld [vmem:[%s0 + $0x38] sm:$0xff]
    %vm33 = vcmask 261120
    %v34 = vsel %vm33, %v25, 0.0
    %35 = vadd.xlane.f32.xlu0 %v34
    %v36 = vpop.xlane.xlu0 %35
    %v37 = vsel %vm33, %v26, 0.0
    %38 = vadd.xlane.f32.xlu0 %v37
    %v39 = vpop.xlane.xlu0 %38
    %v40 = vsel %vm33, %v27, 0.0
    %41 = vadd.xlane.f32.xlu0 %v40
    %v42 = vpop.xlane.xlu0 %41
    %v43 = vsel %vm33, %v28, 0.0
    %44 = vadd.xlane.f32.xlu0 %v43
    %v45 = vpop.xlane.xlu0 %44
    %v46 = vsel %vm33, %v29, 0.0
    %47 = vadd.xlane.f32.xlu0 %v46
    %v48 = vpop.xlane.xlu0 %47
    %v49 = vsel %vm33, %v30, 0.0
    %50 = vadd.xlane.f32.xlu0 %v49
    %v51 = vpop.xlane.xlu0 %50
    %v52 = vsel %vm33, %v31, 0.0
    %53 = vadd.xlane.f32.xlu0 %v52
    %v54 = vpop.xlane.xlu0 %53
    %v55 = vsel %vm33, %v32, 0.0
    %56 = vadd.xlane.f32.xlu0 %v55
    %v57 = vpop.xlane.xlu0 %56
    %v58 = vrcp.pop 32.0
    %v59 = vmul.f32 32.0, %v58
    %v60 = vsub.f32 1.0, %v59
    %v61 = vmul.f32 %v58, %v60
    %v62 = vadd.f32 %v58, %v61
    %vm63 = vweird.f32 %v58
    %v64 = vsel %vm63, %v58, %v62
    %v65 = vmul.f32 %v36, %v64
    %v66 = vmul.f32 %v39, %v64
    %v67 = vmul.f32 %v42, %v64
    %v68 = vmul.f32 %v45, %v64
    %v69 = vmul.f32 %v48, %v64
    %v70 = vmul.f32 %v51, %v64
    %v71 = vmul.f32 %v54, %v64
    %v72 = vmul.f32 %v57, %v64
    %v73 = vsub.f32 %v25, %v65
    %v74 = vsub.f32 %v26, %v66
    %v75 = vsub.f32 %v27, %v67
    %v76 = vsub.f32 %v28, %v68
    %v77 = vsub.f32 %v29, %v69
    %v78 = vsub.f32 %v30, %v70
    %v79 = vsub.f32 %v31, %v71
    %v80 = vsub.f32 %v32, %v72
    %v81 = vmul.f32 %v73, %v73
    %v82 = vmul.f32 %v74, %v74
    %v83 = vmul.f32 %v75, %v75
    %v84 = vmul.f32 %v76, %v76
    %v85 = vmul.f32 %v77, %v77
    %v86 = vmul.f32 %v78, %v78
    %v87 = vmul.f32 %v79, %v79
    %v88 = vmul.f32 %v80, %v80
    %v89 = vsel %vm33, %v81, 0.0
    %90 = vadd.xlane.f32.xlu0 %v89
    %v91 = vpop.xlane.xlu0 %90
    %v92 = vsel %vm33, %v82, 0.0
    %93 = vadd.xlane.f32.xlu0 %v92
    %v94 = vpop.xlane.xlu0 %93
    %v95 = vsel %vm33, %v83, 0.0
    %96 = vadd.xlane.f32.xlu0 %v95
    %v97 = vpop.xlane.xlu0 %96
    %v98 = vsel %vm33, %v84, 0.0
    %99 = vadd.xlane.f32.xlu0 %v98
    %v100 = vpop.xlane.xlu0 %99
    %v101 = vsel %vm33, %v85, 0.0
    %102 = vadd.xlane.f32.xlu0 %v101
    %v103 = vpop.xlane.xlu0 %102
    %v104 = vsel %vm33, %v86, 0.0
    %105 = vadd.xlane.f32.xlu0 %v104
    %v106 = vpop.xlane.xlu0 %105
    %v107 = vsel %vm33, %v87, 0.0
    %108 = vadd.xlane.f32.xlu0 %v107
    %v109 = vpop.xlane.xlu0 %108
    %v110 = vsel %vm33, %v88, 0.0
    %111 = vadd.xlane.f32.xlu0 %v110
    %v112 = vpop.xlane.xlu0 %111
    %v113 = vmul.f32 %v91, %v64
    %v114 = vmul.f32 %v94, %v64
    %v115 = vmul.f32 %v97, %v64
    %v116 = vmul.f32 %v100, %v64
    %v117 = vmul.f32 %v103, %v64
    %v118 = vmul.f32 %v106, %v64
    %v119 = vmul.f32 %v109, %v64
    %v120 = vmul.f32 %v112, %v64
    %v121 = vadd.f32 %v113, 1e-05
    %v122 = vadd.f32 %v114, 1e-05
    %v123 = vadd.f32 %v115, 1e-05
    %v124 = vadd.f32 %v116, 1e-05
    %v125 = vadd.f32 %v117, 1e-05
    %v126 = vadd.f32 %v118, 1e-05
    %v127 = vadd.f32 %v119, 1e-05
    %v128 = vadd.f32 %v120, 1e-05
    %v129 = vrsqrt.pop %v121
    %v130 = vmul.f32 %v129, %v121
    %v131 = vmul.f32 %v130, %v129
    %v132 = vmul.f32 0.5, %v131
    %v133 = vsub.f32 1.5, %v132
    %v134 = vmul.f32 %v129, %v133
    %vm135 = vweird.f32 %v121
    %vm136 = vweird.f32 %v129
    %vm137 = vmor %vm135, %vm136
    %v138 = vsel %vm137, %v129, %v134
    %v139 = vrsqrt.pop %v122
    %v140 = vmul.f32 %v139, %v122
    %v141 = vmul.f32 %v140, %v139
    %v142 = vmul.f32 0.5, %v141
    %v143 = vsub.f32 1.5, %v142
    %v144 = vmul.f32 %v139, %v143
    %vm145 = vweird.f32 %v122
    %vm146 = vweird.f32 %v139
    %vm147 = vmor %vm145, %vm146
    %v148 = vsel %vm147, %v139, %v144
    %v149 = vrsqrt.pop %v123
    %v150 = vmul.f32 %v149, %v123
    %v151 = vmul.f32 %v150, %v149
    %v152 = vmul.f32 0.5, %v151
    %v153 = vsub.f32 1.5, %v152
    %v154 = vmul.f32 %v149, %v153
    %vm155 = vweird.f32 %v123
    %vm156 = vweird.f32 %v149
    %vm157 = vmor %vm155, %vm156
    %v158 = vsel %vm157, %v149, %v154
    %v159 = vrsqrt.pop %v124
    %v160 = vmul.f32 %v159, %v124
    %v161 = vmul.f32 %v160, %v159
    %v162 = vmul.f32 0.5, %v161
    %v163 = vsub.f32 1.5, %v162
    %v164 = vmul.f32 %v159, %v163
    %vm165 = vweird.f32 %v124
    %vm166 = vweird.f32 %v159
    %vm167 = vmor %vm165, %vm166
    %v168 = vsel %vm167, %v159, %v164
    %v169 = vrsqrt.pop %v125
    %v170 = vmul.f32 %v169, %v125
    %v171 = vmul.f32 %v170, %v169
    %v172 = vmul.f32 0.5, %v171
    %v173 = vsub.f32 1.5, %v172
    %v174 = vmul.f32 %v169, %v173
    %vm175 = vweird.f32 %v125
    %vm176 = vweird.f32 %v169
    %vm177 = vmor %vm175, %vm176
    %v178 = vsel %vm177, %v169, %v174
    %v179 = vrsqrt.pop %v126
    %v180 = vmul.f32 %v179, %v126
    %v181 = vmul.f32 %v180, %v179
    %v182 = vmul.f32 0.5, %v181
    %v183 = vsub.f32 1.5, %v182
    %v184 = vmul.f32 %v179, %v183
    %vm185 = vweird.f32 %v126
    %vm186 = vweird.f32 %v179
    %vm187 = vmor %vm185, %vm186
    %v188 = vsel %vm187, %v179, %v184
    %v189 = vrsqrt.pop %v127
    %v190 = vmul.f32 %v189, %v127
    %v191 = vmul.f32 %v190, %v189
    %v192 = vmul.f32 0.5, %v191
    %v193 = vsub.f32 1.5, %v192
    %v194 = vmul.f32 %v189, %v193
    %vm195 = vweird.f32 %v127
    %vm196 = vweird.f32 %v189
    %vm197 = vmor %vm195, %vm196
    %v198 = vsel %vm197, %v189, %v194
    %v199 = vrsqrt.pop %v128
    %v200 = vmul.f32 %v199, %v128
    %v201 = vmul.f32 %v200, %v199
    %v202 = vmul.f32 0.5, %v201
    %v203 = vsub.f32 1.5, %v202
    %v204 = vmul.f32 %v199, %v203
    %vm205 = vweird.f32 %v128
    %vm206 = vweird.f32 %v199
    %vm207 = vmor %vm205, %vm206
    %v208 = vsel %vm207, %v199, %v204
    %v209 = vmul.f32 %v73, %v138
    %v210 = vmul.f32 %v74, %v148
    %v211 = vmul.f32 %v75, %v158
    %v212 = vmul.f32 %v76, %v168
    %v213 = vmul.f32 %v77, %v178
    %v214 = vmul.f32 %v78, %v188
    %v215 = vmul.f32 %v79, %v198
    %v216 = vmul.f32 %v80, %v208
    %v217 = vld [vmem:[%s1] sm:$0x1]
    %v219 = vperm.slane %v217, 0
    %v221 = vmul.f32 %v209, %v219
    %v222 = vmul.f32 %v210, %v219
    %v223 = vmul.f32 %v211, %v219
    %v224 = vmul.f32 %v212, %v219
    %v225 = vmul.f32 %v213, %v219
    %v226 = vmul.f32 %v214, %v219
    %v227 = vmul.f32 %v215, %v219
    %v228 = vmul.f32 %v216, %v219
    %v229 = vld [vmem:[%s2] sm:$0x1]
    %v231 = vperm.slane %v229, 0
    %v233 = vadd.f32 %v221, %v231
    %v234 = vadd.f32 %v222, %v231
    %v235 = vadd.f32 %v223, %v231
    %v236 = vadd.f32 %v224, %v231
    %v237 = vadd.f32 %v225, %v231
    %v238 = vadd.f32 %v226, %v231
    %v239 = vadd.f32 %v227, %v231
    %v240 = vadd.f32 %v228, %v231
    %v241 = vpack.c.bf16 %v233, %v233
    %v242 = vpack.c.bf16 %v234, %v234
    %v243 = vpack.c.bf16 %v235, %v235
    %v244 = vpack.c.bf16 %v236, %v236
    %v245 = vpack.c.bf16 %v237, %v237
    %v246 = vpack.c.bf16 %v238, %v238
    %v247 = vpack.c.bf16 %v239, %v239
    %v248 = vpack.c.bf16 %v240, %v240
    %vm249 = vcmask 257024
    %250 = vst.msk [vmem:[#allocation2] sm:$0xf] %vm249, %v241
    %251 = vst.msk [vmem:[#allocation2 + $0x4] sm:$0xf] %vm249, %v242
    %252 = vst.msk [vmem:[#allocation2 + $0x8] sm:$0xf] %vm249, %v243
    %253 = vst.msk [vmem:[#allocation2 + $0xc] sm:$0xf] %vm249, %v244
    %254 = vst.msk [vmem:[#allocation2 + $0x10] sm:$0xf] %vm249, %v245
    %255 = vst.msk [vmem:[#allocation2 + $0x14] sm:$0xf] %vm249, %v246
    %256 = vst.msk [vmem:[#allocation2 + $0x18] sm:$0xf] %vm249, %v247
    %257 = vst.msk [vmem:[#allocation2 + $0x1c] sm:$0xf] %vm249, %v248
  $region25: #{transformer_forward.24} parent=0 // pred_fallthru
    _
  %v258 = vld [vmem:[#allocation2] sm:$0xf]
  %v259 = vld [vmem:[#allocation2 + $0x4] sm:$0xf]
  %v260 = vld [vmem:[#allocation2 + $0x8] sm:$0xf]
  %v261 = vld [vmem:[#allocation2 + $0xc] sm:$0xf]
  %v262 = vld [vmem:[#allocation2 + $0x10] sm:$0xf]
  %v263 = vld [vmem:[#allocation2 + $0x14] sm:$0xf]
  %v264 = vld [vmem:[#allocation2 + $0x18] sm:$0xf]
  %v265 = vld [vmem:[#allocation2 + $0x1c] sm:$0xf]
  %v266 = vld [vmem:[%s3] sm:$0xf]
  %v267 = vld [vmem:[%s3 + $0x4] sm:$0xf]
  %v268 = vld [vmem:[%s3 + $0x8] sm:$0xf]
  %v269 = vld [vmem:[%s3 + $0xc] sm:$0xf]
  %v270 = vld [vmem:[%s4] sm:$0x1]
  %v272 = vperm.slane %v270, 0
  %v282 = vunpack.c.l.b16 %v258
  %v283 = vunpack.c.l.b16 %v259
  %v284 = vunpack.c.l.b16 %v260
  %v285 = vunpack.c.l.b16 %v261
  %v286 = vunpack.c.l.b16 %v262
  %v287 = vunpack.c.l.b16 %v263
  %v288 = vunpack.c.l.b16 %v264
  %v289 = vunpack.c.l.b16 %v265
  %v290 = vpack.c.b16 %v283, %v282
  %v291 = vpack.c.b16 %v285, %v284
  %v292 = vpack.c.b16 %v287, %v286
  %v293 = vpack.c.b16 %v289, %v288
  %v298 = vunpack.c.l.b16 %v266
  %v299 = vunpack.c.l.b16 %v267
  %v300 = vunpack.c.l.b16 %v268
  %v301 = vunpack.c.l.b16 %v269
  %v302 = vpack.c.b16 %v299, %v298
  %v303 = vpack.c.b16 %v301, %v300
  %vm306 = vcmask 261120
  %v308 = vsel %vm306, %v290, 0
  %v311 = vsel %vm306, %v291, 0
  %v314 = vsel %vm306, %v292, 0
  %v317 = vsel %vm306, %v293, 0
  %319 = vmatpush.bf16.msra.mxu0 0
  %320 = vmatpush.bf16.msra.mxu0 0
  %321 = vmatpush.bf16.msra.mxu0 0
  %322 = vmatpush.bf16.msra.mxu0 0
  %323 = vmatpush.bf16.msra.mxu0 0
  %324 = vmatpush.bf16.msra.mxu0 0
  %325 = vmatpush.bf16.msra.mxu0 %v303
  %326 = vmatpush.bf16.msra.mxu0 %v302
  %327 = vmatmul.bf16.gmra.mxu0 %v308
  %v328 = vpop.f32.mrf.mxu0
  %v329 = vadd.f32 %v272, %v328
  %v330 = vpop.f32.mrf.mxu0
  %v331 = vadd.f32 %v272, %v330
  %332 = vmatmul.bf16.gmra.mxu0 %v311
  %v333 = vpop.f32.mrf.mxu0
  %v334 = vadd.f32 %v272, %v333
  %v335 = vpop.f32.mrf.mxu0
  %v336 = vadd.f32 %v272, %v335
  %337 = vmatmul.bf16.gmra.mxu0 %v314
  %v338 = vpop.f32.mrf.mxu0
  %v339 = vadd.f32 %v272, %v338
  %v340 = vpop.f32.mrf.mxu0
  %v341 = vadd.f32 %v272, %v340
  %342 = vmatmul.bf16.gmra.mxu0 %v317
  %v343 = vpop.f32.mrf.mxu0
  %v344 = vadd.f32 %v272, %v343
  %v345 = vpop.f32.mrf.mxu0
  %v346 = vadd.f32 %v272, %v345
  %347 = vdwg.mxu0
  %v348 = vpack.c.bf16 %v329, %v329
  %v349 = vpack.c.bf16 %v331, %v331
  %v350 = vpack.c.bf16 %v334, %v334
  %v351 = vpack.c.bf16 %v336, %v336
  %v352 = vpack.c.bf16 %v339, %v339
  %v353 = vpack.c.bf16 %v341, %v341
  %v354 = vpack.c.bf16 %v344, %v344
  %v355 = vpack.c.bf16 %v346, %v346
  %vm356 = vcmask 781312
  %357 = vst.msk [vmem:[%s5] sm:$0xf] %vm356, %v348
  %358 = vst.msk [vmem:[%s5 + $0x4] sm:$0xf] %vm356, %v349
  %359 = vst.msk [vmem:[%s5 + $0x8] sm:$0xf] %vm356, %v350
  %360 = vst.msk [vmem:[%s5 + $0xc] sm:$0xf] %vm356, %v351
  %361 = vst.msk [vmem:[%s5 + $0x10] sm:$0xf] %vm356, %v352
  %362 = vst.msk [vmem:[%s5 + $0x14] sm:$0xf] %vm356, %v353
  %363 = vst.msk [vmem:[%s5 + $0x18] sm:$0xf] %vm356, %v354
  %364 = vst.msk [vmem:[%s5 + $0x1c] sm:$0xf] %vm356, %v355
  // Predicated region
  $region26: #{transformer_forward.24} parent=0 // pred_check
    _
  $region27: #{transformer_forward.24} parent=0 // pred_check_branch
    %366 = sbr.rel (0) target = $region29
  $region28: #{transformer_forward.24} parent=0 // pred_region
    _
  $region29: #{transformer_forward.24} parent=0 // pred_fallthru
    _
  // Predicated region
  $region30: #{transformer_forward.24} parent=0 // pred_check
    _
  $region31: #{transformer_forward.24} parent=0 // pred_check_branch
    %368 = sbr.rel (0) target = $region33
  $region32: #{transformer_forward.24} parent=0 // pred_region
    _
  $region33: #{transformer_forward.24} parent=0 // pred_fallthru
    _

// kernel: transformer_forward.27
$region0: #{transformer_forward.27}
  #allocation0 [shape = 'u32[]', space=smem, size = 0x4, offset = 0x4, fixed_abs, tag = 'smem constant byte address 0x4 - core index']
  #allocation1 [shape = 'u32[72,128]{1,0:T(1,128)}', space=vmem, size = 0x9000, scoped, tag = 'internal scratch']
  #allocation2 [shape = 'bf16[64,32]{1,0:T(8,128)(2,1)}', space=vmem, size = 0x4000, scoped, tag = 'scratch operand']
  %s0 = inlined_call_operand.vmem [shape: f32[64,32], index: 0, kind: input, shape index: {}]
  %s1 = inlined_call_operand.vmem [shape: f32[1,32], index: 1, kind: input, shape index: {}]
  %s2 = inlined_call_operand.vmem [shape: f32[1,32], index: 2, kind: input, shape index: {}]
  %s3 = inlined_call_operand.vmem [shape: bf16[32,96], index: 3, kind: input, shape index: {}]
  %s4 = inlined_call_operand.hbm [shape: f32[1,96], index: 4, kind: input, shape index: {}]
  %s5 = inlined_call_operand.vmem [shape: bf16[64,96], index: 5, kind: output, shape index: {}]
  %s6 = sld [smem:[#allocation0]]
  $region38: #{transformer_forward.27} parent=0
    _
  %s8 = ssub.s32 1, %s6
  %s9 = scalar_select 0, %s8, %s6
  $region1: #{transformer_forward.27} parent=0
    #allocation3 [shape = 'u8[512]{0}', space=vmem, size = 0x400, scoped, tag = 'input window, operand 4, single buffered']
    #allocation4 [shape = 's32[1]{0}', space=sflag, size = 0x4, scoped, tag = 'scoped memory for transformer_forward.27']
    %10 = vsyncpa [#allocation4], 0
    // Predicated region
    $region2: #{transformer_forward.27} parent=1 // pred_check
      _
    $region3: #{transformer_forward.27} parent=1 // pred_check_branch
      %12 = sbr.rel (0) target = $region5
    $region4: #{transformer_forward.27} parent=1 // pred_region
      _
    $region5: #{transformer_forward.27} parent=1 // pred_fallthru
      _
    // Predicated region
    $region6: #{transformer_forward.27} parent=1 // pred_check
      _
    $region7: #{transformer_forward.27} parent=1 // pred_check_branch
      %14 = sbr.rel (0) target = $region9
    $region8: #{transformer_forward.27} parent=1 // pred_region
      _
    $region9: #{transformer_forward.27} parent=1 // pred_fallthru
      _
    // Predicated region
    $region10: #{transformer_forward.27} parent=1 // pred_check
      _
    $region11: #{transformer_forward.27} parent=1 // pred_check_branch
      %16 = sbr.rel (0) target = $region13
    $region12: #{transformer_forward.27} parent=1 // pred_region
      _
    $region13: #{transformer_forward.27} parent=1 // pred_fallthru
      _
    // Predicated region
    $region14: #{transformer_forward.27} parent=1 // pred_check
      _
    $region15: #{transformer_forward.27} parent=1 // pred_check_branch
      %18 = sbr.rel (0) target = $region17
    $region16: #{transformer_forward.27} parent=1 // pred_region
      _
    $region17: #{transformer_forward.27} parent=1 // pred_fallthru
      _
    // Predicated region
    $region18: #{transformer_forward.27} parent=1 // pred_check
      _
    $region19: #{transformer_forward.27} parent=1 // pred_check_branch
      %20 = sbr.rel (0) target = $region21
    $region20: #{transformer_forward.27} parent=1 // pred_region
      %22 = vsyncadd [#allocation4], 0
      %s24 = sshll.u32 %s4, 4
      %s25 = int_to_ptr.hbm [resolvable:$true] %s24
      %s26 = sshll.u32 [#allocation3], 4
      %s27 = int_to_ptr.vmem [resolvable:$true] %s26
      %29 = dma.hbm_to_vmem [thread:$0]  %s25, 16, %s27, [#allocation4]
    $region21: #{transformer_forward.27} parent=1 // pred_fallthru
      _
    // Predicated region
    $region22: #{transformer_forward.27} parent=1 // pred_check
      _
    $region23: #{transformer_forward.27} parent=1 // pred_check_branch
      %31 = sbr.rel (0) target = $region25
    $region24: #{transformer_forward.27} parent=1 // pred_region
      %33 = dma.done [#allocation4], 16
    $region25: #{transformer_forward.27} parent=1 // pred_fallthru
      _
    %p35 = scmp.eq.s32.totalorder 0, 0
    // Predicated region
    $region26: #{transformer_forward.27} parent=1 // pred_check
      %p36 = pneg %p35
    $region27: #{transformer_forward.27} parent=1 // pred_check_branch
      %38 = sbr.rel (%p36) target = $region29
    $region28: #{transformer_forward.27} parent=1 // pred_region
      %v39 = vld [vmem:[%s0] sm:$0xff]
      %v40 = vld [vmem:[%s0 + $0x8] sm:$0xff]
      %v41 = vld [vmem:[%s0 + $0x10] sm:$0xff]
      %v42 = vld [vmem:[%s0 + $0x18] sm:$0xff]
      %v43 = vld [vmem:[%s0 + $0x20] sm:$0xff]
      %v44 = vld [vmem:[%s0 + $0x28] sm:$0xff]
      %v45 = vld [vmem:[%s0 + $0x30] sm:$0xff]
      %v46 = vld [vmem:[%s0 + $0x38] sm:$0xff]
      %vm47 = vcmask 261120
      %v48 = vsel %vm47, %v39, 0.0
      %49 = vadd.xlane.f32.xlu0 %v48
      %v50 = vpop.xlane.xlu0 %49
      %v51 = vsel %vm47, %v40, 0.0
      %52 = vadd.xlane.f32.xlu0 %v51
      %v53 = vpop.xlane.xlu0 %52
      %v54 = vsel %vm47, %v41, 0.0
      %55 = vadd.xlane.f32.xlu0 %v54
      %v56 = vpop.xlane.xlu0 %55
      %v57 = vsel %vm47, %v42, 0.0
      %58 = vadd.xlane.f32.xlu0 %v57
      %v59 = vpop.xlane.xlu0 %58
      %v60 = vsel %vm47, %v43, 0.0
      %61 = vadd.xlane.f32.xlu0 %v60
      %v62 = vpop.xlane.xlu0 %61
      %v63 = vsel %vm47, %v44, 0.0
      %64 = vadd.xlane.f32.xlu0 %v63
      %v65 = vpop.xlane.xlu0 %64
      %v66 = vsel %vm47, %v45, 0.0
      %67 = vadd.xlane.f32.xlu0 %v66
      %v68 = vpop.xlane.xlu0 %67
      %v69 = vsel %vm47, %v46, 0.0
      %70 = vadd.xlane.f32.xlu0 %v69
      %v71 = vpop.xlane.xlu0 %70
      %v72 = vrcp.pop 32.0
      %v73 = vmul.f32 32.0, %v72
      %v74 = vsub.f32 1.0, %v73
      %v75 = vmul.f32 %v72, %v74
      %v76 = vadd.f32 %v72, %v75
      %vm77 = vweird.f32 %v72
      %v78 = vsel %vm77, %v72, %v76
      %v79 = vmul.f32 %v50, %v78
      %v80 = vmul.f32 %v53, %v78
      %v81 = vmul.f32 %v56, %v78
      %v82 = vmul.f32 %v59, %v78
      %v83 = vmul.f32 %v62, %v78
      %v84 = vmul.f32 %v65, %v78
      %v85 = vmul.f32 %v68, %v78
      %v86 = vmul.f32 %v71, %v78
      %v87 = vsub.f32 %v39, %v79
      %v88 = vsub.f32 %v40, %v80
      %v89 = vsub.f32 %v41, %v81
      %v90 = vsub.f32 %v42, %v82
      %v91 = vsub.f32 %v43, %v83
      %v92 = vsub.f32 %v44, %v84
      %v93 = vsub.f32 %v45, %v85
      %v94 = vsub.f32 %v46, %v86
      %v95 = vmul.f32 %v87, %v87
      %v96 = vmul.f32 %v88, %v88
      %v97 = vmul.f32 %v89, %v89
      %v98 = vmul.f32 %v90, %v90
      %v99 = vmul.f32 %v91, %v91
      %v100 = vmul.f32 %v92, %v92
      %v101 = vmul.f32 %v93, %v93
      %v102 = vmul.f32 %v94, %v94
      %v103 = vsel %vm47, %v95, 0.0
      %104 = vadd.xlane.f32.xlu0 %v103
      %v105 = vpop.xlane.xlu0 %104
      %v106 = vsel %vm47, %v96, 0.0
      %107 = vadd.xlane.f32.xlu0 %v106
      %v108 = vpop.xlane.xlu0 %107
      %v109 = vsel %vm47, %v97, 0.0
      %110 = vadd.xlane.f32.xlu0 %v109
      %v111 = vpop.xlane.xlu0 %110
      %v112 = vsel %vm47, %v98, 0.0
      %113 = vadd.xlane.f32.xlu0 %v112
      %v114 = vpop.xlane.xlu0 %113
      %v115 = vsel %vm47, %v99, 0.0
      %116 = vadd.xlane.f32.xlu0 %v115
      %v117 = vpop.xlane.xlu0 %116
      %v118 = vsel %vm47, %v100, 0.0
      %119 = vadd.xlane.f32.xlu0 %v118
      %v120 = vpop.xlane.xlu0 %119
      %v121 = vsel %vm47, %v101, 0.0
      %122 = vadd.xlane.f32.xlu0 %v121
      %v123 = vpop.xlane.xlu0 %122
      %v124 = vsel %vm47, %v102, 0.0
      %125 = vadd.xlane.f32.xlu0 %v124
      %v126 = vpop.xlane.xlu0 %125
      %v127 = vmul.f32 %v105, %v78
      %v128 = vmul.f32 %v108, %v78
      %v129 = vmul.f32 %v111, %v78
      %v130 = vmul.f32 %v114, %v78
      %v131 = vmul.f32 %v117, %v78
      %v132 = vmul.f32 %v120, %v78
      %v133 = vmul.f32 %v123, %v78
      %v134 = vmul.f32 %v126, %v78
      %v135 = vadd.f32 %v127, 1e-05
      %v136 = vadd.f32 %v128, 1e-05
      %v137 = vadd.f32 %v129, 1e-05
      %v138 = vadd.f32 %v130, 1e-05
      %v139 = vadd.f32 %v131, 1e-05
      %v140 = vadd.f32 %v132, 1e-05
      %v141 = vadd.f32 %v133, 1e-05
      %v142 = vadd.f32 %v134, 1e-05
      %v143 = vrsqrt.pop %v135
      %v144 = vmul.f32 %v143, %v135
      %v145 = vmul.f32 %v144, %v143
      %v146 = vmul.f32 0.5, %v145
      %v147 = vsub.f32 1.5, %v146
      %v148 = vmul.f32 %v143, %v147
      %vm149 = vweird.f32 %v135
      %vm150 = vweird.f32 %v143
      %vm151 = vmor %vm149, %vm150
      %v152 = vsel %vm151, %v143, %v148
      %v153 = vrsqrt.pop %v136
      %v154 = vmul.f32 %v153, %v136
      %v155 = vmul.f32 %v154, %v153
      %v156 = vmul.f32 0.5, %v155
      %v157 = vsub.f32 1.5, %v156
      %v158 = vmul.f32 %v153, %v157
      %vm159 = vweird.f32 %v136
      %vm160 = vweird.f32 %v153
      %vm161 = vmor %vm159, %vm160
      %v162 = vsel %vm161, %v153, %v158
      %v163 = vrsqrt.pop %v137
      %v164 = vmul.f32 %v163, %v137
      %v165 = vmul.f32 %v164, %v163
      %v166 = vmul.f32 0.5, %v165
      %v167 = vsub.f32 1.5, %v166
      %v168 = vmul.f32 %v163, %v167
      %vm169 = vweird.f32 %v137
      %vm170 = vweird.f32 %v163
      %vm171 = vmor %vm169, %vm170
      %v172 = vsel %vm171, %v163, %v168
      %v173 = vrsqrt.pop %v138
      %v174 = vmul.f32 %v173, %v138
      %v175 = vmul.f32 %v174, %v173
      %v176 = vmul.f32 0.5, %v175
      %v177 = vsub.f32 1.5, %v176
      %v178 = vmul.f32 %v173, %v177
      %vm179 = vweird.f32 %v138
      %vm180 = vweird.f32 %v173
      %vm181 = vmor %vm179, %vm180
      %v182 = vsel %vm181, %v173, %v178
      %v183 = vrsqrt.pop %v139
      %v184 = vmul.f32 %v183, %v139
      %v185 = vmul.f32 %v184, %v183
      %v186 = vmul.f32 0.5, %v185
      %v187 = vsub.f32 1.5, %v186
      %v188 = vmul.f32 %v183, %v187
      %vm189 = vweird.f32 %v139
      %vm190 = vweird.f32 %v183
      %vm191 = vmor %vm189, %vm190
      %v192 = vsel %vm191, %v183, %v188
      %v193 = vrsqrt.pop %v140
      %v194 = vmul.f32 %v193, %v140
      %v195 = vmul.f32 %v194, %v193
      %v196 = vmul.f32 0.5, %v195
      %v197 = vsub.f32 1.5, %v196
      %v198 = vmul.f32 %v193, %v197
      %vm199 = vweird.f32 %v140
      %vm200 = vweird.f32 %v193
      %vm201 = vmor %vm199, %vm200
      %v202 = vsel %vm201, %v193, %v198
      %v203 = vrsqrt.pop %v141
      %v204 = vmul.f32 %v203, %v141
      %v205 = vmul.f32 %v204, %v203
      %v206 = vmul.f32 0.5, %v205
      %v207 = vsub.f32 1.5, %v206
      %v208 = vmul.f32 %v203, %v207
      %vm209 = vweird.f32 %v141
      %vm210 = vweird.f32 %v203
      %vm211 = vmor %vm209, %vm210
      %v212 = vsel %vm211, %v203, %v208
      %v213 = vrsqrt.pop %v142
      %v214 = vmul.f32 %v213, %v142
      %v215 = vmul.f32 %v214, %v213
      %v216 = vmul.f32 0.5, %v215
      %v217 = vsub.f32 1.5, %v216
      %v218 = vmul.f32 %v213, %v217
      %vm219 = vweird.f32 %v142
      %vm220 = vweird.f32 %v213
      %vm221 = vmor %vm219, %vm220
      %v222 = vsel %vm221, %v213, %v218
      %v223 = vmul.f32 %v87, %v152
      %v224 = vmul.f32 %v88, %v162
      %v225 = vmul.f32 %v89, %v172
      %v226 = vmul.f32 %v90, %v182
      %v227 = vmul.f32 %v91, %v192
      %v228 = vmul.f32 %v92, %v202
      %v229 = vmul.f32 %v93, %v212
      %v230 = vmul.f32 %v94, %v222
      %v231 = vld [vmem:[%s1] sm:$0x1]
      %v233 = vperm.slane %v231, 0
      %v235 = vmul.f32 %v223, %v233
      %v236 = vmul.f32 %v224, %v233
      %v237 = vmul.f32 %v225, %v233
      %v238 = vmul.f32 %v226, %v233
      %v239 = vmul.f32 %v227, %v233
      %v240 = vmul.f32 %v228, %v233
      %v241 = vmul.f32 %v229, %v233
      %v242 = vmul.f32 %v230, %v233
      %v243 = vld [vmem:[%s2] sm:$0x1]
      %v245 = vperm.slane %v243, 0
      %v247 = vadd.f32 %v235, %v245
      %v248 = vadd.f32 %v236, %v245
      %v249 = vadd.f32 %v237, %v245
      %v250 = vadd.f32 %v238, %v245
      %v251 = vadd.f32 %v239, %v245
      %v252 = vadd.f32 %v240, %v245
      %v253 = vadd.f32 %v241, %v245
      %v254 = vadd.f32 %v242, %v245
      %v255 = vpack.c.bf16 %v247, %v247
      %v256 = vpack.c.bf16 %v248, %v248
      %v257 = vpack.c.bf16 %v249, %v249
      %v258 = vpack.c.bf16 %v250, %v250
      %v259 = vpack.c.bf16 %v251, %v251
      %v260 = vpack.c.bf16 %v252, %v252
      %v261 = vpack.c.bf16 %v253, %v253
      %v262 = vpack.c.bf16 %v254, %v254
      %vm263 = vcmask 257024
      %264 = vst.msk [vmem:[#allocation2] sm:$0xf] %vm263, %v255
      %265 = vst.msk [vmem:[#allocation2 + $0x4] sm:$0xf] %vm263, %v256
      %266 = vst.msk [vmem:[#allocation2 + $0x8] sm:$0xf] %vm263, %v257
      %267 = vst.msk [vmem:[#allocation2 + $0xc] sm:$0xf] %vm263, %v258
      %268 = vst.msk [vmem:[#allocation2 + $0x10] sm:$0xf] %vm263, %v259
      %269 = vst.msk [vmem:[#allocation2 + $0x14] sm:$0xf] %vm263, %v260
      %270 = vst.msk [vmem:[#allocation2 + $0x18] sm:$0xf] %vm263, %v261
      %271 = vst.msk [vmem:[#allocation2 + $0x1c] sm:$0xf] %vm263, %v262
    $region29: #{transformer_forward.27} parent=1 // pred_fallthru
      _
    %v272 = vld [vmem:[#allocation2] sm:$0xf]
    %v273 = vld [vmem:[#allocation2 + $0x4] sm:$0xf]
    %v274 = vld [vmem:[#allocation2 + $0x8] sm:$0xf]
    %v275 = vld [vmem:[#allocation2 + $0xc] sm:$0xf]
    %v276 = vld [vmem:[#allocation2 + $0x10] sm:$0xf]
    %v277 = vld [vmem:[#allocation2 + $0x14] sm:$0xf]
    %v278 = vld [vmem:[#allocation2 + $0x18] sm:$0xf]
    %v279 = vld [vmem:[#allocation2 + $0x1c] sm:$0xf]
    %v280 = vld [vmem:[%s3] sm:$0xf]
    %v281 = vld [vmem:[%s3 + $0x4] sm:$0xf]
    %v282 = vld [vmem:[%s3 + $0x8] sm:$0xf]
    %v283 = vld [vmem:[%s3 + $0xc] sm:$0xf]
    %v284 = vld [vmem:[#allocation3] sm:$0x1]
    %v286 = vperm.slane %v284, 0
    %v296 = vunpack.c.l.b16 %v272
    %v297 = vunpack.c.l.b16 %v273
    %v298 = vunpack.c.l.b16 %v274
    %v299 = vunpack.c.l.b16 %v275
    %v300 = vunpack.c.l.b16 %v276
    %v301 = vunpack.c.l.b16 %v277
    %v302 = vunpack.c.l.b16 %v278
    %v303 = vunpack.c.l.b16 %v279
    %v304 = vpack.c.b16 %v297, %v296
    %v305 = vpack.c.b16 %v299, %v298
    %v306 = vpack.c.b16 %v301, %v300
    %v307 = vpack.c.b16 %v303, %v302
    %v312 = vunpack.c.l.b16 %v280
    %v313 = vunpack.c.l.b16 %v281
    %v314 = vunpack.c.l.b16 %v282
    %v315 = vunpack.c.l.b16 %v283
    %v316 = vpack.c.b16 %v313, %v312
    %v317 = vpack.c.b16 %v315, %v314
    %vm320 = vcmask 261120
    %v322 = vsel %vm320, %v304, 0
    %v325 = vsel %vm320, %v305, 0
    %v328 = vsel %vm320, %v306, 0
    %v331 = vsel %vm320, %v307, 0
    %333 = vmatpush.bf16.msra.mxu0 0
    %334 = vmatpush.bf16.msra.mxu0 0
    %335 = vmatpush.bf16.msra.mxu0 0
    %336 = vmatpush.bf16.msra.mxu0 0
    %337 = vmatpush.bf16.msra.mxu0 0
    %338 = vmatpush.bf16.msra.mxu0 0
    %339 = vmatpush.bf16.msra.mxu0 %v317
    %340 = vmatpush.bf16.msra.mxu0 %v316
    %341 = vmatmul.bf16.gmra.mxu0 %v322
    %v342 = vpop.f32.mrf.mxu0
    %v343 = vadd.f32 %v286, %v342
    %v344 = vpop.f32.mrf.mxu0
    %v345 = vadd.f32 %v286, %v344
    %346 = vmatmul.bf16.gmra.mxu0 %v325
    %v347 = vpop.f32.mrf.mxu0
    %v348 = vadd.f32 %v286, %v347
    %v349 = vpop.f32.mrf.mxu0
    %v350 = vadd.f32 %v286, %v349
    %351 = vmatmul.bf16.gmra.mxu0 %v328
    %v352 = vpop.f32.mrf.mxu0
    %v353 = vadd.f32 %v286, %v352
    %v354 = vpop.f32.mrf.mxu0
    %v355 = vadd.f32 %v286, %v354
    %356 = vmatmul.bf16.gmra.mxu0 %v331
    %v357 = vpop.f32.mrf.mxu0
    %v358 = vadd.f32 %v286, %v357
    %v359 = vpop.f32.mrf.mxu0
    %v360 = vadd.f32 %v286, %v359
    %361 = vdwg.mxu0
    %v362 = vpack.c.bf16 %v343, %v343
    %v363 = vpack.c.bf16 %v345, %v345
    %v364 = vpack.c.bf16 %v348, %v348
    %v365 = vpack.c.bf16 %v350, %v350
    %v366 = vpack.c.bf16 %v353, %v353
    %v367 = vpack.c.bf16 %v355, %v355
    %v368 = vpack.c.bf16 %v358, %v358
    %v369 = vpack.c.bf16 %v360, %v360
    %vm370 = vcmask 781312
    %371 = vst.msk [vmem:[%s5] sm:$0xf] %vm370, %v362
    %372 = vst.msk [vmem:[%s5 + $0x4] sm:$0xf] %vm370, %v363
    %373 = vst.msk [vmem:[%s5 + $0x8] sm:$0xf] %vm370, %v364
    %374 = vst.msk [vmem:[%s5 + $0xc] sm:$0xf] %vm370, %v365
    %375 = vst.msk [vmem:[%s5 + $0x10] sm:$0xf] %vm370, %v366
    %376 = vst.msk [vmem:[%s5 + $0x14] sm:$0xf] %vm370, %v367
    %377 = vst.msk [vmem:[%s5 + $0x18] sm:$0xf] %vm370, %v368
    %378 = vst.msk [vmem:[%s5 + $0x1c] sm:$0xf] %vm370, %v369
    // Predicated region
    $region30: #{transformer_forward.27} parent=1 // pred_check
      _
    $region31: #{transformer_forward.27} parent=1 // pred_check_branch
      %380 = sbr.rel (0) target = $region33
    $region32: #{transformer_forward.27} parent=1 // pred_region
      _
    $region33: #{transformer_forward.27} parent=1 // pred_fallthru
      _
    // Predicated region
    $region34: #{transformer_forward.27} parent=1 // pred_check
      _
    $region35: #{transformer_forward.27} parent=1 // pred_check_branch
      %382 = sbr.rel (0) target = $region37
    $region36: #{transformer_forward.27} parent=1 // pred_region
      _
    $region37: #{transformer_forward.27} parent=1 // pred_fallthru
      _
    %383 = vsyncpa [#allocation4], 1

// kernel: transformer_forward.31
$region0: #{transformer_forward.31}
  #allocation0 [shape = 'u32[]', space=smem, size = 0x4, offset = 0x4, fixed_abs, tag = 'smem constant byte address 0x4 - core index']
  #allocation1 [shape = 'u32[72,128]{1,0:T(1,128)}', space=vmem, size = 0x9000, scoped, tag = 'internal scratch']
  #allocation2 [shape = 'f32[64,32]{1,0:T(8,128)}', space=vmem, size = 0x8000, scoped, tag = 'scratch operand']
  %s0 = inlined_call_operand.vmem [shape: bf16[64,128], index: 0, kind: input, shape index: {}]
  %s1 = inlined_call_operand.vmem [shape: bf16[128,32], index: 1, kind: input, shape index: {}]
  %s2 = inlined_call_operand.vmem [shape: f32[1,32], index: 2, kind: input, shape index: {}]
  %s3 = inlined_call_operand.vmem [shape: f32[64,32], index: 3, kind: input, shape index: {}]
  %s4 = inlined_call_operand.hbm [shape: f32[64,32], index: 4, kind: output, shape index: {}]
  %s5 = sld [smem:[#allocation0]]
  $region34: #{transformer_forward.31} parent=0
    _
  %s7 = ssub.s32 1, %s5
  %s8 = scalar_select 0, %s7, %s5
  $region1: #{transformer_forward.31} parent=0
    #allocation3 [shape = 'u8[32768]{0}', space=vmem, size = 0x8000, scoped, tag = 'output window, operand 0, single buffered']
    #allocation4 [shape = 's32[1]{0}', space=sflag, size = 0x4, scoped, tag = 'scoped memory for transformer_forward.31']
    %9 = vsyncpa [#allocation4], 0
    // Predicated region
    $region2: #{transformer_forward.31} parent=1 // pred_check
      _
    $region3: #{transformer_forward.31} parent=1 // pred_check_branch
      %11 = sbr.rel (0) target = $region5
    $region4: #{transformer_forward.31} parent=1 // pred_region
      _
    $region5: #{transformer_forward.31} parent=1 // pred_fallthru
      _
    // Predicated region
    $region6: #{transformer_forward.31} parent=1 // pred_check
      _
    $region7: #{transformer_forward.31} parent=1 // pred_check_branch
      %13 = sbr.rel (0) target = $region9
    $region8: #{transformer_forward.31} parent=1 // pred_region
      _
    $region9: #{transformer_forward.31} parent=1 // pred_fallthru
      _
    // Predicated region
    $region10: #{transformer_forward.31} parent=1 // pred_check
      _
    $region11: #{transformer_forward.31} parent=1 // pred_check_branch
      %15 = sbr.rel (0) target = $region13
    $region12: #{transformer_forward.31} parent=1 // pred_region
      _
    $region13: #{transformer_forward.31} parent=1 // pred_fallthru
      _
    // Predicated region
    $region14: #{transformer_forward.31} parent=1 // pred_check
      _
    $region15: #{transformer_forward.31} parent=1 // pred_check_branch
      %17 = sbr.rel (0) target = $region17
    $region16: #{transformer_forward.31} parent=1 // pred_region
      _
    $region17: #{transformer_forward.31} parent=1 // pred_fallthru
      _
    %p18 = scmp.eq.s32.totalorder 0, 0
    // Predicated region
    $region18: #{transformer_forward.31} parent=1 // pred_check
      %p19 = pneg %p18
    $region19: #{transformer_forward.31} parent=1 // pred_check_branch
      %21 = sbr.rel (%p19) target = $region21
    $region20: #{transformer_forward.31} parent=1 // pred_region
      %vm22 = vcmask 261120
      %23 = vst.msk [vmem:[#allocation2] sm:$0xff] %vm22, 0.0
      %24 = vst.msk [vmem:[#allocation2 + $0x8] sm:$0xff] %vm22, 0.0
      %25 = vst.msk [vmem:[#allocation2 + $0x10] sm:$0xff] %vm22, 0.0
      %26 = vst.msk [vmem:[#allocation2 + $0x18] sm:$0xff] %vm22, 0.0
      %27 = vst.msk [vmem:[#allocation2 + $0x20] sm:$0xff] %vm22, 0.0
      %28 = vst.msk [vmem:[#allocation2 + $0x28] sm:$0xff] %vm22, 0.0
      %29 = vst.msk [vmem:[#allocation2 + $0x30] sm:$0xff] %vm22, 0.0
      %30 = vst.msk [vmem:[#allocation2 + $0x38] sm:$0xff] %vm22, 0.0
    $region21: #{transformer_forward.31} parent=1 // pred_fallthru
      _
    %v31 = vld [vmem:[#allocation2] sm:$0xff]
    %v32 = vld [vmem:[#allocation2 + $0x8] sm:$0xff]
    %v33 = vld [vmem:[#allocation2 + $0x10] sm:$0xff]
    %v34 = vld [vmem:[#allocation2 + $0x18] sm:$0xff]
    %v35 = vld [vmem:[#allocation2 + $0x20] sm:$0xff]
    %v36 = vld [vmem:[#allocation2 + $0x28] sm:$0xff]
    %v37 = vld [vmem:[#allocation2 + $0x30] sm:$0xff]
    %v38 = vld [vmem:[#allocation2 + $0x38] sm:$0xff]
    %v39 = vld [vmem:[%s0] sm:$0xf]
    %v40 = vld [vmem:[%s0 + $0x4] sm:$0xf]
    %v41 = vld [vmem:[%s0 + $0x8] sm:$0xf]
    %v42 = vld [vmem:[%s0 + $0xc] sm:$0xf]
    %v43 = vld [vmem:[%s0 + $0x10] sm:$0xf]
    %v44 = vld [vmem:[%s0 + $0x14] sm:$0xf]
    %v45 = vld [vmem:[%s0 + $0x18] sm:$0xf]
    %v46 = vld [vmem:[%s0 + $0x1c] sm:$0xf]
    %v47 = vld [vmem:[%s1] sm:$0xf]
    %v48 = vld [vmem:[%s1 + $0x4] sm:$0xf]
    %v49 = vld [vmem:[%s1 + $0x8] sm:$0xf]
    %v50 = vld [vmem:[%s1 + $0xc] sm:$0xf]
    %v51 = vld [vmem:[%s1 + $0x10] sm:$0xf]
    %v52 = vld [vmem:[%s1 + $0x14] sm:$0xf]
    %v53 = vld [vmem:[%s1 + $0x18] sm:$0xf]
    %v54 = vld [vmem:[%s1 + $0x1c] sm:$0xf]
    %v55 = vld [vmem:[%s1 + $0x20] sm:$0xf]
    %v56 = vld [vmem:[%s1 + $0x24] sm:$0xf]
    %v57 = vld [vmem:[%s1 + $0x28] sm:$0xf]
    %v58 = vld [vmem:[%s1 + $0x2c] sm:$0xf]
    %v59 = vld [vmem:[%s1 + $0x30] sm:$0xf]
    %v60 = vld [vmem:[%s1 + $0x34] sm:$0xf]
    %v61 = vld [vmem:[%s1 + $0x38] sm:$0xf]
    %v62 = vld [vmem:[%s1 + $0x3c] sm:$0xf]
    %v71 = vunpack.c.l.b16 %v39
    %v72 = vunpack.c.l.b16 %v40
    %v73 = vunpack.c.l.b16 %v41
    %v74 = vunpack.c.l.b16 %v42
    %v75 = vunpack.c.l.b16 %v43
    %v76 = vunpack.c.l.b16 %v44
    %v77 = vunpack.c.l.b16 %v45
    %v78 = vunpack.c.l.b16 %v46
    %v79 = vpack.c.b16 %v72, %v71
    %v80 = vpack.c.b16 %v74, %v73
    %v81 = vpack.c.b16 %v76, %v75
    %v82 = vpack.c.b16 %v78, %v77
    %v103 = vunpack.c.l.b16 %v47
    %v104 = vunpack.c.l.b16 %v48
    %v105 = vunpack.c.l.b16 %v49
    %v106 = vunpack.c.l.b16 %v50
    %v107 = vunpack.c.l.b16 %v51
    %v108 = vunpack.c.l.b16 %v52
    %v109 = vunpack.c.l.b16 %v53
    %v110 = vunpack.c.l.b16 %v54
    %v111 = vunpack.c.l.b16 %v55
    %v112 = vunpack.c.l.b16 %v56
    %v113 = vunpack.c.l.b16 %v57
    %v114 = vunpack.c.l.b16 %v58
    %v115 = vunpack.c.l.b16 %v59
    %v116 = vunpack.c.l.b16 %v60
    %v117 = vunpack.c.l.b16 %v61
    %v118 = vunpack.c.l.b16 %v62
    %v119 = vpack.c.b16 %v104, %v103
    %v120 = vpack.c.b16 %v106, %v105
    %v121 = vpack.c.b16 %v108, %v107
    %v122 = vpack.c.b16 %v110, %v109
    %v123 = vpack.c.b16 %v112, %v111
    %v124 = vpack.c.b16 %v114, %v113
    %v125 = vpack.c.b16 %v116, %v115
    %v126 = vpack.c.b16 %v118, %v117
    %135 = vmatpush.bf16.msra.mxu0 %v126
    %136 = vmatpush.bf16.msra.mxu0 %v125
    %137 = vmatpush.bf16.msra.mxu0 %v124
    %138 = vmatpush.bf16.msra.mxu0 %v123
    %139 = vmatpush.bf16.msra.mxu0 %v122
    %140 = vmatpush.bf16.msra.mxu0 %v121
    %141 = vmatpush.bf16.msra.mxu0 %v120
    %142 = vmatpush.bf16.msra.mxu0 %v119
    %143 = vmatmul.bf16.gmra.mxu0 %v79
    %v144 = vpop.f32.mrf.mxu0
    %v145 = vadd.f32 0.0, %v144
    %v146 = vpop.f32.mrf.mxu0
    %v147 = vadd.f32 0.0, %v146
    %148 = vmatmul.bf16.gmra.mxu0 %v80
    %v149 = vpop.f32.mrf.mxu0
    %v150 = vadd.f32 0.0, %v149
    %v151 = vpop.f32.mrf.mxu0
    %v152 = vadd.f32 0.0, %v151
    %153 = vmatmul.bf16.gmra.mxu0 %v81
    %v154 = vpop.f32.mrf.mxu0
    %v155 = vadd.f32 0.0, %v154
    %v156 = vpop.f32.mrf.mxu0
    %v157 = vadd.f32 0.0, %v156
    %158 = vmatmul.bf16.gmra.mxu0 %v82
    %v159 = vpop.f32.mrf.mxu0
    %v160 = vadd.f32 0.0, %v159
    %v161 = vpop.f32.mrf.mxu0
    %v162 = vadd.f32 0.0, %v161
    %163 = vdwg.mxu0
    %v164 = vadd.f32 %v31, %v145
    %v165 = vadd.f32 %v32, %v147
    %v166 = vadd.f32 %v33, %v150
    %v167 = vadd.f32 %v34, %v152
    %v168 = vadd.f32 %v35, %v155
    %v169 = vadd.f32 %v36, %v157
    %v170 = vadd.f32 %v37, %v160
    %v171 = vadd.f32 %v38, %v162
    %vm172 = vcmask 261120
    %173 = vst.msk [vmem:[#allocation2] sm:$0xff] %vm172, %v164
    %174 = vst.msk [vmem:[#allocation2 + $0x8] sm:$0xff] %vm172, %v165
    %175 = vst.msk [vmem:[#allocation2 + $0x10] sm:$0xff] %vm172, %v166
    %176 = vst.msk [vmem:[#allocation2 + $0x18] sm:$0xff] %vm172, %v167
    %177 = vst.msk [vmem:[#allocation2 + $0x20] sm:$0xff] %vm172, %v168
    %178 = vst.msk [vmem:[#allocation2 + $0x28] sm:$0xff] %vm172, %v169
    %179 = vst.msk [vmem:[#allocation2 + $0x30] sm:$0xff] %vm172, %v170
    %180 = vst.msk [vmem:[#allocation2 + $0x38] sm:$0xff] %vm172, %v171
    // Predicated region
    $region22: #{transformer_forward.31} parent=1 // pred_check
      %p181 = pneg %p18
    $region23: #{transformer_forward.31} parent=1 // pred_check_branch
      %183 = sbr.rel (%p181) target = $region25
    $region24: #{transformer_forward.31} parent=1 // pred_region
      %v184 = vld [vmem:[#allocation2] sm:$0xff]
      %v185 = vld [vmem:[#allocation2 + $0x8] sm:$0xff]
      %v186 = vld [vmem:[#allocation2 + $0x10] sm:$0xff]
      %v187 = vld [vmem:[#allocation2 + $0x18] sm:$0xff]
      %v188 = vld [vmem:[#allocation2 + $0x20] sm:$0xff]
      %v189 = vld [vmem:[#allocation2 + $0x28] sm:$0xff]
      %v190 = vld [vmem:[#allocation2 + $0x30] sm:$0xff]
      %v191 = vld [vmem:[#allocation2 + $0x38] sm:$0xff]
      %v192 = vld [vmem:[%s2] sm:$0x1]
      %v194 = vperm.slane %v192, 0
      %v196 = vadd.f32 %v184, %v194
      %v197 = vadd.f32 %v185, %v194
      %v198 = vadd.f32 %v186, %v194
      %v199 = vadd.f32 %v187, %v194
      %v200 = vadd.f32 %v188, %v194
      %v201 = vadd.f32 %v189, %v194
      %v202 = vadd.f32 %v190, %v194
      %v203 = vadd.f32 %v191, %v194
      %v204 = vld [vmem:[%s3] sm:$0xff]
      %v205 = vld [vmem:[%s3 + $0x8] sm:$0xff]
      %v206 = vld [vmem:[%s3 + $0x10] sm:$0xff]
      %v207 = vld [vmem:[%s3 + $0x18] sm:$0xff]
      %v208 = vld [vmem:[%s3 + $0x20] sm:$0xff]
      %v209 = vld [vmem:[%s3 + $0x28] sm:$0xff]
      %v210 = vld [vmem:[%s3 + $0x30] sm:$0xff]
      %v211 = vld [vmem:[%s3 + $0x38] sm:$0xff]
      %v212 = vadd.f32 %v196, %v204
      %v213 = vadd.f32 %v197, %v205
      %v214 = vadd.f32 %v198, %v206
      %v215 = vadd.f32 %v199, %v207
      %v216 = vadd.f32 %v200, %v208
      %v217 = vadd.f32 %v201, %v209
      %v218 = vadd.f32 %v202, %v210
      %v219 = vadd.f32 %v203, %v211
      %220 = vst.msk [vmem:[#allocation3] sm:$0xff] %vm172, %v212
      %221 = vst.msk [vmem:[#allocation3 + $0x8] sm:$0xff] %vm172, %v213
      %222 = vst.msk [vmem:[#allocation3 + $0x10] sm:$0xff] %vm172, %v214
      %223 = vst.msk [vmem:[#allocation3 + $0x18] sm:$0xff] %vm172, %v215
      %224 = vst.msk [vmem:[#allocation3 + $0x20] sm:$0xff] %vm172, %v216
      %225 = vst.msk [vmem:[#allocation3 + $0x28] sm:$0xff] %vm172, %v217
      %226 = vst.msk [vmem:[#allocation3 + $0x30] sm:$0xff] %vm172, %v218
      %227 = vst.msk [vmem:[#allocation3 + $0x38] sm:$0xff] %vm172, %v219
    $region25: #{transformer_forward.31} parent=1 // pred_fallthru
      _
    // Predicated region
    $region26: #{transformer_forward.31} parent=1 // pred_check
      _
    $region27: #{transformer_forward.31} parent=1 // pred_check_branch
      %229 = sbr.rel (0) target = $region29
    $region28: #{transformer_forward.31} parent=1 // pred_region
      %231 = vsyncadd [#allocation4], 0
      %s232 = sshll.u32 [#allocation3], 4
      %s233 = int_to_ptr.vmem [resolvable:$true] %s232
      %s234 = sshll.u32 %s4, 4
      %s235 = int_to_ptr.hbm [resolvable:$true] %s234
      %240 = dma.vmem_to_hbm [thread:$0]  %s233, 1024, %s235, [#allocation4], 128, 128, 8
    $region29: #{transformer_forward.31} parent=1 // pred_fallthru
      _
    // Predicated region
    $region30: #{transformer_forward.31} parent=1 // pred_check
      _
    $region31: #{transformer_forward.31} parent=1 // pred_check_branch
      %242 = sbr.rel (0) target = $region33
    $region32: #{transformer_forward.31} parent=1 // pred_region
      %244 = dma.done [#allocation4], 1024
    $region33: #{transformer_forward.31} parent=1 // pred_fallthru
      _
    %245 = vsyncpa [#allocation4], 1

// kernel: transformer_forward.29
$region0: #{transformer_forward.29}
  #allocation0 [shape = 'u32[]', space=smem, size = 0x4, offset = 0x4, fixed_abs, tag = 'smem constant byte address 0x4 - core index']
  #allocation1 [shape = 'u32[72,128]{1,0:T(1,128)}', space=vmem, size = 0x9000, scoped, tag = 'internal scratch']
  #allocation2 [shape = 'f32[64,32]{1,0:T(8,128)}', space=vmem, size = 0x8000, scoped, tag = 'scratch operand']
  %s0 = inlined_call_operand.vmem [shape: bf16[64,32], index: 0, kind: input, shape index: {}]
  %s1 = inlined_call_operand.vmem [shape: bf16[32,32], index: 1, kind: input, shape index: {}]
  %s2 = inlined_call_operand.hbm [shape: f32[1,32], index: 2, kind: input, shape index: {}]
  %s3 = inlined_call_operand.vmem [shape: f32[64,32], index: 3, kind: input, shape index: {}]
  %s4 = inlined_call_operand.vmem [shape: f32[64,32], index: 4, kind: output, shape index: {}]
  %s5 = sld [smem:[#allocation0]]
  $region38: #{transformer_forward.29} parent=0
    _
  %s7 = ssub.s32 1, %s5
  %s8 = scalar_select 0, %s7, %s5
  $region1: #{transformer_forward.29} parent=0
    #allocation3 [shape = 'u8[512]{0}', space=vmem, size = 0x400, scoped, tag = 'input window, operand 2, single buffered']
    #allocation4 [shape = 's32[1]{0}', space=sflag, size = 0x4, scoped, tag = 'scoped memory for transformer_forward.29']
    %9 = vsyncpa [#allocation4], 0
    // Predicated region
    $region2: #{transformer_forward.29} parent=1 // pred_check
      _
    $region3: #{transformer_forward.29} parent=1 // pred_check_branch
      %11 = sbr.rel (0) target = $region5
    $region4: #{transformer_forward.29} parent=1 // pred_region
      _
    $region5: #{transformer_forward.29} parent=1 // pred_fallthru
      _
    // Predicated region
    $region6: #{transformer_forward.29} parent=1 // pred_check
      _
    $region7: #{transformer_forward.29} parent=1 // pred_check_branch
      %13 = sbr.rel (0) target = $region9
    $region8: #{transformer_forward.29} parent=1 // pred_region
      _
    $region9: #{transformer_forward.29} parent=1 // pred_fallthru
      _
    // Predicated region
    $region10: #{transformer_forward.29} parent=1 // pred_check
      _
    $region11: #{transformer_forward.29} parent=1 // pred_check_branch
      %15 = sbr.rel (0) target = $region13
    $region12: #{transformer_forward.29} parent=1 // pred_region
      %17 = vsyncadd [#allocation4], 0
      %s19 = sshll.u32 %s2, 4
      %s20 = int_to_ptr.hbm [resolvable:$true] %s19
      %s21 = sshll.u32 [#allocation3], 4
      %s22 = int_to_ptr.vmem [resolvable:$true] %s21
      %24 = dma.hbm_to_vmem [thread:$0]  %s20, 16, %s22, [#allocation4]
    $region13: #{transformer_forward.29} parent=1 // pred_fallthru
      _
    // Predicated region
    $region14: #{transformer_forward.29} parent=1 // pred_check
      _
    $region15: #{transformer_forward.29} parent=1 // pred_check_branch
      %26 = sbr.rel (0) target = $region17
    $region16: #{transformer_forward.29} parent=1 // pred_region
      _
    $region17: #{transformer_forward.29} parent=1 // pred_fallthru
      _
    // Predicated region
    $region18: #{transformer_forward.29} parent=1 // pred_check
      _
    $region19: #{transformer_forward.29} parent=1 // pred_check_branch
      %28 = sbr.rel (0) target = $region21
    $region20: #{transformer_forward.29} parent=1 // pred_region
      %30 = dma.done [#allocation4], 16
    $region21: #{transformer_forward.29} parent=1 // pred_fallthru
      _
    %p32 = scmp.eq.s32.totalorder 0, 0
    // Predicated region
    $region22: #{transformer_forward.29} parent=1 // pred_check
      %p33 = pneg %p32
    $region23: #{transformer_forward.29} parent=1 // pred_check_branch
      %35 = sbr.rel (%p33) target = $region25
    $region24: #{transformer_forward.29} parent=1 // pred_region
      %vm36 = vcmask 261120
      %37 = vst.msk [vmem:[#allocation2] sm:$0xff] %vm36, 0.0
      %38 = vst.msk [vmem:[#allocation2 + $0x8] sm:$0xff] %vm36, 0.0
      %39 = vst.msk [vmem:[#allocation2 + $0x10] sm:$0xff] %vm36, 0.0
      %40 = vst.msk [vmem:[#allocation2 + $0x18] sm:$0xff] %vm36, 0.0
      %41 = vst.msk [vmem:[#allocation2 + $0x20] sm:$0xff] %vm36, 0.0
      %42 = vst.msk [vmem:[#allocation2 + $0x28] sm:$0xff] %vm36, 0.0
      %43 = vst.msk [vmem:[#allocation2 + $0x30] sm:$0xff] %vm36, 0.0
      %44 = vst.msk [vmem:[#allocation2 + $0x38] sm:$0xff] %vm36, 0.0
    $region25: #{transformer_forward.29} parent=1 // pred_fallthru
      _
    %v45 = vld [vmem:[#allocation2] sm:$0xff]
    %v46 = vld [vmem:[#allocation2 + $0x8] sm:$0xff]
    %v47 = vld [vmem:[#allocation2 + $0x10] sm:$0xff]
    %v48 = vld [vmem:[#allocation2 + $0x18] sm:$0xff]
    %v49 = vld [vmem:[#allocation2 + $0x20] sm:$0xff]
    %v50 = vld [vmem:[#allocation2 + $0x28] sm:$0xff]
    %v51 = vld [vmem:[#allocation2 + $0x30] sm:$0xff]
    %v52 = vld [vmem:[#allocation2 + $0x38] sm:$0xff]
    %v53 = vld [vmem:[%s0] sm:$0xf]
    %v54 = vld [vmem:[%s0 + $0x4] sm:$0xf]
    %v55 = vld [vmem:[%s0 + $0x8] sm:$0xf]
    %v56 = vld [vmem:[%s0 + $0xc] sm:$0xf]
    %v57 = vld [vmem:[%s0 + $0x10] sm:$0xf]
    %v58 = vld [vmem:[%s0 + $0x14] sm:$0xf]
    %v59 = vld [vmem:[%s0 + $0x18] sm:$0xf]
    %v60 = vld [vmem:[%s0 + $0x1c] sm:$0xf]
    %v61 = vld [vmem:[%s1] sm:$0xf]
    %v62 = vld [vmem:[%s1 + $0x4] sm:$0xf]
    %v63 = vld [vmem:[%s1 + $0x8] sm:$0xf]
    %v64 = vld [vmem:[%s1 + $0xc] sm:$0xf]
    %v73 = vunpack.c.l.b16 %v53
    %v74 = vunpack.c.l.b16 %v54
    %v75 = vunpack.c.l.b16 %v55
    %v76 = vunpack.c.l.b16 %v56
    %v77 = vunpack.c.l.b16 %v57
    %v78 = vunpack.c.l.b16 %v58
    %v79 = vunpack.c.l.b16 %v59
    %v80 = vunpack.c.l.b16 %v60
    %v81 = vpack.c.b16 %v74, %v73
    %v82 = vpack.c.b16 %v76, %v75
    %v83 = vpack.c.b16 %v78, %v77
    %v84 = vpack.c.b16 %v80, %v79
    %v89 = vunpack.c.l.b16 %v61
    %v90 = vunpack.c.l.b16 %v62
    %v91 = vunpack.c.l.b16 %v63
    %v92 = vunpack.c.l.b16 %v64
    %v93 = vpack.c.b16 %v90, %v89
    %v94 = vpack.c.b16 %v92, %v91
    %vm97 = vcmask 261120
    %v99 = vsel %vm97, %v81, 0
    %v102 = vsel %vm97, %v82, 0
    %v105 = vsel %vm97, %v83, 0
    %v108 = vsel %vm97, %v84, 0
    %110 = vmatpush.bf16.msra.mxu0 0
    %111 = vmatpush.bf16.msra.mxu0 0
    %112 = vmatpush.bf16.msra.mxu0 0
    %113 = vmatpush.bf16.msra.mxu0 0
    %114 = vmatpush.bf16.msra.mxu0 0
    %115 = vmatpush.bf16.msra.mxu0 0
    %116 = vmatpush.bf16.msra.mxu0 %v94
    %117 = vmatpush.bf16.msra.mxu0 %v93
    %118 = vmatmul.bf16.gmra.mxu0 %v99
    %v119 = vpop.f32.mrf.mxu0
    %v120 = vadd.f32 0.0, %v119
    %v121 = vpop.f32.mrf.mxu0
    %v122 = vadd.f32 0.0, %v121
    %123 = vmatmul.bf16.gmra.mxu0 %v102
    %v124 = vpop.f32.mrf.mxu0
    %v125 = vadd.f32 0.0, %v124
    %v126 = vpop.f32.mrf.mxu0
    %v127 = vadd.f32 0.0, %v126
    %128 = vmatmul.bf16.gmra.mxu0 %v105
    %v129 = vpop.f32.mrf.mxu0
    %v130 = vadd.f32 0.0, %v129
    %v131 = vpop.f32.mrf.mxu0
    %v132 = vadd.f32 0.0, %v131
    %133 = vmatmul.bf16.gmra.mxu0 %v108
    %v134 = vpop.f32.mrf.mxu0
    %v135 = vadd.f32 0.0, %v134
    %v136 = vpop.f32.mrf.mxu0
    %v137 = vadd.f32 0.0, %v136
    %138 = vdwg.mxu0
    %v139 = vadd.f32 %v45, %v120
    %v140 = vadd.f32 %v46, %v122
    %v141 = vadd.f32 %v47, %v125
    %v142 = vadd.f32 %v48, %v127
    %v143 = vadd.f32 %v49, %v130
    %v144 = vadd.f32 %v50, %v132
    %v145 = vadd.f32 %v51, %v135
    %v146 = vadd.f32 %v52, %v137
    %147 = vst.msk [vmem:[#allocation2] sm:$0xff] %vm97, %v139
    %148 = vst.msk [vmem:[#allocation2 + $0x8] sm:$0xff] %vm97, %v140
    %149 = vst.msk [vmem:[#allocation2 + $0x10] sm:$0xff] %vm97, %v141
    %150 = vst.msk [vmem:[#allocation2 + $0x18] sm:$0xff] %vm97, %v142
    %151 = vst.msk [vmem:[#allocation2 + $0x20] sm:$0xff] %vm97, %v143
    %152 = vst.msk [vmem:[#allocation2 + $0x28] sm:$0xff] %vm97, %v144
    %153 = vst.msk [vmem:[#allocation2 + $0x30] sm:$0xff] %vm97, %v145
    %154 = vst.msk [vmem:[#allocation2 + $0x38] sm:$0xff] %vm97, %v146
    // Predicated region
    $region26: #{transformer_forward.29} parent=1 // pred_check
      %p155 = pneg %p32
    $region27: #{transformer_forward.29} parent=1 // pred_check_branch
      %157 = sbr.rel (%p155) target = $region29
    $region28: #{transformer_forward.29} parent=1 // pred_region
      %v158 = vld [vmem:[#allocation2] sm:$0xff]
      %v159 = vld [vmem:[#allocation2 + $0x8] sm:$0xff]
      %v160 = vld [vmem:[#allocation2 + $0x10] sm:$0xff]
      %v161 = vld [vmem:[#allocation2 + $0x18] sm:$0xff]
      %v162 = vld [vmem:[#allocation2 + $0x20] sm:$0xff]
      %v163 = vld [vmem:[#allocation2 + $0x28] sm:$0xff]
      %v164 = vld [vmem:[#allocation2 + $0x30] sm:$0xff]
      %v165 = vld [vmem:[#allocation2 + $0x38] sm:$0xff]
      %v166 = vld [vmem:[#allocation3] sm:$0x1]
      %v168 = vperm.slane %v166, 0
      %v170 = vadd.f32 %v158, %v168
      %v171 = vadd.f32 %v159, %v168
      %v172 = vadd.f32 %v160, %v168
      %v173 = vadd.f32 %v161, %v168
      %v174 = vadd.f32 %v162, %v168
      %v175 = vadd.f32 %v163, %v168
      %v176 = vadd.f32 %v164, %v168
      %v177 = vadd.f32 %v165, %v168
      %v178 = vld [vmem:[%s3] sm:$0xff]
      %v179 = vld [vmem:[%s3 + $0x8] sm:$0xff]
      %v180 = vld [vmem:[%s3 + $0x10] sm:$0xff]
      %v181 = vld [vmem:[%s3 + $0x18] sm:$0xff]
      %v182 = vld [vmem:[%s3 + $0x20] sm:$0xff]
      %v183 = vld [vmem:[%s3 + $0x28] sm:$0xff]
      %v184 = vld [vmem:[%s3 + $0x30] sm:$0xff]
      %v185 = vld [vmem:[%s3 + $0x38] sm:$0xff]
      %v186 = vadd.f32 %v170, %v178
      %v187 = vadd.f32 %v171, %v179
      %v188 = vadd.f32 %v172, %v180
      %v189 = vadd.f32 %v173, %v181
      %v190 = vadd.f32 %v174, %v182
      %v191 = vadd.f32 %v175, %v183
      %v192 = vadd.f32 %v176, %v184
      %v193 = vadd.f32 %v177, %v185
      %194 = vst.msk [vmem:[%s4] sm:$0xff] %vm97, %v186
      %195 = vst.msk [vmem:[%s4 + $0x8] sm:$0xff] %vm97, %v187
      %196 = vst.msk [vmem:[%s4 + $0x10] sm:$0xff] %vm97, %v188
      %197 = vst.msk [vmem:[%s4 + $0x18] sm:$0xff] %vm97, %v189
      %198 = vst.msk [vmem:[%s4 + $0x20] sm:$0xff] %vm97, %v190
      %199 = vst.msk [vmem:[%s4 + $0x28] sm:$0xff] %vm97, %v191
      %200 = vst.msk [vmem:[%s4 + $0x30] sm:$0xff] %vm97, %v192
      %201 = vst.msk [vmem:[%s4 + $0x38] sm:$0xff] %vm97, %v193
    $region29: #{transformer_forward.29} parent=1 // pred_fallthru
      _
    // Predicated region
    $region30: #{transformer_forward.29} parent=1 // pred_check
      _
    $region31: #{transformer_forward.29} parent=1 // pred_check_branch
      %203 = sbr.rel (0) target = $region33
    $region32: #{transformer_forward.29} parent=1 // pred_region
      _
    $region33: #{transformer_forward.29} parent=1 // pred_fallthru
      _
    // Predicated region
    $region34: #{transformer_forward.29} parent=1 // pred_check
      _
    $region35: #{transformer_forward.29} parent=1 // pred_check_branch
      %205 = sbr.rel (0) target = $region37
    $region36: #{transformer_forward.29} parent=1 // pred_region
      _
    $region37: #{transformer_forward.29} parent=1 // pred_fallthru
      _
    %206 = vsyncpa [#allocation4], 1

// kernel: transformer_forward.30
$region0: #{transformer_forward.30}
  #allocation0 [shape = 'u32[]', space=smem, size = 0x4, offset = 0x4, fixed_abs, tag = 'smem constant byte address 0x4 - core index']
  #allocation1 [shape = 'u32[72,128]{1,0:T(1,128)}', space=vmem, size = 0x9000, scoped, tag = 'internal scratch']
  #allocation2 [shape = 'bf16[64,32]{1,0:T(8,128)(2,1)}', space=vmem, size = 0x4000, scoped, tag = 'scratch operand']
  %s0 = inlined_call_operand.vmem [shape: f32[64,32], index: 0, kind: input, shape index: {}]
  %s1 = inlined_call_operand.vmem [shape: f32[1,32], index: 1, kind: input, shape index: {}]
  %s2 = inlined_call_operand.vmem [shape: f32[1,32], index: 2, kind: input, shape index: {}]
  %s3 = inlined_call_operand.vmem [shape: bf16[32,128], index: 3, kind: input, shape index: {}]
  %s4 = inlined_call_operand.vmem [shape: f32[1,128], index: 4, kind: input, shape index: {}]
  %s5 = inlined_call_operand.vmem [shape: bf16[64,128], index: 5, kind: output, shape index: {}]
  %s6 = sld [smem:[#allocation0]]
  $region34: #{transformer_forward.30} parent=0
    _
  %s8 = ssub.s32 1, %s6
  %s9 = scalar_select 0, %s8, %s6
  // Predicated region
  $region2: #{transformer_forward.30} parent=0 // pred_check
    _
  $region3: #{transformer_forward.30} parent=0 // pred_check_branch
    %11 = sbr.rel (0) target = $region5
  $region4: #{transformer_forward.30} parent=0 // pred_region
    _
  $region5: #{transformer_forward.30} parent=0 // pred_fallthru
    _
  // Predicated region
  $region6: #{transformer_forward.30} parent=0 // pred_check
    _
  $region7: #{transformer_forward.30} parent=0 // pred_check_branch
    %13 = sbr.rel (0) target = $region9
  $region8: #{transformer_forward.30} parent=0 // pred_region
    _
  $region9: #{transformer_forward.30} parent=0 // pred_fallthru
    _
  // Predicated region
  $region10: #{transformer_forward.30} parent=0 // pred_check
    _
  $region11: #{transformer_forward.30} parent=0 // pred_check_branch
    %15 = sbr.rel (0) target = $region13
  $region12: #{transformer_forward.30} parent=0 // pred_region
    _
  $region13: #{transformer_forward.30} parent=0 // pred_fallthru
    _
  // Predicated region
  $region14: #{transformer_forward.30} parent=0 // pred_check
    _
  $region15: #{transformer_forward.30} parent=0 // pred_check_branch
    %17 = sbr.rel (0) target = $region17
  $region16: #{transformer_forward.30} parent=0 // pred_region
    _
  $region17: #{transformer_forward.30} parent=0 // pred_fallthru
    _
  // Predicated region
  $region18: #{transformer_forward.30} parent=0 // pred_check
    _
  $region19: #{transformer_forward.30} parent=0 // pred_check_branch
    %19 = sbr.rel (0) target = $region21
  $region20: #{transformer_forward.30} parent=0 // pred_region
    _
  $region21: #{transformer_forward.30} parent=0 // pred_fallthru
    _
  %p21 = scmp.eq.s32.totalorder 0, 0
  // Predicated region
  $region22: #{transformer_forward.30} parent=0 // pred_check
    %p22 = pneg %p21
  $region23: #{transformer_forward.30} parent=0 // pred_check_branch
    %24 = sbr.rel (%p22) target = $region25
  $region24: #{transformer_forward.30} parent=0 // pred_region
    %v25 = vld [vmem:[%s0] sm:$0xff]
    %v26 = vld [vmem:[%s0 + $0x8] sm:$0xff]
    %v27 = vld [vmem:[%s0 + $0x10] sm:$0xff]
    %v28 = vld [vmem:[%s0 + $0x18] sm:$0xff]
    %v29 = vld [vmem:[%s0 + $0x20] sm:$0xff]
    %v30 = vld [vmem:[%s0 + $0x28] sm:$0xff]
    %v31 = vld [vmem:[%s0 + $0x30] sm:$0xff]
    %v32 = vld [vmem:[%s0 + $0x38] sm:$0xff]
    %vm33 = vcmask 261120
    %v34 = vsel %vm33, %v25, 0.0
    %35 = vadd.xlane.f32.xlu0 %v34
    %v36 = vpop.xlane.xlu0 %35
    %v37 = vsel %vm33, %v26, 0.0
    %38 = vadd.xlane.f32.xlu0 %v37
    %v39 = vpop.xlane.xlu0 %38
    %v40 = vsel %vm33, %v27, 0.0
    %41 = vadd.xlane.f32.xlu0 %v40
    %v42 = vpop.xlane.xlu0 %41
    %v43 = vsel %vm33, %v28, 0.0
    %44 = vadd.xlane.f32.xlu0 %v43
    %v45 = vpop.xlane.xlu0 %44
    %v46 = vsel %vm33, %v29, 0.0
    %47 = vadd.xlane.f32.xlu0 %v46
    %v48 = vpop.xlane.xlu0 %47
    %v49 = vsel %vm33, %v30, 0.0
    %50 = vadd.xlane.f32.xlu0 %v49
    %v51 = vpop.xlane.xlu0 %50
    %v52 = vsel %vm33, %v31, 0.0
    %53 = vadd.xlane.f32.xlu0 %v52
    %v54 = vpop.xlane.xlu0 %53
    %v55 = vsel %vm33, %v32, 0.0
    %56 = vadd.xlane.f32.xlu0 %v55
    %v57 = vpop.xlane.xlu0 %56
    %v58 = vrcp.pop 32.0
    %v59 = vmul.f32 32.0, %v58
    %v60 = vsub.f32 1.0, %v59
    %v61 = vmul.f32 %v58, %v60
    %v62 = vadd.f32 %v58, %v61
    %vm63 = vweird.f32 %v58
    %v64 = vsel %vm63, %v58, %v62
    %v65 = vmul.f32 %v36, %v64
    %v66 = vmul.f32 %v39, %v64
    %v67 = vmul.f32 %v42, %v64
    %v68 = vmul.f32 %v45, %v64
    %v69 = vmul.f32 %v48, %v64
    %v70 = vmul.f32 %v51, %v64
    %v71 = vmul.f32 %v54, %v64
    %v72 = vmul.f32 %v57, %v64
    %v73 = vsub.f32 %v25, %v65
    %v74 = vsub.f32 %v26, %v66
    %v75 = vsub.f32 %v27, %v67
    %v76 = vsub.f32 %v28, %v68
    %v77 = vsub.f32 %v29, %v69
    %v78 = vsub.f32 %v30, %v70
    %v79 = vsub.f32 %v31, %v71
    %v80 = vsub.f32 %v32, %v72
    %v81 = vmul.f32 %v73, %v73
    %v82 = vmul.f32 %v74, %v74
    %v83 = vmul.f32 %v75, %v75
    %v84 = vmul.f32 %v76, %v76
    %v85 = vmul.f32 %v77, %v77
    %v86 = vmul.f32 %v78, %v78
    %v87 = vmul.f32 %v79, %v79
    %v88 = vmul.f32 %v80, %v80
    %v89 = vsel %vm33, %v81, 0.0
    %90 = vadd.xlane.f32.xlu0 %v89
    %v91 = vpop.xlane.xlu0 %90
    %v92 = vsel %vm33, %v82, 0.0
    %93 = vadd.xlane.f32.xlu0 %v92
    %v94 = vpop.xlane.xlu0 %93
    %v95 = vsel %vm33, %v83, 0.0
    %96 = vadd.xlane.f32.xlu0 %v95
    %v97 = vpop.xlane.xlu0 %96
    %v98 = vsel %vm33, %v84, 0.0
    %99 = vadd.xlane.f32.xlu0 %v98
    %v100 = vpop.xlane.xlu0 %99
    %v101 = vsel %vm33, %v85, 0.0
    %102 = vadd.xlane.f32.xlu0 %v101
    %v103 = vpop.xlane.xlu0 %102
    %v104 = vsel %vm33, %v86, 0.0
    %105 = vadd.xlane.f32.xlu0 %v104
    %v106 = vpop.xlane.xlu0 %105
    %v107 = vsel %vm33, %v87, 0.0
    %108 = vadd.xlane.f32.xlu0 %v107
    %v109 = vpop.xlane.xlu0 %108
    %v110 = vsel %vm33, %v88, 0.0
    %111 = vadd.xlane.f32.xlu0 %v110
    %v112 = vpop.xlane.xlu0 %111
    %v113 = vmul.f32 %v91, %v64
    %v114 = vmul.f32 %v94, %v64
    %v115 = vmul.f32 %v97, %v64
    %v116 = vmul.f32 %v100, %v64
    %v117 = vmul.f32 %v103, %v64
    %v118 = vmul.f32 %v106, %v64
    %v119 = vmul.f32 %v109, %v64
    %v120 = vmul.f32 %v112, %v64
    %v121 = vadd.f32 %v113, 1e-05
    %v122 = vadd.f32 %v114, 1e-05
    %v123 = vadd.f32 %v115, 1e-05
    %v124 = vadd.f32 %v116, 1e-05
    %v125 = vadd.f32 %v117, 1e-05
    %v126 = vadd.f32 %v118, 1e-05
    %v127 = vadd.f32 %v119, 1e-05
    %v128 = vadd.f32 %v120, 1e-05
    %v129 = vrsqrt.pop %v121
    %v130 = vmul.f32 %v129, %v121
    %v131 = vmul.f32 %v130, %v129
    %v132 = vmul.f32 0.5, %v131
    %v133 = vsub.f32 1.5, %v132
    %v134 = vmul.f32 %v129, %v133
    %vm135 = vweird.f32 %v121
    %vm136 = vweird.f32 %v129
    %vm137 = vmor %vm135, %vm136
    %v138 = vsel %vm137, %v129, %v134
    %v139 = vrsqrt.pop %v122
    %v140 = vmul.f32 %v139, %v122
    %v141 = vmul.f32 %v140, %v139
    %v142 = vmul.f32 0.5, %v141
    %v143 = vsub.f32 1.5, %v142
    %v144 = vmul.f32 %v139, %v143
    %vm145 = vweird.f32 %v122
    %vm146 = vweird.f32 %v139
    %vm147 = vmor %vm145, %vm146
    %v148 = vsel %vm147, %v139, %v144
    %v149 = vrsqrt.pop %v123
    %v150 = vmul.f32 %v149, %v123
    %v151 = vmul.f32 %v150, %v149
    %v152 = vmul.f32 0.5, %v151
    %v153 = vsub.f32 1.5, %v152
    %v154 = vmul.f32 %v149, %v153
    %vm155 = vweird.f32 %v123
    %vm156 = vweird.f32 %v149
    %vm157 = vmor %vm155, %vm156
    %v158 = vsel %vm157, %v149, %v154
    %v159 = vrsqrt.pop %v124
    %v160 = vmul.f32 %v159, %v124
    %v161 = vmul.f32 %v160, %v159
    %v162 = vmul.f32 0.5, %v161
    %v163 = vsub.f32 1.5, %v162
    %v164 = vmul.f32 %v159, %v163
    %vm165 = vweird.f32 %v124
    %vm166 = vweird.f32 %v159
    %vm167 = vmor %vm165, %vm166
    %v168 = vsel %vm167, %v159, %v164
    %v169 = vrsqrt.pop %v125
    %v170 = vmul.f32 %v169, %v125
    %v171 = vmul.f32 %v170, %v169
    %v172 = vmul.f32 0.5, %v171
    %v173 = vsub.f32 1.5, %v172
    %v174 = vmul.f32 %v169, %v173
    %vm175 = vweird.f32 %v125
    %vm176 = vweird.f32 %v169
    %vm177 = vmor %vm175, %vm176
    %v178 = vsel %vm177, %v169, %v174
    %v179 = vrsqrt.pop %v126
    %v180 = vmul.f32 %v179, %v126
    %v181 = vmul.f32 %v180, %v179
    %v182 = vmul.f32 0.5, %v181
    %v183 = vsub.f32 1.5, %v182
    %v184 = vmul.f32 %v179, %v183
    %vm185 = vweird.f32 %v126
    %vm186 = vweird.f32 %v179
    %vm187 = vmor %vm185, %vm186
    %v188 = vsel %vm187, %v179, %v184
    %v189 = vrsqrt.pop %v127
    %v190 = vmul.f32 %v189, %v127
    %v191 = vmul.f32 %v190, %v189
    %v192 = vmul.f32 0.5, %v191
    %v193 = vsub.f32 1.5, %v192
    %v194 = vmul.f32 %v189, %v193
    %vm195 = vweird.f32 %v127
    %vm196 = vweird.f32 %v189
    %vm197 = vmor %vm195, %vm196
    %v198 = vsel %vm197, %v189, %v194
    %v199 = vrsqrt.pop %v128
    %v200 = vmul.f32 %v199, %v128
    %v201 = vmul.f32 %v200, %v199
    %v202 = vmul.f32 0.5, %v201
    %v203 = vsub.f32 1.5, %v202
    %v204 = vmul.f32 %v199, %v203
    %vm205 = vweird.f32 %v128
    %vm206 = vweird.f32 %v199
    %vm207 = vmor %vm205, %vm206
    %v208 = vsel %vm207, %v199, %v204
    %v209 = vmul.f32 %v73, %v138
    %v210 = vmul.f32 %v74, %v148
    %v211 = vmul.f32 %v75, %v158
    %v212 = vmul.f32 %v76, %v168
    %v213 = vmul.f32 %v77, %v178
    %v214 = vmul.f32 %v78, %v188
    %v215 = vmul.f32 %v79, %v198
    %v216 = vmul.f32 %v80, %v208
    %v217 = vld [vmem:[%s1] sm:$0x1]
    %v219 = vperm.slane %v217, 0
    %v221 = vmul.f32 %v209, %v219
    %v222 = vmul.f32 %v210, %v219
    %v223 = vmul.f32 %v211, %v219
    %v224 = vmul.f32 %v212, %v219
    %v225 = vmul.f32 %v213, %v219
    %v226 = vmul.f32 %v214, %v219
    %v227 = vmul.f32 %v215, %v219
    %v228 = vmul.f32 %v216, %v219
    %v229 = vld [vmem:[%s2] sm:$0x1]
    %v231 = vperm.slane %v229, 0
    %v233 = vadd.f32 %v221, %v231
    %v234 = vadd.f32 %v222, %v231
    %v235 = vadd.f32 %v223, %v231
    %v236 = vadd.f32 %v224, %v231
    %v237 = vadd.f32 %v225, %v231
    %v238 = vadd.f32 %v226, %v231
    %v239 = vadd.f32 %v227, %v231
    %v240 = vadd.f32 %v228, %v231
    %v241 = vpack.c.bf16 %v233, %v233
    %v242 = vpack.c.bf16 %v234, %v234
    %v243 = vpack.c.bf16 %v235, %v235
    %v244 = vpack.c.bf16 %v236, %v236
    %v245 = vpack.c.bf16 %v237, %v237
    %v246 = vpack.c.bf16 %v238, %v238
    %v247 = vpack.c.bf16 %v239, %v239
    %v248 = vpack.c.bf16 %v240, %v240
    %vm249 = vcmask 257024
    %250 = vst.msk [vmem:[#allocation2] sm:$0xf] %vm249, %v241
    %251 = vst.msk [vmem:[#allocation2 + $0x4] sm:$0xf] %vm249, %v242
    %252 = vst.msk [vmem:[#allocation2 + $0x8] sm:$0xf] %vm249, %v243
    %253 = vst.msk [vmem:[#allocation2 + $0xc] sm:$0xf] %vm249, %v244
    %254 = vst.msk [vmem:[#allocation2 + $0x10] sm:$0xf] %vm249, %v245
    %255 = vst.msk [vmem:[#allocation2 + $0x14] sm:$0xf] %vm249, %v246
    %256 = vst.msk [vmem:[#allocation2 + $0x18] sm:$0xf] %vm249, %v247
    %257 = vst.msk [vmem:[#allocation2 + $0x1c] sm:$0xf] %vm249, %v248
  $region25: #{transformer_forward.30} parent=0 // pred_fallthru
    _
  %v258 = vld [vmem:[#allocation2] sm:$0xf]
  %v259 = vld [vmem:[#allocation2 + $0x4] sm:$0xf]
  %v260 = vld [vmem:[#allocation2 + $0x8] sm:$0xf]
  %v261 = vld [vmem:[#allocation2 + $0xc] sm:$0xf]
  %v262 = vld [vmem:[#allocation2 + $0x10] sm:$0xf]
  %v263 = vld [vmem:[#allocation2 + $0x14] sm:$0xf]
  %v264 = vld [vmem:[#allocation2 + $0x18] sm:$0xf]
  %v265 = vld [vmem:[#allocation2 + $0x1c] sm:$0xf]
  %v266 = vld [vmem:[%s3] sm:$0xf]
  %v267 = vld [vmem:[%s3 + $0x4] sm:$0xf]
  %v268 = vld [vmem:[%s3 + $0x8] sm:$0xf]
  %v269 = vld [vmem:[%s3 + $0xc] sm:$0xf]
  %v270 = vld [vmem:[%s4] sm:$0x1]
  %v272 = vperm.slane %v270, 0
  %v282 = vunpack.c.l.b16 %v258
  %v283 = vunpack.c.l.b16 %v259
  %v284 = vunpack.c.l.b16 %v260
  %v285 = vunpack.c.l.b16 %v261
  %v286 = vunpack.c.l.b16 %v262
  %v287 = vunpack.c.l.b16 %v263
  %v288 = vunpack.c.l.b16 %v264
  %v289 = vunpack.c.l.b16 %v265
  %v290 = vpack.c.b16 %v283, %v282
  %v291 = vpack.c.b16 %v285, %v284
  %v292 = vpack.c.b16 %v287, %v286
  %v293 = vpack.c.b16 %v289, %v288
  %v298 = vunpack.c.l.b16 %v266
  %v299 = vunpack.c.l.b16 %v267
  %v300 = vunpack.c.l.b16 %v268
  %v301 = vunpack.c.l.b16 %v269
  %v302 = vpack.c.b16 %v299, %v298
  %v303 = vpack.c.b16 %v301, %v300
  %vm306 = vcmask 261120
  %v308 = vsel %vm306, %v290, 0
  %v311 = vsel %vm306, %v291, 0
  %v314 = vsel %vm306, %v292, 0
  %v317 = vsel %vm306, %v293, 0
  %319 = vmatpush.bf16.msra.mxu0 0
  %320 = vmatpush.bf16.msra.mxu0 0
  %321 = vmatpush.bf16.msra.mxu0 0
  %322 = vmatpush.bf16.msra.mxu0 0
  %323 = vmatpush.bf16.msra.mxu0 0
  %324 = vmatpush.bf16.msra.mxu0 0
  %325 = vmatpush.bf16.msra.mxu0 %v303
  %326 = vmatpush.bf16.msra.mxu0 %v302
  %327 = vmatmul.bf16.gmra.mxu0 %v308
  %v328 = vpop.f32.mrf.mxu0
  %v329 = vadd.f32 %v272, %v328
  %v330 = vpop.f32.mrf.mxu0
  %v331 = vadd.f32 %v272, %v330
  %332 = vmatmul.bf16.gmra.mxu0 %v311
  %v333 = vpop.f32.mrf.mxu0
  %v334 = vadd.f32 %v272, %v333
  %v335 = vpop.f32.mrf.mxu0
  %v336 = vadd.f32 %v272, %v335
  %337 = vmatmul.bf16.gmra.mxu0 %v314
  %v338 = vpop.f32.mrf.mxu0
  %v339 = vadd.f32 %v272, %v338
  %v340 = vpop.f32.mrf.mxu0
  %v341 = vadd.f32 %v272, %v340
  %342 = vmatmul.bf16.gmra.mxu0 %v317
  %v343 = vpop.f32.mrf.mxu0
  %v344 = vadd.f32 %v272, %v343
  %v345 = vpop.f32.mrf.mxu0
  %v346 = vadd.f32 %v272, %v345
  %347 = vdwg.mxu0
  %v348 = vmul.f32 %v329, 0.851
  %v349 = vmul.f32 %v331, 0.851
  %v350 = vmul.f32 %v334, 0.851
  %v351 = vmul.f32 %v336, 0.851
  %v352 = vmul.f32 %v339, 0.851
  %v353 = vmul.f32 %v341, 0.851
  %v354 = vmul.f32 %v344, 0.851
  %v355 = vmul.f32 %v346, 0.851
  %v356 = vtanh.pop %v348
  %v357 = vtanh.pop %v349
  %v358 = vtanh.pop %v350
  %v359 = vtanh.pop %v351
  %v360 = vtanh.pop %v352
  %v361 = vtanh.pop %v353
  %v362 = vtanh.pop %v354
  %v363 = vtanh.pop %v355
  %v364 = vadd.f32 %v356, 1.0
  %v365 = vadd.f32 %v357, 1.0
  %v366 = vadd.f32 %v358, 1.0
  %v367 = vadd.f32 %v359, 1.0
  %v368 = vadd.f32 %v360, 1.0
  %v369 = vadd.f32 %v361, 1.0
  %v370 = vadd.f32 %v362, 1.0
  %v371 = vadd.f32 %v363, 1.0
  %v372 = vmul.f32 %v364, 0.5
  %v373 = vmul.f32 %v365, 0.5
  %v374 = vmul.f32 %v366, 0.5
  %v375 = vmul.f32 %v367, 0.5
  %v376 = vmul.f32 %v368, 0.5
  %v377 = vmul.f32 %v369, 0.5
  %v378 = vmul.f32 %v370, 0.5
  %v379 = vmul.f32 %v371, 0.5
  %v380 = vmul.f32 %v329, %v372
  %v381 = vmul.f32 %v331, %v373
  %v382 = vmul.f32 %v334, %v374
  %v383 = vmul.f32 %v336, %v375
  %v384 = vmul.f32 %v339, %v376
  %v385 = vmul.f32 %v341, %v377
  %v386 = vmul.f32 %v344, %v378
  %v387 = vmul.f32 %v346, %v379
  %v388 = vpack.c.bf16 %v380, %v380
  %v389 = vpack.c.bf16 %v381, %v381
  %v390 = vpack.c.bf16 %v382, %v382
  %v391 = vpack.c.bf16 %v383, %v383
  %v392 = vpack.c.bf16 %v384, %v384
  %v393 = vpack.c.bf16 %v385, %v385
  %v394 = vpack.c.bf16 %v386, %v386
  %v395 = vpack.c.bf16 %v387, %v387
  %396 = vst [vmem:[%s5] sm:$0xf] %v388
  %397 = vst [vmem:[%s5 + $0x4] sm:$0xf] %v389
  %398 = vst [vmem:[%s5 + $0x8] sm:$0xf] %v390
  %399 = vst [vmem:[%s5 + $0xc] sm:$0xf] %v391
  %400 = vst [vmem:[%s5 + $0x10] sm:$0xf] %v392
  %401 = vst [vmem:[%s5 + $0x14] sm:$0xf] %v393
  %402 = vst [vmem:[%s5 + $0x18] sm:$0xf] %v394
  %403 = vst [vmem:[%s5 + $0x1c] sm:$0xf] %v395
  // Predicated region
  $region26: #{transformer_forward.30} parent=0 // pred_check
    _
  $region27: #{transformer_forward.30} parent=0 // pred_check_branch
    %405 = sbr.rel (0) target = $region29
  $region28: #{transformer_forward.30} parent=0 // pred_region
    _
  $region29: #{transformer_forward.30} parent=0 // pred_fallthru
    _
  // Predicated region
  $region30: #{transformer_forward.30} parent=0 // pred_check
    _
  $region31: #{transformer_forward.30} parent=0 // pred_check_branch
    %407 = sbr.rel (0) target = $region33
  $region32: #{transformer_forward.30} parent=0 // pred_region
    _
  $region33: #{transformer_forward.30} parent=0 // pred_fallthru
    _

</llo_original>
